<compile_context>
chip_gen: v6e
topology: v6e:2x2x1
jax: 0.10.0
libtpu: 0.0.40
codegen_flags: <defaults>
</compile_context>

<pallas_src>
import math
import jax
import jax.numpy as jnp
from jax import lax
from jax.experimental import pallas as pl
from jax.experimental.pallas import tpu as pltpu

# ------------------------------ config ---------------------------------------
# TODO(synk): AutoConfig/AutoModel pretrained checkpoint loading has no Pallas
# equivalent; a small deterministic T5 config is initialized in-script instead.
VOCAB = 64          # args.rulenum (vocab after resize_token_embeddings)
H = 32              # hidden size
NH = 2              # attention heads
DKV = 16            # per-head dim (NH*DKV == H)
DFF = 64            # T5 feed-forward inner dim
NUM_ENC_LAYERS = 1
NUM_DEC_LAYERS = 1
REL_BUCKETS = 32
REL_MAXDIST = 128
MASK_ID = 0         # args.mask_id (pad / ignore_index)
NEG = -1e9
# TODO(synk): HF T5 dropout layers are omitted (eval semantics / p = 0).


# ---------------- in-kernel helpers (traced inside the fused kernel) ----------

def _rmsnorm(x, w):
    # T5 LayerNorm: no mean subtraction, no bias.
    var = jnp.mean(x * x, axis=-1, keepdims=True)
    return x * lax.rsqrt(var + 1e-6) * w


def _mm(a, b):
    return jnp.dot(a, b, preferred_element_type=jnp.float32)


def _mha_into(att_ref, xq, xkv, wq, wk, wv, wo, pos, key_bias, B, Tq, Tk):
    """Multi-head attention on flat-2D activations with per-head weights.

    xq: (B*Tq, H), xkv: (B*Tk, H); wq/wk/wv: (NH, H, DKV); wo: (NH, DKV, H);
    pos: (NH, Tq, Tk) or None; key_bias: (B, 1, Tk) or (B, Tq, Tk).
    Writes the (B*Tq, H) attention output into the VMEM scratch `att_ref`
    at sublane-aligned per-batch row slices (no lane slicing, no concats).
    """
    qs = [_mm(xq, wq[hh]) for hh in range(NH)]     # NH x (B*Tq, DKV)
    ks = [_mm(xkv, wk[hh]) for hh in range(NH)]    # NH x (B*Tk, DKV)
    vs = [_mm(xkv, wv[hh]) for hh in range(NH)]
    for b in range(B):
        acc = jnp.zeros((Tq, H), jnp.float32)
        for hh in range(NH):
            qb = qs[hh][b * Tq:(b + 1) * Tq]
            kb = ks[hh][b * Tk:(b + 1) * Tk]
            vb = vs[hh][b * Tk:(b + 1) * Tk]
            s = lax.dot_general(qb, kb, (((1,), (1,)), ((), ())),
                                preferred_element_type=jnp.float32)   # (Tq, Tk)
            s = s + key_bias[b]
            if pos is not None:
                s = s + pos[hh]
            m = jnp.max(s, axis=-1, keepdims=True)
            p = jnp.exp(s - m)
            p = p * pl.reciprocal(jnp.sum(p, axis=-1, keepdims=True), approx=True)
            ctx = _mm(p, vb)                                          # (Tq, DKV)
            acc = acc + _mm(ctx, wo[hh])                              # (Tq, H)
        att_ref[b * Tq:(b + 1) * Tq, :] = acc


# ------------------------------ single fused kernel ----------------------------

def _fused_t5_kernel(
        # encoder
        xe_ref, pe_ref, ekb_ref,
        eln1_ref, ewq_ref, ewk_ref, ewv_ref, ewo_ref,
        eln2_ref, ewi_ref, ewf_ref, efln_ref,
        # decoder
        xd_ref, pd_ref, skb_ref, ckb_ref,
        dln1_ref, dwq1_ref, dwk1_ref, dwv1_ref, dwo1_ref,
        dln2_ref, dwq2_ref, dwk2_ref, dwv2_ref, dwo2_ref,
        dln3_ref, dwi_ref, dwf_ref, dfln_ref,
        # head
        cv_ref, ffwo_ref, ffwp_ref, ffb_ref, emb_ref, tgt_ref,
        # output
        loss_ref,
        # VMEM scratch (attention output accumulators)
        att_e_ref, att_d_ref):
    B = ekb_ref.shape[0]
    Ts = ekb_ref.shape[2]
    Td = skb_ref.shape[1]

    # ---------------- encoder stack (stays in VMEM / vregs) -------------------
    x = xe_ref[...]                      # (B*Ts, H)
    pos_e = pe_ref[...]
    kb_e = ekb_ref[...]
    for l in range(NUM_ENC_LAYERS):      # static unroll: tiny layer count
        h = _rmsnorm(x, eln1_ref[l])
        _mha_into(att_e_ref, h, h, ewq_ref[l], ewk_ref[l], ewv_ref[l],
                  ewo_ref[l], pos_e, kb_e, B, Ts, Ts)
        x = x + att_e_ref[...]
        h = _rmsnorm(x, eln2_ref[l])
        x = x + _mm(jnp.maximum(_mm(h, ewi_ref[l]), 0.0), ewf_ref[l])
    enc = _rmsnorm(x, efln_ref[...])     # (B*Ts, H) never leaves VMEM

    # ---------------- decoder stack -------------------------------------------
    x = xd_ref[...]                      # (B*Td, H)
    pos_d = pd_ref[...]
    skb = skb_ref[...]
    ckb = ckb_ref[...]
    for l in range(NUM_DEC_LAYERS):
        h = _rmsnorm(x, dln1_ref[l])
        _mha_into(att_d_ref, h, h, dwq1_ref[l], dwk1_ref[l], dwv1_ref[l],
                  dwo1_ref[l], pos_d, skb, B, Td, Td)
        x = x + att_d_ref[...]
        h = _rmsnorm(x, dln2_ref[l])
        _mha_into(att_d_ref, h, enc, dwq2_ref[l], dwk2_ref[l], dwv2_ref[l],
                  dwo2_ref[l], None, ckb, B, Td, Ts)
        x = x + att_d_ref[...]
        h = _rmsnorm(x, dln3_ref[l])
        x = x + _mm(jnp.maximum(_mm(h, dwi_ref[l]), 0.0), dwf_ref[l])
    dec = _rmsnorm(x, dfln_ref[...])     # (B*Td, H)

    # -------- head: scale -> coqview combine -> tied lm_head -> masked CE x2 --
    out = dec * (H ** -0.5)              # scale feeds BOTH branches (ref semantics)
    pooled = cv_ref[...]                 # (B*Td, H) mean-pooled coqview (glue)
    comb = jnp.maximum(
        _mm(out, ffwo_ref[...]) + _mm(pooled, ffwp_ref[...]) + ffb_ref[...], 0.0)
    emb = emb_ref[...]                   # (V, H) tied lm_head weight
    logits1 = lax.dot_general(out, emb, (((1,), (1,)), ((), ())),
                              preferred_element_type=jnp.float32)     # (N, V)
    logits2 = lax.dot_general(comb, emb, (((1,), (1,)), ((), ())),
                              preferred_element_type=jnp.float32)

    tgt = tgt_ref[...]                   # (N, 1) int32
    valid = (tgt != MASK_ID).astype(jnp.float32)
    # iota / one-hot / count hoisted and shared between both CE branches.
    onehot = (lax.broadcasted_iota(jnp.int32, logits1.shape, 1)
              == tgt).astype(jnp.float32)
    # guard 0/0 when every target is ignore_index (torch would produce NaN)
    cnt = jnp.maximum(jnp.sum(valid, axis=0, keepdims=True), 1.0)     # (1, 1)
    inv_cnt = 1.0 / cnt

    def ce_sum(logits):
        m = jnp.max(logits, axis=-1, keepdims=True)
        lse = jnp.log(jnp.sum(jnp.exp(logits - m), axis=-1, keepdims=True)) + m
        tl = jnp.sum(logits * onehot, axis=-1, keepdims=True)
        return jnp.sum(valid * (lse - tl), axis=0, keepdims=True)     # (1, 1)

    loss1 = ce_sum(logits1) * inv_cnt
    loss2 = ce_sum(logits2) * inv_cnt
    loss_ref[...] = jnp.concatenate([loss1, loss2], axis=-1)          # (1, 2)


def fused_t5_loss(x_enc, pos_enc, enc_kb, x_dec, pos_dec, self_kb, cross_kb,
                  cv_pooled, tgt, params):
    e, d = params['enc'], params['dec']
    args = (x_enc, pos_enc, enc_kb,
            e['ln1'], e['wq'], e['wk'], e['wv'], e['wo'],
            e['ln2'], e['wi'], e['wf'], params['enc_final_ln'],
            x_dec, pos_dec, self_kb, cross_kb,
            d['ln1'], d['wq1'], d['wk1'], d['wv1'], d['wo1'],
            d['ln2'], d['wq2'], d['wk2'], d['wv2'], d['wo2'],
            d['ln3'], d['wi'], d['wf'], params['dec_final_ln'],
            cv_pooled, params['ffw_out'], params['ffw_pool'], params['ff_b'],
            params['embed'], tgt)
    n_rows_e = x_enc.shape[0]
    n_rows_d = x_dec.shape[0]
    return pl.pallas_call(
        _fused_t5_kernel,
        out_shape=jax.ShapeDtypeStruct((1, 2), jnp.float32),
        in_specs=[pl.BlockSpec(memory_space=pltpu.MemorySpace.VMEM)
                  for _ in args],
        out_specs=pl.BlockSpec(memory_space=pltpu.MemorySpace.VMEM),
        scratch_shapes=[pltpu.VMEM((n_rows_e, H), jnp.float32),
                        pltpu.VMEM((n_rows_d, H), jnp.float32)],
        # v7x guard: keep the whole-problem-in-VMEM design within scoped VMEM.
        compiler_params=pltpu.CompilerParams(vmem_limit_bytes=32 * 1024 * 1024),
    )(*args)


# ------------------------------ T5 glue (plain JAX) ----------------------------

def _relative_position_bucket(rel_pos, bidirectional,
                              num_buckets=REL_BUCKETS, max_distance=REL_MAXDIST):
    ret = jnp.zeros_like(rel_pos)
    n = num_buckets
    if bidirectional:
        n = n // 2
        ret = ret + (rel_pos > 0).astype(jnp.int32) * n
        rel_pos = jnp.abs(rel_pos)
    else:
        rel_pos = -jnp.minimum(rel_pos, 0)
    max_exact = n // 2
    is_small = rel_pos < max_exact
    rel_pos_f = jnp.maximum(rel_pos, 1).astype(jnp.float32)
    large = max_exact + (jnp.log(rel_pos_f / max_exact)
                         / math.log(max_distance / max_exact)
                         * (n - max_exact)).astype(jnp.int32)
    large = jnp.minimum(large, n - 1)
    return ret + jnp.where(is_small, rel_pos, large)


def rel_pos_bias(rel_emb, Tq, Tk, bidirectional):
    ctx = jnp.arange(Tq, dtype=jnp.int32)[:, None]
    mem = jnp.arange(Tk, dtype=jnp.int32)[None, :]
    buckets = _relative_position_bucket(mem - ctx, bidirectional)
    vals = jnp.take(rel_emb, buckets, axis=0)     # (Tq, Tk, NH)
    return jnp.transpose(vals, (2, 0, 1))         # (NH, Tq, Tk)


def forward(params, inputnl, inputrule, inputcoqview):
    inputRes = inputrule[:, 1:]
    inputrule = inputrule[:, :-1]
    rulemask = inputrule != MASK_ID
    nlmask = inputnl != MASK_ID

    B, Ts = inputnl.shape
    Td = inputrule.shape[1]
    embed = params['embed']

    # TODO(synk): embedding gathers kept in plain JAX (jnp.take); a DMA-gather
    # kernel is overkill at these shapes.
    x_enc = jnp.take(embed, inputnl, axis=0).reshape(B * Ts, H)
    x_dec = jnp.take(embed, inputrule, axis=0).reshape(B * Td, H)
    pos_enc = rel_pos_bias(params['enc_rel'], Ts, Ts, bidirectional=True)   # (NH,Ts,Ts)
    pos_dec = rel_pos_bias(params['dec_rel'], Td, Td, bidirectional=False)  # (NH,Td,Td)
    enc_kb = ((1.0 - nlmask.astype(jnp.float32)) * NEG)[:, None, :]         # (B,1,Ts)
    causal = jnp.tril(jnp.ones((Td, Td), jnp.float32))
    self_kb = (1.0 - causal[None] * rulemask[:, None, :].astype(jnp.float32)) * NEG
    cross_kb = enc_kb                                                       # (B,1,Ts)
    # coqview embedding mean-pool done here (cuts kernel DMA bytes ~Lc x).
    cv_pooled = jnp.mean(jnp.take(embed, inputcoqview, axis=0),
                         axis=2).reshape(B * Td, H)
    tgt = inputRes.reshape(B * Td, 1).astype(jnp.int32)

    losses = fused_t5_loss(x_enc, pos_enc, enc_kb, x_dec, pos_dec, self_kb,
                           cross_kb, cv_pooled, tgt, params)
    loss1 = losses[0, 0]
    loss2 = losses[0, 1]
    loss = 0.5 * loss1 + 0.5 * loss2
    return loss, {'loss1': loss1, 'loss2': loss2,
                  'sigma1': params['sigma1'], 'sigma2': params['sigma2']}


# ------------------------------ params ----------------------------------------

def init_params(key):
    keys = iter(jax.random.split(key, 64))

    def nrm(shape, scale=0.02):
        return (scale * jax.random.normal(next(keys), shape)).astype(jnp.float32)

    Le, Ld = NUM_ENC_LAYERS, NUM_DEC_LAYERS
    # Attention weights stored pre-split per head:
    #   wq/wk/wv: (L, NH, H, DKV)  (== torch (H, H) reshaped head-major)
    #   wo:       (L, NH, DKV, H)
    enc = dict(ln1=jnp.ones((Le, 1, H), jnp.float32),
               wq=nrm((Le, NH, H, DKV)), wk=nrm((Le, NH, H, DKV)),
               wv=nrm((Le, NH, H, DKV)), wo=nrm((Le, NH, DKV, H)),
               ln2=jnp.ones((Le, 1, H), jnp.float32),
               wi=nrm((Le, H, DFF)), wf=nrm((Le, DFF, H)))
    dec = dict(ln1=jnp.ones((Ld, 1, H), jnp.float32),
               wq1=nrm((Ld, NH, H, DKV)), wk1=nrm((Ld, NH, H, DKV)),
               wv1=nrm((Ld, NH, H, DKV)), wo1=nrm((Ld, NH, DKV, H)),
               ln2=jnp.ones((Ld, 1, H), jnp.float32),
               wq2=nrm((Ld, NH, H, DKV)), wk2=nrm((Ld, NH, H, DKV)),
               wv2=nrm((Ld, NH, H, DKV)), wo2=nrm((Ld, NH, DKV, H)),
               ln3=jnp.ones((Ld, 1, H), jnp.float32),
               wi=nrm((Ld, H, DFF)), wf=nrm((Ld, DFF, H)))
    return dict(
        embed=nrm((VOCAB, H), 1.0),   # shared embed_tokens + tied lm_head
        enc_rel=nrm((REL_BUCKETS, NH)),
        dec_rel=nrm((REL_BUCKETS, NH)),
        enc=enc, enc_final_ln=jnp.ones((1, H), jnp.float32),
        dec=dec, dec_final_ln=jnp.ones((1, H), jnp.float32),
        # ff = nn.Linear(2H, H): weight.T split into the two H-wide halves.
        ffw_out=nrm((H, H)), ffw_pool=nrm((H, H)),
        ff_b=jnp.zeros((1, H), jnp.float32),
        sigma1=jnp.zeros((1,), jnp.float32), sigma2=jnp.zeros((1,), jnp.float32),
    )


# ------------------------------ main -------------------------------------------

if __name__ == "__main__":
    key = jax.random.PRNGKey(0)
    kp, k1, k2, k3 = jax.random.split(key, 4)
    params = init_params(kp)

    B, T_NL, T_RULE, L_COQ = 2, 16, 9, 4
    inputnl = jax.random.randint(k1, (B, T_NL), 1, VOCAB, dtype=jnp.int32)
    inputrule = jax.random.randint(k2, (B, T_RULE), 1, VOCAB, dtype=jnp.int32)
    inputcoqview = jax.random.randint(k3, (B, T_RULE - 1, L_COQ), 1, VOCAB,
                                      dtype=jnp.int32)
    # Add some pad (mask_id) tokens to exercise attention masks & ignore_index.
    inputnl = inputnl.at[:, -2:].set(MASK_ID)
    inputrule = inputrule.at[:, -2:].set(MASK_ID)

    fwd = jax.jit(forward)
    loss, aux = fwd(params, inputnl, inputrule, inputcoqview)
    jax.block_until_ready(loss)
    assert bool(jnp.isfinite(loss))
    print("KERNEL_OK")
</pallas_src>

<mosaic_0001>
module attributes {stable_mosaic.version = 11 : i64} {
  func.func @_fused_t5_kernel(%arg0: memref<32x32xf32, #tpu.memory_space<vmem>>, %arg1: memref<2x16x16xf32, #tpu.memory_space<vmem>>, %arg2: memref<2x1x16xf32, #tpu.memory_space<vmem>>, %arg3: memref<1x1x32xf32, #tpu.memory_space<vmem>>, %arg4: memref<1x2x32x16xf32, #tpu.memory_space<vmem>>, %arg5: memref<1x2x32x16xf32, #tpu.memory_space<vmem>>, %arg6: memref<1x2x32x16xf32, #tpu.memory_space<vmem>>, %arg7: memref<1x2x16x32xf32, #tpu.memory_space<vmem>>, %arg8: memref<1x1x32xf32, #tpu.memory_space<vmem>>, %arg9: memref<1x32x64xf32, #tpu.memory_space<vmem>>, %arg10: memref<1x64x32xf32, #tpu.memory_space<vmem>>, %arg11: memref<1x32xf32, #tpu.memory_space<vmem>>, %arg12: memref<16x32xf32, #tpu.memory_space<vmem>>, %arg13: memref<2x8x8xf32, #tpu.memory_space<vmem>>, %arg14: memref<2x8x8xf32, #tpu.memory_space<vmem>>, %arg15: memref<2x1x16xf32, #tpu.memory_space<vmem>>, %arg16: memref<1x1x32xf32, #tpu.memory_space<vmem>>, %arg17: memref<1x2x32x16xf32, #tpu.memory_space<vmem>>, %arg18: memref<1x2x32x16xf32, #tpu.memory_space<vmem>>, %arg19: memref<1x2x32x16xf32, #tpu.memory_space<vmem>>, %arg20: memref<1x2x16x32xf32, #tpu.memory_space<vmem>>, %arg21: memref<1x1x32xf32, #tpu.memory_space<vmem>>, %arg22: memref<1x2x32x16xf32, #tpu.memory_space<vmem>>, %arg23: memref<1x2x32x16xf32, #tpu.memory_space<vmem>>, %arg24: memref<1x2x32x16xf32, #tpu.memory_space<vmem>>, %arg25: memref<1x2x16x32xf32, #tpu.memory_space<vmem>>, %arg26: memref<1x1x32xf32, #tpu.memory_space<vmem>>, %arg27: memref<1x32x64xf32, #tpu.memory_space<vmem>>, %arg28: memref<1x64x32xf32, #tpu.memory_space<vmem>>, %arg29: memref<1x32xf32, #tpu.memory_space<vmem>>, %arg30: memref<16x32xf32, #tpu.memory_space<vmem>>, %arg31: memref<32x32xf32, #tpu.memory_space<vmem>>, %arg32: memref<32x32xf32, #tpu.memory_space<vmem>>, %arg33: memref<1x32xf32, #tpu.memory_space<vmem>>, %arg34: memref<64x32xf32, #tpu.memory_space<vmem>>, %arg35: memref<16x1xi32, #tpu.memory_space<vmem>>, %arg36: memref<1x2xf32, #tpu.memory_space<vmem>>, %arg37: memref<32x32xf32, #tpu.memory_space<vmem>>, %arg38: memref<16x32xf32, #tpu.memory_space<vmem>>) attributes {dimension_semantics = [], scalar_prefetch = 0 : i64, scratch_operands = 2 : i64, tpu.core_type = #tpu.core_type<tc>} {
    %c0 = arith.constant 0 : index
    %c0_0 = arith.constant 0 : index
    %0 = vector.load %arg0[%c0, %c0_0] : memref<32x32xf32, #tpu.memory_space<vmem>>, vector<32x32xf32>
    %c0_1 = arith.constant 0 : index
    %c0_2 = arith.constant 0 : index
    %c0_3 = arith.constant 0 : index
    %1 = vector.load %arg1[%c0_1, %c0_2, %c0_3] : memref<2x16x16xf32, #tpu.memory_space<vmem>>, vector<2x16x16xf32>
    %c0_4 = arith.constant 0 : index
    %c0_5 = arith.constant 0 : index
    %c0_6 = arith.constant 0 : index
    %2 = vector.load %arg2[%c0_4, %c0_5, %c0_6] : memref<2x1x16xf32, #tpu.memory_space<vmem>>, vector<2x1x16xf32>
    %c0_7 = arith.constant 0 : index
    %c0_8 = arith.constant 0 : index
    %c0_9 = arith.constant 0 : index
    %3 = vector.load %arg3[%c0_7, %c0_8, %c0_9] : memref<1x1x32xf32, #tpu.memory_space<vmem>>, vector<1x1x32xf32>
    %4 = vector.shape_cast %3 : vector<1x1x32xf32> to vector<1x32xf32>
    %5 = arith.mulf %0, %0 : vector<32x32xf32>
    %cst = arith.constant dense<0.000000e+00> : vector<32xf32>
    %6 = vector.multi_reduction <add>, %5, %cst [1] : vector<32x32xf32> to vector<32xf32>
    %7 = vector.shape_cast %6 : vector<32xf32> to vector<32x1xf32>
    %cst_10 = arith.constant 3.200000e+01 : f32
    %8 = vector.broadcast %cst_10 : f32 to vector<32x1xf32>
    %9 = arith.divf %7, %8 : vector<32x1xf32>
    %cst_11 = arith.constant 9.99999997E-7 : f32
    %10 = vector.broadcast %cst_11 : f32 to vector<32x1xf32>
    %11 = arith.addf %9, %10 : vector<32x1xf32>
    %12 = math.rsqrt %11 : vector<32x1xf32>
    %13 = vector.broadcast %12 : vector<32x1xf32> to vector<32x32xf32>
    %14 = arith.mulf %0, %13 : vector<32x32xf32>
    %15 = vector.broadcast %4 : vector<1x32xf32> to vector<32x32xf32>
    %16 = arith.mulf %14, %15 : vector<32x32xf32>
    %c0_12 = arith.constant 0 : index
    %c0_13 = arith.constant 0 : index
    %c0_14 = arith.constant 0 : index
    %c0_15 = arith.constant 0 : index
    %17 = vector.load %arg4[%c0_12, %c0_13, %c0_14, %c0_15] : memref<1x2x32x16xf32, #tpu.memory_space<vmem>>, vector<1x2x32x16xf32>
    %18 = vector.shape_cast %17 : vector<1x2x32x16xf32> to vector<2x32x16xf32>
    %c0_16 = arith.constant 0 : index
    %c0_17 = arith.constant 0 : index
    %c0_18 = arith.constant 0 : index
    %c0_19 = arith.constant 0 : index
    %19 = vector.load %arg5[%c0_16, %c0_17, %c0_18, %c0_19] : memref<1x2x32x16xf32, #tpu.memory_space<vmem>>, vector<1x2x32x16xf32>
    %20 = vector.shape_cast %19 : vector<1x2x32x16xf32> to vector<2x32x16xf32>
    %c0_20 = arith.constant 0 : index
    %c0_21 = arith.constant 0 : index
    %c0_22 = arith.constant 0 : index
    %c0_23 = arith.constant 0 : index
    %21 = vector.load %arg6[%c0_20, %c0_21, %c0_22, %c0_23] : memref<1x2x32x16xf32, #tpu.memory_space<vmem>>, vector<1x2x32x16xf32>
    %22 = vector.shape_cast %21 : vector<1x2x32x16xf32> to vector<2x32x16xf32>
    %c0_24 = arith.constant 0 : index
    %c0_25 = arith.constant 0 : index
    %c0_26 = arith.constant 0 : index
    %c0_27 = arith.constant 0 : index
    %23 = vector.load %arg7[%c0_24, %c0_25, %c0_26, %c0_27] : memref<1x2x16x32xf32, #tpu.memory_space<vmem>>, vector<1x2x16x32xf32>
    %24 = vector.shape_cast %23 : vector<1x2x16x32xf32> to vector<2x16x32xf32>
    %25 = vector.extract_strided_slice %18 {offsets = [0, 0, 0], sizes = [1, 32, 16], strides = [1, 1, 1]} : vector<2x32x16xf32> to vector<1x32x16xf32>
    %26 = vector.shape_cast %25 : vector<1x32x16xf32> to vector<32x16xf32>
    %cst_28 = arith.constant dense<0.000000e+00> : vector<32x16xf32>
    %27 = tpu.matmul %16, %26, %cst_28 {dimension_numbers = #tpu.dot_dimension_numbers<[1], [0], [0], [1], [0, 0, 1, 1], [], []>} : vector<32x32xf32>, vector<32x16xf32>, vector<32x16xf32> -> vector<32x16xf32>
    %28 = vector.extract_strided_slice %18 {offsets = [1, 0, 0], sizes = [1, 32, 16], strides = [1, 1, 1]} : vector<2x32x16xf32> to vector<1x32x16xf32>
    %29 = vector.shape_cast %28 : vector<1x32x16xf32> to vector<32x16xf32>
    %cst_29 = arith.constant dense<0.000000e+00> : vector<32x16xf32>
    %30 = tpu.matmul %16, %29, %cst_29 {dimension_numbers = #tpu.dot_dimension_numbers<[1], [0], [0], [1], [0, 0, 1, 1], [], []>} : vector<32x32xf32>, vector<32x16xf32>, vector<32x16xf32> -> vector<32x16xf32>
    %31 = vector.extract_strided_slice %20 {offsets = [0, 0, 0], sizes = [1, 32, 16], strides = [1, 1, 1]} : vector<2x32x16xf32> to vector<1x32x16xf32>
    %32 = vector.shape_cast %31 : vector<1x32x16xf32> to vector<32x16xf32>
    %cst_30 = arith.constant dense<0.000000e+00> : vector<32x16xf32>
    %33 = tpu.matmul %16, %32, %cst_30 {dimension_numbers = #tpu.dot_dimension_numbers<[1], [0], [0], [1], [0, 0, 1, 1], [], []>} : vector<32x32xf32>, vector<32x16xf32>, vector<32x16xf32> -> vector<32x16xf32>
    %34 = vector.extract_strided_slice %20 {offsets = [1, 0, 0], sizes = [1, 32, 16], strides = [1, 1, 1]} : vector<2x32x16xf32> to vector<1x32x16xf32>
    %35 = vector.shape_cast %34 : vector<1x32x16xf32> to vector<32x16xf32>
    %cst_31 = arith.constant dense<0.000000e+00> : vector<32x16xf32>
    %36 = tpu.matmul %16, %35, %cst_31 {dimension_numbers = #tpu.dot_dimension_numbers<[1], [0], [0], [1], [0, 0, 1, 1], [], []>} : vector<32x32xf32>, vector<32x16xf32>, vector<32x16xf32> -> vector<32x16xf32>
    %37 = vector.extract_strided_slice %22 {offsets = [0, 0, 0], sizes = [1, 32, 16], strides = [1, 1, 1]} : vector<2x32x16xf32> to vector<1x32x16xf32>
    %38 = vector.shape_cast %37 : vector<1x32x16xf32> to vector<32x16xf32>
    %cst_32 = arith.constant dense<0.000000e+00> : vector<32x16xf32>
    %39 = tpu.matmul %16, %38, %cst_32 {dimension_numbers = #tpu.dot_dimension_numbers<[1], [0], [0], [1], [0, 0, 1, 1], [], []>} : vector<32x32xf32>, vector<32x16xf32>, vector<32x16xf32> -> vector<32x16xf32>
    %40 = vector.extract_strided_slice %22 {offsets = [1, 0, 0], sizes = [1, 32, 16], strides = [1, 1, 1]} : vector<2x32x16xf32> to vector<1x32x16xf32>
    %41 = vector.shape_cast %40 : vector<1x32x16xf32> to vector<32x16xf32>
    %cst_33 = arith.constant dense<0.000000e+00> : vector<32x16xf32>
    %42 = tpu.matmul %16, %41, %cst_33 {dimension_numbers = #tpu.dot_dimension_numbers<[1], [0], [0], [1], [0, 0, 1, 1], [], []>} : vector<32x32xf32>, vector<32x16xf32>, vector<32x16xf32> -> vector<32x16xf32>
    %cst_34 = arith.constant 0.000000e+00 : f32
    %43 = vector.broadcast %cst_34 : f32 to vector<16x32xf32>
    %44 = vector.extract_strided_slice %27 {offsets = [0, 0], sizes = [16, 16], strides = [1, 1]} : vector<32x16xf32> to vector<16x16xf32>
    %45 = vector.extract_strided_slice %33 {offsets = [0, 0], sizes = [16, 16], strides = [1, 1]} : vector<32x16xf32> to vector<16x16xf32>
    %46 = vector.extract_strided_slice %39 {offsets = [0, 0], sizes = [16, 16], strides = [1, 1]} : vector<32x16xf32> to vector<16x16xf32>
    %cst_35 = arith.constant dense<0.000000e+00> : vector<16x16xf32>
    %47 = tpu.matmul %44, %45, %cst_35 {dimension_numbers = #tpu.dot_dimension_numbers<[1], [1], [0], [0], [0, 0, 1, 0], [], []>} : vector<16x16xf32>, vector<16x16xf32>, vector<16x16xf32> -> vector<16x16xf32>
    %48 = vector.extract_strided_slice %2 {offsets = [0, 0, 0], sizes = [1, 1, 16], strides = [1, 1, 1]} : vector<2x1x16xf32> to vector<1x1x16xf32>
    %49 = vector.shape_cast %48 : vector<1x1x16xf32> to vector<1x16xf32>
    %50 = vector.broadcast %49 : vector<1x16xf32> to vector<16x16xf32>
    %51 = arith.addf %47, %50 : vector<16x16xf32>
    %52 = vector.extract_strided_slice %1 {offsets = [0, 0, 0], sizes = [1, 16, 16], strides = [1, 1, 1]} : vector<2x16x16xf32> to vector<1x16x16xf32>
    %53 = vector.shape_cast %52 : vector<1x16x16xf32> to vector<16x16xf32>
    %54 = arith.addf %51, %53 : vector<16x16xf32>
    %cst_36 = arith.constant dense<0xFF800000> : vector<16xf32>
    %55 = vector.multi_reduction <maximumf>, %54, %cst_36 [1] : vector<16x16xf32> to vector<16xf32>
    %56 = vector.shape_cast %55 : vector<16xf32> to vector<16x1xf32>
    %57 = vector.broadcast %56 : vector<16x1xf32> to vector<16x16xf32>
    %58 = arith.subf %54, %57 : vector<16x16xf32>
    %59 = math.exp %58 : vector<16x16xf32>
    %cst_37 = arith.constant dense<0.000000e+00> : vector<16xf32>
    %60 = vector.multi_reduction <add>, %59, %cst_37 [1] : vector<16x16xf32> to vector<16xf32>
    %61 = vector.shape_cast %60 : vector<16xf32> to vector<16x1xf32>
    %62 = tpu.reciprocal %61 {approx = true} : vector<16x1xf32> -> vector<16x1xf32>
    %63 = vector.broadcast %62 : vector<16x1xf32> to vector<16x16xf32>
    %64 = arith.mulf %59, %63 : vector<16x16xf32>
    %cst_38 = arith.constant dense<0.000000e+00> : vector<16x16xf32>
    %65 = tpu.matmul %64, %46, %cst_38 {dimension_numbers = #tpu.dot_dimension_numbers<[1], [0], [0], [1], [0, 0, 1, 1], [], []>} : vector<16x16xf32>, vector<16x16xf32>, vector<16x16xf32> -> vector<16x16xf32>
    %66 = vector.extract_strided_slice %24 {offsets = [0, 0, 0], sizes = [1, 16, 32], strides = [1, 1, 1]} : vector<2x16x32xf32> to vector<1x16x32xf32>
    %67 = vector.shape_cast %66 : vector<1x16x32xf32> to vector<16x32xf32>
    %cst_39 = arith.constant dense<0.000000e+00> : vector<16x32xf32>
    %68 = tpu.matmul %65, %67, %cst_39 {dimension_numbers = #tpu.dot_dimension_numbers<[1], [0], [0], [1], [0, 0, 1, 1], [], []>} : vector<16x16xf32>, vector<16x32xf32>, vector<16x32xf32> -> vector<16x32xf32>
    %69 = arith.addf %43, %68 : vector<16x32xf32>
    %70 = vector.extract_strided_slice %30 {offsets = [0, 0], sizes = [16, 16], strides = [1, 1]} : vector<32x16xf32> to vector<16x16xf32>
    %71 = vector.extract_strided_slice %36 {offsets = [0, 0], sizes = [16, 16], strides = [1, 1]} : vector<32x16xf32> to vector<16x16xf32>
    %72 = vector.extract_strided_slice %42 {offsets = [0, 0], sizes = [16, 16], strides = [1, 1]} : vector<32x16xf32> to vector<16x16xf32>
    %cst_40 = arith.constant dense<0.000000e+00> : vector<16x16xf32>
    %73 = tpu.matmul %70, %71, %cst_40 {dimension_numbers = #tpu.dot_dimension_numbers<[1], [1], [0], [0], [0, 0, 1, 0], [], []>} : vector<16x16xf32>, vector<16x16xf32>, vector<16x16xf32> -> vector<16x16xf32>
    %74 = vector.extract_strided_slice %2 {offsets = [0, 0, 0], sizes = [1, 1, 16], strides = [1, 1, 1]} : vector<2x1x16xf32> to vector<1x1x16xf32>
    %75 = vector.shape_cast %74 : vector<1x1x16xf32> to vector<1x16xf32>
    %76 = vector.broadcast %75 : vector<1x16xf32> to vector<16x16xf32>
    %77 = arith.addf %73, %76 : vector<16x16xf32>
    %78 = vector.extract_strided_slice %1 {offsets = [1, 0, 0], sizes = [1, 16, 16], strides = [1, 1, 1]} : vector<2x16x16xf32> to vector<1x16x16xf32>
    %79 = vector.shape_cast %78 : vector<1x16x16xf32> to vector<16x16xf32>
    %80 = arith.addf %77, %79 : vector<16x16xf32>
    %cst_41 = arith.constant dense<0xFF800000> : vector<16xf32>
    %81 = vector.multi_reduction <maximumf>, %80, %cst_41 [1] : vector<16x16xf32> to vector<16xf32>
    %82 = vector.shape_cast %81 : vector<16xf32> to vector<16x1xf32>
    %83 = vector.broadcast %82 : vector<16x1xf32> to vector<16x16xf32>
    %84 = arith.subf %80, %83 : vector<16x16xf32>
    %85 = math.exp %84 : vector<16x16xf32>
    %cst_42 = arith.constant dense<0.000000e+00> : vector<16xf32>
    %86 = vector.multi_reduction <add>, %85, %cst_42 [1] : vector<16x16xf32> to vector<16xf32>
    %87 = vector.shape_cast %86 : vector<16xf32> to vector<16x1xf32>
    %88 = tpu.reciprocal %87 {approx = true} : vector<16x1xf32> -> vector<16x1xf32>
    %89 = vector.broadcast %88 : vector<16x1xf32> to vector<16x16xf32>
    %90 = arith.mulf %85, %89 : vector<16x16xf32>
    %cst_43 = arith.constant dense<0.000000e+00> : vector<16x16xf32>
    %91 = tpu.matmul %90, %72, %cst_43 {dimension_numbers = #tpu.dot_dimension_numbers<[1], [0], [0], [1], [0, 0, 1, 1], [], []>} : vector<16x16xf32>, vector<16x16xf32>, vector<16x16xf32> -> vector<16x16xf32>
    %92 = vector.extract_strided_slice %24 {offsets = [1, 0, 0], sizes = [1, 16, 32], strides = [1, 1, 1]} : vector<2x16x32xf32> to vector<1x16x32xf32>
    %93 = vector.shape_cast %92 : vector<1x16x32xf32> to vector<16x32xf32>
    %cst_44 = arith.constant dense<0.000000e+00> : vector<16x32xf32>
    %94 = tpu.matmul %91, %93, %cst_44 {dimension_numbers = #tpu.dot_dimension_numbers<[1], [0], [0], [1], [0, 0, 1, 1], [], []>} : vector<16x16xf32>, vector<16x32xf32>, vector<16x32xf32> -> vector<16x32xf32>
    %95 = arith.addf %69, %94 : vector<16x32xf32>
    %c0_45 = arith.constant 0 : index
    %c0_46 = arith.constant 0 : index
    %96 = vector.load %arg37[%c0_45, %c0_46] : memref<32x32xf32, #tpu.memory_space<vmem>>, vector<16x32xf32>
    tpu.vector_store %arg37[%c0_45, %c0_46], %95 {strides = array<i32>} : memref<32x32xf32, #tpu.memory_space<vmem>>, vector<16x32xf32>,
    %cst_47 = arith.constant 0.000000e+00 : f32
    %97 = vector.broadcast %cst_47 : f32 to vector<16x32xf32>
    %98 = vector.extract_strided_slice %27 {offsets = [16, 0], sizes = [16, 16], strides = [1, 1]} : vector<32x16xf32> to vector<16x16xf32>
    %99 = vector.extract_strided_slice %33 {offsets = [16, 0], sizes = [16, 16], strides = [1, 1]} : vector<32x16xf32> to vector<16x16xf32>
    %100 = vector.extract_strided_slice %39 {offsets = [16, 0], sizes = [16, 16], strides = [1, 1]} : vector<32x16xf32> to vector<16x16xf32>
    %cst_48 = arith.constant dense<0.000000e+00> : vector<16x16xf32>
    %101 = tpu.matmul %98, %99, %cst_48 {dimension_numbers = #tpu.dot_dimension_numbers<[1], [1], [0], [0], [0, 0, 1, 0], [], []>} : vector<16x16xf32>, vector<16x16xf32>, vector<16x16xf32> -> vector<16x16xf32>
    %102 = vector.extract_strided_slice %2 {offsets = [1, 0, 0], sizes = [1, 1, 16], strides = [1, 1, 1]} : vector<2x1x16xf32> to vector<1x1x16xf32>
    %103 = vector.shape_cast %102 : vector<1x1x16xf32> to vector<1x16xf32>
    %104 = vector.broadcast %103 : vector<1x16xf32> to vector<16x16xf32>
    %105 = arith.addf %101, %104 : vector<16x16xf32>
    %106 = vector.extract_strided_slice %1 {offsets = [0, 0, 0], sizes = [1, 16, 16], strides = [1, 1, 1]} : vector<2x16x16xf32> to vector<1x16x16xf32>
    %107 = vector.shape_cast %106 : vector<1x16x16xf32> to vector<16x16xf32>
    %108 = arith.addf %105, %107 : vector<16x16xf32>
    %cst_49 = arith.constant dense<0xFF800000> : vector<16xf32>
    %109 = vector.multi_reduction <maximumf>, %108, %cst_49 [1] : vector<16x16xf32> to vector<16xf32>
    %110 = vector.shape_cast %109 : vector<16xf32> to vector<16x1xf32>
    %111 = vector.broadcast %110 : vector<16x1xf32> to vector<16x16xf32>
    %112 = arith.subf %108, %111 : vector<16x16xf32>
    %113 = math.exp %112 : vector<16x16xf32>
    %cst_50 = arith.constant dense<0.000000e+00> : vector<16xf32>
    %114 = vector.multi_reduction <add>, %113, %cst_50 [1] : vector<16x16xf32> to vector<16xf32>
    %115 = vector.shape_cast %114 : vector<16xf32> to vector<16x1xf32>
    %116 = tpu.reciprocal %115 {approx = true} : vector<16x1xf32> -> vector<16x1xf32>
    %117 = vector.broadcast %116 : vector<16x1xf32> to vector<16x16xf32>
    %118 = arith.mulf %113, %117 : vector<16x16xf32>
    %cst_51 = arith.constant dense<0.000000e+00> : vector<16x16xf32>
    %119 = tpu.matmul %118, %100, %cst_51 {dimension_numbers = #tpu.dot_dimension_numbers<[1], [0], [0], [1], [0, 0, 1, 1], [], []>} : vector<16x16xf32>, vector<16x16xf32>, vector<16x16xf32> -> vector<16x16xf32>
    %120 = vector.extract_strided_slice %24 {offsets = [0, 0, 0], sizes = [1, 16, 32], strides = [1, 1, 1]} : vector<2x16x32xf32> to vector<1x16x32xf32>
    %121 = vector.shape_cast %120 : vector<1x16x32xf32> to vector<16x32xf32>
    %cst_52 = arith.constant dense<0.000000e+00> : vector<16x32xf32>
    %122 = tpu.matmul %119, %121, %cst_52 {dimension_numbers = #tpu.dot_dimension_numbers<[1], [0], [0], [1], [0, 0, 1, 1], [], []>} : vector<16x16xf32>, vector<16x32xf32>, vector<16x32xf32> -> vector<16x32xf32>
    %123 = arith.addf %97, %122 : vector<16x32xf32>
    %124 = vector.extract_strided_slice %30 {offsets = [16, 0], sizes = [16, 16], strides = [1, 1]} : vector<32x16xf32> to vector<16x16xf32>
    %125 = vector.extract_strided_slice %36 {offsets = [16, 0], sizes = [16, 16], strides = [1, 1]} : vector<32x16xf32> to vector<16x16xf32>
    %126 = vector.extract_strided_slice %42 {offsets = [16, 0], sizes = [16, 16], strides = [1, 1]} : vector<32x16xf32> to vector<16x16xf32>
    %cst_53 = arith.constant dense<0.000000e+00> : vector<16x16xf32>
    %127 = tpu.matmul %124, %125, %cst_53 {dimension_numbers = #tpu.dot_dimension_numbers<[1], [1], [0], [0], [0, 0, 1, 0], [], []>} : vector<16x16xf32>, vector<16x16xf32>, vector<16x16xf32> -> vector<16x16xf32>
    %128 = vector.extract_strided_slice %2 {offsets = [1, 0, 0], sizes = [1, 1, 16], strides = [1, 1, 1]} : vector<2x1x16xf32> to vector<1x1x16xf32>
    %129 = vector.shape_cast %128 : vector<1x1x16xf32> to vector<1x16xf32>
    %130 = vector.broadcast %129 : vector<1x16xf32> to vector<16x16xf32>
    %131 = arith.addf %127, %130 : vector<16x16xf32>
    %132 = vector.extract_strided_slice %1 {offsets = [1, 0, 0], sizes = [1, 16, 16], strides = [1, 1, 1]} : vector<2x16x16xf32> to vector<1x16x16xf32>
    %133 = vector.shape_cast %132 : vector<1x16x16xf32> to vector<16x16xf32>
    %134 = arith.addf %131, %133 : vector<16x16xf32>
    %cst_54 = arith.constant dense<0xFF800000> : vector<16xf32>
    %135 = vector.multi_reduction <maximumf>, %134, %cst_54 [1] : vector<16x16xf32> to vector<16xf32>
    %136 = vector.shape_cast %135 : vector<16xf32> to vector<16x1xf32>
    %137 = vector.broadcast %136 : vector<16x1xf32> to vector<16x16xf32>
    %138 = arith.subf %134, %137 : vector<16x16xf32>
    %139 = math.exp %138 : vector<16x16xf32>
    %cst_55 = arith.constant dense<0.000000e+00> : vector<16xf32>
    %140 = vector.multi_reduction <add>, %139, %cst_55 [1] : vector<16x16xf32> to vector<16xf32>
    %141 = vector.shape_cast %140 : vector<16xf32> to vector<16x1xf32>
    %142 = tpu.reciprocal %141 {approx = true} : vector<16x1xf32> -> vector<16x1xf32>
    %143 = vector.broadcast %142 : vector<16x1xf32> to vector<16x16xf32>
    %144 = arith.mulf %139, %143 : vector<16x16xf32>
    %cst_56 = arith.constant dense<0.000000e+00> : vector<16x16xf32>
    %145 = tpu.matmul %144, %126, %cst_56 {dimension_numbers = #tpu.dot_dimension_numbers<[1], [0], [0], [1], [0, 0, 1, 1], [], []>} : vector<16x16xf32>, vector<16x16xf32>, vector<16x16xf32> -> vector<16x16xf32>
    %146 = vector.extract_strided_slice %24 {offsets = [1, 0, 0], sizes = [1, 16, 32], strides = [1, 1, 1]} : vector<2x16x32xf32> to vector<1x16x32xf32>
    %147 = vector.shape_cast %146 : vector<1x16x32xf32> to vector<16x32xf32>
    %cst_57 = arith.constant dense<0.000000e+00> : vector<16x32xf32>
    %148 = tpu.matmul %145, %147, %cst_57 {dimension_numbers = #tpu.dot_dimension_numbers<[1], [0], [0], [1], [0, 0, 1, 1], [], []>} : vector<16x16xf32>, vector<16x32xf32>, vector<16x32xf32> -> vector<16x32xf32>
    %149 = arith.addf %123, %148 : vector<16x32xf32>
    %c16 = arith.constant 16 : index
    %c0_58 = arith.constant 0 : index
    %150 = vector.load %arg37[%c16, %c0_58] : memref<32x32xf32, #tpu.memory_space<vmem>>, vector<16x32xf32>
    tpu.vector_store %arg37[%c16, %c0_58], %149 {strides = array<i32>} : memref<32x32xf32, #tpu.memory_space<vmem>>, vector<16x32xf32>,
    %c0_59 = arith.constant 0 : index
    %c0_60 = arith.constant 0 : index
    %151 = vector.load %arg37[%c0_59, %c0_60] : memref<32x32xf32, #tpu.memory_space<vmem>>, vector<32x32xf32>
    %152 = arith.addf %0, %151 : vector<32x32xf32>
    %c0_61 = arith.constant 0 : index
    %c0_62 = arith.constant 0 : index
    %c0_63 = arith.constant 0 : index
    %153 = vector.load %arg8[%c0_61, %c0_62, %c0_63] : memref<1x1x32xf32, #tpu.memory_space<vmem>>, vector<1x1x32xf32>
    %154 = vector.shape_cast %153 : vector<1x1x32xf32> to vector<1x32xf32>
    %155 = arith.mulf %152, %152 : vector<32x32xf32>
    %cst_64 = arith.constant dense<0.000000e+00> : vector<32xf32>
    %156 = vector.multi_reduction <add>, %155, %cst_64 [1] : vector<32x32xf32> to vector<32xf32>
    %157 = vector.shape_cast %156 : vector<32xf32> to vector<32x1xf32>
    %cst_65 = arith.constant 3.200000e+01 : f32
    %158 = vector.broadcast %cst_65 : f32 to vector<32x1xf32>
    %159 = arith.divf %157, %158 : vector<32x1xf32>
    %cst_66 = arith.constant 9.99999997E-7 : f32
    %160 = vector.broadcast %cst_66 : f32 to vector<32x1xf32>
    %161 = arith.addf %159, %160 : vector<32x1xf32>
    %162 = math.rsqrt %161 : vector<32x1xf32>
    %163 = vector.broadcast %162 : vector<32x1xf32> to vector<32x32xf32>
    %164 = arith.mulf %152, %163 : vector<32x32xf32>
    %165 = vector.broadcast %154 : vector<1x32xf32> to vector<32x32xf32>
    %166 = arith.mulf %164, %165 : vector<32x32xf32>
    %c0_67 = arith.constant 0 : index
    %c0_68 = arith.constant 0 : index
    %c0_69 = arith.constant 0 : index
    %167 = vector.load %arg9[%c0_67, %c0_68, %c0_69] : memref<1x32x64xf32, #tpu.memory_space<vmem>>, vector<1x32x64xf32>
    %168 = vector.shape_cast %167 : vector<1x32x64xf32> to vector<32x64xf32>
    %cst_70 = arith.constant dense<0.000000e+00> : vector<32x64xf32>
    %169 = tpu.matmul %166, %168, %cst_70 {dimension_numbers = #tpu.dot_dimension_numbers<[1], [0], [0], [1], [0, 0, 1, 1], [], []>} : vector<32x32xf32>, vector<32x64xf32>, vector<32x64xf32> -> vector<32x64xf32>
    %cst_71 = arith.constant 0.000000e+00 : f32
    %170 = vector.broadcast %cst_71 : f32 to vector<32x64xf32>
    %171 = arith.maximumf %169, %170 : vector<32x64xf32>
    %c0_72 = arith.constant 0 : index
    %c0_73 = arith.constant 0 : index
    %c0_74 = arith.constant 0 : index
    %172 = vector.load %arg10[%c0_72, %c0_73, %c0_74] : memref<1x64x32xf32, #tpu.memory_space<vmem>>, vector<1x64x32xf32>
    %173 = vector.shape_cast %172 : vector<1x64x32xf32> to vector<64x32xf32>
    %cst_75 = arith.constant dense<0.000000e+00> : vector<32x32xf32>
    %174 = tpu.matmul %171, %173, %cst_75 {dimension_numbers = #tpu.dot_dimension_numbers<[1], [0], [0], [1], [0, 0, 1, 1], [], []>} : vector<32x64xf32>, vector<64x32xf32>, vector<32x32xf32> -> vector<32x32xf32>
    %175 = arith.addf %152, %174 : vector<32x32xf32>
    %c0_76 = arith.constant 0 : index
    %c0_77 = arith.constant 0 : index
    %176 = vector.load %arg11[%c0_76, %c0_77] : memref<1x32xf32, #tpu.memory_space<vmem>>, vector<1x32xf32>
    %177 = arith.mulf %175, %175 : vector<32x32xf32>
    %cst_78 = arith.constant dense<0.000000e+00> : vector<32xf32>
    %178 = vector.multi_reduction <add>, %177, %cst_78 [1] : vector<32x32xf32> to vector<32xf32>
    %179 = vector.shape_cast %178 : vector<32xf32> to vector<32x1xf32>
    %cst_79 = arith.constant 3.200000e+01 : f32
    %180 = vector.broadcast %cst_79 : f32 to vector<32x1xf32>
    %181 = arith.divf %179, %180 : vector<32x1xf32>
    %cst_80 = arith.constant 9.99999997E-7 : f32
    %182 = vector.broadcast %cst_80 : f32 to vector<32x1xf32>
    %183 = arith.addf %181, %182 : vector<32x1xf32>
    %184 = math.rsqrt %183 : vector<32x1xf32>
    %185 = vector.broadcast %184 : vector<32x1xf32> to vector<32x32xf32>
    %186 = arith.mulf %175, %185 : vector<32x32xf32>
    %187 = vector.broadcast %176 : vector<1x32xf32> to vector<32x32xf32>
    %188 = arith.mulf %186, %187 : vector<32x32xf32>
    %c0_81 = arith.constant 0 : index
    %c0_82 = arith.constant 0 : index
    %189 = vector.load %arg12[%c0_81, %c0_82] : memref<16x32xf32, #tpu.memory_space<vmem>>, vector<16x32xf32>
    %c0_83 = arith.constant 0 : index
    %c0_84 = arith.constant 0 : index
    %c0_85 = arith.constant 0 : index
    %190 = vector.load %arg13[%c0_83, %c0_84, %c0_85] : memref<2x8x8xf32, #tpu.memory_space<vmem>>, vector<2x8x8xf32>
    %c0_86 = arith.constant 0 : index
    %c0_87 = arith.constant 0 : index
    %c0_88 = arith.constant 0 : index
    %191 = vector.load %arg14[%c0_86, %c0_87, %c0_88] : memref<2x8x8xf32, #tpu.memory_space<vmem>>, vector<2x8x8xf32>
    %c0_89 = arith.constant 0 : index
    %c0_90 = arith.constant 0 : index
    %c0_91 = arith.constant 0 : index
    %192 = vector.load %arg15[%c0_89, %c0_90, %c0_91] : memref<2x1x16xf32, #tpu.memory_space<vmem>>, vector<2x1x16xf32>
    %c0_92 = arith.constant 0 : index
    %c0_93 = arith.constant 0 : index
    %c0_94 = arith.constant 0 : index
    %193 = vector.load %arg16[%c0_92, %c0_93, %c0_94] : memref<1x1x32xf32, #tpu.memory_space<vmem>>, vector<1x1x32xf32>
    %194 = vector.shape_cast %193 : vector<1x1x32xf32> to vector<1x32xf32>
    %195 = arith.mulf %189, %189 : vector<16x32xf32>
    %cst_95 = arith.constant dense<0.000000e+00> : vector<16xf32>
    %196 = vector.multi_reduction <add>, %195, %cst_95 [1] : vector<16x32xf32> to vector<16xf32>
    %197 = vector.shape_cast %196 : vector<16xf32> to vector<16x1xf32>
    %cst_96 = arith.constant 3.200000e+01 : f32
    %198 = vector.broadcast %cst_96 : f32 to vector<16x1xf32>
    %199 = arith.divf %197, %198 : vector<16x1xf32>
    %cst_97 = arith.constant 9.99999997E-7 : f32
    %200 = vector.broadcast %cst_97 : f32 to vector<16x1xf32>
    %201 = arith.addf %199, %200 : vector<16x1xf32>
    %202 = math.rsqrt %201 : vector<16x1xf32>
    %203 = vector.broadcast %202 : vector<16x1xf32> to vector<16x32xf32>
    %204 = arith.mulf %189, %203 : vector<16x32xf32>
    %205 = vector.broadcast %194 : vector<1x32xf32> to vector<16x32xf32>
    %206 = arith.mulf %204, %205 : vector<16x32xf32>
    %c0_98 = arith.constant 0 : index
    %c0_99 = arith.constant 0 : index
    %c0_100 = arith.constant 0 : index
    %c0_101 = arith.constant 0 : index
    %207 = vector.load %arg17[%c0_98, %c0_99, %c0_100, %c0_101] : memref<1x2x32x16xf32, #tpu.memory_space<vmem>>, vector<1x2x32x16xf32>
    %208 = vector.shape_cast %207 : vector<1x2x32x16xf32> to vector<2x32x16xf32>
    %c0_102 = arith.constant 0 : index
    %c0_103 = arith.constant 0 : index
    %c0_104 = arith.constant 0 : index
    %c0_105 = arith.constant 0 : index
    %209 = vector.load %arg18[%c0_102, %c0_103, %c0_104, %c0_105] : memref<1x2x32x16xf32, #tpu.memory_space<vmem>>, vector<1x2x32x16xf32>
    %210 = vector.shape_cast %209 : vector<1x2x32x16xf32> to vector<2x32x16xf32>
    %c0_106 = arith.constant 0 : index
    %c0_107 = arith.constant 0 : index
    %c0_108 = arith.constant 0 : index
    %c0_109 = arith.constant 0 : index
    %211 = vector.load %arg19[%c0_106, %c0_107, %c0_108, %c0_109] : memref<1x2x32x16xf32, #tpu.memory_space<vmem>>, vector<1x2x32x16xf32>
    %212 = vector.shape_cast %211 : vector<1x2x32x16xf32> to vector<2x32x16xf32>
    %c0_110 = arith.constant 0 : index
    %c0_111 = arith.constant 0 : index
    %c0_112 = arith.constant 0 : index
    %c0_113 = arith.constant 0 : index
    %213 = vector.load %arg20[%c0_110, %c0_111, %c0_112, %c0_113] : memref<1x2x16x32xf32, #tpu.memory_space<vmem>>, vector<1x2x16x32xf32>
    %214 = vector.shape_cast %213 : vector<1x2x16x32xf32> to vector<2x16x32xf32>
    %215 = vector.extract_strided_slice %208 {offsets = [0, 0, 0], sizes = [1, 32, 16], strides = [1, 1, 1]} : vector<2x32x16xf32> to vector<1x32x16xf32>
    %216 = vector.shape_cast %215 : vector<1x32x16xf32> to vector<32x16xf32>
    %cst_114 = arith.constant dense<0.000000e+00> : vector<16x16xf32>
    %217 = tpu.matmul %206, %216, %cst_114 {dimension_numbers = #tpu.dot_dimension_numbers<[1], [0], [0], [1], [0, 0, 1, 1], [], []>} : vector<16x32xf32>, vector<32x16xf32>, vector<16x16xf32> -> vector<16x16xf32>
    %218 = vector.extract_strided_slice %208 {offsets = [1, 0, 0], sizes = [1, 32, 16], strides = [1, 1, 1]} : vector<2x32x16xf32> to vector<1x32x16xf32>
    %219 = vector.shape_cast %218 : vector<1x32x16xf32> to vector<32x16xf32>
    %cst_115 = arith.constant dense<0.000000e+00> : vector<16x16xf32>
    %220 = tpu.matmul %206, %219, %cst_115 {dimension_numbers = #tpu.dot_dimension_numbers<[1], [0], [0], [1], [0, 0, 1, 1], [], []>} : vector<16x32xf32>, vector<32x16xf32>, vector<16x16xf32> -> vector<16x16xf32>
    %221 = vector.extract_strided_slice %210 {offsets = [0, 0, 0], sizes = [1, 32, 16], strides = [1, 1, 1]} : vector<2x32x16xf32> to vector<1x32x16xf32>
    %222 = vector.shape_cast %221 : vector<1x32x16xf32> to vector<32x16xf32>
    %cst_116 = arith.constant dense<0.000000e+00> : vector<16x16xf32>
    %223 = tpu.matmul %206, %222, %cst_116 {dimension_numbers = #tpu.dot_dimension_numbers<[1], [0], [0], [1], [0, 0, 1, 1], [], []>} : vector<16x32xf32>, vector<32x16xf32>, vector<16x16xf32> -> vector<16x16xf32>
    %224 = vector.extract_strided_slice %210 {offsets = [1, 0, 0], sizes = [1, 32, 16], strides = [1, 1, 1]} : vector<2x32x16xf32> to vector<1x32x16xf32>
    %225 = vector.shape_cast %224 : vector<1x32x16xf32> to vector<32x16xf32>
    %cst_117 = arith.constant dense<0.000000e+00> : vector<16x16xf32>
    %226 = tpu.matmul %206, %225, %cst_117 {dimension_numbers = #tpu.dot_dimension_numbers<[1], [0], [0], [1], [0, 0, 1, 1], [], []>} : vector<16x32xf32>, vector<32x16xf32>, vector<16x16xf32> -> vector<16x16xf32>
    %227 = vector.extract_strided_slice %212 {offsets = [0, 0, 0], sizes = [1, 32, 16], strides = [1, 1, 1]} : vector<2x32x16xf32> to vector<1x32x16xf32>
    %228 = vector.shape_cast %227 : vector<1x32x16xf32> to vector<32x16xf32>
    %cst_118 = arith.constant dense<0.000000e+00> : vector<16x16xf32>
    %229 = tpu.matmul %206, %228, %cst_118 {dimension_numbers = #tpu.dot_dimension_numbers<[1], [0], [0], [1], [0, 0, 1, 1], [], []>} : vector<16x32xf32>, vector<32x16xf32>, vector<16x16xf32> -> vector<16x16xf32>
    %230 = vector.extract_strided_slice %212 {offsets = [1, 0, 0], sizes = [1, 32, 16], strides = [1, 1, 1]} : vector<2x32x16xf32> to vector<1x32x16xf32>
    %231 = vector.shape_cast %230 : vector<1x32x16xf32> to vector<32x16xf32>
    %cst_119 = arith.constant dense<0.000000e+00> : vector<16x16xf32>
    %232 = tpu.matmul %206, %231, %cst_119 {dimension_numbers = #tpu.dot_dimension_numbers<[1], [0], [0], [1], [0, 0, 1, 1], [], []>} : vector<16x32xf32>, vector<32x16xf32>, vector<16x16xf32> -> vector<16x16xf32>
    %cst_120 = arith.constant 0.000000e+00 : f32
    %233 = vector.broadcast %cst_120 : f32 to vector<8x32xf32>
    %234 = vector.extract_strided_slice %217 {offsets = [0, 0], sizes = [8, 16], strides = [1, 1]} : vector<16x16xf32> to vector<8x16xf32>
    %235 = vector.extract_strided_slice %223 {offsets = [0, 0], sizes = [8, 16], strides = [1, 1]} : vector<16x16xf32> to vector<8x16xf32>
    %236 = vector.extract_strided_slice %229 {offsets = [0, 0], sizes = [8, 16], strides = [1, 1]} : vector<16x16xf32> to vector<8x16xf32>
    %cst_121 = arith.constant dense<0.000000e+00> : vector<8x8xf32>
    %237 = tpu.matmul %234, %235, %cst_121 {dimension_numbers = #tpu.dot_dimension_numbers<[1], [1], [0], [0], [0, 0, 1, 0], [], []>} : vector<8x16xf32>, vector<8x16xf32>, vector<8x8xf32> -> vector<8x8xf32>
    %238 = vector.extract_strided_slice %191 {offsets = [0, 0, 0], sizes = [1, 8, 8], strides = [1, 1, 1]} : vector<2x8x8xf32> to vector<1x8x8xf32>
    %239 = vector.shape_cast %238 : vector<1x8x8xf32> to vector<8x8xf32>
    %240 = arith.addf %237, %239 : vector<8x8xf32>
    %241 = vector.extract_strided_slice %190 {offsets = [0, 0, 0], sizes = [1, 8, 8], strides = [1, 1, 1]} : vector<2x8x8xf32> to vector<1x8x8xf32>
    %242 = vector.shape_cast %241 : vector<1x8x8xf32> to vector<8x8xf32>
    %243 = arith.addf %240, %242 : vector<8x8xf32>
    %cst_122 = arith.constant dense<0xFF800000> : vector<8xf32>
    %244 = vector.multi_reduction <maximumf>, %243, %cst_122 [1] : vector<8x8xf32> to vector<8xf32>
    %245 = vector.shape_cast %244 : vector<8xf32> to vector<8x1xf32>
    %246 = vector.broadcast %245 : vector<8x1xf32> to vector<8x8xf32>
    %247 = arith.subf %243, %246 : vector<8x8xf32>
    %248 = math.exp %247 : vector<8x8xf32>
    %cst_123 = arith.constant dense<0.000000e+00> : vector<8xf32>
    %249 = vector.multi_reduction <add>, %248, %cst_123 [1] : vector<8x8xf32> to vector<8xf32>
    %250 = vector.shape_cast %249 : vector<8xf32> to vector<8x1xf32>
    %251 = tpu.reciprocal %250 {approx = true} : vector<8x1xf32> -> vector<8x1xf32>
    %252 = vector.broadcast %251 : vector<8x1xf32> to vector<8x8xf32>
    %253 = arith.mulf %248, %252 : vector<8x8xf32>
    %cst_124 = arith.constant dense<0.000000e+00> : vector<8x16xf32>
    %254 = tpu.matmul %253, %236, %cst_124 {dimension_numbers = #tpu.dot_dimension_numbers<[1], [0], [0], [1], [0, 0, 1, 1], [], []>} : vector<8x8xf32>, vector<8x16xf32>, vector<8x16xf32> -> vector<8x16xf32>
    %255 = vector.extract_strided_slice %214 {offsets = [0, 0, 0], sizes = [1, 16, 32], strides = [1, 1, 1]} : vector<2x16x32xf32> to vector<1x16x32xf32>
    %256 = vector.shape_cast %255 : vector<1x16x32xf32> to vector<16x32xf32>
    %cst_125 = arith.constant dense<0.000000e+00> : vector<8x32xf32>
    %257 = tpu.matmul %254, %256, %cst_125 {dimension_numbers = #tpu.dot_dimension_numbers<[1], [0], [0], [1], [0, 0, 1, 1], [], []>} : vector<8x16xf32>, vector<16x32xf32>, vector<8x32xf32> -> vector<8x32xf32>
    %258 = arith.addf %233, %257 : vector<8x32xf32>
    %259 = vector.extract_strided_slice %220 {offsets = [0, 0], sizes = [8, 16], strides = [1, 1]} : vector<16x16xf32> to vector<8x16xf32>
    %260 = vector.extract_strided_slice %226 {offsets = [0, 0], sizes = [8, 16], strides = [1, 1]} : vector<16x16xf32> to vector<8x16xf32>
    %261 = vector.extract_strided_slice %232 {offsets = [0, 0], sizes = [8, 16], strides = [1, 1]} : vector<16x16xf32> to vector<8x16xf32>
    %cst_126 = arith.constant dense<0.000000e+00> : vector<8x8xf32>
    %262 = tpu.matmul %259, %260, %cst_126 {dimension_numbers = #tpu.dot_dimension_numbers<[1], [1], [0], [0], [0, 0, 1, 0], [], []>} : vector<8x16xf32>, vector<8x16xf32>, vector<8x8xf32> -> vector<8x8xf32>
    %263 = vector.extract_strided_slice %191 {offsets = [0, 0, 0], sizes = [1, 8, 8], strides = [1, 1, 1]} : vector<2x8x8xf32> to vector<1x8x8xf32>
    %264 = vector.shape_cast %263 : vector<1x8x8xf32> to vector<8x8xf32>
    %265 = arith.addf %262, %264 : vector<8x8xf32>
    %266 = vector.extract_strided_slice %190 {offsets = [1, 0, 0], sizes = [1, 8, 8], strides = [1, 1, 1]} : vector<2x8x8xf32> to vector<1x8x8xf32>
    %267 = vector.shape_cast %266 : vector<1x8x8xf32> to vector<8x8xf32>
    %268 = arith.addf %265, %267 : vector<8x8xf32>
    %cst_127 = arith.constant dense<0xFF800000> : vector<8xf32>
    %269 = vector.multi_reduction <maximumf>, %268, %cst_127 [1] : vector<8x8xf32> to vector<8xf32>
    %270 = vector.shape_cast %269 : vector<8xf32> to vector<8x1xf32>
    %271 = vector.broadcast %270 : vector<8x1xf32> to vector<8x8xf32>
    %272 = arith.subf %268, %271 : vector<8x8xf32>
    %273 = math.exp %272 : vector<8x8xf32>
    %cst_128 = arith.constant dense<0.000000e+00> : vector<8xf32>
    %274 = vector.multi_reduction <add>, %273, %cst_128 [1] : vector<8x8xf32> to vector<8xf32>
    %275 = vector.shape_cast %274 : vector<8xf32> to vector<8x1xf32>
    %276 = tpu.reciprocal %275 {approx = true} : vector<8x1xf32> -> vector<8x1xf32>
    %277 = vector.broadcast %276 : vector<8x1xf32> to vector<8x8xf32>
    %278 = arith.mulf %273, %277 : vector<8x8xf32>
    %cst_129 = arith.constant dense<0.000000e+00> : vector<8x16xf32>
    %279 = tpu.matmul %278, %261, %cst_129 {dimension_numbers = #tpu.dot_dimension_numbers<[1], [0], [0], [1], [0, 0, 1, 1], [], []>} : vector<8x8xf32>, vector<8x16xf32>, vector<8x16xf32> -> vector<8x16xf32>
    %280 = vector.extract_strided_slice %214 {offsets = [1, 0, 0], sizes = [1, 16, 32], strides = [1, 1, 1]} : vector<2x16x32xf32> to vector<1x16x32xf32>
    %281 = vector.shape_cast %280 : vector<1x16x32xf32> to vector<16x32xf32>
    %cst_130 = arith.constant dense<0.000000e+00> : vector<8x32xf32>
    %282 = tpu.matmul %279, %281, %cst_130 {dimension_numbers = #tpu.dot_dimension_numbers<[1], [0], [0], [1], [0, 0, 1, 1], [], []>} : vector<8x16xf32>, vector<16x32xf32>, vector<8x32xf32> -> vector<8x32xf32>
    %283 = arith.addf %258, %282 : vector<8x32xf32>
    %c0_131 = arith.constant 0 : index
    %c0_132 = arith.constant 0 : index
    %284 = vector.load %arg38[%c0_131, %c0_132] : memref<16x32xf32, #tpu.memory_space<vmem>>, vector<8x32xf32>
    tpu.vector_store %arg38[%c0_131, %c0_132], %283 {strides = array<i32>} : memref<16x32xf32, #tpu.memory_space<vmem>>, vector<8x32xf32>,
    %cst_133 = arith.constant 0.000000e+00 : f32
    %285 = vector.broadcast %cst_133 : f32 to vector<8x32xf32>
    %286 = vector.extract_strided_slice %217 {offsets = [8, 0], sizes = [8, 16], strides = [1, 1]} : vector<16x16xf32> to vector<8x16xf32>
    %287 = vector.extract_strided_slice %223 {offsets = [8, 0], sizes = [8, 16], strides = [1, 1]} : vector<16x16xf32> to vector<8x16xf32>
    %288 = vector.extract_strided_slice %229 {offsets = [8, 0], sizes = [8, 16], strides = [1, 1]} : vector<16x16xf32> to vector<8x16xf32>
    %cst_134 = arith.constant dense<0.000000e+00> : vector<8x8xf32>
    %289 = tpu.matmul %286, %287, %cst_134 {dimension_numbers = #tpu.dot_dimension_numbers<[1], [1], [0], [0], [0, 0, 1, 0], [], []>} : vector<8x16xf32>, vector<8x16xf32>, vector<8x8xf32> -> vector<8x8xf32>
    %290 = vector.extract_strided_slice %191 {offsets = [1, 0, 0], sizes = [1, 8, 8], strides = [1, 1, 1]} : vector<2x8x8xf32> to vector<1x8x8xf32>
    %291 = vector.shape_cast %290 : vector<1x8x8xf32> to vector<8x8xf32>
    %292 = arith.addf %289, %291 : vector<8x8xf32>
    %293 = vector.extract_strided_slice %190 {offsets = [0, 0, 0], sizes = [1, 8, 8], strides = [1, 1, 1]} : vector<2x8x8xf32> to vector<1x8x8xf32>
    %294 = vector.shape_cast %293 : vector<1x8x8xf32> to vector<8x8xf32>
    %295 = arith.addf %292, %294 : vector<8x8xf32>
    %cst_135 = arith.constant dense<0xFF800000> : vector<8xf32>
    %296 = vector.multi_reduction <maximumf>, %295, %cst_135 [1] : vector<8x8xf32> to vector<8xf32>
    %297 = vector.shape_cast %296 : vector<8xf32> to vector<8x1xf32>
    %298 = vector.broadcast %297 : vector<8x1xf32> to vector<8x8xf32>
    %299 = arith.subf %295, %298 : vector<8x8xf32>
    %300 = math.exp %299 : vector<8x8xf32>
    %cst_136 = arith.constant dense<0.000000e+00> : vector<8xf32>
    %301 = vector.multi_reduction <add>, %300, %cst_136 [1] : vector<8x8xf32> to vector<8xf32>
    %302 = vector.shape_cast %301 : vector<8xf32> to vector<8x1xf32>
    %303 = tpu.reciprocal %302 {approx = true} : vector<8x1xf32> -> vector<8x1xf32>
    %304 = vector.broadcast %303 : vector<8x1xf32> to vector<8x8xf32>
    %305 = arith.mulf %300, %304 : vector<8x8xf32>
    %cst_137 = arith.constant dense<0.000000e+00> : vector<8x16xf32>
    %306 = tpu.matmul %305, %288, %cst_137 {dimension_numbers = #tpu.dot_dimension_numbers<[1], [0], [0], [1], [0, 0, 1, 1], [], []>} : vector<8x8xf32>, vector<8x16xf32>, vector<8x16xf32> -> vector<8x16xf32>
    %307 = vector.extract_strided_slice %214 {offsets = [0, 0, 0], sizes = [1, 16, 32], strides = [1, 1, 1]} : vector<2x16x32xf32> to vector<1x16x32xf32>
    %308 = vector.shape_cast %307 : vector<1x16x32xf32> to vector<16x32xf32>
    %cst_138 = arith.constant dense<0.000000e+00> : vector<8x32xf32>
    %309 = tpu.matmul %306, %308, %cst_138 {dimension_numbers = #tpu.dot_dimension_numbers<[1], [0], [0], [1], [0, 0, 1, 1], [], []>} : vector<8x16xf32>, vector<16x32xf32>, vector<8x32xf32> -> vector<8x32xf32>
    %310 = arith.addf %285, %309 : vector<8x32xf32>
    %311 = vector.extract_strided_slice %220 {offsets = [8, 0], sizes = [8, 16], strides = [1, 1]} : vector<16x16xf32> to vector<8x16xf32>
    %312 = vector.extract_strided_slice %226 {offsets = [8, 0], sizes = [8, 16], strides = [1, 1]} : vector<16x16xf32> to vector<8x16xf32>
    %313 = vector.extract_strided_slice %232 {offsets = [8, 0], sizes = [8, 16], strides = [1, 1]} : vector<16x16xf32> to vector<8x16xf32>
    %cst_139 = arith.constant dense<0.000000e+00> : vector<8x8xf32>
    %314 = tpu.matmul %311, %312, %cst_139 {dimension_numbers = #tpu.dot_dimension_numbers<[1], [1], [0], [0], [0, 0, 1, 0], [], []>} : vector<8x16xf32>, vector<8x16xf32>, vector<8x8xf32> -> vector<8x8xf32>
    %315 = vector.extract_strided_slice %191 {offsets = [1, 0, 0], sizes = [1, 8, 8], strides = [1, 1, 1]} : vector<2x8x8xf32> to vector<1x8x8xf32>
    %316 = vector.shape_cast %315 : vector<1x8x8xf32> to vector<8x8xf32>
    %317 = arith.addf %314, %316 : vector<8x8xf32>
    %318 = vector.extract_strided_slice %190 {offsets = [1, 0, 0], sizes = [1, 8, 8], strides = [1, 1, 1]} : vector<2x8x8xf32> to vector<1x8x8xf32>
    %319 = vector.shape_cast %318 : vector<1x8x8xf32> to vector<8x8xf32>
    %320 = arith.addf %317, %319 : vector<8x8xf32>
    %cst_140 = arith.constant dense<0xFF800000> : vector<8xf32>
    %321 = vector.multi_reduction <maximumf>, %320, %cst_140 [1] : vector<8x8xf32> to vector<8xf32>
    %322 = vector.shape_cast %321 : vector<8xf32> to vector<8x1xf32>
    %323 = vector.broadcast %322 : vector<8x1xf32> to vector<8x8xf32>
    %324 = arith.subf %320, %323 : vector<8x8xf32>
    %325 = math.exp %324 : vector<8x8xf32>
    %cst_141 = arith.constant dense<0.000000e+00> : vector<8xf32>
    %326 = vector.multi_reduction <add>, %325, %cst_141 [1] : vector<8x8xf32> to vector<8xf32>
    %327 = vector.shape_cast %326 : vector<8xf32> to vector<8x1xf32>
    %328 = tpu.reciprocal %327 {approx = true} : vector<8x1xf32> -> vector<8x1xf32>
    %329 = vector.broadcast %328 : vector<8x1xf32> to vector<8x8xf32>
    %330 = arith.mulf %325, %329 : vector<8x8xf32>
    %cst_142 = arith.constant dense<0.000000e+00> : vector<8x16xf32>
    %331 = tpu.matmul %330, %313, %cst_142 {dimension_numbers = #tpu.dot_dimension_numbers<[1], [0], [0], [1], [0, 0, 1, 1], [], []>} : vector<8x8xf32>, vector<8x16xf32>, vector<8x16xf32> -> vector<8x16xf32>
    %332 = vector.extract_strided_slice %214 {offsets = [1, 0, 0], sizes = [1, 16, 32], strides = [1, 1, 1]} : vector<2x16x32xf32> to vector<1x16x32xf32>
    %333 = vector.shape_cast %332 : vector<1x16x32xf32> to vector<16x32xf32>
    %cst_143 = arith.constant dense<0.000000e+00> : vector<8x32xf32>
    %334 = tpu.matmul %331, %333, %cst_143 {dimension_numbers = #tpu.dot_dimension_numbers<[1], [0], [0], [1], [0, 0, 1, 1], [], []>} : vector<8x16xf32>, vector<16x32xf32>, vector<8x32xf32> -> vector<8x32xf32>
    %335 = arith.addf %310, %334 : vector<8x32xf32>
    %c8 = arith.constant 8 : index
    %c0_144 = arith.constant 0 : index
    %336 = vector.load %arg38[%c8, %c0_144] : memref<16x32xf32, #tpu.memory_space<vmem>>, vector<8x32xf32>
    tpu.vector_store %arg38[%c8, %c0_144], %335 {strides = array<i32>} : memref<16x32xf32, #tpu.memory_space<vmem>>, vector<8x32xf32>,
    %c0_145 = arith.constant 0 : index
    %c0_146 = arith.constant 0 : index
    %337 = vector.load %arg38[%c0_145, %c0_146] : memref<16x32xf32, #tpu.memory_space<vmem>>, vector<16x32xf32>
    %338 = arith.addf %189, %337 : vector<16x32xf32>
    %c0_147 = arith.constant 0 : index
    %c0_148 = arith.constant 0 : index
    %c0_149 = arith.constant 0 : index
    %339 = vector.load %arg21[%c0_147, %c0_148, %c0_149] : memref<1x1x32xf32, #tpu.memory_space<vmem>>, vector<1x1x32xf32>
    %340 = vector.shape_cast %339 : vector<1x1x32xf32> to vector<1x32xf32>
    %341 = arith.mulf %338, %338 : vector<16x32xf32>
    %cst_150 = arith.constant dense<0.000000e+00> : vector<16xf32>
    %342 = vector.multi_reduction <add>, %341, %cst_150 [1] : vector<16x32xf32> to vector<16xf32>
    %343 = vector.shape_cast %342 : vector<16xf32> to vector<16x1xf32>
    %cst_151 = arith.constant 3.200000e+01 : f32
    %344 = vector.broadcast %cst_151 : f32 to vector<16x1xf32>
    %345 = arith.divf %343, %344 : vector<16x1xf32>
    %cst_152 = arith.constant 9.99999997E-7 : f32
    %346 = vector.broadcast %cst_152 : f32 to vector<16x1xf32>
    %347 = arith.addf %345, %346 : vector<16x1xf32>
    %348 = math.rsqrt %347 : vector<16x1xf32>
    %349 = vector.broadcast %348 : vector<16x1xf32> to vector<16x32xf32>
    %350 = arith.mulf %338, %349 : vector<16x32xf32>
    %351 = vector.broadcast %340 : vector<1x32xf32> to vector<16x32xf32>
    %352 = arith.mulf %350, %351 : vector<16x32xf32>
    %c0_153 = arith.constant 0 : index
    %c0_154 = arith.constant 0 : index
    %c0_155 = arith.constant 0 : index
    %c0_156 = arith.constant 0 : index
    %353 = vector.load %arg22[%c0_153, %c0_154, %c0_155, %c0_156] : memref<1x2x32x16xf32, #tpu.memory_space<vmem>>, vector<1x2x32x16xf32>
    %354 = vector.shape_cast %353 : vector<1x2x32x16xf32> to vector<2x32x16xf32>
    %c0_157 = arith.constant 0 : index
    %c0_158 = arith.constant 0 : index
    %c0_159 = arith.constant 0 : index
    %c0_160 = arith.constant 0 : index
    %355 = vector.load %arg23[%c0_157, %c0_158, %c0_159, %c0_160] : memref<1x2x32x16xf32, #tpu.memory_space<vmem>>, vector<1x2x32x16xf32>
    %356 = vector.shape_cast %355 : vector<1x2x32x16xf32> to vector<2x32x16xf32>
    %c0_161 = arith.constant 0 : index
    %c0_162 = arith.constant 0 : index
    %c0_163 = arith.constant 0 : index
    %c0_164 = arith.constant 0 : index
    %357 = vector.load %arg24[%c0_161, %c0_162, %c0_163, %c0_164] : memref<1x2x32x16xf32, #tpu.memory_space<vmem>>, vector<1x2x32x16xf32>
    %358 = vector.shape_cast %357 : vector<1x2x32x16xf32> to vector<2x32x16xf32>
    %c0_165 = arith.constant 0 : index
    %c0_166 = arith.constant 0 : index
    %c0_167 = arith.constant 0 : index
    %c0_168 = arith.constant 0 : index
    %359 = vector.load %arg25[%c0_165, %c0_166, %c0_167, %c0_168] : memref<1x2x16x32xf32, #tpu.memory_space<vmem>>, vector<1x2x16x32xf32>
    %360 = vector.shape_cast %359 : vector<1x2x16x32xf32> to vector<2x16x32xf32>
    %361 = vector.extract_strided_slice %354 {offsets = [0, 0, 0], sizes = [1, 32, 16], strides = [1, 1, 1]} : vector<2x32x16xf32> to vector<1x32x16xf32>
    %362 = vector.shape_cast %361 : vector<1x32x16xf32> to vector<32x16xf32>
    %cst_169 = arith.constant dense<0.000000e+00> : vector<16x16xf32>
    %363 = tpu.matmul %352, %362, %cst_169 {dimension_numbers = #tpu.dot_dimension_numbers<[1], [0], [0], [1], [0, 0, 1, 1], [], []>} : vector<16x32xf32>, vector<32x16xf32>, vector<16x16xf32> -> vector<16x16xf32>
    %364 = vector.extract_strided_slice %354 {offsets = [1, 0, 0], sizes = [1, 32, 16], strides = [1, 1, 1]} : vector<2x32x16xf32> to vector<1x32x16xf32>
    %365 = vector.shape_cast %364 : vector<1x32x16xf32> to vector<32x16xf32>
    %cst_170 = arith.constant dense<0.000000e+00> : vector<16x16xf32>
    %366 = tpu.matmul %352, %365, %cst_170 {dimension_numbers = #tpu.dot_dimension_numbers<[1], [0], [0], [1], [0, 0, 1, 1], [], []>} : vector<16x32xf32>, vector<32x16xf32>, vector<16x16xf32> -> vector<16x16xf32>
    %367 = vector.extract_strided_slice %356 {offsets = [0, 0, 0], sizes = [1, 32, 16], strides = [1, 1, 1]} : vector<2x32x16xf32> to vector<1x32x16xf32>
    %368 = vector.shape_cast %367 : vector<1x32x16xf32> to vector<32x16xf32>
    %cst_171 = arith.constant dense<0.000000e+00> : vector<32x16xf32>
    %369 = tpu.matmul %188, %368, %cst_171 {dimension_numbers = #tpu.dot_dimension_numbers<[1], [0], [0], [1], [0, 0, 1, 1], [], []>} : vector<32x32xf32>, vector<32x16xf32>, vector<32x16xf32> -> vector<32x16xf32>
    %370 = vector.extract_strided_slice %356 {offsets = [1, 0, 0], sizes = [1, 32, 16], strides = [1, 1, 1]} : vector<2x32x16xf32> to vector<1x32x16xf32>
    %371 = vector.shape_cast %370 : vector<1x32x16xf32> to vector<32x16xf32>
    %cst_172 = arith.constant dense<0.000000e+00> : vector<32x16xf32>
    %372 = tpu.matmul %188, %371, %cst_172 {dimension_numbers = #tpu.dot_dimension_numbers<[1], [0], [0], [1], [0, 0, 1, 1], [], []>} : vector<32x32xf32>, vector<32x16xf32>, vector<32x16xf32> -> vector<32x16xf32>
    %373 = vector.extract_strided_slice %358 {offsets = [0, 0, 0], sizes = [1, 32, 16], strides = [1, 1, 1]} : vector<2x32x16xf32> to vector<1x32x16xf32>
    %374 = vector.shape_cast %373 : vector<1x32x16xf32> to vector<32x16xf32>
    %cst_173 = arith.constant dense<0.000000e+00> : vector<32x16xf32>
    %375 = tpu.matmul %188, %374, %cst_173 {dimension_numbers = #tpu.dot_dimension_numbers<[1], [0], [0], [1], [0, 0, 1, 1], [], []>} : vector<32x32xf32>, vector<32x16xf32>, vector<32x16xf32> -> vector<32x16xf32>
    %376 = vector.extract_strided_slice %358 {offsets = [1, 0, 0], sizes = [1, 32, 16], strides = [1, 1, 1]} : vector<2x32x16xf32> to vector<1x32x16xf32>
    %377 = vector.shape_cast %376 : vector<1x32x16xf32> to vector<32x16xf32>
    %cst_174 = arith.constant dense<0.000000e+00> : vector<32x16xf32>
    %378 = tpu.matmul %188, %377, %cst_174 {dimension_numbers = #tpu.dot_dimension_numbers<[1], [0], [0], [1], [0, 0, 1, 1], [], []>} : vector<32x32xf32>, vector<32x16xf32>, vector<32x16xf32> -> vector<32x16xf32>
    %cst_175 = arith.constant 0.000000e+00 : f32
    %379 = vector.broadcast %cst_175 : f32 to vector<8x32xf32>
    %380 = vector.extract_strided_slice %363 {offsets = [0, 0], sizes = [8, 16], strides = [1, 1]} : vector<16x16xf32> to vector<8x16xf32>
    %381 = vector.extract_strided_slice %369 {offsets = [0, 0], sizes = [16, 16], strides = [1, 1]} : vector<32x16xf32> to vector<16x16xf32>
    %382 = vector.extract_strided_slice %375 {offsets = [0, 0], sizes = [16, 16], strides = [1, 1]} : vector<32x16xf32> to vector<16x16xf32>
    %cst_176 = arith.constant dense<0.000000e+00> : vector<8x16xf32>
    %383 = tpu.matmul %380, %381, %cst_176 {dimension_numbers = #tpu.dot_dimension_numbers<[1], [1], [0], [0], [0, 0, 1, 0], [], []>} : vector<8x16xf32>, vector<16x16xf32>, vector<8x16xf32> -> vector<8x16xf32>
    %384 = vector.extract_strided_slice %192 {offsets = [0, 0, 0], sizes = [1, 1, 16], strides = [1, 1, 1]} : vector<2x1x16xf32> to vector<1x1x16xf32>
    %385 = vector.shape_cast %384 : vector<1x1x16xf32> to vector<1x16xf32>
    %386 = vector.broadcast %385 : vector<1x16xf32> to vector<8x16xf32>
    %387 = arith.addf %383, %386 : vector<8x16xf32>
    %cst_177 = arith.constant dense<0xFF800000> : vector<8xf32>
    %388 = vector.multi_reduction <maximumf>, %387, %cst_177 [1] : vector<8x16xf32> to vector<8xf32>
    %389 = vector.shape_cast %388 : vector<8xf32> to vector<8x1xf32>
    %390 = vector.broadcast %389 : vector<8x1xf32> to vector<8x16xf32>
    %391 = arith.subf %387, %390 : vector<8x16xf32>
    %392 = math.exp %391 : vector<8x16xf32>
    %cst_178 = arith.constant dense<0.000000e+00> : vector<8xf32>
    %393 = vector.multi_reduction <add>, %392, %cst_178 [1] : vector<8x16xf32> to vector<8xf32>
    %394 = vector.shape_cast %393 : vector<8xf32> to vector<8x1xf32>
    %395 = tpu.reciprocal %394 {approx = true} : vector<8x1xf32> -> vector<8x1xf32>
    %396 = vector.broadcast %395 : vector<8x1xf32> to vector<8x16xf32>
    %397 = arith.mulf %392, %396 : vector<8x16xf32>
    %cst_179 = arith.constant dense<0.000000e+00> : vector<8x16xf32>
    %398 = tpu.matmul %397, %382, %cst_179 {dimension_numbers = #tpu.dot_dimension_numbers<[1], [0], [0], [1], [0, 0, 1, 1], [], []>} : vector<8x16xf32>, vector<16x16xf32>, vector<8x16xf32> -> vector<8x16xf32>
    %399 = vector.extract_strided_slice %360 {offsets = [0, 0, 0], sizes = [1, 16, 32], strides = [1, 1, 1]} : vector<2x16x32xf32> to vector<1x16x32xf32>
    %400 = vector.shape_cast %399 : vector<1x16x32xf32> to vector<16x32xf32>
    %cst_180 = arith.constant dense<0.000000e+00> : vector<8x32xf32>
    %401 = tpu.matmul %398, %400, %cst_180 {dimension_numbers = #tpu.dot_dimension_numbers<[1], [0], [0], [1], [0, 0, 1, 1], [], []>} : vector<8x16xf32>, vector<16x32xf32>, vector<8x32xf32> -> vector<8x32xf32>
    %402 = arith.addf %379, %401 : vector<8x32xf32>
    %403 = vector.extract_strided_slice %366 {offsets = [0, 0], sizes = [8, 16], strides = [1, 1]} : vector<16x16xf32> to vector<8x16xf32>
    %404 = vector.extract_strided_slice %372 {offsets = [0, 0], sizes = [16, 16], strides = [1, 1]} : vector<32x16xf32> to vector<16x16xf32>
    %405 = vector.extract_strided_slice %378 {offsets = [0, 0], sizes = [16, 16], strides = [1, 1]} : vector<32x16xf32> to vector<16x16xf32>
    %cst_181 = arith.constant dense<0.000000e+00> : vector<8x16xf32>
    %406 = tpu.matmul %403, %404, %cst_181 {dimension_numbers = #tpu.dot_dimension_numbers<[1], [1], [0], [0], [0, 0, 1, 0], [], []>} : vector<8x16xf32>, vector<16x16xf32>, vector<8x16xf32> -> vector<8x16xf32>
    %407 = vector.extract_strided_slice %192 {offsets = [0, 0, 0], sizes = [1, 1, 16], strides = [1, 1, 1]} : vector<2x1x16xf32> to vector<1x1x16xf32>
    %408 = vector.shape_cast %407 : vector<1x1x16xf32> to vector<1x16xf32>
    %409 = vector.broadcast %408 : vector<1x16xf32> to vector<8x16xf32>
    %410 = arith.addf %406, %409 : vector<8x16xf32>
    %cst_182 = arith.constant dense<0xFF800000> : vector<8xf32>
    %411 = vector.multi_reduction <maximumf>, %410, %cst_182 [1] : vector<8x16xf32> to vector<8xf32>
    %412 = vector.shape_cast %411 : vector<8xf32> to vector<8x1xf32>
    %413 = vector.broadcast %412 : vector<8x1xf32> to vector<8x16xf32>
    %414 = arith.subf %410, %413 : vector<8x16xf32>
    %415 = math.exp %414 : vector<8x16xf32>
    %cst_183 = arith.constant dense<0.000000e+00> : vector<8xf32>
    %416 = vector.multi_reduction <add>, %415, %cst_183 [1] : vector<8x16xf32> to vector<8xf32>
    %417 = vector.shape_cast %416 : vector<8xf32> to vector<8x1xf32>
    %418 = tpu.reciprocal %417 {approx = true} : vector<8x1xf32> -> vector<8x1xf32>
    %419 = vector.broadcast %418 : vector<8x1xf32> to vector<8x16xf32>
    %420 = arith.mulf %415, %419 : vector<8x16xf32>
    %cst_184 = arith.constant dense<0.000000e+00> : vector<8x16xf32>
    %421 = tpu.matmul %420, %405, %cst_184 {dimension_numbers = #tpu.dot_dimension_numbers<[1], [0], [0], [1], [0, 0, 1, 1], [], []>} : vector<8x16xf32>, vector<16x16xf32>, vector<8x16xf32> -> vector<8x16xf32>
    %422 = vector.extract_strided_slice %360 {offsets = [1, 0, 0], sizes = [1, 16, 32], strides = [1, 1, 1]} : vector<2x16x32xf32> to vector<1x16x32xf32>
    %423 = vector.shape_cast %422 : vector<1x16x32xf32> to vector<16x32xf32>
    %cst_185 = arith.constant dense<0.000000e+00> : vector<8x32xf32>
    %424 = tpu.matmul %421, %423, %cst_185 {dimension_numbers = #tpu.dot_dimension_numbers<[1], [0], [0], [1], [0, 0, 1, 1], [], []>} : vector<8x16xf32>, vector<16x32xf32>, vector<8x32xf32> -> vector<8x32xf32>
    %425 = arith.addf %402, %424 : vector<8x32xf32>
    %c0_186 = arith.constant 0 : index
    %c0_187 = arith.constant 0 : index
    %426 = vector.load %arg38[%c0_186, %c0_187] : memref<16x32xf32, #tpu.memory_space<vmem>>, vector<8x32xf32>
    tpu.vector_store %arg38[%c0_186, %c0_187], %425 {strides = array<i32>} : memref<16x32xf32, #tpu.memory_space<vmem>>, vector<8x32xf32>,
    %cst_188 = arith.constant 0.000000e+00 : f32
    %427 = vector.broadcast %cst_188 : f32 to vector<8x32xf32>
    %428 = vector.extract_strided_slice %363 {offsets = [8, 0], sizes = [8, 16], strides = [1, 1]} : vector<16x16xf32> to vector<8x16xf32>
    %429 = vector.extract_strided_slice %369 {offsets = [16, 0], sizes = [16, 16], strides = [1, 1]} : vector<32x16xf32> to vector<16x16xf32>
    %430 = vector.extract_strided_slice %375 {offsets = [16, 0], sizes = [16, 16], strides = [1, 1]} : vector<32x16xf32> to vector<16x16xf32>
    %cst_189 = arith.constant dense<0.000000e+00> : vector<8x16xf32>
    %431 = tpu.matmul %428, %429, %cst_189 {dimension_numbers = #tpu.dot_dimension_numbers<[1], [1], [0], [0], [0, 0, 1, 0], [], []>} : vector<8x16xf32>, vector<16x16xf32>, vector<8x16xf32> -> vector<8x16xf32>
    %432 = vector.extract_strided_slice %192 {offsets = [1, 0, 0], sizes = [1, 1, 16], strides = [1, 1, 1]} : vector<2x1x16xf32> to vector<1x1x16xf32>
    %433 = vector.shape_cast %432 : vector<1x1x16xf32> to vector<1x16xf32>
    %434 = vector.broadcast %433 : vector<1x16xf32> to vector<8x16xf32>
    %435 = arith.addf %431, %434 : vector<8x16xf32>
    %cst_190 = arith.constant dense<0xFF800000> : vector<8xf32>
    %436 = vector.multi_reduction <maximumf>, %435, %cst_190 [1] : vector<8x16xf32> to vector<8xf32>
    %437 = vector.shape_cast %436 : vector<8xf32> to vector<8x1xf32>
    %438 = vector.broadcast %437 : vector<8x1xf32> to vector<8x16xf32>
    %439 = arith.subf %435, %438 : vector<8x16xf32>
    %440 = math.exp %439 : vector<8x16xf32>
    %cst_191 = arith.constant dense<0.000000e+00> : vector<8xf32>
    %441 = vector.multi_reduction <add>, %440, %cst_191 [1] : vector<8x16xf32> to vector<8xf32>
    %442 = vector.shape_cast %441 : vector<8xf32> to vector<8x1xf32>
    %443 = tpu.reciprocal %442 {approx = true} : vector<8x1xf32> -> vector<8x1xf32>
    %444 = vector.broadcast %443 : vector<8x1xf32> to vector<8x16xf32>
    %445 = arith.mulf %440, %444 : vector<8x16xf32>
    %cst_192 = arith.constant dense<0.000000e+00> : vector<8x16xf32>
    %446 = tpu.matmul %445, %430, %cst_192 {dimension_numbers = #tpu.dot_dimension_numbers<[1], [0], [0], [1], [0, 0, 1, 1], [], []>} : vector<8x16xf32>, vector<16x16xf32>, vector<8x16xf32> -> vector<8x16xf32>
    %447 = vector.extract_strided_slice %360 {offsets = [0, 0, 0], sizes = [1, 16, 32], strides = [1, 1, 1]} : vector<2x16x32xf32> to vector<1x16x32xf32>
    %448 = vector.shape_cast %447 : vector<1x16x32xf32> to vector<16x32xf32>
    %cst_193 = arith.constant dense<0.000000e+00> : vector<8x32xf32>
    %449 = tpu.matmul %446, %448, %cst_193 {dimension_numbers = #tpu.dot_dimension_numbers<[1], [0], [0], [1], [0, 0, 1, 1], [], []>} : vector<8x16xf32>, vector<16x32xf32>, vector<8x32xf32> -> vector<8x32xf32>
    %450 = arith.addf %427, %449 : vector<8x32xf32>
    %451 = vector.extract_strided_slice %366 {offsets = [8, 0], sizes = [8, 16], strides = [1, 1]} : vector<16x16xf32> to vector<8x16xf32>
    %452 = vector.extract_strided_slice %372 {offsets = [16, 0], sizes = [16, 16], strides = [1, 1]} : vector<32x16xf32> to vector<16x16xf32>
    %453 = vector.extract_strided_slice %378 {offsets = [16, 0], sizes = [16, 16], strides = [1, 1]} : vector<32x16xf32> to vector<16x16xf32>
    %cst_194 = arith.constant dense<0.000000e+00> : vector<8x16xf32>
    %454 = tpu.matmul %451, %452, %cst_194 {dimension_numbers = #tpu.dot_dimension_numbers<[1], [1], [0], [0], [0, 0, 1, 0], [], []>} : vector<8x16xf32>, vector<16x16xf32>, vector<8x16xf32> -> vector<8x16xf32>
    %455 = vector.extract_strided_slice %192 {offsets = [1, 0, 0], sizes = [1, 1, 16], strides = [1, 1, 1]} : vector<2x1x16xf32> to vector<1x1x16xf32>
    %456 = vector.shape_cast %455 : vector<1x1x16xf32> to vector<1x16xf32>
    %457 = vector.broadcast %456 : vector<1x16xf32> to vector<8x16xf32>
    %458 = arith.addf %454, %457 : vector<8x16xf32>
    %cst_195 = arith.constant dense<0xFF800000> : vector<8xf32>
    %459 = vector.multi_reduction <maximumf>, %458, %cst_195 [1] : vector<8x16xf32> to vector<8xf32>
    %460 = vector.shape_cast %459 : vector<8xf32> to vector<8x1xf32>
    %461 = vector.broadcast %460 : vector<8x1xf32> to vector<8x16xf32>
    %462 = arith.subf %458, %461 : vector<8x16xf32>
    %463 = math.exp %462 : vector<8x16xf32>
    %cst_196 = arith.constant dense<0.000000e+00> : vector<8xf32>
    %464 = vector.multi_reduction <add>, %463, %cst_196 [1] : vector<8x16xf32> to vector<8xf32>
    %465 = vector.shape_cast %464 : vector<8xf32> to vector<8x1xf32>
    %466 = tpu.reciprocal %465 {approx = true} : vector<8x1xf32> -> vector<8x1xf32>
    %467 = vector.broadcast %466 : vector<8x1xf32> to vector<8x16xf32>
    %468 = arith.mulf %463, %467 : vector<8x16xf32>
    %cst_197 = arith.constant dense<0.000000e+00> : vector<8x16xf32>
    %469 = tpu.matmul %468, %453, %cst_197 {dimension_numbers = #tpu.dot_dimension_numbers<[1], [0], [0], [1], [0, 0, 1, 1], [], []>} : vector<8x16xf32>, vector<16x16xf32>, vector<8x16xf32> -> vector<8x16xf32>
    %470 = vector.extract_strided_slice %360 {offsets = [1, 0, 0], sizes = [1, 16, 32], strides = [1, 1, 1]} : vector<2x16x32xf32> to vector<1x16x32xf32>
    %471 = vector.shape_cast %470 : vector<1x16x32xf32> to vector<16x32xf32>
    %cst_198 = arith.constant dense<0.000000e+00> : vector<8x32xf32>
    %472 = tpu.matmul %469, %471, %cst_198 {dimension_numbers = #tpu.dot_dimension_numbers<[1], [0], [0], [1], [0, 0, 1, 1], [], []>} : vector<8x16xf32>, vector<16x32xf32>, vector<8x32xf32> -> vector<8x32xf32>
    %473 = arith.addf %450, %472 : vector<8x32xf32>
    %c8_199 = arith.constant 8 : index
    %c0_200 = arith.constant 0 : index
    %474 = vector.load %arg38[%c8_199, %c0_200] : memref<16x32xf32, #tpu.memory_space<vmem>>, vector<8x32xf32>
    tpu.vector_store %arg38[%c8_199, %c0_200], %473 {strides = array<i32>} : memref<16x32xf32, #tpu.memory_space<vmem>>, vector<8x32xf32>,
    %c0_201 = arith.constant 0 : index
    %c0_202 = arith.constant 0 : index
    %475 = vector.load %arg38[%c0_201, %c0_202] : memref<16x32xf32, #tpu.memory_space<vmem>>, vector<16x32xf32>
    %476 = arith.addf %338, %475 : vector<16x32xf32>
    %c0_203 = arith.constant 0 : index
    %c0_204 = arith.constant 0 : index
    %c0_205 = arith.constant 0 : index
    %477 = vector.load %arg26[%c0_203, %c0_204, %c0_205] : memref<1x1x32xf32, #tpu.memory_space<vmem>>, vector<1x1x32xf32>
    %478 = vector.shape_cast %477 : vector<1x1x32xf32> to vector<1x32xf32>
    %479 = arith.mulf %476, %476 : vector<16x32xf32>
    %cst_206 = arith.constant dense<0.000000e+00> : vector<16xf32>
    %480 = vector.multi_reduction <add>, %479, %cst_206 [1] : vector<16x32xf32> to vector<16xf32>
    %481 = vector.shape_cast %480 : vector<16xf32> to vector<16x1xf32>
    %cst_207 = arith.constant 3.200000e+01 : f32
    %482 = vector.broadcast %cst_207 : f32 to vector<16x1xf32>
    %483 = arith.divf %481, %482 : vector<16x1xf32>
    %cst_208 = arith.constant 9.99999997E-7 : f32
    %484 = vector.broadcast %cst_208 : f32 to vector<16x1xf32>
    %485 = arith.addf %483, %484 : vector<16x1xf32>
    %486 = math.rsqrt %485 : vector<16x1xf32>
    %487 = vector.broadcast %486 : vector<16x1xf32> to vector<16x32xf32>
    %488 = arith.mulf %476, %487 : vector<16x32xf32>
    %489 = vector.broadcast %478 : vector<1x32xf32> to vector<16x32xf32>
    %490 = arith.mulf %488, %489 : vector<16x32xf32>
    %c0_209 = arith.constant 0 : index
    %c0_210 = arith.constant 0 : index
    %c0_211 = arith.constant 0 : index
    %491 = vector.load %arg27[%c0_209, %c0_210, %c0_211] : memref<1x32x64xf32, #tpu.memory_space<vmem>>, vector<1x32x64xf32>
    %492 = vector.shape_cast %491 : vector<1x32x64xf32> to vector<32x64xf32>
    %cst_212 = arith.constant dense<0.000000e+00> : vector<16x64xf32>
    %493 = tpu.matmul %490, %492, %cst_212 {dimension_numbers = #tpu.dot_dimension_numbers<[1], [0], [0], [1], [0, 0, 1, 1], [], []>} : vector<16x32xf32>, vector<32x64xf32>, vector<16x64xf32> -> vector<16x64xf32>
    %cst_213 = arith.constant 0.000000e+00 : f32
    %494 = vector.broadcast %cst_213 : f32 to vector<16x64xf32>
    %495 = arith.maximumf %493, %494 : vector<16x64xf32>
    %c0_214 = arith.constant 0 : index
    %c0_215 = arith.constant 0 : index
    %c0_216 = arith.constant 0 : index
    %496 = vector.load %arg28[%c0_214, %c0_215, %c0_216] : memref<1x64x32xf32, #tpu.memory_space<vmem>>, vector<1x64x32xf32>
    %497 = vector.shape_cast %496 : vector<1x64x32xf32> to vector<64x32xf32>
    %cst_217 = arith.constant dense<0.000000e+00> : vector<16x32xf32>
    %498 = tpu.matmul %495, %497, %cst_217 {dimension_numbers = #tpu.dot_dimension_numbers<[1], [0], [0], [1], [0, 0, 1, 1], [], []>} : vector<16x64xf32>, vector<64x32xf32>, vector<16x32xf32> -> vector<16x32xf32>
    %499 = arith.addf %476, %498 : vector<16x32xf32>
    %c0_218 = arith.constant 0 : index
    %c0_219 = arith.constant 0 : index
    %500 = vector.load %arg29[%c0_218, %c0_219] : memref<1x32xf32, #tpu.memory_space<vmem>>, vector<1x32xf32>
    %501 = arith.mulf %499, %499 : vector<16x32xf32>
    %cst_220 = arith.constant dense<0.000000e+00> : vector<16xf32>
    %502 = vector.multi_reduction <add>, %501, %cst_220 [1] : vector<16x32xf32> to vector<16xf32>
    %503 = vector.shape_cast %502 : vector<16xf32> to vector<16x1xf32>
    %cst_221 = arith.constant 3.200000e+01 : f32
    %504 = vector.broadcast %cst_221 : f32 to vector<16x1xf32>
    %505 = arith.divf %503, %504 : vector<16x1xf32>
    %cst_222 = arith.constant 9.99999997E-7 : f32
    %506 = vector.broadcast %cst_222 : f32 to vector<16x1xf32>
    %507 = arith.addf %505, %506 : vector<16x1xf32>
    %508 = math.rsqrt %507 : vector<16x1xf32>
    %509 = vector.broadcast %508 : vector<16x1xf32> to vector<16x32xf32>
    %510 = arith.mulf %499, %509 : vector<16x32xf32>
    %511 = vector.broadcast %500 : vector<1x32xf32> to vector<16x32xf32>
    %512 = arith.mulf %510, %511 : vector<16x32xf32>
    %cst_223 = arith.constant 0.176776692 : f32
    %513 = vector.broadcast %cst_223 : f32 to vector<16x32xf32>
    %514 = arith.mulf %512, %513 : vector<16x32xf32>
    %c0_224 = arith.constant 0 : index
    %c0_225 = arith.constant 0 : index
    %515 = vector.load %arg30[%c0_224, %c0_225] : memref<16x32xf32, #tpu.memory_space<vmem>>, vector<16x32xf32>
    %c0_226 = arith.constant 0 : index
    %c0_227 = arith.constant 0 : index
    %516 = vector.load %arg31[%c0_226, %c0_227] : memref<32x32xf32, #tpu.memory_space<vmem>>, vector<32x32xf32>
    %cst_228 = arith.constant dense<0.000000e+00> : vector<16x32xf32>
    %517 = tpu.matmul %514, %516, %cst_228 {dimension_numbers = #tpu.dot_dimension_numbers<[1], [0], [0], [1], [0, 0, 1, 1], [], []>} : vector<16x32xf32>, vector<32x32xf32>, vector<16x32xf32> -> vector<16x32xf32>
    %c0_229 = arith.constant 0 : index
    %c0_230 = arith.constant 0 : index
    %518 = vector.load %arg32[%c0_229, %c0_230] : memref<32x32xf32, #tpu.memory_space<vmem>>, vector<32x32xf32>
    %cst_231 = arith.constant dense<0.000000e+00> : vector<16x32xf32>
    %519 = tpu.matmul %515, %518, %cst_231 {dimension_numbers = #tpu.dot_dimension_numbers<[1], [0], [0], [1], [0, 0, 1, 1], [], []>} : vector<16x32xf32>, vector<32x32xf32>, vector<16x32xf32> -> vector<16x32xf32>
    %520 = arith.addf %517, %519 : vector<16x32xf32>
    %c0_232 = arith.constant 0 : index
    %c0_233 = arith.constant 0 : index
    %521 = vector.load %arg33[%c0_232, %c0_233] : memref<1x32xf32, #tpu.memory_space<vmem>>, vector<1x32xf32>
    %522 = vector.broadcast %521 : vector<1x32xf32> to vector<16x32xf32>
    %523 = arith.addf %520, %522 : vector<16x32xf32>
    %cst_234 = arith.constant 0.000000e+00 : f32
    %524 = vector.broadcast %cst_234 : f32 to vector<16x32xf32>
    %525 = arith.maximumf %523, %524 : vector<16x32xf32>
    %c0_235 = arith.constant 0 : index
    %c0_236 = arith.constant 0 : index
    %526 = vector.load %arg34[%c0_235, %c0_236] : memref<64x32xf32, #tpu.memory_space<vmem>>, vector<64x32xf32>
    %cst_237 = arith.constant dense<0.000000e+00> : vector<16x64xf32>
    %527 = tpu.matmul %514, %526, %cst_237 {dimension_numbers = #tpu.dot_dimension_numbers<[1], [1], [0], [0], [0, 0, 1, 0], [], []>} : vector<16x32xf32>, vector<64x32xf32>, vector<16x64xf32> -> vector<16x64xf32>
    %cst_238 = arith.constant dense<0.000000e+00> : vector<16x64xf32>
    %528 = tpu.matmul %525, %526, %cst_238 {dimension_numbers = #tpu.dot_dimension_numbers<[1], [1], [0], [0], [0, 0, 1, 0], [], []>} : vector<16x32xf32>, vector<64x32xf32>, vector<16x64xf32> -> vector<16x64xf32>
    %c0_239 = arith.constant 0 : index
    %c0_240 = arith.constant 0 : index
    %529 = vector.load %arg35[%c0_239, %c0_240] : memref<16x1xi32, #tpu.memory_space<vmem>>, vector<16x1xi32>
    %c0_i32 = arith.constant 0 : i32
    %530 = vector.broadcast %c0_i32 : i32 to vector<16x1xi32>
    %531 = arith.cmpi ne, %529, %530 : vector<16x1xi32>
    %532 = arith.extui %531 : vector<16x1xi1> to vector<16x1xi32>
    %533 = arith.sitofp %532 : vector<16x1xi32> to vector<16x1xf32>
    %534 = tpu.iota {dimensions = array<i32: 1>} : vector<16x64xi32>
    %535 = vector.broadcast %529 : vector<16x1xi32> to vector<16x64xi32>
    %536 = arith.cmpi eq, %534, %535 : vector<16x64xi32>
    %537 = arith.extui %536 : vector<16x64xi1> to vector<16x64xi32>
    %538 = arith.sitofp %537 : vector<16x64xi32> to vector<16x64xf32>
    %cst_241 = arith.constant dense<0.000000e+00> : vector<1xf32>
    %539 = vector.multi_reduction <add>, %533, %cst_241 [0] : vector<16x1xf32> to vector<1xf32>
    %540 = vector.shape_cast %539 : vector<1xf32> to vector<1x1xf32>
    %cst_242 = arith.constant 1.000000e+00 : f32
    %541 = vector.broadcast %cst_242 : f32 to vector<1x1xf32>
    %542 = arith.maximumf %540, %541 : vector<1x1xf32>
    %cst_243 = arith.constant 1.000000e+00 : f32
    %543 = vector.broadcast %cst_243 : f32 to vector<1x1xf32>
    %544 = arith.divf %543, %542 : vector<1x1xf32>
    %cst_244 = arith.constant dense<0xFF800000> : vector<16xf32>
    %545 = vector.multi_reduction <maximumf>, %527, %cst_244 [1] : vector<16x64xf32> to vector<16xf32>
    %546 = vector.shape_cast %545 : vector<16xf32> to vector<16x1xf32>
    %547 = vector.broadcast %546 : vector<16x1xf32> to vector<16x64xf32>
    %548 = arith.subf %527, %547 : vector<16x64xf32>
    %549 = math.exp %548 : vector<16x64xf32>
    %cst_245 = arith.constant dense<0.000000e+00> : vector<16xf32>
    %550 = vector.multi_reduction <add>, %549, %cst_245 [1] : vector<16x64xf32> to vector<16xf32>
    %551 = vector.shape_cast %550 : vector<16xf32> to vector<16x1xf32>
    %552 = math.log %551 : vector<16x1xf32>
    %553 = arith.addf %552, %546 : vector<16x1xf32>
    %554 = arith.mulf %527, %538 : vector<16x64xf32>
    %cst_246 = arith.constant dense<0.000000e+00> : vector<16xf32>
    %555 = vector.multi_reduction <add>, %554, %cst_246 [1] : vector<16x64xf32> to vector<16xf32>
    %556 = vector.shape_cast %555 : vector<16xf32> to vector<16x1xf32>
    %557 = arith.subf %553, %556 : vector<16x1xf32>
    %558 = arith.mulf %533, %557 : vector<16x1xf32>
    %cst_247 = arith.constant dense<0.000000e+00> : vector<1xf32>
    %559 = vector.multi_reduction <add>, %558, %cst_247 [0] : vector<16x1xf32> to vector<1xf32>
    %560 = vector.shape_cast %559 : vector<1xf32> to vector<1x1xf32>
    %561 = arith.mulf %560, %544 : vector<1x1xf32>
    %cst_248 = arith.constant dense<0xFF800000> : vector<16xf32>
    %562 = vector.multi_reduction <maximumf>, %528, %cst_248 [1] : vector<16x64xf32> to vector<16xf32>
    %563 = vector.shape_cast %562 : vector<16xf32> to vector<16x1xf32>
    %564 = vector.broadcast %563 : vector<16x1xf32> to vector<16x64xf32>
    %565 = arith.subf %528, %564 : vector<16x64xf32>
    %566 = math.exp %565 : vector<16x64xf32>
    %cst_249 = arith.constant dense<0.000000e+00> : vector<16xf32>
    %567 = vector.multi_reduction <add>, %566, %cst_249 [1] : vector<16x64xf32> to vector<16xf32>
    %568 = vector.shape_cast %567 : vector<16xf32> to vector<16x1xf32>
    %569 = math.log %568 : vector<16x1xf32>
    %570 = arith.addf %569, %563 : vector<16x1xf32>
    %571 = arith.mulf %528, %538 : vector<16x64xf32>
    %cst_250 = arith.constant dense<0.000000e+00> : vector<16xf32>
    %572 = vector.multi_reduction <add>, %571, %cst_250 [1] : vector<16x64xf32> to vector<16xf32>
    %573 = vector.shape_cast %572 : vector<16xf32> to vector<16x1xf32>
    %574 = arith.subf %570, %573 : vector<16x1xf32>
    %575 = arith.mulf %533, %574 : vector<16x1xf32>
    %cst_251 = arith.constant dense<0.000000e+00> : vector<1xf32>
    %576 = vector.multi_reduction <add>, %575, %cst_251 [0] : vector<16x1xf32> to vector<1xf32>
    %577 = vector.shape_cast %576 : vector<1xf32> to vector<1x1xf32>
    %578 = arith.mulf %577, %544 : vector<1x1xf32>
    %579 = tpu.concatenate %561, %578 in 1 : vector<1x1xf32>, vector<1x1xf32> -> vector<1x2xf32>
    %c0_252 = arith.constant 0 : index
    %c0_253 = arith.constant 0 : index
    %580 = vector.load %arg36[%c0_252, %c0_253] : memref<1x2xf32, #tpu.memory_space<vmem>>, vector<1x2xf32>
    tpu.vector_store %arg36[%c0_252, %c0_253], %579 {strides = array<i32>} : memref<1x2xf32, #tpu.memory_space<vmem>>, vector<1x2xf32>,
    return
  }
}

</mosaic_0001>

<llo_original>
// kernel: forward.1
$region0: #{forward.1}
  #allocation0 [shape = 'u32[]', space=smem, size = 0x4, offset = 0x4, fixed_abs, tag = 'smem constant byte address 0x4 - core index']
  #allocation1 [shape = 'u32[144,128]{1,0:T(1,128)}', space=vmem, size = 0x12000, scoped, tag = 'internal scratch']
  #allocation2 [shape = 'f32[32,32]{1,0:T(8,128)}', space=vmem, size = 0x4000, scoped, tag = 'scratch operand']
  #allocation3 [shape = 'f32[16,32]{1,0:T(8,128)}', space=vmem, size = 0x2000, scoped, tag = 'scratch operand']
  %s0 = inlined_call_operand.smem [shape: u32[37], index: -1, kind: input, shape index: {}]
  %s1 = sld [smem:[%s0]]
  %s2 = scalar_lea.smem %s0, 1
  %s3 = sld [smem:[%s2]]
  %s4 = scalar_lea.smem %s0, 2
  %s5 = sld [smem:[%s4]]
  %s6 = scalar_lea.smem %s0, 3
  %s7 = sld [smem:[%s6]]
  %s8 = scalar_lea.smem %s0, 4
  %s9 = sld [smem:[%s8]]
  %s10 = scalar_lea.smem %s0, 5
  %s11 = sld [smem:[%s10]]
  %s12 = scalar_lea.smem %s0, 6
  %s13 = sld [smem:[%s12]]
  %s14 = scalar_lea.smem %s0, 7
  %s15 = sld [smem:[%s14]]
  %s16 = scalar_lea.smem %s0, 8
  %s17 = sld [smem:[%s16]]
  %s18 = scalar_lea.smem %s0, 9
  %s19 = sld [smem:[%s18]]
  %s20 = scalar_lea.smem %s0, 10
  %s21 = sld [smem:[%s20]]
  %s22 = scalar_lea.smem %s0, 11
  %s23 = sld [smem:[%s22]]
  %s24 = scalar_lea.smem %s0, 12
  %s25 = sld [smem:[%s24]]
  %s26 = scalar_lea.smem %s0, 13
  %s27 = sld [smem:[%s26]]
  %s28 = scalar_lea.smem %s0, 14
  %s29 = sld [smem:[%s28]]
  %s30 = scalar_lea.smem %s0, 15
  %s31 = sld [smem:[%s30]]
  %s32 = scalar_lea.smem %s0, 16
  %s33 = sld [smem:[%s32]]
  %s34 = scalar_lea.smem %s0, 17
  %s35 = sld [smem:[%s34]]
  %s36 = scalar_lea.smem %s0, 18
  %s37 = sld [smem:[%s36]]
  %s38 = scalar_lea.smem %s0, 19
  %s39 = sld [smem:[%s38]]
  %s40 = scalar_lea.smem %s0, 20
  %s41 = sld [smem:[%s40]]
  %s42 = scalar_lea.smem %s0, 21
  %s43 = sld [smem:[%s42]]
  %s44 = scalar_lea.smem %s0, 22
  %s45 = sld [smem:[%s44]]
  %s46 = scalar_lea.smem %s0, 23
  %s47 = sld [smem:[%s46]]
  %s48 = scalar_lea.smem %s0, 24
  %s49 = sld [smem:[%s48]]
  %s50 = scalar_lea.smem %s0, 25
  %s51 = sld [smem:[%s50]]
  %s52 = scalar_lea.smem %s0, 26
  %s53 = sld [smem:[%s52]]
  %s54 = scalar_lea.smem %s0, 27
  %s55 = sld [smem:[%s54]]
  %s56 = scalar_lea.smem %s0, 28
  %s57 = sld [smem:[%s56]]
  %s58 = scalar_lea.smem %s0, 29
  %s59 = sld [smem:[%s58]]
  %s60 = scalar_lea.smem %s0, 30
  %s61 = sld [smem:[%s60]]
  %s62 = scalar_lea.smem %s0, 31
  %s63 = sld [smem:[%s62]]
  %s64 = scalar_lea.smem %s0, 32
  %s65 = sld [smem:[%s64]]
  %s66 = scalar_lea.smem %s0, 33
  %s67 = sld [smem:[%s66]]
  %s68 = scalar_lea.smem %s0, 34
  %s69 = sld [smem:[%s68]]
  %s70 = scalar_lea.smem %s0, 35
  %s71 = sld [smem:[%s70]]
  %s72 = scalar_lea.smem %s0, 36
  %s73 = sld [smem:[%s72]]
  %s74 = sld [smem:[#allocation0]]
  $region154: #{forward.1} parent=0
    _
  %s76 = ssub.s32 1, %s74
  %s77 = scalar_select 0, %s76, %s74
  // Predicated region
  $region2: #{forward.1} parent=0 // pred_check
    _
  $region3: #{forward.1} parent=0 // pred_check_branch
    %79 = sbr.rel (0) target = $region5
  $region4: #{forward.1} parent=0 // pred_region
    _
  $region5: #{forward.1} parent=0 // pred_fallthru
    _
  // Predicated region
  $region6: #{forward.1} parent=0 // pred_check
    _
  $region7: #{forward.1} parent=0 // pred_check_branch
    %81 = sbr.rel (0) target = $region9
  $region8: #{forward.1} parent=0 // pred_region
    _
  $region9: #{forward.1} parent=0 // pred_fallthru
    _
  // Predicated region
  $region10: #{forward.1} parent=0 // pred_check
    _
  $region11: #{forward.1} parent=0 // pred_check_branch
    %83 = sbr.rel (0) target = $region13
  $region12: #{forward.1} parent=0 // pred_region
    _
  $region13: #{forward.1} parent=0 // pred_fallthru
    _
  // Predicated region
  $region14: #{forward.1} parent=0 // pred_check
    _
  $region15: #{forward.1} parent=0 // pred_check_branch
    %85 = sbr.rel (0) target = $region17
  $region16: #{forward.1} parent=0 // pred_region
    _
  $region17: #{forward.1} parent=0 // pred_fallthru
    _
  // Predicated region
  $region18: #{forward.1} parent=0 // pred_check
    _
  $region19: #{forward.1} parent=0 // pred_check_branch
    %87 = sbr.rel (0) target = $region21
  $region20: #{forward.1} parent=0 // pred_region
    _
  $region21: #{forward.1} parent=0 // pred_fallthru
    _
  // Predicated region
  $region22: #{forward.1} parent=0 // pred_check
    _
  $region23: #{forward.1} parent=0 // pred_check_branch
    %89 = sbr.rel (0) target = $region25
  $region24: #{forward.1} parent=0 // pred_region
    _
  $region25: #{forward.1} parent=0 // pred_fallthru
    _
  // Predicated region
  $region26: #{forward.1} parent=0 // pred_check
    _
  $region27: #{forward.1} parent=0 // pred_check_branch
    %91 = sbr.rel (0) target = $region29
  $region28: #{forward.1} parent=0 // pred_region
    _
  $region29: #{forward.1} parent=0 // pred_fallthru
    _
  // Predicated region
  $region30: #{forward.1} parent=0 // pred_check
    _
  $region31: #{forward.1} parent=0 // pred_check_branch
    %93 = sbr.rel (0) target = $region33
  $region32: #{forward.1} parent=0 // pred_region
    _
  $region33: #{forward.1} parent=0 // pred_fallthru
    _
  // Predicated region
  $region34: #{forward.1} parent=0 // pred_check
    _
  $region35: #{forward.1} parent=0 // pred_check_branch
    %95 = sbr.rel (0) target = $region37
  $region36: #{forward.1} parent=0 // pred_region
    _
  $region37: #{forward.1} parent=0 // pred_fallthru
    _
  // Predicated region
  $region38: #{forward.1} parent=0 // pred_check
    _
  $region39: #{forward.1} parent=0 // pred_check_branch
    %97 = sbr.rel (0) target = $region41
  $region40: #{forward.1} parent=0 // pred_region
    _
  $region41: #{forward.1} parent=0 // pred_fallthru
    _
  // Predicated region
  $region42: #{forward.1} parent=0 // pred_check
    _
  $region43: #{forward.1} parent=0 // pred_check_branch
    %99 = sbr.rel (0) target = $region45
  $region44: #{forward.1} parent=0 // pred_region
    _
  $region45: #{forward.1} parent=0 // pred_fallthru
    _
  // Predicated region
  $region46: #{forward.1} parent=0 // pred_check
    _
  $region47: #{forward.1} parent=0 // pred_check_branch
    %101 = sbr.rel (0) target = $region49
  $region48: #{forward.1} parent=0 // pred_region
    _
  $region49: #{forward.1} parent=0 // pred_fallthru
    _
  // Predicated region
  $region50: #{forward.1} parent=0 // pred_check
    _
  $region51: #{forward.1} parent=0 // pred_check_branch
    %103 = sbr.rel (0) target = $region53
  $region52: #{forward.1} parent=0 // pred_region
    _
  $region53: #{forward.1} parent=0 // pred_fallthru
    _
  // Predicated region
  $region54: #{forward.1} parent=0 // pred_check
    _
  $region55: #{forward.1} parent=0 // pred_check_branch
    %105 = sbr.rel (0) target = $region57
  $region56: #{forward.1} parent=0 // pred_region
    _
  $region57: #{forward.1} parent=0 // pred_fallthru
    _
  // Predicated region
  $region58: #{forward.1} parent=0 // pred_check
    _
  $region59: #{forward.1} parent=0 // pred_check_branch
    %107 = sbr.rel (0) target = $region61
  $region60: #{forward.1} parent=0 // pred_region
    _
  $region61: #{forward.1} parent=0 // pred_fallthru
    _
  // Predicated region
  $region62: #{forward.1} parent=0 // pred_check
    _
  $region63: #{forward.1} parent=0 // pred_check_branch
    %109 = sbr.rel (0) target = $region65
  $region64: #{forward.1} parent=0 // pred_region
    _
  $region65: #{forward.1} parent=0 // pred_fallthru
    _
  // Predicated region
  $region66: #{forward.1} parent=0 // pred_check
    _
  $region67: #{forward.1} parent=0 // pred_check_branch
    %111 = sbr.rel (0) target = $region69
  $region68: #{forward.1} parent=0 // pred_region
    _
  $region69: #{forward.1} parent=0 // pred_fallthru
    _
  // Predicated region
  $region70: #{forward.1} parent=0 // pred_check
    _
  $region71: #{forward.1} parent=0 // pred_check_branch
    %113 = sbr.rel (0) target = $region73
  $region72: #{forward.1} parent=0 // pred_region
    _
  $region73: #{forward.1} parent=0 // pred_fallthru
    _
  // Predicated region
  $region74: #{forward.1} parent=0 // pred_check
    _
  $region75: #{forward.1} parent=0 // pred_check_branch
    %115 = sbr.rel (0) target = $region77
  $region76: #{forward.1} parent=0 // pred_region
    _
  $region77: #{forward.1} parent=0 // pred_fallthru
    _
  // Predicated region
  $region78: #{forward.1} parent=0 // pred_check
    _
  $region79: #{forward.1} parent=0 // pred_check_branch
    %117 = sbr.rel (0) target = $region81
  $region80: #{forward.1} parent=0 // pred_region
    _
  $region81: #{forward.1} parent=0 // pred_fallthru
    _
  // Predicated region
  $region82: #{forward.1} parent=0 // pred_check
    _
  $region83: #{forward.1} parent=0 // pred_check_branch
    %119 = sbr.rel (0) target = $region85
  $region84: #{forward.1} parent=0 // pred_region
    _
  $region85: #{forward.1} parent=0 // pred_fallthru
    _
  // Predicated region
  $region86: #{forward.1} parent=0 // pred_check
    _
  $region87: #{forward.1} parent=0 // pred_check_branch
    %121 = sbr.rel (0) target = $region89
  $region88: #{forward.1} parent=0 // pred_region
    _
  $region89: #{forward.1} parent=0 // pred_fallthru
    _
  // Predicated region
  $region90: #{forward.1} parent=0 // pred_check
    _
  $region91: #{forward.1} parent=0 // pred_check_branch
    %123 = sbr.rel (0) target = $region93
  $region92: #{forward.1} parent=0 // pred_region
    _
  $region93: #{forward.1} parent=0 // pred_fallthru
    _
  // Predicated region
  $region94: #{forward.1} parent=0 // pred_check
    _
  $region95: #{forward.1} parent=0 // pred_check_branch
    %125 = sbr.rel (0) target = $region97
  $region96: #{forward.1} parent=0 // pred_region
    _
  $region97: #{forward.1} parent=0 // pred_fallthru
    _
  // Predicated region
  $region98: #{forward.1} parent=0 // pred_check
    _
  $region99: #{forward.1} parent=0 // pred_check_branch
    %127 = sbr.rel (0) target = $region101
  $region100: #{forward.1} parent=0 // pred_region
    _
  $region101: #{forward.1} parent=0 // pred_fallthru
    _
  // Predicated region
  $region102: #{forward.1} parent=0 // pred_check
    _
  $region103: #{forward.1} parent=0 // pred_check_branch
    %129 = sbr.rel (0) target = $region105
  $region104: #{forward.1} parent=0 // pred_region
    _
  $region105: #{forward.1} parent=0 // pred_fallthru
    _
  // Predicated region
  $region106: #{forward.1} parent=0 // pred_check
    _
  $region107: #{forward.1} parent=0 // pred_check_branch
    %131 = sbr.rel (0) target = $region109
  $region108: #{forward.1} parent=0 // pred_region
    _
  $region109: #{forward.1} parent=0 // pred_fallthru
    _
  // Predicated region
  $region110: #{forward.1} parent=0 // pred_check
    _
  $region111: #{forward.1} parent=0 // pred_check_branch
    %133 = sbr.rel (0) target = $region113
  $region112: #{forward.1} parent=0 // pred_region
    _
  $region113: #{forward.1} parent=0 // pred_fallthru
    _
  // Predicated region
  $region114: #{forward.1} parent=0 // pred_check
    _
  $region115: #{forward.1} parent=0 // pred_check_branch
    %135 = sbr.rel (0) target = $region117
  $region116: #{forward.1} parent=0 // pred_region
    _
  $region117: #{forward.1} parent=0 // pred_fallthru
    _
  // Predicated region
  $region118: #{forward.1} parent=0 // pred_check
    _
  $region119: #{forward.1} parent=0 // pred_check_branch
    %137 = sbr.rel (0) target = $region121
  $region120: #{forward.1} parent=0 // pred_region
    _
  $region121: #{forward.1} parent=0 // pred_fallthru
    _
  // Predicated region
  $region122: #{forward.1} parent=0 // pred_check
    _
  $region123: #{forward.1} parent=0 // pred_check_branch
    %139 = sbr.rel (0) target = $region125
  $region124: #{forward.1} parent=0 // pred_region
    _
  $region125: #{forward.1} parent=0 // pred_fallthru
    _
  // Predicated region
  $region126: #{forward.1} parent=0 // pred_check
    _
  $region127: #{forward.1} parent=0 // pred_check_branch
    %141 = sbr.rel (0) target = $region129
  $region128: #{forward.1} parent=0 // pred_region
    _
  $region129: #{forward.1} parent=0 // pred_fallthru
    _
  // Predicated region
  $region130: #{forward.1} parent=0 // pred_check
    _
  $region131: #{forward.1} parent=0 // pred_check_branch
    %143 = sbr.rel (0) target = $region133
  $region132: #{forward.1} parent=0 // pred_region
    _
  $region133: #{forward.1} parent=0 // pred_fallthru
    _
  // Predicated region
  $region134: #{forward.1} parent=0 // pred_check
    _
  $region135: #{forward.1} parent=0 // pred_check_branch
    %145 = sbr.rel (0) target = $region137
  $region136: #{forward.1} parent=0 // pred_region
    _
  $region137: #{forward.1} parent=0 // pred_fallthru
    _
  // Predicated region
  $region138: #{forward.1} parent=0 // pred_check
    _
  $region139: #{forward.1} parent=0 // pred_check_branch
    %147 = sbr.rel (0) target = $region141
  $region140: #{forward.1} parent=0 // pred_region
    _
  $region141: #{forward.1} parent=0 // pred_fallthru
    _
  // Predicated region
  $region142: #{forward.1} parent=0 // pred_check
    _
  $region143: #{forward.1} parent=0 // pred_check_branch
    %149 = sbr.rel (0) target = $region145
  $region144: #{forward.1} parent=0 // pred_region
    _
  $region145: #{forward.1} parent=0 // pred_fallthru
    _
  %v150 = vld [vmem:[%s1] sm:$0xff]
  %v151 = vld [vmem:[%s1 + $0x8] sm:$0xff]
  %v152 = vld [vmem:[%s1 + $0x10] sm:$0xff]
  %v153 = vld [vmem:[%s1 + $0x18] sm:$0xff]
  %v154 = vld [vmem:[%s3] sm:$0xff]
  %v155 = vld [vmem:[%s3 + $0x8] sm:$0xff]
  %v156 = vld [vmem:[%s3 + $0x10] sm:$0xff]
  %v157 = vld [vmem:[%s3 + $0x18] sm:$0xff]
  %v158 = vld [vmem:[%s5] sm:$0x1]
  %v159 = vld [vmem:[%s5 + $0x1] sm:$0x1]
  %v160 = vld [vmem:[%s7] sm:$0x1]
  %v161 = vmul.f32 %v150, %v150
  %v162 = vmul.f32 %v151, %v151
  %v163 = vmul.f32 %v152, %v152
  %v164 = vmul.f32 %v153, %v153
  %vm165 = vcmask 261120
  %v166 = vsel %vm165, %v161, 0.0
  %167 = vadd.xlane.f32.xlu0 %v166
  %v168 = vpop.xlane.xlu0 %167
  %v169 = vsel %vm165, %v162, 0.0
  %170 = vadd.xlane.f32.xlu0 %v169
  %v171 = vpop.xlane.xlu0 %170
  %v172 = vsel %vm165, %v163, 0.0
  %173 = vadd.xlane.f32.xlu0 %v172
  %v174 = vpop.xlane.xlu0 %173
  %v175 = vsel %vm165, %v164, 0.0
  %176 = vadd.xlane.f32.xlu0 %v175
  %v177 = vpop.xlane.xlu0 %176
  %v178 = vrcp.pop 32.0
  %v179 = vmul.f32 %v168, %v178
  %v180 = vmul.f32 %v171, %v178
  %v181 = vmul.f32 %v174, %v178
  %v182 = vmul.f32 %v177, %v178
  %v183 = vadd.f32 %v179, 1e-06
  %v184 = vadd.f32 %v180, 1e-06
  %v185 = vadd.f32 %v181, 1e-06
  %v186 = vadd.f32 %v182, 1e-06
  %v187 = vrsqrt.pop %v183
  %v188 = vrsqrt.pop %v184
  %v189 = vrsqrt.pop %v185
  %v190 = vrsqrt.pop %v186
  %v191 = vmul.f32 %v150, %v187
  %v192 = vmul.f32 %v151, %v188
  %v193 = vmul.f32 %v152, %v189
  %v194 = vmul.f32 %v153, %v190
  %v196 = vlaneseq
  %v197 = vshrl.u32 %v196, 7
  %v198 = vsub.s32 0, %v197
  %v199 = vrot.slane %v160, %v198
  %v201 = vmul.f32 %v191, %v199
  %v202 = vmul.f32 %v192, %v199
  %v203 = vmul.f32 %v193, %v199
  %v204 = vmul.f32 %v194, %v199
  %v205 = vld [vmem:[%s9] sm:$0xff]
  %v206 = vld [vmem:[%s9 + $0x8] sm:$0xff]
  %v207 = vld [vmem:[%s9 + $0x10] sm:$0xff]
  %v208 = vld [vmem:[%s9 + $0x18] sm:$0xff]
  %v209 = vld [vmem:[%s9 + $0x20] sm:$0xff]
  %v210 = vld [vmem:[%s9 + $0x28] sm:$0xff]
  %v211 = vld [vmem:[%s9 + $0x30] sm:$0xff]
  %v212 = vld [vmem:[%s9 + $0x38] sm:$0xff]
  %v213 = vld [vmem:[%s11] sm:$0xff]
  %v214 = vld [vmem:[%s11 + $0x8] sm:$0xff]
  %v215 = vld [vmem:[%s11 + $0x10] sm:$0xff]
  %v216 = vld [vmem:[%s11 + $0x18] sm:$0xff]
  %v217 = vld [vmem:[%s11 + $0x20] sm:$0xff]
  %v218 = vld [vmem:[%s11 + $0x28] sm:$0xff]
  %v219 = vld [vmem:[%s11 + $0x30] sm:$0xff]
  %v220 = vld [vmem:[%s11 + $0x38] sm:$0xff]
  %v221 = vld [vmem:[%s13] sm:$0xff]
  %v222 = vld [vmem:[%s13 + $0x8] sm:$0xff]
  %v223 = vld [vmem:[%s13 + $0x10] sm:$0xff]
  %v224 = vld [vmem:[%s13 + $0x18] sm:$0xff]
  %v225 = vld [vmem:[%s13 + $0x20] sm:$0xff]
  %v226 = vld [vmem:[%s13 + $0x28] sm:$0xff]
  %v227 = vld [vmem:[%s13 + $0x30] sm:$0xff]
  %v228 = vld [vmem:[%s13 + $0x38] sm:$0xff]
  %v229 = vld [vmem:[%s15] sm:$0xff]
  %v230 = vld [vmem:[%s15 + $0x8] sm:$0xff]
  %v231 = vld [vmem:[%s15 + $0x10] sm:$0xff]
  %v232 = vld [vmem:[%s15 + $0x18] sm:$0xff]
  %v234 = vsel %vm165, %v201, 0
  %v237 = vsel %vm165, %v202, 0
  %v240 = vsel %vm165, %v203, 0
  %v243 = vsel %vm165, %v204, 0
  %245 = vmatprep.subr.mxu0 0.0
  %246 = vmatpush1.msra.mxu0 0.0
  %247 = vmatprep.subr.mxu0 0.0
  %248 = vmatpush1.msra.mxu0 0.0
  %249 = vmatprep.subr.mxu0 0.0
  %250 = vmatpush1.msra.mxu0 0.0
  %251 = vmatprep.subr.mxu0 0.0
  %252 = vmatpush1.msra.mxu0 0.0
  %253 = vmatprep.subr.mxu0 0.0
  %254 = vmatpush1.msra.mxu0 0.0
  %255 = vmatprep.subr.mxu0 0.0
  %256 = vmatpush1.msra.mxu0 0.0
  %257 = vmatprep.subr.mxu0 0.0
  %258 = vmatpush1.msra.mxu0 0.0
  %259 = vmatprep.subr.mxu0 0.0
  %260 = vmatpush1.msra.mxu0 0.0
  %261 = vmatprep.subr.mxu0 0.0
  %262 = vmatpush1.msra.mxu0 0.0
  %263 = vmatprep.subr.mxu0 0.0
  %264 = vmatpush1.msra.mxu0 0.0
  %265 = vmatprep.subr.mxu0 0.0
  %266 = vmatpush1.msra.mxu0 0.0
  %267 = vmatprep.subr.mxu0 0.0
  %268 = vmatpush1.msra.mxu0 0.0
  %269 = vmatprep.subr.mxu0 0.0
  %270 = vmatpush1.msra.mxu0 %v208
  %271 = vmatprep.subr.mxu0 0.0
  %272 = vmatpush1.msra.mxu0 %v207
  %273 = vmatprep.subr.mxu0 0.0
  %274 = vmatpush1.msra.mxu0 %v206
  %275 = vmatprep.subr.mxu0 0.0
  %276 = vmatpush1.msra.mxu0 %v205
  %277 = vmatprep.subr.mxu0 0.0
  %278 = vmatpush2.msra.mxu0 0.0
  %279 = vmatprep.subr.mxu0 0.0
  %280 = vmatpush2.msra.mxu0 0.0
  %281 = vmatprep.subr.mxu0 0.0
  %282 = vmatpush2.msra.mxu0 0.0
  %283 = vmatprep.subr.mxu0 0.0
  %284 = vmatpush2.msra.mxu0 0.0
  %285 = vmatprep.subr.mxu0 0.0
  %286 = vmatpush2.msra.mxu0 0.0
  %287 = vmatprep.subr.mxu0 0.0
  %288 = vmatpush2.msra.mxu0 0.0
  %289 = vmatprep.subr.mxu0 0.0
  %290 = vmatpush2.msra.mxu0 0.0
  %291 = vmatprep.subr.mxu0 0.0
  %292 = vmatpush2.msra.mxu0 0.0
  %293 = vmatprep.subr.mxu0 0.0
  %294 = vmatpush2.msra.mxu0 0.0
  %295 = vmatprep.subr.mxu0 0.0
  %296 = vmatpush2.msra.mxu0 0.0
  %297 = vmatprep.subr.mxu0 0.0
  %298 = vmatpush2.msra.mxu0 0.0
  %299 = vmatprep.subr.mxu0 0.0
  %300 = vmatpush2.msra.mxu0 0.0
  %301 = vmatprep.subr.mxu0 0.0
  %302 = vmatpush2.msra.mxu0 0.0
  %303 = vmatprep.subr.mxu0 0.0
  %304 = vmatpush2.msra.mxu0 0.0
  %305 = vmatprep.subr.mxu0 0.0
  %306 = vmatpush2.msra.mxu0 0.0
  %307 = vmatprep.subr.mxu0 0.0
  %308 = vmatpush2.msra.mxu0 0.0
  %309 = vmatprep.mubr.f32.mxu0 0.0
  %310 = vmatmul.mubr.f32.gmra.mxu0 %v234
  %v311 = vpop.f32.mrf.mxu0
  %v312 = vadd.f32 0.0, %v311
  %v313 = vpop.f32.mrf.mxu0
  %314 = vmatprep.mubr.f32.mxu0 0.0
  %315 = vmatmul.mubr.f32.gmra.mxu0 %v237
  %v316 = vpop.f32.mrf.mxu0
  %v317 = vadd.f32 0.0, %v316
  %v318 = vpop.f32.mrf.mxu0
  %319 = vmatprep.mubr.f32.mxu0 0.0
  %320 = vmatmul.mubr.f32.gmra.mxu0 %v240
  %v321 = vpop.f32.mrf.mxu0
  %v322 = vadd.f32 0.0, %v321
  %v323 = vpop.f32.mrf.mxu0
  %324 = vmatprep.mubr.f32.mxu0 0.0
  %325 = vmatmul.mubr.f32.gmra.mxu0 %v243
  %v326 = vpop.f32.mrf.mxu0
  %v327 = vadd.f32 0.0, %v326
  %v328 = vpop.f32.mrf.mxu0
  %329 = vdwg.mxu0
  %330 = vmatprep.subr.mxu0 0.0
  %331 = vmatpush1.msra.mxu0 0.0
  %332 = vmatprep.subr.mxu0 0.0
  %333 = vmatpush1.msra.mxu0 0.0
  %334 = vmatprep.subr.mxu0 0.0
  %335 = vmatpush1.msra.mxu0 0.0
  %336 = vmatprep.subr.mxu0 0.0
  %337 = vmatpush1.msra.mxu0 0.0
  %338 = vmatprep.subr.mxu0 0.0
  %339 = vmatpush1.msra.mxu0 0.0
  %340 = vmatprep.subr.mxu0 0.0
  %341 = vmatpush1.msra.mxu0 0.0
  %342 = vmatprep.subr.mxu0 0.0
  %343 = vmatpush1.msra.mxu0 0.0
  %344 = vmatprep.subr.mxu0 0.0
  %345 = vmatpush1.msra.mxu0 0.0
  %346 = vmatprep.subr.mxu0 0.0
  %347 = vmatpush1.msra.mxu0 0.0
  %348 = vmatprep.subr.mxu0 0.0
  %349 = vmatpush1.msra.mxu0 0.0
  %350 = vmatprep.subr.mxu0 0.0
  %351 = vmatpush1.msra.mxu0 0.0
  %352 = vmatprep.subr.mxu0 0.0
  %353 = vmatpush1.msra.mxu0 0.0
  %354 = vmatprep.subr.mxu0 0.0
  %355 = vmatpush1.msra.mxu0 %v212
  %356 = vmatprep.subr.mxu0 0.0
  %357 = vmatpush1.msra.mxu0 %v211
  %358 = vmatprep.subr.mxu0 0.0
  %359 = vmatpush1.msra.mxu0 %v210
  %360 = vmatprep.subr.mxu0 0.0
  %361 = vmatpush1.msra.mxu0 %v209
  %362 = vmatprep.subr.mxu0 0.0
  %363 = vmatpush2.msra.mxu0 0.0
  %364 = vmatprep.subr.mxu0 0.0
  %365 = vmatpush2.msra.mxu0 0.0
  %366 = vmatprep.subr.mxu0 0.0
  %367 = vmatpush2.msra.mxu0 0.0
  %368 = vmatprep.subr.mxu0 0.0
  %369 = vmatpush2.msra.mxu0 0.0
  %370 = vmatprep.subr.mxu0 0.0
  %371 = vmatpush2.msra.mxu0 0.0
  %372 = vmatprep.subr.mxu0 0.0
  %373 = vmatpush2.msra.mxu0 0.0
  %374 = vmatprep.subr.mxu0 0.0
  %375 = vmatpush2.msra.mxu0 0.0
  %376 = vmatprep.subr.mxu0 0.0
  %377 = vmatpush2.msra.mxu0 0.0
  %378 = vmatprep.subr.mxu0 0.0
  %379 = vmatpush2.msra.mxu0 0.0
  %380 = vmatprep.subr.mxu0 0.0
  %381 = vmatpush2.msra.mxu0 0.0
  %382 = vmatprep.subr.mxu0 0.0
  %383 = vmatpush2.msra.mxu0 0.0
  %384 = vmatprep.subr.mxu0 0.0
  %385 = vmatpush2.msra.mxu0 0.0
  %386 = vmatprep.subr.mxu0 0.0
  %387 = vmatpush2.msra.mxu0 0.0
  %388 = vmatprep.subr.mxu0 0.0
  %389 = vmatpush2.msra.mxu0 0.0
  %390 = vmatprep.subr.mxu0 0.0
  %391 = vmatpush2.msra.mxu0 0.0
  %392 = vmatprep.subr.mxu0 0.0
  %393 = vmatpush2.msra.mxu0 0.0
  %394 = vmatprep.mubr.f32.mxu0 0.0
  %395 = vmatmul.mubr.f32.gmra.mxu0 %v234
  %v396 = vpop.f32.mrf.mxu0
  %v397 = vadd.f32 0.0, %v396
  %v398 = vpop.f32.mrf.mxu0
  %399 = vmatprep.mubr.f32.mxu0 0.0
  %400 = vmatmul.mubr.f32.gmra.mxu0 %v237
  %v401 = vpop.f32.mrf.mxu0
  %v402 = vadd.f32 0.0, %v401
  %v403 = vpop.f32.mrf.mxu0
  %404 = vmatprep.mubr.f32.mxu0 0.0
  %405 = vmatmul.mubr.f32.gmra.mxu0 %v240
  %v406 = vpop.f32.mrf.mxu0
  %v407 = vadd.f32 0.0, %v406
  %v408 = vpop.f32.mrf.mxu0
  %409 = vmatprep.mubr.f32.mxu0 0.0
  %410 = vmatmul.mubr.f32.gmra.mxu0 %v243
  %v411 = vpop.f32.mrf.mxu0
  %v412 = vadd.f32 0.0, %v411
  %v413 = vpop.f32.mrf.mxu0
  %414 = vdwg.mxu0
  %415 = vmatprep.subr.mxu0 0.0
  %416 = vmatpush1.msra.mxu0 0.0
  %417 = vmatprep.subr.mxu0 0.0
  %418 = vmatpush1.msra.mxu0 0.0
  %419 = vmatprep.subr.mxu0 0.0
  %420 = vmatpush1.msra.mxu0 0.0
  %421 = vmatprep.subr.mxu0 0.0
  %422 = vmatpush1.msra.mxu0 0.0
  %423 = vmatprep.subr.mxu0 0.0
  %424 = vmatpush1.msra.mxu0 0.0
  %425 = vmatprep.subr.mxu0 0.0
  %426 = vmatpush1.msra.mxu0 0.0
  %427 = vmatprep.subr.mxu0 0.0
  %428 = vmatpush1.msra.mxu0 0.0
  %429 = vmatprep.subr.mxu0 0.0
  %430 = vmatpush1.msra.mxu0 0.0
  %431 = vmatprep.subr.mxu0 0.0
  %432 = vmatpush1.msra.mxu0 0.0
  %433 = vmatprep.subr.mxu0 0.0
  %434 = vmatpush1.msra.mxu0 0.0
  %435 = vmatprep.subr.mxu0 0.0
  %436 = vmatpush1.msra.mxu0 0.0
  %437 = vmatprep.subr.mxu0 0.0
  %438 = vmatpush1.msra.mxu0 0.0
  %439 = vmatprep.subr.mxu0 0.0
  %440 = vmatpush1.msra.mxu0 %v216
  %441 = vmatprep.subr.mxu0 0.0
  %442 = vmatpush1.msra.mxu0 %v215
  %443 = vmatprep.subr.mxu0 0.0
  %444 = vmatpush1.msra.mxu0 %v214
  %445 = vmatprep.subr.mxu0 0.0
  %446 = vmatpush1.msra.mxu0 %v213
  %447 = vmatprep.subr.mxu0 0.0
  %448 = vmatpush2.msra.mxu0 0.0
  %449 = vmatprep.subr.mxu0 0.0
  %450 = vmatpush2.msra.mxu0 0.0
  %451 = vmatprep.subr.mxu0 0.0
  %452 = vmatpush2.msra.mxu0 0.0
  %453 = vmatprep.subr.mxu0 0.0
  %454 = vmatpush2.msra.mxu0 0.0
  %455 = vmatprep.subr.mxu0 0.0
  %456 = vmatpush2.msra.mxu0 0.0
  %457 = vmatprep.subr.mxu0 0.0
  %458 = vmatpush2.msra.mxu0 0.0
  %459 = vmatprep.subr.mxu0 0.0
  %460 = vmatpush2.msra.mxu0 0.0
  %461 = vmatprep.subr.mxu0 0.0
  %462 = vmatpush2.msra.mxu0 0.0
  %463 = vmatprep.subr.mxu0 0.0
  %464 = vmatpush2.msra.mxu0 0.0
  %465 = vmatprep.subr.mxu0 0.0
  %466 = vmatpush2.msra.mxu0 0.0
  %467 = vmatprep.subr.mxu0 0.0
  %468 = vmatpush2.msra.mxu0 0.0
  %469 = vmatprep.subr.mxu0 0.0
  %470 = vmatpush2.msra.mxu0 0.0
  %471 = vmatprep.subr.mxu0 0.0
  %472 = vmatpush2.msra.mxu0 0.0
  %473 = vmatprep.subr.mxu0 0.0
  %474 = vmatpush2.msra.mxu0 0.0
  %475 = vmatprep.subr.mxu0 0.0
  %476 = vmatpush2.msra.mxu0 0.0
  %477 = vmatprep.subr.mxu0 0.0
  %478 = vmatpush2.msra.mxu0 0.0
  %479 = vmatprep.mubr.f32.mxu0 0.0
  %480 = vmatmul.mubr.f32.gmra.mxu0 %v234
  %v481 = vpop.f32.mrf.mxu0
  %v482 = vadd.f32 0.0, %v481
  %v483 = vpop.f32.mrf.mxu0
  %484 = vmatprep.mubr.f32.mxu0 0.0
  %485 = vmatmul.mubr.f32.gmra.mxu0 %v237
  %v486 = vpop.f32.mrf.mxu0
  %v487 = vadd.f32 0.0, %v486
  %v488 = vpop.f32.mrf.mxu0
  %489 = vmatprep.mubr.f32.mxu0 0.0
  %490 = vmatmul.mubr.f32.gmra.mxu0 %v240
  %v491 = vpop.f32.mrf.mxu0
  %v492 = vadd.f32 0.0, %v491
  %v493 = vpop.f32.mrf.mxu0
  %494 = vmatprep.mubr.f32.mxu0 0.0
  %495 = vmatmul.mubr.f32.gmra.mxu0 %v243
  %v496 = vpop.f32.mrf.mxu0
  %v497 = vadd.f32 0.0, %v496
  %v498 = vpop.f32.mrf.mxu0
  %499 = vdwg.mxu0
  %500 = vmatprep.subr.mxu0 0.0
  %501 = vmatpush1.msra.mxu0 0.0
  %502 = vmatprep.subr.mxu0 0.0
  %503 = vmatpush1.msra.mxu0 0.0
  %504 = vmatprep.subr.mxu0 0.0
  %505 = vmatpush1.msra.mxu0 0.0
  %506 = vmatprep.subr.mxu0 0.0
  %507 = vmatpush1.msra.mxu0 0.0
  %508 = vmatprep.subr.mxu0 0.0
  %509 = vmatpush1.msra.mxu0 0.0
  %510 = vmatprep.subr.mxu0 0.0
  %511 = vmatpush1.msra.mxu0 0.0
  %512 = vmatprep.subr.mxu0 0.0
  %513 = vmatpush1.msra.mxu0 0.0
  %514 = vmatprep.subr.mxu0 0.0
  %515 = vmatpush1.msra.mxu0 0.0
  %516 = vmatprep.subr.mxu0 0.0
  %517 = vmatpush1.msra.mxu0 0.0
  %518 = vmatprep.subr.mxu0 0.0
  %519 = vmatpush1.msra.mxu0 0.0
  %520 = vmatprep.subr.mxu0 0.0
  %521 = vmatpush1.msra.mxu0 0.0
  %522 = vmatprep.subr.mxu0 0.0
  %523 = vmatpush1.msra.mxu0 0.0
  %524 = vmatprep.subr.mxu0 0.0
  %525 = vmatpush1.msra.mxu0 %v220
  %526 = vmatprep.subr.mxu0 0.0
  %527 = vmatpush1.msra.mxu0 %v219
  %528 = vmatprep.subr.mxu0 0.0
  %529 = vmatpush1.msra.mxu0 %v218
  %530 = vmatprep.subr.mxu0 0.0
  %531 = vmatpush1.msra.mxu0 %v217
  %532 = vmatprep.subr.mxu0 0.0
  %533 = vmatpush2.msra.mxu0 0.0
  %534 = vmatprep.subr.mxu0 0.0
  %535 = vmatpush2.msra.mxu0 0.0
  %536 = vmatprep.subr.mxu0 0.0
  %537 = vmatpush2.msra.mxu0 0.0
  %538 = vmatprep.subr.mxu0 0.0
  %539 = vmatpush2.msra.mxu0 0.0
  %540 = vmatprep.subr.mxu0 0.0
  %541 = vmatpush2.msra.mxu0 0.0
  %542 = vmatprep.subr.mxu0 0.0
  %543 = vmatpush2.msra.mxu0 0.0
  %544 = vmatprep.subr.mxu0 0.0
  %545 = vmatpush2.msra.mxu0 0.0
  %546 = vmatprep.subr.mxu0 0.0
  %547 = vmatpush2.msra.mxu0 0.0
  %548 = vmatprep.subr.mxu0 0.0
  %549 = vmatpush2.msra.mxu0 0.0
  %550 = vmatprep.subr.mxu0 0.0
  %551 = vmatpush2.msra.mxu0 0.0
  %552 = vmatprep.subr.mxu0 0.0
  %553 = vmatpush2.msra.mxu0 0.0
  %554 = vmatprep.subr.mxu0 0.0
  %555 = vmatpush2.msra.mxu0 0.0
  %556 = vmatprep.subr.mxu0 0.0
  %557 = vmatpush2.msra.mxu0 0.0
  %558 = vmatprep.subr.mxu0 0.0
  %559 = vmatpush2.msra.mxu0 0.0
  %560 = vmatprep.subr.mxu0 0.0
  %561 = vmatpush2.msra.mxu0 0.0
  %562 = vmatprep.subr.mxu0 0.0
  %563 = vmatpush2.msra.mxu0 0.0
  %564 = vmatprep.mubr.f32.mxu0 0.0
  %565 = vmatmul.mubr.f32.gmra.mxu0 %v234
  %v566 = vpop.f32.mrf.mxu0
  %v567 = vadd.f32 0.0, %v566
  %v568 = vpop.f32.mrf.mxu0
  %569 = vmatprep.mubr.f32.mxu0 0.0
  %570 = vmatmul.mubr.f32.gmra.mxu0 %v237
  %v571 = vpop.f32.mrf.mxu0
  %v572 = vadd.f32 0.0, %v571
  %v573 = vpop.f32.mrf.mxu0
  %574 = vmatprep.mubr.f32.mxu0 0.0
  %575 = vmatmul.mubr.f32.gmra.mxu0 %v240
  %v576 = vpop.f32.mrf.mxu0
  %v577 = vadd.f32 0.0, %v576
  %v578 = vpop.f32.mrf.mxu0
  %579 = vmatprep.mubr.f32.mxu0 0.0
  %580 = vmatmul.mubr.f32.gmra.mxu0 %v243
  %v581 = vpop.f32.mrf.mxu0
  %v582 = vadd.f32 0.0, %v581
  %v583 = vpop.f32.mrf.mxu0
  %584 = vdwg.mxu0
  %585 = vmatprep.subr.mxu0 0.0
  %586 = vmatpush1.msra.mxu0 0.0
  %587 = vmatprep.subr.mxu0 0.0
  %588 = vmatpush1.msra.mxu0 0.0
  %589 = vmatprep.subr.mxu0 0.0
  %590 = vmatpush1.msra.mxu0 0.0
  %591 = vmatprep.subr.mxu0 0.0
  %592 = vmatpush1.msra.mxu0 0.0
  %593 = vmatprep.subr.mxu0 0.0
  %594 = vmatpush1.msra.mxu0 0.0
  %595 = vmatprep.subr.mxu0 0.0
  %596 = vmatpush1.msra.mxu0 0.0
  %597 = vmatprep.subr.mxu0 0.0
  %598 = vmatpush1.msra.mxu0 0.0
  %599 = vmatprep.subr.mxu0 0.0
  %600 = vmatpush1.msra.mxu0 0.0
  %601 = vmatprep.subr.mxu0 0.0
  %602 = vmatpush1.msra.mxu0 0.0
  %603 = vmatprep.subr.mxu0 0.0
  %604 = vmatpush1.msra.mxu0 0.0
  %605 = vmatprep.subr.mxu0 0.0
  %606 = vmatpush1.msra.mxu0 0.0
  %607 = vmatprep.subr.mxu0 0.0
  %608 = vmatpush1.msra.mxu0 0.0
  %609 = vmatprep.subr.mxu0 0.0
  %610 = vmatpush1.msra.mxu0 %v224
  %611 = vmatprep.subr.mxu0 0.0
  %612 = vmatpush1.msra.mxu0 %v223
  %613 = vmatprep.subr.mxu0 0.0
  %614 = vmatpush1.msra.mxu0 %v222
  %615 = vmatprep.subr.mxu0 0.0
  %616 = vmatpush1.msra.mxu0 %v221
  %617 = vmatprep.subr.mxu0 0.0
  %618 = vmatpush2.msra.mxu0 0.0
  %619 = vmatprep.subr.mxu0 0.0
  %620 = vmatpush2.msra.mxu0 0.0
  %621 = vmatprep.subr.mxu0 0.0
  %622 = vmatpush2.msra.mxu0 0.0
  %623 = vmatprep.subr.mxu0 0.0
  %624 = vmatpush2.msra.mxu0 0.0
  %625 = vmatprep.subr.mxu0 0.0
  %626 = vmatpush2.msra.mxu0 0.0
  %627 = vmatprep.subr.mxu0 0.0
  %628 = vmatpush2.msra.mxu0 0.0
  %629 = vmatprep.subr.mxu0 0.0
  %630 = vmatpush2.msra.mxu0 0.0
  %631 = vmatprep.subr.mxu0 0.0
  %632 = vmatpush2.msra.mxu0 0.0
  %633 = vmatprep.subr.mxu0 0.0
  %634 = vmatpush2.msra.mxu0 0.0
  %635 = vmatprep.subr.mxu0 0.0
  %636 = vmatpush2.msra.mxu0 0.0
  %637 = vmatprep.subr.mxu0 0.0
  %638 = vmatpush2.msra.mxu0 0.0
  %639 = vmatprep.subr.mxu0 0.0
  %640 = vmatpush2.msra.mxu0 0.0
  %641 = vmatprep.subr.mxu0 0.0
  %642 = vmatpush2.msra.mxu0 0.0
  %643 = vmatprep.subr.mxu0 0.0
  %644 = vmatpush2.msra.mxu0 0.0
  %645 = vmatprep.subr.mxu0 0.0
  %646 = vmatpush2.msra.mxu0 0.0
  %647 = vmatprep.subr.mxu0 0.0
  %648 = vmatpush2.msra.mxu0 0.0
  %649 = vmatprep.mubr.f32.mxu0 0.0
  %650 = vmatmul.mubr.f32.gmra.mxu0 %v234
  %v651 = vpop.f32.mrf.mxu0
  %v652 = vadd.f32 0.0, %v651
  %v653 = vpop.f32.mrf.mxu0
  %654 = vmatprep.mubr.f32.mxu0 0.0
  %655 = vmatmul.mubr.f32.gmra.mxu0 %v237
  %v656 = vpop.f32.mrf.mxu0
  %v657 = vadd.f32 0.0, %v656
  %v658 = vpop.f32.mrf.mxu0
  %659 = vmatprep.mubr.f32.mxu0 0.0
  %660 = vmatmul.mubr.f32.gmra.mxu0 %v240
  %v661 = vpop.f32.mrf.mxu0
  %v662 = vadd.f32 0.0, %v661
  %v663 = vpop.f32.mrf.mxu0
  %664 = vmatprep.mubr.f32.mxu0 0.0
  %665 = vmatmul.mubr.f32.gmra.mxu0 %v243
  %v666 = vpop.f32.mrf.mxu0
  %v667 = vadd.f32 0.0, %v666
  %v668 = vpop.f32.mrf.mxu0
  %669 = vdwg.mxu0
  %670 = vmatprep.subr.mxu0 0.0
  %671 = vmatpush1.msra.mxu0 0.0
  %672 = vmatprep.subr.mxu0 0.0
  %673 = vmatpush1.msra.mxu0 0.0
  %674 = vmatprep.subr.mxu0 0.0
  %675 = vmatpush1.msra.mxu0 0.0
  %676 = vmatprep.subr.mxu0 0.0
  %677 = vmatpush1.msra.mxu0 0.0
  %678 = vmatprep.subr.mxu0 0.0
  %679 = vmatpush1.msra.mxu0 0.0
  %680 = vmatprep.subr.mxu0 0.0
  %681 = vmatpush1.msra.mxu0 0.0
  %682 = vmatprep.subr.mxu0 0.0
  %683 = vmatpush1.msra.mxu0 0.0
  %684 = vmatprep.subr.mxu0 0.0
  %685 = vmatpush1.msra.mxu0 0.0
  %686 = vmatprep.subr.mxu0 0.0
  %687 = vmatpush1.msra.mxu0 0.0
  %688 = vmatprep.subr.mxu0 0.0
  %689 = vmatpush1.msra.mxu0 0.0
  %690 = vmatprep.subr.mxu0 0.0
  %691 = vmatpush1.msra.mxu0 0.0
  %692 = vmatprep.subr.mxu0 0.0
  %693 = vmatpush1.msra.mxu0 0.0
  %694 = vmatprep.subr.mxu0 0.0
  %695 = vmatpush1.msra.mxu0 %v228
  %696 = vmatprep.subr.mxu0 0.0
  %697 = vmatpush1.msra.mxu0 %v227
  %698 = vmatprep.subr.mxu0 0.0
  %699 = vmatpush1.msra.mxu0 %v226
  %700 = vmatprep.subr.mxu0 0.0
  %701 = vmatpush1.msra.mxu0 %v225
  %702 = vmatprep.subr.mxu0 0.0
  %703 = vmatpush2.msra.mxu0 0.0
  %704 = vmatprep.subr.mxu0 0.0
  %705 = vmatpush2.msra.mxu0 0.0
  %706 = vmatprep.subr.mxu0 0.0
  %707 = vmatpush2.msra.mxu0 0.0
  %708 = vmatprep.subr.mxu0 0.0
  %709 = vmatpush2.msra.mxu0 0.0
  %710 = vmatprep.subr.mxu0 0.0
  %711 = vmatpush2.msra.mxu0 0.0
  %712 = vmatprep.subr.mxu0 0.0
  %713 = vmatpush2.msra.mxu0 0.0
  %714 = vmatprep.subr.mxu0 0.0
  %715 = vmatpush2.msra.mxu0 0.0
  %716 = vmatprep.subr.mxu0 0.0
  %717 = vmatpush2.msra.mxu0 0.0
  %718 = vmatprep.subr.mxu0 0.0
  %719 = vmatpush2.msra.mxu0 0.0
  %720 = vmatprep.subr.mxu0 0.0
  %721 = vmatpush2.msra.mxu0 0.0
  %722 = vmatprep.subr.mxu0 0.0
  %723 = vmatpush2.msra.mxu0 0.0
  %724 = vmatprep.subr.mxu0 0.0
  %725 = vmatpush2.msra.mxu0 0.0
  %726 = vmatprep.subr.mxu0 0.0
  %727 = vmatpush2.msra.mxu0 0.0
  %728 = vmatprep.subr.mxu0 0.0
  %729 = vmatpush2.msra.mxu0 0.0
  %730 = vmatprep.subr.mxu0 0.0
  %731 = vmatpush2.msra.mxu0 0.0
  %732 = vmatprep.subr.mxu0 0.0
  %733 = vmatpush2.msra.mxu0 0.0
  %734 = vmatprep.mubr.f32.mxu0 0.0
  %735 = vmatmul.mubr.f32.gmra.mxu0 %v234
  %v736 = vpop.f32.mrf.mxu0
  %v737 = vadd.f32 0.0, %v736
  %v738 = vpop.f32.mrf.mxu0
  %739 = vmatprep.mubr.f32.mxu0 0.0
  %740 = vmatmul.mubr.f32.gmra.mxu0 %v237
  %v741 = vpop.f32.mrf.mxu0
  %v742 = vadd.f32 0.0, %v741
  %v743 = vpop.f32.mrf.mxu0
  %744 = vmatprep.mubr.f32.mxu0 0.0
  %745 = vmatmul.mubr.f32.gmra.mxu0 %v240
  %v746 = vpop.f32.mrf.mxu0
  %v747 = vadd.f32 0.0, %v746
  %v748 = vpop.f32.mrf.mxu0
  %749 = vmatprep.mubr.f32.mxu0 0.0
  %750 = vmatmul.mubr.f32.gmra.mxu0 %v243
  %v751 = vpop.f32.mrf.mxu0
  %v752 = vadd.f32 0.0, %v751
  %v753 = vpop.f32.mrf.mxu0
  %754 = vdwg.mxu0
  %v756 = vlaneseq
  %v757 = vshrl.u32 %v756, 7
  %v758 = vsub.s32 0, %v757
  %v759 = vrot.slane %v158, %v758
  %vm761 = vcmask 130048
  %v763 = vsel %vm761, %v312, 0
  %v766 = vsel %vm761, %v317, 0
  %v769 = vsel %vm761, %v482, 0
  %v772 = vsel %vm761, %v487, 0
  %774 = vmatprep.subr.mxu0 0.0
  %775 = vmatpush1.xpose.msra.mxu0 0.0
  %776 = vmatprep.subr.mxu0 0.0
  %777 = vmatpush1.xpose.msra.mxu0 0.0
  %778 = vmatprep.subr.mxu0 0.0
  %779 = vmatpush1.xpose.msra.mxu0 0.0
  %780 = vmatprep.subr.mxu0 0.0
  %781 = vmatpush1.xpose.msra.mxu0 0.0
  %782 = vmatprep.subr.mxu0 0.0
  %783 = vmatpush1.xpose.msra.mxu0 0.0
  %784 = vmatprep.subr.mxu0 0.0
  %785 = vmatpush1.xpose.msra.mxu0 0.0
  %786 = vmatprep.subr.mxu0 0.0
  %787 = vmatpush1.xpose.msra.mxu0 0.0
  %788 = vmatprep.subr.mxu0 0.0
  %789 = vmatpush1.xpose.msra.mxu0 0.0
  %790 = vmatprep.subr.mxu0 0.0
  %791 = vmatpush1.xpose.msra.mxu0 0.0
  %792 = vmatprep.subr.mxu0 0.0
  %793 = vmatpush1.xpose.msra.mxu0 0.0
  %794 = vmatprep.subr.mxu0 0.0
  %795 = vmatpush1.xpose.msra.mxu0 0.0
  %796 = vmatprep.subr.mxu0 0.0
  %797 = vmatpush1.xpose.msra.mxu0 0.0
  %798 = vmatprep.subr.mxu0 0.0
  %799 = vmatpush1.xpose.msra.mxu0 0.0
  %800 = vmatprep.subr.mxu0 0.0
  %801 = vmatpush1.xpose.msra.mxu0 0.0
  %802 = vmatprep.subr.mxu0 0.0
  %803 = vmatpush1.xpose.msra.mxu0 %v772
  %804 = vmatprep.subr.mxu0 0.0
  %805 = vmatpush1.xpose.msra.mxu0 %v769
  %806 = vmatprep.subr.mxu0 0.0
  %807 = vmatpush2.xpose.msra.mxu0 0.0
  %808 = vmatprep.subr.mxu0 0.0
  %809 = vmatpush2.xpose.msra.mxu0 0.0
  %810 = vmatprep.subr.mxu0 0.0
  %811 = vmatpush2.xpose.msra.mxu0 0.0
  %812 = vmatprep.subr.mxu0 0.0
  %813 = vmatpush2.xpose.msra.mxu0 0.0
  %814 = vmatprep.subr.mxu0 0.0
  %815 = vmatpush2.xpose.msra.mxu0 0.0
  %816 = vmatprep.subr.mxu0 0.0
  %817 = vmatpush2.xpose.msra.mxu0 0.0
  %818 = vmatprep.subr.mxu0 0.0
  %819 = vmatpush2.xpose.msra.mxu0 0.0
  %820 = vmatprep.subr.mxu0 0.0
  %821 = vmatpush2.xpose.msra.mxu0 0.0
  %822 = vmatprep.subr.mxu0 0.0
  %823 = vmatpush2.xpose.msra.mxu0 0.0
  %824 = vmatprep.subr.mxu0 0.0
  %825 = vmatpush2.xpose.msra.mxu0 0.0
  %826 = vmatprep.subr.mxu0 0.0
  %827 = vmatpush2.xpose.msra.mxu0 0.0
  %828 = vmatprep.subr.mxu0 0.0
  %829 = vmatpush2.xpose.msra.mxu0 0.0
  %830 = vmatprep.subr.mxu0 0.0
  %831 = vmatpush2.xpose.msra.mxu0 0.0
  %832 = vmatprep.subr.mxu0 0.0
  %833 = vmatpush2.xpose.msra.mxu0 0.0
  %834 = vmatprep.subr.mxu0 0.0
  %835 = vmatpush2.xpose.msra.mxu0 0.0
  %836 = vmatprep.subr.mxu0 0.0
  %837 = vmatpush2.xpose.msra.mxu0 0.0
  %838 = vmatprep.mubr.f32.mxu0 0.0
  %839 = vmatmul.mubr.f32.gmra.mxu0 %v763
  %v840 = vpop.f32.mrf.mxu0
  %v841 = vadd.f32 %v759, %v840
  %v842 = vpop.f32.mrf.mxu0
  %843 = vmatprep.mubr.f32.mxu0 0.0
  %844 = vmatmul.mubr.f32.gmra.mxu0 %v766
  %v845 = vpop.f32.mrf.mxu0
  %v846 = vadd.f32 %v759, %v845
  %v847 = vpop.f32.mrf.mxu0
  %848 = vdwg.mxu0
  %v849 = vadd.f32 %v841, %v154
  %v850 = vadd.f32 %v846, %v155
  %v851 = vsel %vm761, %v849, -inf
  %852 = vmax.xlane.f32.xlu0 %v851
  %v853 = vpop.xlane.xlu0 %852
  %v854 = vsel %vm761, %v850, -inf
  %855 = vmax.xlane.f32.xlu0 %v854
  %v856 = vpop.xlane.xlu0 %855
  %v857 = vsub.f32 %v849, %v853
  %v858 = vsub.f32 %v850, %v856
  %v859 = vmul.f32 %v857, 1.442695
  %v860 = vpow.pop %v859
  %v861 = vmul.f32 %v858, 1.442695
  %v862 = vpow.pop %v861
  %v863 = vsel %vm761, %v860, 0.0
  %864 = vadd.xlane.f32.xlu0 %v863
  %v865 = vpop.xlane.xlu0 %864
  %v866 = vsel %vm761, %v862, 0.0
  %867 = vadd.xlane.f32.xlu0 %v866
  %v868 = vpop.xlane.xlu0 %867
  %v869 = vrcp.pop %v865
  %v870 = vrcp.pop %v868
  %v871 = vmul.f32 %v860, %v869
  %v872 = vmul.f32 %v862, %v870
  %v874 = vsel %vm761, %v871, 0
  %v877 = vsel %vm761, %v872, 0
  %879 = vmatprep.subr.mxu0 0.0
  %880 = vmatpush1.msra.mxu0 0.0
  %881 = vmatprep.subr.mxu0 0.0
  %882 = vmatpush1.msra.mxu0 0.0
  %883 = vmatprep.subr.mxu0 0.0
  %884 = vmatpush1.msra.mxu0 0.0
  %885 = vmatprep.subr.mxu0 0.0
  %886 = vmatpush1.msra.mxu0 0.0
  %887 = vmatprep.subr.mxu0 0.0
  %888 = vmatpush1.msra.mxu0 0.0
  %889 = vmatprep.subr.mxu0 0.0
  %890 = vmatpush1.msra.mxu0 0.0
  %891 = vmatprep.subr.mxu0 0.0
  %892 = vmatpush1.msra.mxu0 0.0
  %893 = vmatprep.subr.mxu0 0.0
  %894 = vmatpush1.msra.mxu0 0.0
  %895 = vmatprep.subr.mxu0 0.0
  %896 = vmatpush1.msra.mxu0 0.0
  %897 = vmatprep.subr.mxu0 0.0
  %898 = vmatpush1.msra.mxu0 0.0
  %899 = vmatprep.subr.mxu0 0.0
  %900 = vmatpush1.msra.mxu0 0.0
  %901 = vmatprep.subr.mxu0 0.0
  %902 = vmatpush1.msra.mxu0 0.0
  %903 = vmatprep.subr.mxu0 0.0
  %904 = vmatpush1.msra.mxu0 0.0
  %905 = vmatprep.subr.mxu0 0.0
  %906 = vmatpush1.msra.mxu0 0.0
  %907 = vmatprep.subr.mxu0 0.0
  %908 = vmatpush1.msra.mxu0 %v657
  %909 = vmatprep.subr.mxu0 0.0
  %910 = vmatpush1.msra.mxu0 %v652
  %911 = vmatprep.subr.mxu0 0.0
  %912 = vmatpush2.msra.mxu0 0.0
  %913 = vmatprep.subr.mxu0 0.0
  %914 = vmatpush2.msra.mxu0 0.0
  %915 = vmatprep.subr.mxu0 0.0
  %916 = vmatpush2.msra.mxu0 0.0
  %917 = vmatprep.subr.mxu0 0.0
  %918 = vmatpush2.msra.mxu0 0.0
  %919 = vmatprep.subr.mxu0 0.0
  %920 = vmatpush2.msra.mxu0 0.0
  %921 = vmatprep.subr.mxu0 0.0
  %922 = vmatpush2.msra.mxu0 0.0
  %923 = vmatprep.subr.mxu0 0.0
  %924 = vmatpush2.msra.mxu0 0.0
  %925 = vmatprep.subr.mxu0 0.0
  %926 = vmatpush2.msra.mxu0 0.0
  %927 = vmatprep.subr.mxu0 0.0
  %928 = vmatpush2.msra.mxu0 0.0
  %929 = vmatprep.subr.mxu0 0.0
  %930 = vmatpush2.msra.mxu0 0.0
  %931 = vmatprep.subr.mxu0 0.0
  %932 = vmatpush2.msra.mxu0 0.0
  %933 = vmatprep.subr.mxu0 0.0
  %934 = vmatpush2.msra.mxu0 0.0
  %935 = vmatprep.subr.mxu0 0.0
  %936 = vmatpush2.msra.mxu0 0.0
  %937 = vmatprep.subr.mxu0 0.0
  %938 = vmatpush2.msra.mxu0 0.0
  %939 = vmatprep.subr.mxu0 0.0
  %940 = vmatpush2.msra.mxu0 0.0
  %941 = vmatprep.subr.mxu0 0.0
  %942 = vmatpush2.msra.mxu0 0.0
  %943 = vmatprep.mubr.f32.mxu0 0.0
  %944 = vmatmul.mubr.f32.gmra.mxu0 %v874
  %v945 = vpop.f32.mrf.mxu0
  %v946 = vadd.f32 0.0, %v945
  %v947 = vpop.f32.mrf.mxu0
  %948 = vmatprep.mubr.f32.mxu0 0.0
  %949 = vmatmul.mubr.f32.gmra.mxu0 %v877
  %v950 = vpop.f32.mrf.mxu0
  %v951 = vadd.f32 0.0, %v950
  %v952 = vpop.f32.mrf.mxu0
  %953 = vdwg.mxu0
  %v955 = vsel %vm761, %v397, 0
  %v958 = vsel %vm761, %v402, 0
  %v961 = vsel %vm761, %v567, 0
  %v964 = vsel %vm761, %v572, 0
  %966 = vmatprep.subr.mxu0 0.0
  %967 = vmatpush1.xpose.msra.mxu0 0.0
  %968 = vmatprep.subr.mxu0 0.0
  %969 = vmatpush1.xpose.msra.mxu0 0.0
  %970 = vmatprep.subr.mxu0 0.0
  %971 = vmatpush1.xpose.msra.mxu0 0.0
  %972 = vmatprep.subr.mxu0 0.0
  %973 = vmatpush1.xpose.msra.mxu0 0.0
  %974 = vmatprep.subr.mxu0 0.0
  %975 = vmatpush1.xpose.msra.mxu0 0.0
  %976 = vmatprep.subr.mxu0 0.0
  %977 = vmatpush1.xpose.msra.mxu0 0.0
  %978 = vmatprep.subr.mxu0 0.0
  %979 = vmatpush1.xpose.msra.mxu0 0.0
  %980 = vmatprep.subr.mxu0 0.0
  %981 = vmatpush1.xpose.msra.mxu0 0.0
  %982 = vmatprep.subr.mxu0 0.0
  %983 = vmatpush1.xpose.msra.mxu0 0.0
  %984 = vmatprep.subr.mxu0 0.0
  %985 = vmatpush1.xpose.msra.mxu0 0.0
  %986 = vmatprep.subr.mxu0 0.0
  %987 = vmatpush1.xpose.msra.mxu0 0.0
  %988 = vmatprep.subr.mxu0 0.0
  %989 = vmatpush1.xpose.msra.mxu0 0.0
  %990 = vmatprep.subr.mxu0 0.0
  %991 = vmatpush1.xpose.msra.mxu0 0.0
  %992 = vmatprep.subr.mxu0 0.0
  %993 = vmatpush1.xpose.msra.mxu0 0.0
  %994 = vmatprep.subr.mxu0 0.0
  %995 = vmatpush1.xpose.msra.mxu0 %v964
  %996 = vmatprep.subr.mxu0 0.0
  %997 = vmatpush1.xpose.msra.mxu0 %v961
  %998 = vmatprep.subr.mxu0 0.0
  %999 = vmatpush2.xpose.msra.mxu0 0.0
  %1000 = vmatprep.subr.mxu0 0.0
  %1001 = vmatpush2.xpose.msra.mxu0 0.0
  %1002 = vmatprep.subr.mxu0 0.0
  %1003 = vmatpush2.xpose.msra.mxu0 0.0
  %1004 = vmatprep.subr.mxu0 0.0
  %1005 = vmatpush2.xpose.msra.mxu0 0.0
  %1006 = vmatprep.subr.mxu0 0.0
  %1007 = vmatpush2.xpose.msra.mxu0 0.0
  %1008 = vmatprep.subr.mxu0 0.0
  %1009 = vmatpush2.xpose.msra.mxu0 0.0
  %1010 = vmatprep.subr.mxu0 0.0
  %1011 = vmatpush2.xpose.msra.mxu0 0.0
  %1012 = vmatprep.subr.mxu0 0.0
  %1013 = vmatpush2.xpose.msra.mxu0 0.0
  %1014 = vmatprep.subr.mxu0 0.0
  %1015 = vmatpush2.xpose.msra.mxu0 0.0
  %1016 = vmatprep.subr.mxu0 0.0
  %1017 = vmatpush2.xpose.msra.mxu0 0.0
  %1018 = vmatprep.subr.mxu0 0.0
  %1019 = vmatpush2.xpose.msra.mxu0 0.0
  %1020 = vmatprep.subr.mxu0 0.0
  %1021 = vmatpush2.xpose.msra.mxu0 0.0
  %1022 = vmatprep.subr.mxu0 0.0
  %1023 = vmatpush2.xpose.msra.mxu0 0.0
  %1024 = vmatprep.subr.mxu0 0.0
  %1025 = vmatpush2.xpose.msra.mxu0 0.0
  %1026 = vmatprep.subr.mxu0 0.0
  %1027 = vmatpush2.xpose.msra.mxu0 0.0
  %1028 = vmatprep.subr.mxu0 0.0
  %1029 = vmatpush2.xpose.msra.mxu0 0.0
  %1030 = vmatprep.mubr.f32.mxu0 0.0
  %1031 = vmatmul.mubr.f32.gmra.mxu0 %v955
  %v1032 = vpop.f32.mrf.mxu0
  %v1033 = vadd.f32 %v759, %v1032
  %v1034 = vpop.f32.mrf.mxu0
  %1035 = vmatprep.mubr.f32.mxu0 0.0
  %1036 = vmatmul.mubr.f32.gmra.mxu0 %v958
  %v1037 = vpop.f32.mrf.mxu0
  %v1038 = vadd.f32 %v759, %v1037
  %v1039 = vpop.f32.mrf.mxu0
  %1040 = vdwg.mxu0
  %v1041 = vadd.f32 %v1033, %v156
  %v1042 = vadd.f32 %v1038, %v157
  %v1043 = vsel %vm761, %v1041, -inf
  %1044 = vmax.xlane.f32.xlu0 %v1043
  %v1045 = vpop.xlane.xlu0 %1044
  %v1046 = vsel %vm761, %v1042, -inf
  %1047 = vmax.xlane.f32.xlu0 %v1046
  %v1048 = vpop.xlane.xlu0 %1047
  %v1049 = vsub.f32 %v1041, %v1045
  %v1050 = vsub.f32 %v1042, %v1048
  %v1051 = vmul.f32 %v1049, 1.442695
  %v1052 = vpow.pop %v1051
  %v1053 = vmul.f32 %v1050, 1.442695
  %v1054 = vpow.pop %v1053
  %v1055 = vsel %vm761, %v1052, 0.0
  %1056 = vadd.xlane.f32.xlu0 %v1055
  %v1057 = vpop.xlane.xlu0 %1056
  %v1058 = vsel %vm761, %v1054, 0.0
  %1059 = vadd.xlane.f32.xlu0 %v1058
  %v1060 = vpop.xlane.xlu0 %1059
  %v1061 = vrcp.pop %v1057
  %v1062 = vrcp.pop %v1060
  %v1063 = vmul.f32 %v1052, %v1061
  %v1064 = vmul.f32 %v1054, %v1062
  %v1066 = vsel %vm761, %v1063, 0
  %v1069 = vsel %vm761, %v1064, 0
  %1071 = vmatprep.subr.mxu0 0.0
  %1072 = vmatpush1.msra.mxu0 0.0
  %1073 = vmatprep.subr.mxu0 0.0
  %1074 = vmatpush1.msra.mxu0 0.0
  %1075 = vmatprep.subr.mxu0 0.0
  %1076 = vmatpush1.msra.mxu0 0.0
  %1077 = vmatprep.subr.mxu0 0.0
  %1078 = vmatpush1.msra.mxu0 0.0
  %1079 = vmatprep.subr.mxu0 0.0
  %1080 = vmatpush1.msra.mxu0 0.0
  %1081 = vmatprep.subr.mxu0 0.0
  %1082 = vmatpush1.msra.mxu0 0.0
  %1083 = vmatprep.subr.mxu0 0.0
  %1084 = vmatpush1.msra.mxu0 0.0
  %1085 = vmatprep.subr.mxu0 0.0
  %1086 = vmatpush1.msra.mxu0 0.0
  %1087 = vmatprep.subr.mxu0 0.0
  %1088 = vmatpush1.msra.mxu0 0.0
  %1089 = vmatprep.subr.mxu0 0.0
  %1090 = vmatpush1.msra.mxu0 0.0
  %1091 = vmatprep.subr.mxu0 0.0
  %1092 = vmatpush1.msra.mxu0 0.0
  %1093 = vmatprep.subr.mxu0 0.0
  %1094 = vmatpush1.msra.mxu0 0.0
  %1095 = vmatprep.subr.mxu0 0.0
  %1096 = vmatpush1.msra.mxu0 0.0
  %1097 = vmatprep.subr.mxu0 0.0
  %1098 = vmatpush1.msra.mxu0 0.0
  %1099 = vmatprep.subr.mxu0 0.0
  %1100 = vmatpush1.msra.mxu0 %v742
  %1101 = vmatprep.subr.mxu0 0.0
  %1102 = vmatpush1.msra.mxu0 %v737
  %1103 = vmatprep.subr.mxu0 0.0
  %1104 = vmatpush2.msra.mxu0 0.0
  %1105 = vmatprep.subr.mxu0 0.0
  %1106 = vmatpush2.msra.mxu0 0.0
  %1107 = vmatprep.subr.mxu0 0.0
  %1108 = vmatpush2.msra.mxu0 0.0
  %1109 = vmatprep.subr.mxu0 0.0
  %1110 = vmatpush2.msra.mxu0 0.0
  %1111 = vmatprep.subr.mxu0 0.0
  %1112 = vmatpush2.msra.mxu0 0.0
  %1113 = vmatprep.subr.mxu0 0.0
  %1114 = vmatpush2.msra.mxu0 0.0
  %1115 = vmatprep.subr.mxu0 0.0
  %1116 = vmatpush2.msra.mxu0 0.0
  %1117 = vmatprep.subr.mxu0 0.0
  %1118 = vmatpush2.msra.mxu0 0.0
  %1119 = vmatprep.subr.mxu0 0.0
  %1120 = vmatpush2.msra.mxu0 0.0
  %1121 = vmatprep.subr.mxu0 0.0
  %1122 = vmatpush2.msra.mxu0 0.0
  %1123 = vmatprep.subr.mxu0 0.0
  %1124 = vmatpush2.msra.mxu0 0.0
  %1125 = vmatprep.subr.mxu0 0.0
  %1126 = vmatpush2.msra.mxu0 0.0
  %1127 = vmatprep.subr.mxu0 0.0
  %1128 = vmatpush2.msra.mxu0 0.0
  %1129 = vmatprep.subr.mxu0 0.0
  %1130 = vmatpush2.msra.mxu0 0.0
  %1131 = vmatprep.subr.mxu0 0.0
  %1132 = vmatpush2.msra.mxu0 0.0
  %1133 = vmatprep.subr.mxu0 0.0
  %1134 = vmatpush2.msra.mxu0 0.0
  %1135 = vmatprep.mubr.f32.mxu0 0.0
  %1136 = vmatmul.mubr.f32.gmra.mxu0 %v1066
  %v1137 = vpop.f32.mrf.mxu0
  %v1138 = vadd.f32 0.0, %v1137
  %v1139 = vpop.f32.mrf.mxu0
  %1140 = vmatprep.mubr.f32.mxu0 0.0
  %1141 = vmatmul.mubr.f32.gmra.mxu0 %v1069
  %v1142 = vpop.f32.mrf.mxu0
  %v1143 = vadd.f32 0.0, %v1142
  %v1144 = vpop.f32.mrf.mxu0
  %1145 = vdwg.mxu0
  %v1147 = vsel %vm761, %v1138, 0
  %v1150 = vsel %vm761, %v1143, 0
  %1152 = vmatprep.subr.mxu0 0.0
  %1153 = vmatpush1.msra.mxu0 0.0
  %1154 = vmatprep.subr.mxu0 0.0
  %1155 = vmatpush1.msra.mxu0 0.0
  %1156 = vmatprep.subr.mxu0 0.0
  %1157 = vmatpush1.msra.mxu0 0.0
  %1158 = vmatprep.subr.mxu0 0.0
  %1159 = vmatpush1.msra.mxu0 0.0
  %1160 = vmatprep.subr.mxu0 0.0
  %1161 = vmatpush1.msra.mxu0 0.0
  %1162 = vmatprep.subr.mxu0 0.0
  %1163 = vmatpush1.msra.mxu0 0.0
  %1164 = vmatprep.subr.mxu0 0.0
  %1165 = vmatpush1.msra.mxu0 0.0
  %1166 = vmatprep.subr.mxu0 0.0
  %1167 = vmatpush1.msra.mxu0 0.0
  %1168 = vmatprep.subr.mxu0 0.0
  %1169 = vmatpush1.msra.mxu0 0.0
  %1170 = vmatprep.subr.mxu0 0.0
  %1171 = vmatpush1.msra.mxu0 0.0
  %1172 = vmatprep.subr.mxu0 0.0
  %1173 = vmatpush1.msra.mxu0 0.0
  %1174 = vmatprep.subr.mxu0 0.0
  %1175 = vmatpush1.msra.mxu0 0.0
  %1176 = vmatprep.subr.mxu0 0.0
  %1177 = vmatpush1.msra.mxu0 0.0
  %1178 = vmatprep.subr.mxu0 0.0
  %1179 = vmatpush1.msra.mxu0 0.0
  %1180 = vmatprep.subr.mxu0 0.0
  %1181 = vmatpush1.msra.mxu0 %v232
  %1182 = vmatprep.subr.mxu0 0.0
  %1183 = vmatpush1.msra.mxu0 %v231
  %1184 = vmatprep.subr.mxu0 0.0
  %1185 = vmatpush2.msra.mxu0 0.0
  %1186 = vmatprep.subr.mxu0 0.0
  %1187 = vmatpush2.msra.mxu0 0.0
  %1188 = vmatprep.subr.mxu0 0.0
  %1189 = vmatpush2.msra.mxu0 0.0
  %1190 = vmatprep.subr.mxu0 0.0
  %1191 = vmatpush2.msra.mxu0 0.0
  %1192 = vmatprep.subr.mxu0 0.0
  %1193 = vmatpush2.msra.mxu0 0.0
  %1194 = vmatprep.subr.mxu0 0.0
  %1195 = vmatpush2.msra.mxu0 0.0
  %1196 = vmatprep.subr.mxu0 0.0
  %1197 = vmatpush2.msra.mxu0 0.0
  %1198 = vmatprep.subr.mxu0 0.0
  %1199 = vmatpush2.msra.mxu0 0.0
  %1200 = vmatprep.subr.mxu0 0.0
  %1201 = vmatpush2.msra.mxu0 0.0
  %1202 = vmatprep.subr.mxu0 0.0
  %1203 = vmatpush2.msra.mxu0 0.0
  %1204 = vmatprep.subr.mxu0 0.0
  %1205 = vmatpush2.msra.mxu0 0.0
  %1206 = vmatprep.subr.mxu0 0.0
  %1207 = vmatpush2.msra.mxu0 0.0
  %1208 = vmatprep.subr.mxu0 0.0
  %1209 = vmatpush2.msra.mxu0 0.0
  %1210 = vmatprep.subr.mxu0 0.0
  %1211 = vmatpush2.msra.mxu0 0.0
  %1212 = vmatprep.subr.mxu0 0.0
  %1213 = vmatpush2.msra.mxu0 0.0
  %1214 = vmatprep.subr.mxu0 0.0
  %1215 = vmatpush2.msra.mxu0 0.0
  %1216 = vmatprep.mubr.f32.mxu0 0.0
  %1217 = vmatmul.mubr.f32.gmra.mxu0 %v1147
  %v1218 = vpop.f32.mrf.mxu0
  %v1219 = vadd.f32 0.0, %v1218
  %v1220 = vpop.f32.mrf.mxu0
  %1221 = vmatprep.mubr.f32.mxu0 0.0
  %1222 = vmatmul.mubr.f32.gmra.mxu0 %v1150
  %v1223 = vpop.f32.mrf.mxu0
  %v1224 = vadd.f32 0.0, %v1223
  %v1225 = vpop.f32.mrf.mxu0
  %1226 = vdwg.mxu0
  %v1228 = vsel %vm761, %v946, 0
  %v1231 = vsel %vm761, %v951, 0
  %1233 = vmatprep.subr.mxu0 0.0
  %1234 = vmatpush1.msra.mxu0 0.0
  %1235 = vmatprep.subr.mxu0 0.0
  %1236 = vmatpush1.msra.mxu0 0.0
  %1237 = vmatprep.subr.mxu0 0.0
  %1238 = vmatpush1.msra.mxu0 0.0
  %1239 = vmatprep.subr.mxu0 0.0
  %1240 = vmatpush1.msra.mxu0 0.0
  %1241 = vmatprep.subr.mxu0 0.0
  %1242 = vmatpush1.msra.mxu0 0.0
  %1243 = vmatprep.subr.mxu0 0.0
  %1244 = vmatpush1.msra.mxu0 0.0
  %1245 = vmatprep.subr.mxu0 0.0
  %1246 = vmatpush1.msra.mxu0 0.0
  %1247 = vmatprep.subr.mxu0 0.0
  %1248 = vmatpush1.msra.mxu0 0.0
  %1249 = vmatprep.subr.mxu0 0.0
  %1250 = vmatpush1.msra.mxu0 0.0
  %1251 = vmatprep.subr.mxu0 0.0
  %1252 = vmatpush1.msra.mxu0 0.0
  %1253 = vmatprep.subr.mxu0 0.0
  %1254 = vmatpush1.msra.mxu0 0.0
  %1255 = vmatprep.subr.mxu0 0.0
  %1256 = vmatpush1.msra.mxu0 0.0
  %1257 = vmatprep.subr.mxu0 0.0
  %1258 = vmatpush1.msra.mxu0 0.0
  %1259 = vmatprep.subr.mxu0 0.0
  %1260 = vmatpush1.msra.mxu0 0.0
  %1261 = vmatprep.subr.mxu0 0.0
  %1262 = vmatpush1.msra.mxu0 %v230
  %1263 = vmatprep.subr.mxu0 0.0
  %1264 = vmatpush1.msra.mxu0 %v229
  %1265 = vmatprep.subr.mxu0 0.0
  %1266 = vmatpush2.msra.mxu0 0.0
  %1267 = vmatprep.subr.mxu0 0.0
  %1268 = vmatpush2.msra.mxu0 0.0
  %1269 = vmatprep.subr.mxu0 0.0
  %1270 = vmatpush2.msra.mxu0 0.0
  %1271 = vmatprep.subr.mxu0 0.0
  %1272 = vmatpush2.msra.mxu0 0.0
  %1273 = vmatprep.subr.mxu0 0.0
  %1274 = vmatpush2.msra.mxu0 0.0
  %1275 = vmatprep.subr.mxu0 0.0
  %1276 = vmatpush2.msra.mxu0 0.0
  %1277 = vmatprep.subr.mxu0 0.0
  %1278 = vmatpush2.msra.mxu0 0.0
  %1279 = vmatprep.subr.mxu0 0.0
  %1280 = vmatpush2.msra.mxu0 0.0
  %1281 = vmatprep.subr.mxu0 0.0
  %1282 = vmatpush2.msra.mxu0 0.0
  %1283 = vmatprep.subr.mxu0 0.0
  %1284 = vmatpush2.msra.mxu0 0.0
  %1285 = vmatprep.subr.mxu0 0.0
  %1286 = vmatpush2.msra.mxu0 0.0
  %1287 = vmatprep.subr.mxu0 0.0
  %1288 = vmatpush2.msra.mxu0 0.0
  %1289 = vmatprep.subr.mxu0 0.0
  %1290 = vmatpush2.msra.mxu0 0.0
  %1291 = vmatprep.subr.mxu0 0.0
  %1292 = vmatpush2.msra.mxu0 0.0
  %1293 = vmatprep.subr.mxu0 0.0
  %1294 = vmatpush2.msra.mxu0 0.0
  %1295 = vmatprep.subr.mxu0 0.0
  %1296 = vmatpush2.msra.mxu0 0.0
  %1297 = vmatprep.mubr.f32.mxu0 0.0
  %1298 = vmatmul.mubr.f32.gmra.mxu0 %v1228
  %v1299 = vpop.f32.mrf.mxu0
  %v1300 = vadd.f32 %v1219, %v1299
  %v1301 = vpop.f32.mrf.mxu0
  %1302 = vmatprep.mubr.f32.mxu0 0.0
  %1303 = vmatmul.mubr.f32.gmra.mxu0 %v1231
  %v1304 = vpop.f32.mrf.mxu0
  %v1305 = vadd.f32 %v1224, %v1304
  %v1306 = vpop.f32.mrf.mxu0
  %1307 = vdwg.mxu0
  %1308 = vst.msk [vmem:[#allocation2] sm:$0xff] %vm165, %v1300
  %1309 = vst.msk [vmem:[#allocation2 + $0x8] sm:$0xff] %vm165, %v1305
  %v1311 = vlaneseq
  %v1312 = vshrl.u32 %v1311, 7
  %v1313 = vsub.s32 0, %v1312
  %v1314 = vrot.slane %v159, %v1313
  %v1317 = vsel %vm761, %v322, 0
  %v1320 = vsel %vm761, %v327, 0
  %v1323 = vsel %vm761, %v492, 0
  %v1326 = vsel %vm761, %v497, 0
  %1328 = vmatprep.subr.mxu0 0.0
  %1329 = vmatpush1.xpose.msra.mxu0 0.0
  %1330 = vmatprep.subr.mxu0 0.0
  %1331 = vmatpush1.xpose.msra.mxu0 0.0
  %1332 = vmatprep.subr.mxu0 0.0
  %1333 = vmatpush1.xpose.msra.mxu0 0.0
  %1334 = vmatprep.subr.mxu0 0.0
  %1335 = vmatpush1.xpose.msra.mxu0 0.0
  %1336 = vmatprep.subr.mxu0 0.0
  %1337 = vmatpush1.xpose.msra.mxu0 0.0
  %1338 = vmatprep.subr.mxu0 0.0
  %1339 = vmatpush1.xpose.msra.mxu0 0.0
  %1340 = vmatprep.subr.mxu0 0.0
  %1341 = vmatpush1.xpose.msra.mxu0 0.0
  %1342 = vmatprep.subr.mxu0 0.0
  %1343 = vmatpush1.xpose.msra.mxu0 0.0
  %1344 = vmatprep.subr.mxu0 0.0
  %1345 = vmatpush1.xpose.msra.mxu0 0.0
  %1346 = vmatprep.subr.mxu0 0.0
  %1347 = vmatpush1.xpose.msra.mxu0 0.0
  %1348 = vmatprep.subr.mxu0 0.0
  %1349 = vmatpush1.xpose.msra.mxu0 0.0
  %1350 = vmatprep.subr.mxu0 0.0
  %1351 = vmatpush1.xpose.msra.mxu0 0.0
  %1352 = vmatprep.subr.mxu0 0.0
  %1353 = vmatpush1.xpose.msra.mxu0 0.0
  %1354 = vmatprep.subr.mxu0 0.0
  %1355 = vmatpush1.xpose.msra.mxu0 0.0
  %1356 = vmatprep.subr.mxu0 0.0
  %1357 = vmatpush1.xpose.msra.mxu0 %v1326
  %1358 = vmatprep.subr.mxu0 0.0
  %1359 = vmatpush1.xpose.msra.mxu0 %v1323
  %1360 = vmatprep.subr.mxu0 0.0
  %1361 = vmatpush2.xpose.msra.mxu0 0.0
  %1362 = vmatprep.subr.mxu0 0.0
  %1363 = vmatpush2.xpose.msra.mxu0 0.0
  %1364 = vmatprep.subr.mxu0 0.0
  %1365 = vmatpush2.xpose.msra.mxu0 0.0
  %1366 = vmatprep.subr.mxu0 0.0
  %1367 = vmatpush2.xpose.msra.mxu0 0.0
  %1368 = vmatprep.subr.mxu0 0.0
  %1369 = vmatpush2.xpose.msra.mxu0 0.0
  %1370 = vmatprep.subr.mxu0 0.0
  %1371 = vmatpush2.xpose.msra.mxu0 0.0
  %1372 = vmatprep.subr.mxu0 0.0
  %1373 = vmatpush2.xpose.msra.mxu0 0.0
  %1374 = vmatprep.subr.mxu0 0.0
  %1375 = vmatpush2.xpose.msra.mxu0 0.0
  %1376 = vmatprep.subr.mxu0 0.0
  %1377 = vmatpush2.xpose.msra.mxu0 0.0
  %1378 = vmatprep.subr.mxu0 0.0
  %1379 = vmatpush2.xpose.msra.mxu0 0.0
  %1380 = vmatprep.subr.mxu0 0.0
  %1381 = vmatpush2.xpose.msra.mxu0 0.0
  %1382 = vmatprep.subr.mxu0 0.0
  %1383 = vmatpush2.xpose.msra.mxu0 0.0
  %1384 = vmatprep.subr.mxu0 0.0
  %1385 = vmatpush2.xpose.msra.mxu0 0.0
  %1386 = vmatprep.subr.mxu0 0.0
  %1387 = vmatpush2.xpose.msra.mxu0 0.0
  %1388 = vmatprep.subr.mxu0 0.0
  %1389 = vmatpush2.xpose.msra.mxu0 0.0
  %1390 = vmatprep.subr.mxu0 0.0
  %1391 = vmatpush2.xpose.msra.mxu0 0.0
  %1392 = vmatprep.mubr.f32.mxu0 0.0
  %1393 = vmatmul.mubr.f32.gmra.mxu0 %v1317
  %v1394 = vpop.f32.mrf.mxu0
  %v1395 = vadd.f32 %v1314, %v1394
  %v1396 = vpop.f32.mrf.mxu0
  %1397 = vmatprep.mubr.f32.mxu0 0.0
  %1398 = vmatmul.mubr.f32.gmra.mxu0 %v1320
  %v1399 = vpop.f32.mrf.mxu0
  %v1400 = vadd.f32 %v1314, %v1399
  %v1401 = vpop.f32.mrf.mxu0
  %1402 = vdwg.mxu0
  %v1403 = vadd.f32 %v1395, %v154
  %v1404 = vadd.f32 %v1400, %v155
  %v1405 = vsel %vm761, %v1403, -inf
  %1406 = vmax.xlane.f32.xlu0 %v1405
  %v1407 = vpop.xlane.xlu0 %1406
  %v1408 = vsel %vm761, %v1404, -inf
  %1409 = vmax.xlane.f32.xlu0 %v1408
  %v1410 = vpop.xlane.xlu0 %1409
  %v1411 = vsub.f32 %v1403, %v1407
  %v1412 = vsub.f32 %v1404, %v1410
  %v1413 = vmul.f32 %v1411, 1.442695
  %v1414 = vpow.pop %v1413
  %v1415 = vmul.f32 %v1412, 1.442695
  %v1416 = vpow.pop %v1415
  %v1417 = vsel %vm761, %v1414, 0.0
  %1418 = vadd.xlane.f32.xlu0 %v1417
  %v1419 = vpop.xlane.xlu0 %1418
  %v1420 = vsel %vm761, %v1416, 0.0
  %1421 = vadd.xlane.f32.xlu0 %v1420
  %v1422 = vpop.xlane.xlu0 %1421
  %v1423 = vrcp.pop %v1419
  %v1424 = vrcp.pop %v1422
  %v1425 = vmul.f32 %v1414, %v1423
  %v1426 = vmul.f32 %v1416, %v1424
  %v1428 = vsel %vm761, %v1425, 0
  %v1431 = vsel %vm761, %v1426, 0
  %1433 = vmatprep.subr.mxu0 0.0
  %1434 = vmatpush1.msra.mxu0 0.0
  %1435 = vmatprep.subr.mxu0 0.0
  %1436 = vmatpush1.msra.mxu0 0.0
  %1437 = vmatprep.subr.mxu0 0.0
  %1438 = vmatpush1.msra.mxu0 0.0
  %1439 = vmatprep.subr.mxu0 0.0
  %1440 = vmatpush1.msra.mxu0 0.0
  %1441 = vmatprep.subr.mxu0 0.0
  %1442 = vmatpush1.msra.mxu0 0.0
  %1443 = vmatprep.subr.mxu0 0.0
  %1444 = vmatpush1.msra.mxu0 0.0
  %1445 = vmatprep.subr.mxu0 0.0
  %1446 = vmatpush1.msra.mxu0 0.0
  %1447 = vmatprep.subr.mxu0 0.0
  %1448 = vmatpush1.msra.mxu0 0.0
  %1449 = vmatprep.subr.mxu0 0.0
  %1450 = vmatpush1.msra.mxu0 0.0
  %1451 = vmatprep.subr.mxu0 0.0
  %1452 = vmatpush1.msra.mxu0 0.0
  %1453 = vmatprep.subr.mxu0 0.0
  %1454 = vmatpush1.msra.mxu0 0.0
  %1455 = vmatprep.subr.mxu0 0.0
  %1456 = vmatpush1.msra.mxu0 0.0
  %1457 = vmatprep.subr.mxu0 0.0
  %1458 = vmatpush1.msra.mxu0 0.0
  %1459 = vmatprep.subr.mxu0 0.0
  %1460 = vmatpush1.msra.mxu0 0.0
  %1461 = vmatprep.subr.mxu0 0.0
  %1462 = vmatpush1.msra.mxu0 %v667
  %1463 = vmatprep.subr.mxu0 0.0
  %1464 = vmatpush1.msra.mxu0 %v662
  %1465 = vmatprep.subr.mxu0 0.0
  %1466 = vmatpush2.msra.mxu0 0.0
  %1467 = vmatprep.subr.mxu0 0.0
  %1468 = vmatpush2.msra.mxu0 0.0
  %1469 = vmatprep.subr.mxu0 0.0
  %1470 = vmatpush2.msra.mxu0 0.0
  %1471 = vmatprep.subr.mxu0 0.0
  %1472 = vmatpush2.msra.mxu0 0.0
  %1473 = vmatprep.subr.mxu0 0.0
  %1474 = vmatpush2.msra.mxu0 0.0
  %1475 = vmatprep.subr.mxu0 0.0
  %1476 = vmatpush2.msra.mxu0 0.0
  %1477 = vmatprep.subr.mxu0 0.0
  %1478 = vmatpush2.msra.mxu0 0.0
  %1479 = vmatprep.subr.mxu0 0.0
  %1480 = vmatpush2.msra.mxu0 0.0
  %1481 = vmatprep.subr.mxu0 0.0
  %1482 = vmatpush2.msra.mxu0 0.0
  %1483 = vmatprep.subr.mxu0 0.0
  %1484 = vmatpush2.msra.mxu0 0.0
  %1485 = vmatprep.subr.mxu0 0.0
  %1486 = vmatpush2.msra.mxu0 0.0
  %1487 = vmatprep.subr.mxu0 0.0
  %1488 = vmatpush2.msra.mxu0 0.0
  %1489 = vmatprep.subr.mxu0 0.0
  %1490 = vmatpush2.msra.mxu0 0.0
  %1491 = vmatprep.subr.mxu0 0.0
  %1492 = vmatpush2.msra.mxu0 0.0
  %1493 = vmatprep.subr.mxu0 0.0
  %1494 = vmatpush2.msra.mxu0 0.0
  %1495 = vmatprep.subr.mxu0 0.0
  %1496 = vmatpush2.msra.mxu0 0.0
  %1497 = vmatprep.mubr.f32.mxu0 0.0
  %1498 = vmatmul.mubr.f32.gmra.mxu0 %v1428
  %v1499 = vpop.f32.mrf.mxu0
  %v1500 = vadd.f32 0.0, %v1499
  %v1501 = vpop.f32.mrf.mxu0
  %1502 = vmatprep.mubr.f32.mxu0 0.0
  %1503 = vmatmul.mubr.f32.gmra.mxu0 %v1431
  %v1504 = vpop.f32.mrf.mxu0
  %v1505 = vadd.f32 0.0, %v1504
  %v1506 = vpop.f32.mrf.mxu0
  %1507 = vdwg.mxu0
  %v1509 = vsel %vm761, %v407, 0
  %v1512 = vsel %vm761, %v412, 0
  %v1515 = vsel %vm761, %v577, 0
  %v1518 = vsel %vm761, %v582, 0
  %1520 = vmatprep.subr.mxu0 0.0
  %1521 = vmatpush1.xpose.msra.mxu0 0.0
  %1522 = vmatprep.subr.mxu0 0.0
  %1523 = vmatpush1.xpose.msra.mxu0 0.0
  %1524 = vmatprep.subr.mxu0 0.0
  %1525 = vmatpush1.xpose.msra.mxu0 0.0
  %1526 = vmatprep.subr.mxu0 0.0
  %1527 = vmatpush1.xpose.msra.mxu0 0.0
  %1528 = vmatprep.subr.mxu0 0.0
  %1529 = vmatpush1.xpose.msra.mxu0 0.0
  %1530 = vmatprep.subr.mxu0 0.0
  %1531 = vmatpush1.xpose.msra.mxu0 0.0
  %1532 = vmatprep.subr.mxu0 0.0
  %1533 = vmatpush1.xpose.msra.mxu0 0.0
  %1534 = vmatprep.subr.mxu0 0.0
  %1535 = vmatpush1.xpose.msra.mxu0 0.0
  %1536 = vmatprep.subr.mxu0 0.0
  %1537 = vmatpush1.xpose.msra.mxu0 0.0
  %1538 = vmatprep.subr.mxu0 0.0
  %1539 = vmatpush1.xpose.msra.mxu0 0.0
  %1540 = vmatprep.subr.mxu0 0.0
  %1541 = vmatpush1.xpose.msra.mxu0 0.0
  %1542 = vmatprep.subr.mxu0 0.0
  %1543 = vmatpush1.xpose.msra.mxu0 0.0
  %1544 = vmatprep.subr.mxu0 0.0
  %1545 = vmatpush1.xpose.msra.mxu0 0.0
  %1546 = vmatprep.subr.mxu0 0.0
  %1547 = vmatpush1.xpose.msra.mxu0 0.0
  %1548 = vmatprep.subr.mxu0 0.0
  %1549 = vmatpush1.xpose.msra.mxu0 %v1518
  %1550 = vmatprep.subr.mxu0 0.0
  %1551 = vmatpush1.xpose.msra.mxu0 %v1515
  %1552 = vmatprep.subr.mxu0 0.0
  %1553 = vmatpush2.xpose.msra.mxu0 0.0
  %1554 = vmatprep.subr.mxu0 0.0
  %1555 = vmatpush2.xpose.msra.mxu0 0.0
  %1556 = vmatprep.subr.mxu0 0.0
  %1557 = vmatpush2.xpose.msra.mxu0 0.0
  %1558 = vmatprep.subr.mxu0 0.0
  %1559 = vmatpush2.xpose.msra.mxu0 0.0
  %1560 = vmatprep.subr.mxu0 0.0
  %1561 = vmatpush2.xpose.msra.mxu0 0.0
  %1562 = vmatprep.subr.mxu0 0.0
  %1563 = vmatpush2.xpose.msra.mxu0 0.0
  %1564 = vmatprep.subr.mxu0 0.0
  %1565 = vmatpush2.xpose.msra.mxu0 0.0
  %1566 = vmatprep.subr.mxu0 0.0
  %1567 = vmatpush2.xpose.msra.mxu0 0.0
  %1568 = vmatprep.subr.mxu0 0.0
  %1569 = vmatpush2.xpose.msra.mxu0 0.0
  %1570 = vmatprep.subr.mxu0 0.0
  %1571 = vmatpush2.xpose.msra.mxu0 0.0
  %1572 = vmatprep.subr.mxu0 0.0
  %1573 = vmatpush2.xpose.msra.mxu0 0.0
  %1574 = vmatprep.subr.mxu0 0.0
  %1575 = vmatpush2.xpose.msra.mxu0 0.0
  %1576 = vmatprep.subr.mxu0 0.0
  %1577 = vmatpush2.xpose.msra.mxu0 0.0
  %1578 = vmatprep.subr.mxu0 0.0
  %1579 = vmatpush2.xpose.msra.mxu0 0.0
  %1580 = vmatprep.subr.mxu0 0.0
  %1581 = vmatpush2.xpose.msra.mxu0 0.0
  %1582 = vmatprep.subr.mxu0 0.0
  %1583 = vmatpush2.xpose.msra.mxu0 0.0
  %1584 = vmatprep.mubr.f32.mxu0 0.0
  %1585 = vmatmul.mubr.f32.gmra.mxu0 %v1509
  %v1586 = vpop.f32.mrf.mxu0
  %v1587 = vadd.f32 %v1314, %v1586
  %v1588 = vpop.f32.mrf.mxu0
  %1589 = vmatprep.mubr.f32.mxu0 0.0
  %1590 = vmatmul.mubr.f32.gmra.mxu0 %v1512
  %v1591 = vpop.f32.mrf.mxu0
  %v1592 = vadd.f32 %v1314, %v1591
  %v1593 = vpop.f32.mrf.mxu0
  %1594 = vdwg.mxu0
  %v1595 = vadd.f32 %v1587, %v156
  %v1596 = vadd.f32 %v1592, %v157
  %v1597 = vsel %vm761, %v1595, -inf
  %1598 = vmax.xlane.f32.xlu0 %v1597
  %v1599 = vpop.xlane.xlu0 %1598
  %v1600 = vsel %vm761, %v1596, -inf
  %1601 = vmax.xlane.f32.xlu0 %v1600
  %v1602 = vpop.xlane.xlu0 %1601
  %v1603 = vsub.f32 %v1595, %v1599
  %v1604 = vsub.f32 %v1596, %v1602
  %v1605 = vmul.f32 %v1603, 1.442695
  %v1606 = vpow.pop %v1605
  %v1607 = vmul.f32 %v1604, 1.442695
  %v1608 = vpow.pop %v1607
  %v1609 = vsel %vm761, %v1606, 0.0
  %1610 = vadd.xlane.f32.xlu0 %v1609
  %v1611 = vpop.xlane.xlu0 %1610
  %v1612 = vsel %vm761, %v1608, 0.0
  %1613 = vadd.xlane.f32.xlu0 %v1612
  %v1614 = vpop.xlane.xlu0 %1613
  %v1615 = vrcp.pop %v1611
  %v1616 = vrcp.pop %v1614
  %v1617 = vmul.f32 %v1606, %v1615
  %v1618 = vmul.f32 %v1608, %v1616
  %v1620 = vsel %vm761, %v1617, 0
  %v1623 = vsel %vm761, %v1618, 0
  %1625 = vmatprep.subr.mxu0 0.0
  %1626 = vmatpush1.msra.mxu0 0.0
  %1627 = vmatprep.subr.mxu0 0.0
  %1628 = vmatpush1.msra.mxu0 0.0
  %1629 = vmatprep.subr.mxu0 0.0
  %1630 = vmatpush1.msra.mxu0 0.0
  %1631 = vmatprep.subr.mxu0 0.0
  %1632 = vmatpush1.msra.mxu0 0.0
  %1633 = vmatprep.subr.mxu0 0.0
  %1634 = vmatpush1.msra.mxu0 0.0
  %1635 = vmatprep.subr.mxu0 0.0
  %1636 = vmatpush1.msra.mxu0 0.0
  %1637 = vmatprep.subr.mxu0 0.0
  %1638 = vmatpush1.msra.mxu0 0.0
  %1639 = vmatprep.subr.mxu0 0.0
  %1640 = vmatpush1.msra.mxu0 0.0
  %1641 = vmatprep.subr.mxu0 0.0
  %1642 = vmatpush1.msra.mxu0 0.0
  %1643 = vmatprep.subr.mxu0 0.0
  %1644 = vmatpush1.msra.mxu0 0.0
  %1645 = vmatprep.subr.mxu0 0.0
  %1646 = vmatpush1.msra.mxu0 0.0
  %1647 = vmatprep.subr.mxu0 0.0
  %1648 = vmatpush1.msra.mxu0 0.0
  %1649 = vmatprep.subr.mxu0 0.0
  %1650 = vmatpush1.msra.mxu0 0.0
  %1651 = vmatprep.subr.mxu0 0.0
  %1652 = vmatpush1.msra.mxu0 0.0
  %1653 = vmatprep.subr.mxu0 0.0
  %1654 = vmatpush1.msra.mxu0 %v752
  %1655 = vmatprep.subr.mxu0 0.0
  %1656 = vmatpush1.msra.mxu0 %v747
  %1657 = vmatprep.subr.mxu0 0.0
  %1658 = vmatpush2.msra.mxu0 0.0
  %1659 = vmatprep.subr.mxu0 0.0
  %1660 = vmatpush2.msra.mxu0 0.0
  %1661 = vmatprep.subr.mxu0 0.0
  %1662 = vmatpush2.msra.mxu0 0.0
  %1663 = vmatprep.subr.mxu0 0.0
  %1664 = vmatpush2.msra.mxu0 0.0
  %1665 = vmatprep.subr.mxu0 0.0
  %1666 = vmatpush2.msra.mxu0 0.0
  %1667 = vmatprep.subr.mxu0 0.0
  %1668 = vmatpush2.msra.mxu0 0.0
  %1669 = vmatprep.subr.mxu0 0.0
  %1670 = vmatpush2.msra.mxu0 0.0
  %1671 = vmatprep.subr.mxu0 0.0
  %1672 = vmatpush2.msra.mxu0 0.0
  %1673 = vmatprep.subr.mxu0 0.0
  %1674 = vmatpush2.msra.mxu0 0.0
  %1675 = vmatprep.subr.mxu0 0.0
  %1676 = vmatpush2.msra.mxu0 0.0
  %1677 = vmatprep.subr.mxu0 0.0
  %1678 = vmatpush2.msra.mxu0 0.0
  %1679 = vmatprep.subr.mxu0 0.0
  %1680 = vmatpush2.msra.mxu0 0.0
  %1681 = vmatprep.subr.mxu0 0.0
  %1682 = vmatpush2.msra.mxu0 0.0
  %1683 = vmatprep.subr.mxu0 0.0
  %1684 = vmatpush2.msra.mxu0 0.0
  %1685 = vmatprep.subr.mxu0 0.0
  %1686 = vmatpush2.msra.mxu0 0.0
  %1687 = vmatprep.subr.mxu0 0.0
  %1688 = vmatpush2.msra.mxu0 0.0
  %1689 = vmatprep.mubr.f32.mxu0 0.0
  %1690 = vmatmul.mubr.f32.gmra.mxu0 %v1620
  %v1691 = vpop.f32.mrf.mxu0
  %v1692 = vadd.f32 0.0, %v1691
  %v1693 = vpop.f32.mrf.mxu0
  %1694 = vmatprep.mubr.f32.mxu0 0.0
  %1695 = vmatmul.mubr.f32.gmra.mxu0 %v1623
  %v1696 = vpop.f32.mrf.mxu0
  %v1697 = vadd.f32 0.0, %v1696
  %v1698 = vpop.f32.mrf.mxu0
  %1699 = vdwg.mxu0
  %v1701 = vsel %vm761, %v1692, 0
  %v1704 = vsel %vm761, %v1697, 0
  %1706 = vmatprep.subr.mxu0 0.0
  %1707 = vmatpush1.msra.mxu0 0.0
  %1708 = vmatprep.subr.mxu0 0.0
  %1709 = vmatpush1.msra.mxu0 0.0
  %1710 = vmatprep.subr.mxu0 0.0
  %1711 = vmatpush1.msra.mxu0 0.0
  %1712 = vmatprep.subr.mxu0 0.0
  %1713 = vmatpush1.msra.mxu0 0.0
  %1714 = vmatprep.subr.mxu0 0.0
  %1715 = vmatpush1.msra.mxu0 0.0
  %1716 = vmatprep.subr.mxu0 0.0
  %1717 = vmatpush1.msra.mxu0 0.0
  %1718 = vmatprep.subr.mxu0 0.0
  %1719 = vmatpush1.msra.mxu0 0.0
  %1720 = vmatprep.subr.mxu0 0.0
  %1721 = vmatpush1.msra.mxu0 0.0
  %1722 = vmatprep.subr.mxu0 0.0
  %1723 = vmatpush1.msra.mxu0 0.0
  %1724 = vmatprep.subr.mxu0 0.0
  %1725 = vmatpush1.msra.mxu0 0.0
  %1726 = vmatprep.subr.mxu0 0.0
  %1727 = vmatpush1.msra.mxu0 0.0
  %1728 = vmatprep.subr.mxu0 0.0
  %1729 = vmatpush1.msra.mxu0 0.0
  %1730 = vmatprep.subr.mxu0 0.0
  %1731 = vmatpush1.msra.mxu0 0.0
  %1732 = vmatprep.subr.mxu0 0.0
  %1733 = vmatpush1.msra.mxu0 0.0
  %1734 = vmatprep.subr.mxu0 0.0
  %1735 = vmatpush1.msra.mxu0 %v232
  %1736 = vmatprep.subr.mxu0 0.0
  %1737 = vmatpush1.msra.mxu0 %v231
  %1738 = vmatprep.subr.mxu0 0.0
  %1739 = vmatpush2.msra.mxu0 0.0
  %1740 = vmatprep.subr.mxu0 0.0
  %1741 = vmatpush2.msra.mxu0 0.0
  %1742 = vmatprep.subr.mxu0 0.0
  %1743 = vmatpush2.msra.mxu0 0.0
  %1744 = vmatprep.subr.mxu0 0.0
  %1745 = vmatpush2.msra.mxu0 0.0
  %1746 = vmatprep.subr.mxu0 0.0
  %1747 = vmatpush2.msra.mxu0 0.0
  %1748 = vmatprep.subr.mxu0 0.0
  %1749 = vmatpush2.msra.mxu0 0.0
  %1750 = vmatprep.subr.mxu0 0.0
  %1751 = vmatpush2.msra.mxu0 0.0
  %1752 = vmatprep.subr.mxu0 0.0
  %1753 = vmatpush2.msra.mxu0 0.0
  %1754 = vmatprep.subr.mxu0 0.0
  %1755 = vmatpush2.msra.mxu0 0.0
  %1756 = vmatprep.subr.mxu0 0.0
  %1757 = vmatpush2.msra.mxu0 0.0
  %1758 = vmatprep.subr.mxu0 0.0
  %1759 = vmatpush2.msra.mxu0 0.0
  %1760 = vmatprep.subr.mxu0 0.0
  %1761 = vmatpush2.msra.mxu0 0.0
  %1762 = vmatprep.subr.mxu0 0.0
  %1763 = vmatpush2.msra.mxu0 0.0
  %1764 = vmatprep.subr.mxu0 0.0
  %1765 = vmatpush2.msra.mxu0 0.0
  %1766 = vmatprep.subr.mxu0 0.0
  %1767 = vmatpush2.msra.mxu0 0.0
  %1768 = vmatprep.subr.mxu0 0.0
  %1769 = vmatpush2.msra.mxu0 0.0
  %1770 = vmatprep.mubr.f32.mxu0 0.0
  %1771 = vmatmul.mubr.f32.gmra.mxu0 %v1701
  %v1772 = vpop.f32.mrf.mxu0
  %v1773 = vadd.f32 0.0, %v1772
  %v1774 = vpop.f32.mrf.mxu0
  %1775 = vmatprep.mubr.f32.mxu0 0.0
  %1776 = vmatmul.mubr.f32.gmra.mxu0 %v1704
  %v1777 = vpop.f32.mrf.mxu0
  %v1778 = vadd.f32 0.0, %v1777
  %v1779 = vpop.f32.mrf.mxu0
  %1780 = vdwg.mxu0
  %v1782 = vsel %vm761, %v1500, 0
  %v1785 = vsel %vm761, %v1505, 0
  %1787 = vmatprep.subr.mxu0 0.0
  %1788 = vmatpush1.msra.mxu0 0.0
  %1789 = vmatprep.subr.mxu0 0.0
  %1790 = vmatpush1.msra.mxu0 0.0
  %1791 = vmatprep.subr.mxu0 0.0
  %1792 = vmatpush1.msra.mxu0 0.0
  %1793 = vmatprep.subr.mxu0 0.0
  %1794 = vmatpush1.msra.mxu0 0.0
  %1795 = vmatprep.subr.mxu0 0.0
  %1796 = vmatpush1.msra.mxu0 0.0
  %1797 = vmatprep.subr.mxu0 0.0
  %1798 = vmatpush1.msra.mxu0 0.0
  %1799 = vmatprep.subr.mxu0 0.0
  %1800 = vmatpush1.msra.mxu0 0.0
  %1801 = vmatprep.subr.mxu0 0.0
  %1802 = vmatpush1.msra.mxu0 0.0
  %1803 = vmatprep.subr.mxu0 0.0
  %1804 = vmatpush1.msra.mxu0 0.0
  %1805 = vmatprep.subr.mxu0 0.0
  %1806 = vmatpush1.msra.mxu0 0.0
  %1807 = vmatprep.subr.mxu0 0.0
  %1808 = vmatpush1.msra.mxu0 0.0
  %1809 = vmatprep.subr.mxu0 0.0
  %1810 = vmatpush1.msra.mxu0 0.0
  %1811 = vmatprep.subr.mxu0 0.0
  %1812 = vmatpush1.msra.mxu0 0.0
  %1813 = vmatprep.subr.mxu0 0.0
  %1814 = vmatpush1.msra.mxu0 0.0
  %1815 = vmatprep.subr.mxu0 0.0
  %1816 = vmatpush1.msra.mxu0 %v230
  %1817 = vmatprep.subr.mxu0 0.0
  %1818 = vmatpush1.msra.mxu0 %v229
  %1819 = vmatprep.subr.mxu0 0.0
  %1820 = vmatpush2.msra.mxu0 0.0
  %1821 = vmatprep.subr.mxu0 0.0
  %1822 = vmatpush2.msra.mxu0 0.0
  %1823 = vmatprep.subr.mxu0 0.0
  %1824 = vmatpush2.msra.mxu0 0.0
  %1825 = vmatprep.subr.mxu0 0.0
  %1826 = vmatpush2.msra.mxu0 0.0
  %1827 = vmatprep.subr.mxu0 0.0
  %1828 = vmatpush2.msra.mxu0 0.0
  %1829 = vmatprep.subr.mxu0 0.0
  %1830 = vmatpush2.msra.mxu0 0.0
  %1831 = vmatprep.subr.mxu0 0.0
  %1832 = vmatpush2.msra.mxu0 0.0
  %1833 = vmatprep.subr.mxu0 0.0
  %1834 = vmatpush2.msra.mxu0 0.0
  %1835 = vmatprep.subr.mxu0 0.0
  %1836 = vmatpush2.msra.mxu0 0.0
  %1837 = vmatprep.subr.mxu0 0.0
  %1838 = vmatpush2.msra.mxu0 0.0
  %1839 = vmatprep.subr.mxu0 0.0
  %1840 = vmatpush2.msra.mxu0 0.0
  %1841 = vmatprep.subr.mxu0 0.0
  %1842 = vmatpush2.msra.mxu0 0.0
  %1843 = vmatprep.subr.mxu0 0.0
  %1844 = vmatpush2.msra.mxu0 0.0
  %1845 = vmatprep.subr.mxu0 0.0
  %1846 = vmatpush2.msra.mxu0 0.0
  %1847 = vmatprep.subr.mxu0 0.0
  %1848 = vmatpush2.msra.mxu0 0.0
  %1849 = vmatprep.subr.mxu0 0.0
  %1850 = vmatpush2.msra.mxu0 0.0
  %1851 = vmatprep.mubr.f32.mxu0 0.0
  %1852 = vmatmul.mubr.f32.gmra.mxu0 %v1782
  %v1853 = vpop.f32.mrf.mxu0
  %v1854 = vadd.f32 %v1773, %v1853
  %v1855 = vpop.f32.mrf.mxu0
  %1856 = vmatprep.mubr.f32.mxu0 0.0
  %1857 = vmatmul.mubr.f32.gmra.mxu0 %v1785
  %v1858 = vpop.f32.mrf.mxu0
  %v1859 = vadd.f32 %v1778, %v1858
  %v1860 = vpop.f32.mrf.mxu0
  %1861 = vdwg.mxu0
  %1862 = vst.msk [vmem:[#allocation2 + $0x10] sm:$0xff] %vm165, %v1854
  %1863 = vst.msk [vmem:[#allocation2 + $0x18] sm:$0xff] %vm165, %v1859
  %v1864 = vld [vmem:[#allocation2] sm:$0xff]
  %v1865 = vld [vmem:[#allocation2 + $0x8] sm:$0xff]
  %v1866 = vld [vmem:[#allocation2 + $0x10] sm:$0xff]
  %v1867 = vld [vmem:[#allocation2 + $0x18] sm:$0xff]
  %v1868 = vadd.f32 %v150, %v1864
  %v1869 = vadd.f32 %v151, %v1865
  %v1870 = vadd.f32 %v152, %v1866
  %v1871 = vadd.f32 %v153, %v1867
  %v1872 = vld [vmem:[%s17] sm:$0x1]
  %v1873 = vmul.f32 %v1868, %v1868
  %v1874 = vmul.f32 %v1869, %v1869
  %v1875 = vmul.f32 %v1870, %v1870
  %v1876 = vmul.f32 %v1871, %v1871
  %v1877 = vsel %vm165, %v1873, 0.0
  %1878 = vadd.xlane.f32.xlu0 %v1877
  %v1879 = vpop.xlane.xlu0 %1878
  %v1880 = vsel %vm165, %v1874, 0.0
  %1881 = vadd.xlane.f32.xlu0 %v1880
  %v1882 = vpop.xlane.xlu0 %1881
  %v1883 = vsel %vm165, %v1875, 0.0
  %1884 = vadd.xlane.f32.xlu0 %v1883
  %v1885 = vpop.xlane.xlu0 %1884
  %v1886 = vsel %vm165, %v1876, 0.0
  %1887 = vadd.xlane.f32.xlu0 %v1886
  %v1888 = vpop.xlane.xlu0 %1887
  %v1889 = vmul.f32 %v1879, %v178
  %v1890 = vmul.f32 %v1882, %v178
  %v1891 = vmul.f32 %v1885, %v178
  %v1892 = vmul.f32 %v1888, %v178
  %v1893 = vadd.f32 %v1889, 1e-06
  %v1894 = vadd.f32 %v1890, 1e-06
  %v1895 = vadd.f32 %v1891, 1e-06
  %v1896 = vadd.f32 %v1892, 1e-06
  %v1897 = vrsqrt.pop %v1893
  %v1898 = vrsqrt.pop %v1894
  %v1899 = vrsqrt.pop %v1895
  %v1900 = vrsqrt.pop %v1896
  %v1901 = vmul.f32 %v1868, %v1897
  %v1902 = vmul.f32 %v1869, %v1898
  %v1903 = vmul.f32 %v1870, %v1899
  %v1904 = vmul.f32 %v1871, %v1900
  %v1906 = vlaneseq
  %v1907 = vshrl.u32 %v1906, 7
  %v1908 = vsub.s32 0, %v1907
  %v1909 = vrot.slane %v1872, %v1908
  %v1911 = vmul.f32 %v1901, %v1909
  %v1912 = vmul.f32 %v1902, %v1909
  %v1913 = vmul.f32 %v1903, %v1909
  %v1914 = vmul.f32 %v1904, %v1909
  %v1915 = vld [vmem:[%s19] sm:$0xff]
  %v1916 = vld [vmem:[%s19 + $0x8] sm:$0xff]
  %v1917 = vld [vmem:[%s19 + $0x10] sm:$0xff]
  %v1918 = vld [vmem:[%s19 + $0x18] sm:$0xff]
  %v1920 = vsel %vm165, %v1911, 0
  %v1923 = vsel %vm165, %v1912, 0
  %v1926 = vsel %vm165, %v1913, 0
  %v1929 = vsel %vm165, %v1914, 0
  %1931 = vmatprep.subr.mxu0 0.0
  %1932 = vmatpush1.msra.mxu0 0.0
  %1933 = vmatprep.subr.mxu0 0.0
  %1934 = vmatpush1.msra.mxu0 0.0
  %1935 = vmatprep.subr.mxu0 0.0
  %1936 = vmatpush1.msra.mxu0 0.0
  %1937 = vmatprep.subr.mxu0 0.0
  %1938 = vmatpush1.msra.mxu0 0.0
  %1939 = vmatprep.subr.mxu0 0.0
  %1940 = vmatpush1.msra.mxu0 0.0
  %1941 = vmatprep.subr.mxu0 0.0
  %1942 = vmatpush1.msra.mxu0 0.0
  %1943 = vmatprep.subr.mxu0 0.0
  %1944 = vmatpush1.msra.mxu0 0.0
  %1945 = vmatprep.subr.mxu0 0.0
  %1946 = vmatpush1.msra.mxu0 0.0
  %1947 = vmatprep.subr.mxu0 0.0
  %1948 = vmatpush1.msra.mxu0 0.0
  %1949 = vmatprep.subr.mxu0 0.0
  %1950 = vmatpush1.msra.mxu0 0.0
  %1951 = vmatprep.subr.mxu0 0.0
  %1952 = vmatpush1.msra.mxu0 0.0
  %1953 = vmatprep.subr.mxu0 0.0
  %1954 = vmatpush1.msra.mxu0 0.0
  %1955 = vmatprep.subr.mxu0 0.0
  %1956 = vmatpush1.msra.mxu0 %v1918
  %1957 = vmatprep.subr.mxu0 0.0
  %1958 = vmatpush1.msra.mxu0 %v1917
  %1959 = vmatprep.subr.mxu0 0.0
  %1960 = vmatpush1.msra.mxu0 %v1916
  %1961 = vmatprep.subr.mxu0 0.0
  %1962 = vmatpush1.msra.mxu0 %v1915
  %1963 = vmatprep.subr.mxu0 0.0
  %1964 = vmatpush2.msra.mxu0 0.0
  %1965 = vmatprep.subr.mxu0 0.0
  %1966 = vmatpush2.msra.mxu0 0.0
  %1967 = vmatprep.subr.mxu0 0.0
  %1968 = vmatpush2.msra.mxu0 0.0
  %1969 = vmatprep.subr.mxu0 0.0
  %1970 = vmatpush2.msra.mxu0 0.0
  %1971 = vmatprep.subr.mxu0 0.0
  %1972 = vmatpush2.msra.mxu0 0.0
  %1973 = vmatprep.subr.mxu0 0.0
  %1974 = vmatpush2.msra.mxu0 0.0
  %1975 = vmatprep.subr.mxu0 0.0
  %1976 = vmatpush2.msra.mxu0 0.0
  %1977 = vmatprep.subr.mxu0 0.0
  %1978 = vmatpush2.msra.mxu0 0.0
  %1979 = vmatprep.subr.mxu0 0.0
  %1980 = vmatpush2.msra.mxu0 0.0
  %1981 = vmatprep.subr.mxu0 0.0
  %1982 = vmatpush2.msra.mxu0 0.0
  %1983 = vmatprep.subr.mxu0 0.0
  %1984 = vmatpush2.msra.mxu0 0.0
  %1985 = vmatprep.subr.mxu0 0.0
  %1986 = vmatpush2.msra.mxu0 0.0
  %1987 = vmatprep.subr.mxu0 0.0
  %1988 = vmatpush2.msra.mxu0 0.0
  %1989 = vmatprep.subr.mxu0 0.0
  %1990 = vmatpush2.msra.mxu0 0.0
  %1991 = vmatprep.subr.mxu0 0.0
  %1992 = vmatpush2.msra.mxu0 0.0
  %1993 = vmatprep.subr.mxu0 0.0
  %1994 = vmatpush2.msra.mxu0 0.0
  %1995 = vmatprep.mubr.f32.mxu0 0.0
  %1996 = vmatmul.mubr.f32.gmra.mxu0 %v1920
  %v1997 = vpop.f32.mrf.mxu0
  %v1998 = vadd.f32 0.0, %v1997
  %v1999 = vpop.f32.mrf.mxu0
  %2000 = vmatprep.mubr.f32.mxu0 0.0
  %2001 = vmatmul.mubr.f32.gmra.mxu0 %v1923
  %v2002 = vpop.f32.mrf.mxu0
  %v2003 = vadd.f32 0.0, %v2002
  %v2004 = vpop.f32.mrf.mxu0
  %2005 = vmatprep.mubr.f32.mxu0 0.0
  %2006 = vmatmul.mubr.f32.gmra.mxu0 %v1926
  %v2007 = vpop.f32.mrf.mxu0
  %v2008 = vadd.f32 0.0, %v2007
  %v2009 = vpop.f32.mrf.mxu0
  %2010 = vmatprep.mubr.f32.mxu0 0.0
  %2011 = vmatmul.mubr.f32.gmra.mxu0 %v1929
  %v2012 = vpop.f32.mrf.mxu0
  %v2013 = vadd.f32 0.0, %v2012
  %v2014 = vpop.f32.mrf.mxu0
  %2015 = vdwg.mxu0
  %v2016 = vmax.f32 %v1998, 0.0
  %v2017 = vmax.f32 %v2003, 0.0
  %v2018 = vmax.f32 %v2008, 0.0
  %v2019 = vmax.f32 %v2013, 0.0
  %v2020 = vld [vmem:[%s21] sm:$0xff]
  %v2021 = vld [vmem:[%s21 + $0x8] sm:$0xff]
  %v2022 = vld [vmem:[%s21 + $0x10] sm:$0xff]
  %v2023 = vld [vmem:[%s21 + $0x18] sm:$0xff]
  %v2024 = vld [vmem:[%s21 + $0x20] sm:$0xff]
  %v2025 = vld [vmem:[%s21 + $0x28] sm:$0xff]
  %v2026 = vld [vmem:[%s21 + $0x30] sm:$0xff]
  %v2027 = vld [vmem:[%s21 + $0x38] sm:$0xff]
  %vm2028 = vcmask 523264
  %v2030 = vsel %vm2028, %v2016, 0
  %v2033 = vsel %vm2028, %v2017, 0
  %v2036 = vsel %vm2028, %v2018, 0
  %v2039 = vsel %vm2028, %v2019, 0
  %2041 = vmatprep.subr.mxu0 0.0
  %2042 = vmatpush1.msra.mxu0 0.0
  %2043 = vmatprep.subr.mxu0 0.0
  %2044 = vmatpush1.msra.mxu0 0.0
  %2045 = vmatprep.subr.mxu0 0.0
  %2046 = vmatpush1.msra.mxu0 0.0
  %2047 = vmatprep.subr.mxu0 0.0
  %2048 = vmatpush1.msra.mxu0 0.0
  %2049 = vmatprep.subr.mxu0 0.0
  %2050 = vmatpush1.msra.mxu0 0.0
  %2051 = vmatprep.subr.mxu0 0.0
  %2052 = vmatpush1.msra.mxu0 0.0
  %2053 = vmatprep.subr.mxu0 0.0
  %2054 = vmatpush1.msra.mxu0 0.0
  %2055 = vmatprep.subr.mxu0 0.0
  %2056 = vmatpush1.msra.mxu0 0.0
  %2057 = vmatprep.subr.mxu0 0.0
  %2058 = vmatpush1.msra.mxu0 %v2027
  %2059 = vmatprep.subr.mxu0 0.0
  %2060 = vmatpush1.msra.mxu0 %v2026
  %2061 = vmatprep.subr.mxu0 0.0
  %2062 = vmatpush1.msra.mxu0 %v2025
  %2063 = vmatprep.subr.mxu0 0.0
  %2064 = vmatpush1.msra.mxu0 %v2024
  %2065 = vmatprep.subr.mxu0 0.0
  %2066 = vmatpush1.msra.mxu0 %v2023
  %2067 = vmatprep.subr.mxu0 0.0
  %2068 = vmatpush1.msra.mxu0 %v2022
  %2069 = vmatprep.subr.mxu0 0.0
  %2070 = vmatpush1.msra.mxu0 %v2021
  %2071 = vmatprep.subr.mxu0 0.0
  %2072 = vmatpush1.msra.mxu0 %v2020
  %2073 = vmatprep.subr.mxu0 0.0
  %2074 = vmatpush2.msra.mxu0 0.0
  %2075 = vmatprep.subr.mxu0 0.0
  %2076 = vmatpush2.msra.mxu0 0.0
  %2077 = vmatprep.subr.mxu0 0.0
  %2078 = vmatpush2.msra.mxu0 0.0
  %2079 = vmatprep.subr.mxu0 0.0
  %2080 = vmatpush2.msra.mxu0 0.0
  %2081 = vmatprep.subr.mxu0 0.0
  %2082 = vmatpush2.msra.mxu0 0.0
  %2083 = vmatprep.subr.mxu0 0.0
  %2084 = vmatpush2.msra.mxu0 0.0
  %2085 = vmatprep.subr.mxu0 0.0
  %2086 = vmatpush2.msra.mxu0 0.0
  %2087 = vmatprep.subr.mxu0 0.0
  %2088 = vmatpush2.msra.mxu0 0.0
  %2089 = vmatprep.subr.mxu0 0.0
  %2090 = vmatpush2.msra.mxu0 0.0
  %2091 = vmatprep.subr.mxu0 0.0
  %2092 = vmatpush2.msra.mxu0 0.0
  %2093 = vmatprep.subr.mxu0 0.0
  %2094 = vmatpush2.msra.mxu0 0.0
  %2095 = vmatprep.subr.mxu0 0.0
  %2096 = vmatpush2.msra.mxu0 0.0
  %2097 = vmatprep.subr.mxu0 0.0
  %2098 = vmatpush2.msra.mxu0 0.0
  %2099 = vmatprep.subr.mxu0 0.0
  %2100 = vmatpush2.msra.mxu0 0.0
  %2101 = vmatprep.subr.mxu0 0.0
  %2102 = vmatpush2.msra.mxu0 0.0
  %2103 = vmatprep.subr.mxu0 0.0
  %2104 = vmatpush2.msra.mxu0 0.0
  %2105 = vmatprep.mubr.f32.mxu0 0.0
  %2106 = vmatmul.mubr.f32.gmra.mxu0 %v2030
  %v2107 = vpop.f32.mrf.mxu0
  %v2108 = vadd.f32 0.0, %v2107
  %v2109 = vpop.f32.mrf.mxu0
  %2110 = vmatprep.mubr.f32.mxu0 0.0
  %2111 = vmatmul.mubr.f32.gmra.mxu0 %v2033
  %v2112 = vpop.f32.mrf.mxu0
  %v2113 = vadd.f32 0.0, %v2112
  %v2114 = vpop.f32.mrf.mxu0
  %2115 = vmatprep.mubr.f32.mxu0 0.0
  %2116 = vmatmul.mubr.f32.gmra.mxu0 %v2036
  %v2117 = vpop.f32.mrf.mxu0
  %v2118 = vadd.f32 0.0, %v2117
  %v2119 = vpop.f32.mrf.mxu0
  %2120 = vmatprep.mubr.f32.mxu0 0.0
  %2121 = vmatmul.mubr.f32.gmra.mxu0 %v2039
  %v2122 = vpop.f32.mrf.mxu0
  %v2123 = vadd.f32 0.0, %v2122
  %v2124 = vpop.f32.mrf.mxu0
  %2125 = vdwg.mxu0
  %v2126 = vadd.f32 %v1868, %v2108
  %v2127 = vadd.f32 %v1869, %v2113
  %v2128 = vadd.f32 %v1870, %v2118
  %v2129 = vadd.f32 %v1871, %v2123
  %v2130 = vld [vmem:[%s23] sm:$0x1]
  %v2131 = vmul.f32 %v2126, %v2126
  %v2132 = vmul.f32 %v2127, %v2127
  %v2133 = vmul.f32 %v2128, %v2128
  %v2134 = vmul.f32 %v2129, %v2129
  %v2135 = vsel %vm165, %v2131, 0.0
  %2136 = vadd.xlane.f32.xlu0 %v2135
  %v2137 = vpop.xlane.xlu0 %2136
  %v2138 = vsel %vm165, %v2132, 0.0
  %2139 = vadd.xlane.f32.xlu0 %v2138
  %v2140 = vpop.xlane.xlu0 %2139
  %v2141 = vsel %vm165, %v2133, 0.0
  %2142 = vadd.xlane.f32.xlu0 %v2141
  %v2143 = vpop.xlane.xlu0 %2142
  %v2144 = vsel %vm165, %v2134, 0.0
  %2145 = vadd.xlane.f32.xlu0 %v2144
  %v2146 = vpop.xlane.xlu0 %2145
  %v2147 = vmul.f32 %v2137, %v178
  %v2148 = vmul.f32 %v2140, %v178
  %v2149 = vmul.f32 %v2143, %v178
  %v2150 = vmul.f32 %v2146, %v178
  %v2151 = vadd.f32 %v2147, 1e-06
  %v2152 = vadd.f32 %v2148, 1e-06
  %v2153 = vadd.f32 %v2149, 1e-06
  %v2154 = vadd.f32 %v2150, 1e-06
  %v2155 = vrsqrt.pop %v2151
  %v2156 = vrsqrt.pop %v2152
  %v2157 = vrsqrt.pop %v2153
  %v2158 = vrsqrt.pop %v2154
  %v2159 = vmul.f32 %v2126, %v2155
  %v2160 = vmul.f32 %v2127, %v2156
  %v2161 = vmul.f32 %v2128, %v2157
  %v2162 = vmul.f32 %v2129, %v2158
  %v2164 = vlaneseq
  %v2165 = vshrl.u32 %v2164, 7
  %v2166 = vsub.s32 0, %v2165
  %v2167 = vrot.slane %v2130, %v2166
  %v2169 = vmul.f32 %v2159, %v2167
  %v2170 = vmul.f32 %v2160, %v2167
  %v2171 = vmul.f32 %v2161, %v2167
  %v2172 = vmul.f32 %v2162, %v2167
  %v2173 = vld [vmem:[%s25] sm:$0xff]
  %v2174 = vld [vmem:[%s25 + $0x8] sm:$0xff]
  %v2175 = vld [vmem:[%s27] sm:$0xff]
  %v2176 = vld [vmem:[%s27 + $0x8] sm:$0xff]
  %v2177 = vld [vmem:[%s29] sm:$0xff]
  %v2178 = vld [vmem:[%s29 + $0x8] sm:$0xff]
  %v2179 = vld [vmem:[%s31] sm:$0x1]
  %v2180 = vld [vmem:[%s31 + $0x1] sm:$0x1]
  %v2181 = vld [vmem:[%s33] sm:$0x1]
  %v2182 = vmul.f32 %v2173, %v2173
  %v2183 = vmul.f32 %v2174, %v2174
  %v2184 = vsel %vm165, %v2182, 0.0
  %2185 = vadd.xlane.f32.xlu0 %v2184
  %v2186 = vpop.xlane.xlu0 %2185
  %v2187 = vsel %vm165, %v2183, 0.0
  %2188 = vadd.xlane.f32.xlu0 %v2187
  %v2189 = vpop.xlane.xlu0 %2188
  %v2190 = vmul.f32 %v2186, %v178
  %v2191 = vmul.f32 %v2189, %v178
  %v2192 = vadd.f32 %v2190, 1e-06
  %v2193 = vadd.f32 %v2191, 1e-06
  %v2194 = vrsqrt.pop %v2192
  %v2195 = vrsqrt.pop %v2193
  %v2196 = vmul.f32 %v2173, %v2194
  %v2197 = vmul.f32 %v2174, %v2195
  %v2199 = vlaneseq
  %v2200 = vshrl.u32 %v2199, 7
  %v2201 = vsub.s32 0, %v2200
  %v2202 = vrot.slane %v2181, %v2201
  %v2204 = vmul.f32 %v2196, %v2202
  %v2205 = vmul.f32 %v2197, %v2202
  %v2206 = vld [vmem:[%s35] sm:$0xff]
  %v2207 = vld [vmem:[%s35 + $0x8] sm:$0xff]
  %v2208 = vld [vmem:[%s35 + $0x10] sm:$0xff]
  %v2209 = vld [vmem:[%s35 + $0x18] sm:$0xff]
  %v2210 = vld [vmem:[%s35 + $0x20] sm:$0xff]
  %v2211 = vld [vmem:[%s35 + $0x28] sm:$0xff]
  %v2212 = vld [vmem:[%s35 + $0x30] sm:$0xff]
  %v2213 = vld [vmem:[%s35 + $0x38] sm:$0xff]
  %v2214 = vld [vmem:[%s37] sm:$0xff]
  %v2215 = vld [vmem:[%s37 + $0x8] sm:$0xff]
  %v2216 = vld [vmem:[%s37 + $0x10] sm:$0xff]
  %v2217 = vld [vmem:[%s37 + $0x18] sm:$0xff]
  %v2218 = vld [vmem:[%s37 + $0x20] sm:$0xff]
  %v2219 = vld [vmem:[%s37 + $0x28] sm:$0xff]
  %v2220 = vld [vmem:[%s37 + $0x30] sm:$0xff]
  %v2221 = vld [vmem:[%s37 + $0x38] sm:$0xff]
  %v2222 = vld [vmem:[%s39] sm:$0xff]
  %v2223 = vld [vmem:[%s39 + $0x8] sm:$0xff]
  %v2224 = vld [vmem:[%s39 + $0x10] sm:$0xff]
  %v2225 = vld [vmem:[%s39 + $0x18] sm:$0xff]
  %v2226 = vld [vmem:[%s39 + $0x20] sm:$0xff]
  %v2227 = vld [vmem:[%s39 + $0x28] sm:$0xff]
  %v2228 = vld [vmem:[%s39 + $0x30] sm:$0xff]
  %v2229 = vld [vmem:[%s39 + $0x38] sm:$0xff]
  %v2230 = vld [vmem:[%s41] sm:$0xff]
  %v2231 = vld [vmem:[%s41 + $0x8] sm:$0xff]
  %v2232 = vld [vmem:[%s41 + $0x10] sm:$0xff]
  %v2233 = vld [vmem:[%s41 + $0x18] sm:$0xff]
  %v2235 = vsel %vm165, %v2204, 0
  %v2238 = vsel %vm165, %v2205, 0
  %2240 = vmatprep.subr.mxu0 0.0
  %2241 = vmatpush1.msra.mxu0 0.0
  %2242 = vmatprep.subr.mxu0 0.0
  %2243 = vmatpush1.msra.mxu0 0.0
  %2244 = vmatprep.subr.mxu0 0.0
  %2245 = vmatpush1.msra.mxu0 0.0
  %2246 = vmatprep.subr.mxu0 0.0
  %2247 = vmatpush1.msra.mxu0 0.0
  %2248 = vmatprep.subr.mxu0 0.0
  %2249 = vmatpush1.msra.mxu0 0.0
  %2250 = vmatprep.subr.mxu0 0.0
  %2251 = vmatpush1.msra.mxu0 0.0
  %2252 = vmatprep.subr.mxu0 0.0
  %2253 = vmatpush1.msra.mxu0 0.0
  %2254 = vmatprep.subr.mxu0 0.0
  %2255 = vmatpush1.msra.mxu0 0.0
  %2256 = vmatprep.subr.mxu0 0.0
  %2257 = vmatpush1.msra.mxu0 0.0
  %2258 = vmatprep.subr.mxu0 0.0
  %2259 = vmatpush1.msra.mxu0 0.0
  %2260 = vmatprep.subr.mxu0 0.0
  %2261 = vmatpush1.msra.mxu0 0.0
  %2262 = vmatprep.subr.mxu0 0.0
  %2263 = vmatpush1.msra.mxu0 0.0
  %2264 = vmatprep.subr.mxu0 0.0
  %2265 = vmatpush1.msra.mxu0 %v2209
  %2266 = vmatprep.subr.mxu0 0.0
  %2267 = vmatpush1.msra.mxu0 %v2208
  %2268 = vmatprep.subr.mxu0 0.0
  %2269 = vmatpush1.msra.mxu0 %v2207
  %2270 = vmatprep.subr.mxu0 0.0
  %2271 = vmatpush1.msra.mxu0 %v2206
  %2272 = vmatprep.subr.mxu0 0.0
  %2273 = vmatpush2.msra.mxu0 0.0
  %2274 = vmatprep.subr.mxu0 0.0
  %2275 = vmatpush2.msra.mxu0 0.0
  %2276 = vmatprep.subr.mxu0 0.0
  %2277 = vmatpush2.msra.mxu0 0.0
  %2278 = vmatprep.subr.mxu0 0.0
  %2279 = vmatpush2.msra.mxu0 0.0
  %2280 = vmatprep.subr.mxu0 0.0
  %2281 = vmatpush2.msra.mxu0 0.0
  %2282 = vmatprep.subr.mxu0 0.0
  %2283 = vmatpush2.msra.mxu0 0.0
  %2284 = vmatprep.subr.mxu0 0.0
  %2285 = vmatpush2.msra.mxu0 0.0
  %2286 = vmatprep.subr.mxu0 0.0
  %2287 = vmatpush2.msra.mxu0 0.0
  %2288 = vmatprep.subr.mxu0 0.0
  %2289 = vmatpush2.msra.mxu0 0.0
  %2290 = vmatprep.subr.mxu0 0.0
  %2291 = vmatpush2.msra.mxu0 0.0
  %2292 = vmatprep.subr.mxu0 0.0
  %2293 = vmatpush2.msra.mxu0 0.0
  %2294 = vmatprep.subr.mxu0 0.0
  %2295 = vmatpush2.msra.mxu0 0.0
  %2296 = vmatprep.subr.mxu0 0.0
  %2297 = vmatpush2.msra.mxu0 0.0
  %2298 = vmatprep.subr.mxu0 0.0
  %2299 = vmatpush2.msra.mxu0 0.0
  %2300 = vmatprep.subr.mxu0 0.0
  %2301 = vmatpush2.msra.mxu0 0.0
  %2302 = vmatprep.subr.mxu0 0.0
  %2303 = vmatpush2.msra.mxu0 0.0
  %2304 = vmatprep.mubr.f32.mxu0 0.0
  %2305 = vmatmul.mubr.f32.gmra.mxu0 %v2235
  %v2306 = vpop.f32.mrf.mxu0
  %v2307 = vadd.f32 0.0, %v2306
  %v2308 = vpop.f32.mrf.mxu0
  %2309 = vmatprep.mubr.f32.mxu0 0.0
  %2310 = vmatmul.mubr.f32.gmra.mxu0 %v2238
  %v2311 = vpop.f32.mrf.mxu0
  %v2312 = vadd.f32 0.0, %v2311
  %v2313 = vpop.f32.mrf.mxu0
  %2314 = vdwg.mxu0
  %2315 = vmatprep.subr.mxu0 0.0
  %2316 = vmatpush1.msra.mxu0 0.0
  %2317 = vmatprep.subr.mxu0 0.0
  %2318 = vmatpush1.msra.mxu0 0.0
  %2319 = vmatprep.subr.mxu0 0.0
  %2320 = vmatpush1.msra.mxu0 0.0
  %2321 = vmatprep.subr.mxu0 0.0
  %2322 = vmatpush1.msra.mxu0 0.0
  %2323 = vmatprep.subr.mxu0 0.0
  %2324 = vmatpush1.msra.mxu0 0.0
  %2325 = vmatprep.subr.mxu0 0.0
  %2326 = vmatpush1.msra.mxu0 0.0
  %2327 = vmatprep.subr.mxu0 0.0
  %2328 = vmatpush1.msra.mxu0 0.0
  %2329 = vmatprep.subr.mxu0 0.0
  %2330 = vmatpush1.msra.mxu0 0.0
  %2331 = vmatprep.subr.mxu0 0.0
  %2332 = vmatpush1.msra.mxu0 0.0
  %2333 = vmatprep.subr.mxu0 0.0
  %2334 = vmatpush1.msra.mxu0 0.0
  %2335 = vmatprep.subr.mxu0 0.0
  %2336 = vmatpush1.msra.mxu0 0.0
  %2337 = vmatprep.subr.mxu0 0.0
  %2338 = vmatpush1.msra.mxu0 0.0
  %2339 = vmatprep.subr.mxu0 0.0
  %2340 = vmatpush1.msra.mxu0 %v2213
  %2341 = vmatprep.subr.mxu0 0.0
  %2342 = vmatpush1.msra.mxu0 %v2212
  %2343 = vmatprep.subr.mxu0 0.0
  %2344 = vmatpush1.msra.mxu0 %v2211
  %2345 = vmatprep.subr.mxu0 0.0
  %2346 = vmatpush1.msra.mxu0 %v2210
  %2347 = vmatprep.subr.mxu0 0.0
  %2348 = vmatpush2.msra.mxu0 0.0
  %2349 = vmatprep.subr.mxu0 0.0
  %2350 = vmatpush2.msra.mxu0 0.0
  %2351 = vmatprep.subr.mxu0 0.0
  %2352 = vmatpush2.msra.mxu0 0.0
  %2353 = vmatprep.subr.mxu0 0.0
  %2354 = vmatpush2.msra.mxu0 0.0
  %2355 = vmatprep.subr.mxu0 0.0
  %2356 = vmatpush2.msra.mxu0 0.0
  %2357 = vmatprep.subr.mxu0 0.0
  %2358 = vmatpush2.msra.mxu0 0.0
  %2359 = vmatprep.subr.mxu0 0.0
  %2360 = vmatpush2.msra.mxu0 0.0
  %2361 = vmatprep.subr.mxu0 0.0
  %2362 = vmatpush2.msra.mxu0 0.0
  %2363 = vmatprep.subr.mxu0 0.0
  %2364 = vmatpush2.msra.mxu0 0.0
  %2365 = vmatprep.subr.mxu0 0.0
  %2366 = vmatpush2.msra.mxu0 0.0
  %2367 = vmatprep.subr.mxu0 0.0
  %2368 = vmatpush2.msra.mxu0 0.0
  %2369 = vmatprep.subr.mxu0 0.0
  %2370 = vmatpush2.msra.mxu0 0.0
  %2371 = vmatprep.subr.mxu0 0.0
  %2372 = vmatpush2.msra.mxu0 0.0
  %2373 = vmatprep.subr.mxu0 0.0
  %2374 = vmatpush2.msra.mxu0 0.0
  %2375 = vmatprep.subr.mxu0 0.0
  %2376 = vmatpush2.msra.mxu0 0.0
  %2377 = vmatprep.subr.mxu0 0.0
  %2378 = vmatpush2.msra.mxu0 0.0
  %2379 = vmatprep.mubr.f32.mxu0 0.0
  %2380 = vmatmul.mubr.f32.gmra.mxu0 %v2235
  %v2381 = vpop.f32.mrf.mxu0
  %v2382 = vadd.f32 0.0, %v2381
  %v2383 = vpop.f32.mrf.mxu0
  %2384 = vmatprep.mubr.f32.mxu0 0.0
  %2385 = vmatmul.mubr.f32.gmra.mxu0 %v2238
  %v2386 = vpop.f32.mrf.mxu0
  %v2387 = vadd.f32 0.0, %v2386
  %v2388 = vpop.f32.mrf.mxu0
  %2389 = vdwg.mxu0
  %2390 = vmatprep.subr.mxu0 0.0
  %2391 = vmatpush1.msra.mxu0 0.0
  %2392 = vmatprep.subr.mxu0 0.0
  %2393 = vmatpush1.msra.mxu0 0.0
  %2394 = vmatprep.subr.mxu0 0.0
  %2395 = vmatpush1.msra.mxu0 0.0
  %2396 = vmatprep.subr.mxu0 0.0
  %2397 = vmatpush1.msra.mxu0 0.0
  %2398 = vmatprep.subr.mxu0 0.0
  %2399 = vmatpush1.msra.mxu0 0.0
  %2400 = vmatprep.subr.mxu0 0.0
  %2401 = vmatpush1.msra.mxu0 0.0
  %2402 = vmatprep.subr.mxu0 0.0
  %2403 = vmatpush1.msra.mxu0 0.0
  %2404 = vmatprep.subr.mxu0 0.0
  %2405 = vmatpush1.msra.mxu0 0.0
  %2406 = vmatprep.subr.mxu0 0.0
  %2407 = vmatpush1.msra.mxu0 0.0
  %2408 = vmatprep.subr.mxu0 0.0
  %2409 = vmatpush1.msra.mxu0 0.0
  %2410 = vmatprep.subr.mxu0 0.0
  %2411 = vmatpush1.msra.mxu0 0.0
  %2412 = vmatprep.subr.mxu0 0.0
  %2413 = vmatpush1.msra.mxu0 0.0
  %2414 = vmatprep.subr.mxu0 0.0
  %2415 = vmatpush1.msra.mxu0 %v2217
  %2416 = vmatprep.subr.mxu0 0.0
  %2417 = vmatpush1.msra.mxu0 %v2216
  %2418 = vmatprep.subr.mxu0 0.0
  %2419 = vmatpush1.msra.mxu0 %v2215
  %2420 = vmatprep.subr.mxu0 0.0
  %2421 = vmatpush1.msra.mxu0 %v2214
  %2422 = vmatprep.subr.mxu0 0.0
  %2423 = vmatpush2.msra.mxu0 0.0
  %2424 = vmatprep.subr.mxu0 0.0
  %2425 = vmatpush2.msra.mxu0 0.0
  %2426 = vmatprep.subr.mxu0 0.0
  %2427 = vmatpush2.msra.mxu0 0.0
  %2428 = vmatprep.subr.mxu0 0.0
  %2429 = vmatpush2.msra.mxu0 0.0
  %2430 = vmatprep.subr.mxu0 0.0
  %2431 = vmatpush2.msra.mxu0 0.0
  %2432 = vmatprep.subr.mxu0 0.0
  %2433 = vmatpush2.msra.mxu0 0.0
  %2434 = vmatprep.subr.mxu0 0.0
  %2435 = vmatpush2.msra.mxu0 0.0
  %2436 = vmatprep.subr.mxu0 0.0
  %2437 = vmatpush2.msra.mxu0 0.0
  %2438 = vmatprep.subr.mxu0 0.0
  %2439 = vmatpush2.msra.mxu0 0.0
  %2440 = vmatprep.subr.mxu0 0.0
  %2441 = vmatpush2.msra.mxu0 0.0
  %2442 = vmatprep.subr.mxu0 0.0
  %2443 = vmatpush2.msra.mxu0 0.0
  %2444 = vmatprep.subr.mxu0 0.0
  %2445 = vmatpush2.msra.mxu0 0.0
  %2446 = vmatprep.subr.mxu0 0.0
  %2447 = vmatpush2.msra.mxu0 0.0
  %2448 = vmatprep.subr.mxu0 0.0
  %2449 = vmatpush2.msra.mxu0 0.0
  %2450 = vmatprep.subr.mxu0 0.0
  %2451 = vmatpush2.msra.mxu0 0.0
  %2452 = vmatprep.subr.mxu0 0.0
  %2453 = vmatpush2.msra.mxu0 0.0
  %2454 = vmatprep.mubr.f32.mxu0 0.0
  %2455 = vmatmul.mubr.f32.gmra.mxu0 %v2235
  %v2456 = vpop.f32.mrf.mxu0
  %v2457 = vadd.f32 0.0, %v2456
  %v2458 = vpop.f32.mrf.mxu0
  %2459 = vmatprep.mubr.f32.mxu0 0.0
  %2460 = vmatmul.mubr.f32.gmra.mxu0 %v2238
  %v2461 = vpop.f32.mrf.mxu0
  %v2462 = vadd.f32 0.0, %v2461
  %v2463 = vpop.f32.mrf.mxu0
  %2464 = vdwg.mxu0
  %2465 = vmatprep.subr.mxu0 0.0
  %2466 = vmatpush1.msra.mxu0 0.0
  %2467 = vmatprep.subr.mxu0 0.0
  %2468 = vmatpush1.msra.mxu0 0.0
  %2469 = vmatprep.subr.mxu0 0.0
  %2470 = vmatpush1.msra.mxu0 0.0
  %2471 = vmatprep.subr.mxu0 0.0
  %2472 = vmatpush1.msra.mxu0 0.0
  %2473 = vmatprep.subr.mxu0 0.0
  %2474 = vmatpush1.msra.mxu0 0.0
  %2475 = vmatprep.subr.mxu0 0.0
  %2476 = vmatpush1.msra.mxu0 0.0
  %2477 = vmatprep.subr.mxu0 0.0
  %2478 = vmatpush1.msra.mxu0 0.0
  %2479 = vmatprep.subr.mxu0 0.0
  %2480 = vmatpush1.msra.mxu0 0.0
  %2481 = vmatprep.subr.mxu0 0.0
  %2482 = vmatpush1.msra.mxu0 0.0
  %2483 = vmatprep.subr.mxu0 0.0
  %2484 = vmatpush1.msra.mxu0 0.0
  %2485 = vmatprep.subr.mxu0 0.0
  %2486 = vmatpush1.msra.mxu0 0.0
  %2487 = vmatprep.subr.mxu0 0.0
  %2488 = vmatpush1.msra.mxu0 0.0
  %2489 = vmatprep.subr.mxu0 0.0
  %2490 = vmatpush1.msra.mxu0 %v2221
  %2491 = vmatprep.subr.mxu0 0.0
  %2492 = vmatpush1.msra.mxu0 %v2220
  %2493 = vmatprep.subr.mxu0 0.0
  %2494 = vmatpush1.msra.mxu0 %v2219
  %2495 = vmatprep.subr.mxu0 0.0
  %2496 = vmatpush1.msra.mxu0 %v2218
  %2497 = vmatprep.subr.mxu0 0.0
  %2498 = vmatpush2.msra.mxu0 0.0
  %2499 = vmatprep.subr.mxu0 0.0
  %2500 = vmatpush2.msra.mxu0 0.0
  %2501 = vmatprep.subr.mxu0 0.0
  %2502 = vmatpush2.msra.mxu0 0.0
  %2503 = vmatprep.subr.mxu0 0.0
  %2504 = vmatpush2.msra.mxu0 0.0
  %2505 = vmatprep.subr.mxu0 0.0
  %2506 = vmatpush2.msra.mxu0 0.0
  %2507 = vmatprep.subr.mxu0 0.0
  %2508 = vmatpush2.msra.mxu0 0.0
  %2509 = vmatprep.subr.mxu0 0.0
  %2510 = vmatpush2.msra.mxu0 0.0
  %2511 = vmatprep.subr.mxu0 0.0
  %2512 = vmatpush2.msra.mxu0 0.0
  %2513 = vmatprep.subr.mxu0 0.0
  %2514 = vmatpush2.msra.mxu0 0.0
  %2515 = vmatprep.subr.mxu0 0.0
  %2516 = vmatpush2.msra.mxu0 0.0
  %2517 = vmatprep.subr.mxu0 0.0
  %2518 = vmatpush2.msra.mxu0 0.0
  %2519 = vmatprep.subr.mxu0 0.0
  %2520 = vmatpush2.msra.mxu0 0.0
  %2521 = vmatprep.subr.mxu0 0.0
  %2522 = vmatpush2.msra.mxu0 0.0
  %2523 = vmatprep.subr.mxu0 0.0
  %2524 = vmatpush2.msra.mxu0 0.0
  %2525 = vmatprep.subr.mxu0 0.0
  %2526 = vmatpush2.msra.mxu0 0.0
  %2527 = vmatprep.subr.mxu0 0.0
  %2528 = vmatpush2.msra.mxu0 0.0
  %2529 = vmatprep.mubr.f32.mxu0 0.0
  %2530 = vmatmul.mubr.f32.gmra.mxu0 %v2235
  %v2531 = vpop.f32.mrf.mxu0
  %v2532 = vadd.f32 0.0, %v2531
  %v2533 = vpop.f32.mrf.mxu0
  %2534 = vmatprep.mubr.f32.mxu0 0.0
  %2535 = vmatmul.mubr.f32.gmra.mxu0 %v2238
  %v2536 = vpop.f32.mrf.mxu0
  %v2537 = vadd.f32 0.0, %v2536
  %v2538 = vpop.f32.mrf.mxu0
  %2539 = vdwg.mxu0
  %2540 = vmatprep.subr.mxu0 0.0
  %2541 = vmatpush1.msra.mxu0 0.0
  %2542 = vmatprep.subr.mxu0 0.0
  %2543 = vmatpush1.msra.mxu0 0.0
  %2544 = vmatprep.subr.mxu0 0.0
  %2545 = vmatpush1.msra.mxu0 0.0
  %2546 = vmatprep.subr.mxu0 0.0
  %2547 = vmatpush1.msra.mxu0 0.0
  %2548 = vmatprep.subr.mxu0 0.0
  %2549 = vmatpush1.msra.mxu0 0.0
  %2550 = vmatprep.subr.mxu0 0.0
  %2551 = vmatpush1.msra.mxu0 0.0
  %2552 = vmatprep.subr.mxu0 0.0
  %2553 = vmatpush1.msra.mxu0 0.0
  %2554 = vmatprep.subr.mxu0 0.0
  %2555 = vmatpush1.msra.mxu0 0.0
  %2556 = vmatprep.subr.mxu0 0.0
  %2557 = vmatpush1.msra.mxu0 0.0
  %2558 = vmatprep.subr.mxu0 0.0
  %2559 = vmatpush1.msra.mxu0 0.0
  %2560 = vmatprep.subr.mxu0 0.0
  %2561 = vmatpush1.msra.mxu0 0.0
  %2562 = vmatprep.subr.mxu0 0.0
  %2563 = vmatpush1.msra.mxu0 0.0
  %2564 = vmatprep.subr.mxu0 0.0
  %2565 = vmatpush1.msra.mxu0 %v2225
  %2566 = vmatprep.subr.mxu0 0.0
  %2567 = vmatpush1.msra.mxu0 %v2224
  %2568 = vmatprep.subr.mxu0 0.0
  %2569 = vmatpush1.msra.mxu0 %v2223
  %2570 = vmatprep.subr.mxu0 0.0
  %2571 = vmatpush1.msra.mxu0 %v2222
  %2572 = vmatprep.subr.mxu0 0.0
  %2573 = vmatpush2.msra.mxu0 0.0
  %2574 = vmatprep.subr.mxu0 0.0
  %2575 = vmatpush2.msra.mxu0 0.0
  %2576 = vmatprep.subr.mxu0 0.0
  %2577 = vmatpush2.msra.mxu0 0.0
  %2578 = vmatprep.subr.mxu0 0.0
  %2579 = vmatpush2.msra.mxu0 0.0
  %2580 = vmatprep.subr.mxu0 0.0
  %2581 = vmatpush2.msra.mxu0 0.0
  %2582 = vmatprep.subr.mxu0 0.0
  %2583 = vmatpush2.msra.mxu0 0.0
  %2584 = vmatprep.subr.mxu0 0.0
  %2585 = vmatpush2.msra.mxu0 0.0
  %2586 = vmatprep.subr.mxu0 0.0
  %2587 = vmatpush2.msra.mxu0 0.0
  %2588 = vmatprep.subr.mxu0 0.0
  %2589 = vmatpush2.msra.mxu0 0.0
  %2590 = vmatprep.subr.mxu0 0.0
  %2591 = vmatpush2.msra.mxu0 0.0
  %2592 = vmatprep.subr.mxu0 0.0
  %2593 = vmatpush2.msra.mxu0 0.0
  %2594 = vmatprep.subr.mxu0 0.0
  %2595 = vmatpush2.msra.mxu0 0.0
  %2596 = vmatprep.subr.mxu0 0.0
  %2597 = vmatpush2.msra.mxu0 0.0
  %2598 = vmatprep.subr.mxu0 0.0
  %2599 = vmatpush2.msra.mxu0 0.0
  %2600 = vmatprep.subr.mxu0 0.0
  %2601 = vmatpush2.msra.mxu0 0.0
  %2602 = vmatprep.subr.mxu0 0.0
  %2603 = vmatpush2.msra.mxu0 0.0
  %2604 = vmatprep.mubr.f32.mxu0 0.0
  %2605 = vmatmul.mubr.f32.gmra.mxu0 %v2235
  %v2606 = vpop.f32.mrf.mxu0
  %v2607 = vadd.f32 0.0, %v2606
  %v2608 = vpop.f32.mrf.mxu0
  %2609 = vmatprep.mubr.f32.mxu0 0.0
  %2610 = vmatmul.mubr.f32.gmra.mxu0 %v2238
  %v2611 = vpop.f32.mrf.mxu0
  %v2612 = vadd.f32 0.0, %v2611
  %v2613 = vpop.f32.mrf.mxu0
  %2614 = vdwg.mxu0
  %2615 = vmatprep.subr.mxu0 0.0
  %2616 = vmatpush1.msra.mxu0 0.0
  %2617 = vmatprep.subr.mxu0 0.0
  %2618 = vmatpush1.msra.mxu0 0.0
  %2619 = vmatprep.subr.mxu0 0.0
  %2620 = vmatpush1.msra.mxu0 0.0
  %2621 = vmatprep.subr.mxu0 0.0
  %2622 = vmatpush1.msra.mxu0 0.0
  %2623 = vmatprep.subr.mxu0 0.0
  %2624 = vmatpush1.msra.mxu0 0.0
  %2625 = vmatprep.subr.mxu0 0.0
  %2626 = vmatpush1.msra.mxu0 0.0
  %2627 = vmatprep.subr.mxu0 0.0
  %2628 = vmatpush1.msra.mxu0 0.0
  %2629 = vmatprep.subr.mxu0 0.0
  %2630 = vmatpush1.msra.mxu0 0.0
  %2631 = vmatprep.subr.mxu0 0.0
  %2632 = vmatpush1.msra.mxu0 0.0
  %2633 = vmatprep.subr.mxu0 0.0
  %2634 = vmatpush1.msra.mxu0 0.0
  %2635 = vmatprep.subr.mxu0 0.0
  %2636 = vmatpush1.msra.mxu0 0.0
  %2637 = vmatprep.subr.mxu0 0.0
  %2638 = vmatpush1.msra.mxu0 0.0
  %2639 = vmatprep.subr.mxu0 0.0
  %2640 = vmatpush1.msra.mxu0 %v2229
  %2641 = vmatprep.subr.mxu0 0.0
  %2642 = vmatpush1.msra.mxu0 %v2228
  %2643 = vmatprep.subr.mxu0 0.0
  %2644 = vmatpush1.msra.mxu0 %v2227
  %2645 = vmatprep.subr.mxu0 0.0
  %2646 = vmatpush1.msra.mxu0 %v2226
  %2647 = vmatprep.subr.mxu0 0.0
  %2648 = vmatpush2.msra.mxu0 0.0
  %2649 = vmatprep.subr.mxu0 0.0
  %2650 = vmatpush2.msra.mxu0 0.0
  %2651 = vmatprep.subr.mxu0 0.0
  %2652 = vmatpush2.msra.mxu0 0.0
  %2653 = vmatprep.subr.mxu0 0.0
  %2654 = vmatpush2.msra.mxu0 0.0
  %2655 = vmatprep.subr.mxu0 0.0
  %2656 = vmatpush2.msra.mxu0 0.0
  %2657 = vmatprep.subr.mxu0 0.0
  %2658 = vmatpush2.msra.mxu0 0.0
  %2659 = vmatprep.subr.mxu0 0.0
  %2660 = vmatpush2.msra.mxu0 0.0
  %2661 = vmatprep.subr.mxu0 0.0
  %2662 = vmatpush2.msra.mxu0 0.0
  %2663 = vmatprep.subr.mxu0 0.0
  %2664 = vmatpush2.msra.mxu0 0.0
  %2665 = vmatprep.subr.mxu0 0.0
  %2666 = vmatpush2.msra.mxu0 0.0
  %2667 = vmatprep.subr.mxu0 0.0
  %2668 = vmatpush2.msra.mxu0 0.0
  %2669 = vmatprep.subr.mxu0 0.0
  %2670 = vmatpush2.msra.mxu0 0.0
  %2671 = vmatprep.subr.mxu0 0.0
  %2672 = vmatpush2.msra.mxu0 0.0
  %2673 = vmatprep.subr.mxu0 0.0
  %2674 = vmatpush2.msra.mxu0 0.0
  %2675 = vmatprep.subr.mxu0 0.0
  %2676 = vmatpush2.msra.mxu0 0.0
  %2677 = vmatprep.subr.mxu0 0.0
  %2678 = vmatpush2.msra.mxu0 0.0
  %2679 = vmatprep.mubr.f32.mxu0 0.0
  %2680 = vmatmul.mubr.f32.gmra.mxu0 %v2235
  %v2681 = vpop.f32.mrf.mxu0
  %v2682 = vadd.f32 0.0, %v2681
  %v2683 = vpop.f32.mrf.mxu0
  %2684 = vmatprep.mubr.f32.mxu0 0.0
  %2685 = vmatmul.mubr.f32.gmra.mxu0 %v2238
  %v2686 = vpop.f32.mrf.mxu0
  %v2687 = vadd.f32 0.0, %v2686
  %v2688 = vpop.f32.mrf.mxu0
  %2689 = vdwg.mxu0
  %v2691 = vsel %vm761, %v2307, 0
  %v2694 = vsel %vm761, %v2457, 0
  %2696 = vmatprep.subr.mxu0 0.0
  %2697 = vmatpush1.xpose.msra.mxu0 0.0
  %2698 = vmatprep.subr.mxu0 0.0
  %2699 = vmatpush1.xpose.msra.mxu0 0.0
  %2700 = vmatprep.subr.mxu0 0.0
  %2701 = vmatpush1.xpose.msra.mxu0 0.0
  %2702 = vmatprep.subr.mxu0 0.0
  %2703 = vmatpush1.xpose.msra.mxu0 0.0
  %2704 = vmatprep.subr.mxu0 0.0
  %2705 = vmatpush1.xpose.msra.mxu0 0.0
  %2706 = vmatprep.subr.mxu0 0.0
  %2707 = vmatpush1.xpose.msra.mxu0 0.0
  %2708 = vmatprep.subr.mxu0 0.0
  %2709 = vmatpush1.xpose.msra.mxu0 0.0
  %2710 = vmatprep.subr.mxu0 0.0
  %2711 = vmatpush1.xpose.msra.mxu0 0.0
  %2712 = vmatprep.subr.mxu0 0.0
  %2713 = vmatpush1.xpose.msra.mxu0 0.0
  %2714 = vmatprep.subr.mxu0 0.0
  %2715 = vmatpush1.xpose.msra.mxu0 0.0
  %2716 = vmatprep.subr.mxu0 0.0
  %2717 = vmatpush1.xpose.msra.mxu0 0.0
  %2718 = vmatprep.subr.mxu0 0.0
  %2719 = vmatpush1.xpose.msra.mxu0 0.0
  %2720 = vmatprep.subr.mxu0 0.0
  %2721 = vmatpush1.xpose.msra.mxu0 0.0
  %2722 = vmatprep.subr.mxu0 0.0
  %2723 = vmatpush1.xpose.msra.mxu0 0.0
  %2724 = vmatprep.subr.mxu0 0.0
  %2725 = vmatpush1.xpose.msra.mxu0 0.0
  %2726 = vmatprep.subr.mxu0 0.0
  %2727 = vmatpush1.xpose.msra.mxu0 %v2694
  %2728 = vmatprep.subr.mxu0 0.0
  %2729 = vmatpush2.xpose.msra.mxu0 0.0
  %2730 = vmatprep.subr.mxu0 0.0
  %2731 = vmatpush2.xpose.msra.mxu0 0.0
  %2732 = vmatprep.subr.mxu0 0.0
  %2733 = vmatpush2.xpose.msra.mxu0 0.0
  %2734 = vmatprep.subr.mxu0 0.0
  %2735 = vmatpush2.xpose.msra.mxu0 0.0
  %2736 = vmatprep.subr.mxu0 0.0
  %2737 = vmatpush2.xpose.msra.mxu0 0.0
  %2738 = vmatprep.subr.mxu0 0.0
  %2739 = vmatpush2.xpose.msra.mxu0 0.0
  %2740 = vmatprep.subr.mxu0 0.0
  %2741 = vmatpush2.xpose.msra.mxu0 0.0
  %2742 = vmatprep.subr.mxu0 0.0
  %2743 = vmatpush2.xpose.msra.mxu0 0.0
  %2744 = vmatprep.subr.mxu0 0.0
  %2745 = vmatpush2.xpose.msra.mxu0 0.0
  %2746 = vmatprep.subr.mxu0 0.0
  %2747 = vmatpush2.xpose.msra.mxu0 0.0
  %2748 = vmatprep.subr.mxu0 0.0
  %2749 = vmatpush2.xpose.msra.mxu0 0.0
  %2750 = vmatprep.subr.mxu0 0.0
  %2751 = vmatpush2.xpose.msra.mxu0 0.0
  %2752 = vmatprep.subr.mxu0 0.0
  %2753 = vmatpush2.xpose.msra.mxu0 0.0
  %2754 = vmatprep.subr.mxu0 0.0
  %2755 = vmatpush2.xpose.msra.mxu0 0.0
  %2756 = vmatprep.subr.mxu0 0.0
  %2757 = vmatpush2.xpose.msra.mxu0 0.0
  %2758 = vmatprep.subr.mxu0 0.0
  %2759 = vmatpush2.xpose.msra.mxu0 0.0
  %2760 = vmatprep.mubr.f32.mxu0 0.0
  %2761 = vmatmul.mubr.f32.gmra.mxu0 %v2691
  %v2762 = vpop.f32.mrf.mxu0
  %v2763 = vadd.f32 %v2177, %v2762
  %v2764 = vpop.f32.mrf.mxu0
  %2765 = vdwg.mxu0
  %v2766 = vadd.f32 %v2763, %v2175
  %vm2767 = vcmask 64512
  %v2768 = vsel %vm2767, %v2766, -inf
  %2769 = vmax.xlane.f32.xlu0 %v2768
  %v2770 = vpop.xlane.xlu0 %2769
  %v2771 = vsub.f32 %v2766, %v2770
  %v2772 = vmul.f32 %v2771, 1.442695
  %v2773 = vpow.pop %v2772
  %v2774 = vsel %vm2767, %v2773, 0.0
  %2775 = vadd.xlane.f32.xlu0 %v2774
  %v2776 = vpop.xlane.xlu0 %2775
  %v2777 = vrcp.pop %v2776
  %v2778 = vmul.f32 %v2773, %v2777
  %v2780 = vsel %vm2767, %v2778, 0
  %2782 = vmatprep.subr.mxu0 0.0
  %2783 = vmatpush1.msra.mxu0 0.0
  %2784 = vmatprep.subr.mxu0 0.0
  %2785 = vmatpush1.msra.mxu0 0.0
  %2786 = vmatprep.subr.mxu0 0.0
  %2787 = vmatpush1.msra.mxu0 0.0
  %2788 = vmatprep.subr.mxu0 0.0
  %2789 = vmatpush1.msra.mxu0 0.0
  %2790 = vmatprep.subr.mxu0 0.0
  %2791 = vmatpush1.msra.mxu0 0.0
  %2792 = vmatprep.subr.mxu0 0.0
  %2793 = vmatpush1.msra.mxu0 0.0
  %2794 = vmatprep.subr.mxu0 0.0
  %2795 = vmatpush1.msra.mxu0 0.0
  %2796 = vmatprep.subr.mxu0 0.0
  %2797 = vmatpush1.msra.mxu0 0.0
  %2798 = vmatprep.subr.mxu0 0.0
  %2799 = vmatpush1.msra.mxu0 0.0
  %2800 = vmatprep.subr.mxu0 0.0
  %2801 = vmatpush1.msra.mxu0 0.0
  %2802 = vmatprep.subr.mxu0 0.0
  %2803 = vmatpush1.msra.mxu0 0.0
  %2804 = vmatprep.subr.mxu0 0.0
  %2805 = vmatpush1.msra.mxu0 0.0
  %2806 = vmatprep.subr.mxu0 0.0
  %2807 = vmatpush1.msra.mxu0 0.0
  %2808 = vmatprep.subr.mxu0 0.0
  %2809 = vmatpush1.msra.mxu0 0.0
  %2810 = vmatprep.subr.mxu0 0.0
  %2811 = vmatpush1.msra.mxu0 0.0
  %2812 = vmatprep.subr.mxu0 0.0
  %2813 = vmatpush1.msra.mxu0 %v2607
  %2814 = vmatprep.subr.mxu0 0.0
  %2815 = vmatpush2.msra.mxu0 0.0
  %2816 = vmatprep.subr.mxu0 0.0
  %2817 = vmatpush2.msra.mxu0 0.0
  %2818 = vmatprep.subr.mxu0 0.0
  %2819 = vmatpush2.msra.mxu0 0.0
  %2820 = vmatprep.subr.mxu0 0.0
  %2821 = vmatpush2.msra.mxu0 0.0
  %2822 = vmatprep.subr.mxu0 0.0
  %2823 = vmatpush2.msra.mxu0 0.0
  %2824 = vmatprep.subr.mxu0 0.0
  %2825 = vmatpush2.msra.mxu0 0.0
  %2826 = vmatprep.subr.mxu0 0.0
  %2827 = vmatpush2.msra.mxu0 0.0
  %2828 = vmatprep.subr.mxu0 0.0
  %2829 = vmatpush2.msra.mxu0 0.0
  %2830 = vmatprep.subr.mxu0 0.0
  %2831 = vmatpush2.msra.mxu0 0.0
  %2832 = vmatprep.subr.mxu0 0.0
  %2833 = vmatpush2.msra.mxu0 0.0
  %2834 = vmatprep.subr.mxu0 0.0
  %2835 = vmatpush2.msra.mxu0 0.0
  %2836 = vmatprep.subr.mxu0 0.0
  %2837 = vmatpush2.msra.mxu0 0.0
  %2838 = vmatprep.subr.mxu0 0.0
  %2839 = vmatpush2.msra.mxu0 0.0
  %2840 = vmatprep.subr.mxu0 0.0
  %2841 = vmatpush2.msra.mxu0 0.0
  %2842 = vmatprep.subr.mxu0 0.0
  %2843 = vmatpush2.msra.mxu0 0.0
  %2844 = vmatprep.subr.mxu0 0.0
  %2845 = vmatpush2.msra.mxu0 0.0
  %2846 = vmatprep.mubr.f32.mxu0 0.0
  %2847 = vmatmul.mubr.f32.gmra.mxu0 %v2780
  %v2848 = vpop.f32.mrf.mxu0
  %v2849 = vadd.f32 0.0, %v2848
  %v2850 = vpop.f32.mrf.mxu0
  %2851 = vdwg.mxu0
  %v2853 = vsel %vm761, %v2382, 0
  %v2856 = vsel %vm761, %v2532, 0
  %2858 = vmatprep.subr.mxu0 0.0
  %2859 = vmatpush1.xpose.msra.mxu0 0.0
  %2860 = vmatprep.subr.mxu0 0.0
  %2861 = vmatpush1.xpose.msra.mxu0 0.0
  %2862 = vmatprep.subr.mxu0 0.0
  %2863 = vmatpush1.xpose.msra.mxu0 0.0
  %2864 = vmatprep.subr.mxu0 0.0
  %2865 = vmatpush1.xpose.msra.mxu0 0.0
  %2866 = vmatprep.subr.mxu0 0.0
  %2867 = vmatpush1.xpose.msra.mxu0 0.0
  %2868 = vmatprep.subr.mxu0 0.0
  %2869 = vmatpush1.xpose.msra.mxu0 0.0
  %2870 = vmatprep.subr.mxu0 0.0
  %2871 = vmatpush1.xpose.msra.mxu0 0.0
  %2872 = vmatprep.subr.mxu0 0.0
  %2873 = vmatpush1.xpose.msra.mxu0 0.0
  %2874 = vmatprep.subr.mxu0 0.0
  %2875 = vmatpush1.xpose.msra.mxu0 0.0
  %2876 = vmatprep.subr.mxu0 0.0
  %2877 = vmatpush1.xpose.msra.mxu0 0.0
  %2878 = vmatprep.subr.mxu0 0.0
  %2879 = vmatpush1.xpose.msra.mxu0 0.0
  %2880 = vmatprep.subr.mxu0 0.0
  %2881 = vmatpush1.xpose.msra.mxu0 0.0
  %2882 = vmatprep.subr.mxu0 0.0
  %2883 = vmatpush1.xpose.msra.mxu0 0.0
  %2884 = vmatprep.subr.mxu0 0.0
  %2885 = vmatpush1.xpose.msra.mxu0 0.0
  %2886 = vmatprep.subr.mxu0 0.0
  %2887 = vmatpush1.xpose.msra.mxu0 0.0
  %2888 = vmatprep.subr.mxu0 0.0
  %2889 = vmatpush1.xpose.msra.mxu0 %v2856
  %2890 = vmatprep.subr.mxu0 0.0
  %2891 = vmatpush2.xpose.msra.mxu0 0.0
  %2892 = vmatprep.subr.mxu0 0.0
  %2893 = vmatpush2.xpose.msra.mxu0 0.0
  %2894 = vmatprep.subr.mxu0 0.0
  %2895 = vmatpush2.xpose.msra.mxu0 0.0
  %2896 = vmatprep.subr.mxu0 0.0
  %2897 = vmatpush2.xpose.msra.mxu0 0.0
  %2898 = vmatprep.subr.mxu0 0.0
  %2899 = vmatpush2.xpose.msra.mxu0 0.0
  %2900 = vmatprep.subr.mxu0 0.0
  %2901 = vmatpush2.xpose.msra.mxu0 0.0
  %2902 = vmatprep.subr.mxu0 0.0
  %2903 = vmatpush2.xpose.msra.mxu0 0.0
  %2904 = vmatprep.subr.mxu0 0.0
  %2905 = vmatpush2.xpose.msra.mxu0 0.0
  %2906 = vmatprep.subr.mxu0 0.0
  %2907 = vmatpush2.xpose.msra.mxu0 0.0
  %2908 = vmatprep.subr.mxu0 0.0
  %2909 = vmatpush2.xpose.msra.mxu0 0.0
  %2910 = vmatprep.subr.mxu0 0.0
  %2911 = vmatpush2.xpose.msra.mxu0 0.0
  %2912 = vmatprep.subr.mxu0 0.0
  %2913 = vmatpush2.xpose.msra.mxu0 0.0
  %2914 = vmatprep.subr.mxu0 0.0
  %2915 = vmatpush2.xpose.msra.mxu0 0.0
  %2916 = vmatprep.subr.mxu0 0.0
  %2917 = vmatpush2.xpose.msra.mxu0 0.0
  %2918 = vmatprep.subr.mxu0 0.0
  %2919 = vmatpush2.xpose.msra.mxu0 0.0
  %2920 = vmatprep.subr.mxu0 0.0
  %2921 = vmatpush2.xpose.msra.mxu0 0.0
  %2922 = vmatprep.mubr.f32.mxu0 0.0
  %2923 = vmatmul.mubr.f32.gmra.mxu0 %v2853
  %v2924 = vpop.f32.mrf.mxu0
  %v2925 = vadd.f32 %v2177, %v2924
  %v2926 = vpop.f32.mrf.mxu0
  %2927 = vdwg.mxu0
  %v2928 = vadd.f32 %v2925, %v2176
  %v2929 = vsel %vm2767, %v2928, -inf
  %2930 = vmax.xlane.f32.xlu0 %v2929
  %v2931 = vpop.xlane.xlu0 %2930
  %v2932 = vsub.f32 %v2928, %v2931
  %v2933 = vmul.f32 %v2932, 1.442695
  %v2934 = vpow.pop %v2933
  %v2935 = vsel %vm2767, %v2934, 0.0
  %2936 = vadd.xlane.f32.xlu0 %v2935
  %v2937 = vpop.xlane.xlu0 %2936
  %v2938 = vrcp.pop %v2937
  %v2939 = vmul.f32 %v2934, %v2938
  %v2941 = vsel %vm2767, %v2939, 0
  %2943 = vmatprep.subr.mxu0 0.0
  %2944 = vmatpush1.msra.mxu0 0.0
  %2945 = vmatprep.subr.mxu0 0.0
  %2946 = vmatpush1.msra.mxu0 0.0
  %2947 = vmatprep.subr.mxu0 0.0
  %2948 = vmatpush1.msra.mxu0 0.0
  %2949 = vmatprep.subr.mxu0 0.0
  %2950 = vmatpush1.msra.mxu0 0.0
  %2951 = vmatprep.subr.mxu0 0.0
  %2952 = vmatpush1.msra.mxu0 0.0
  %2953 = vmatprep.subr.mxu0 0.0
  %2954 = vmatpush1.msra.mxu0 0.0
  %2955 = vmatprep.subr.mxu0 0.0
  %2956 = vmatpush1.msra.mxu0 0.0
  %2957 = vmatprep.subr.mxu0 0.0
  %2958 = vmatpush1.msra.mxu0 0.0
  %2959 = vmatprep.subr.mxu0 0.0
  %2960 = vmatpush1.msra.mxu0 0.0
  %2961 = vmatprep.subr.mxu0 0.0
  %2962 = vmatpush1.msra.mxu0 0.0
  %2963 = vmatprep.subr.mxu0 0.0
  %2964 = vmatpush1.msra.mxu0 0.0
  %2965 = vmatprep.subr.mxu0 0.0
  %2966 = vmatpush1.msra.mxu0 0.0
  %2967 = vmatprep.subr.mxu0 0.0
  %2968 = vmatpush1.msra.mxu0 0.0
  %2969 = vmatprep.subr.mxu0 0.0
  %2970 = vmatpush1.msra.mxu0 0.0
  %2971 = vmatprep.subr.mxu0 0.0
  %2972 = vmatpush1.msra.mxu0 0.0
  %2973 = vmatprep.subr.mxu0 0.0
  %2974 = vmatpush1.msra.mxu0 %v2682
  %2975 = vmatprep.subr.mxu0 0.0
  %2976 = vmatpush2.msra.mxu0 0.0
  %2977 = vmatprep.subr.mxu0 0.0
  %2978 = vmatpush2.msra.mxu0 0.0
  %2979 = vmatprep.subr.mxu0 0.0
  %2980 = vmatpush2.msra.mxu0 0.0
  %2981 = vmatprep.subr.mxu0 0.0
  %2982 = vmatpush2.msra.mxu0 0.0
  %2983 = vmatprep.subr.mxu0 0.0
  %2984 = vmatpush2.msra.mxu0 0.0
  %2985 = vmatprep.subr.mxu0 0.0
  %2986 = vmatpush2.msra.mxu0 0.0
  %2987 = vmatprep.subr.mxu0 0.0
  %2988 = vmatpush2.msra.mxu0 0.0
  %2989 = vmatprep.subr.mxu0 0.0
  %2990 = vmatpush2.msra.mxu0 0.0
  %2991 = vmatprep.subr.mxu0 0.0
  %2992 = vmatpush2.msra.mxu0 0.0
  %2993 = vmatprep.subr.mxu0 0.0
  %2994 = vmatpush2.msra.mxu0 0.0
  %2995 = vmatprep.subr.mxu0 0.0
  %2996 = vmatpush2.msra.mxu0 0.0
  %2997 = vmatprep.subr.mxu0 0.0
  %2998 = vmatpush2.msra.mxu0 0.0
  %2999 = vmatprep.subr.mxu0 0.0
  %3000 = vmatpush2.msra.mxu0 0.0
  %3001 = vmatprep.subr.mxu0 0.0
  %3002 = vmatpush2.msra.mxu0 0.0
  %3003 = vmatprep.subr.mxu0 0.0
  %3004 = vmatpush2.msra.mxu0 0.0
  %3005 = vmatprep.subr.mxu0 0.0
  %3006 = vmatpush2.msra.mxu0 0.0
  %3007 = vmatprep.mubr.f32.mxu0 0.0
  %3008 = vmatmul.mubr.f32.gmra.mxu0 %v2941
  %v3009 = vpop.f32.mrf.mxu0
  %v3010 = vadd.f32 0.0, %v3009
  %v3011 = vpop.f32.mrf.mxu0
  %3012 = vdwg.mxu0
  %v3014 = vsel %vm761, %v3010, 0
  %3016 = vmatprep.subr.mxu0 0.0
  %3017 = vmatpush1.msra.mxu0 0.0
  %3018 = vmatprep.subr.mxu0 0.0
  %3019 = vmatpush1.msra.mxu0 0.0
  %3020 = vmatprep.subr.mxu0 0.0
  %3021 = vmatpush1.msra.mxu0 0.0
  %3022 = vmatprep.subr.mxu0 0.0
  %3023 = vmatpush1.msra.mxu0 0.0
  %3024 = vmatprep.subr.mxu0 0.0
  %3025 = vmatpush1.msra.mxu0 0.0
  %3026 = vmatprep.subr.mxu0 0.0
  %3027 = vmatpush1.msra.mxu0 0.0
  %3028 = vmatprep.subr.mxu0 0.0
  %3029 = vmatpush1.msra.mxu0 0.0
  %3030 = vmatprep.subr.mxu0 0.0
  %3031 = vmatpush1.msra.mxu0 0.0
  %3032 = vmatprep.subr.mxu0 0.0
  %3033 = vmatpush1.msra.mxu0 0.0
  %3034 = vmatprep.subr.mxu0 0.0
  %3035 = vmatpush1.msra.mxu0 0.0
  %3036 = vmatprep.subr.mxu0 0.0
  %3037 = vmatpush1.msra.mxu0 0.0
  %3038 = vmatprep.subr.mxu0 0.0
  %3039 = vmatpush1.msra.mxu0 0.0
  %3040 = vmatprep.subr.mxu0 0.0
  %3041 = vmatpush1.msra.mxu0 0.0
  %3042 = vmatprep.subr.mxu0 0.0
  %3043 = vmatpush1.msra.mxu0 0.0
  %3044 = vmatprep.subr.mxu0 0.0
  %3045 = vmatpush1.msra.mxu0 %v2233
  %3046 = vmatprep.subr.mxu0 0.0
  %3047 = vmatpush1.msra.mxu0 %v2232
  %3048 = vmatprep.subr.mxu0 0.0
  %3049 = vmatpush2.msra.mxu0 0.0
  %3050 = vmatprep.subr.mxu0 0.0
  %3051 = vmatpush2.msra.mxu0 0.0
  %3052 = vmatprep.subr.mxu0 0.0
  %3053 = vmatpush2.msra.mxu0 0.0
  %3054 = vmatprep.subr.mxu0 0.0
  %3055 = vmatpush2.msra.mxu0 0.0
  %3056 = vmatprep.subr.mxu0 0.0
  %3057 = vmatpush2.msra.mxu0 0.0
  %3058 = vmatprep.subr.mxu0 0.0
  %3059 = vmatpush2.msra.mxu0 0.0
  %3060 = vmatprep.subr.mxu0 0.0
  %3061 = vmatpush2.msra.mxu0 0.0
  %3062 = vmatprep.subr.mxu0 0.0
  %3063 = vmatpush2.msra.mxu0 0.0
  %3064 = vmatprep.subr.mxu0 0.0
  %3065 = vmatpush2.msra.mxu0 0.0
  %3066 = vmatprep.subr.mxu0 0.0
  %3067 = vmatpush2.msra.mxu0 0.0
  %3068 = vmatprep.subr.mxu0 0.0
  %3069 = vmatpush2.msra.mxu0 0.0
  %3070 = vmatprep.subr.mxu0 0.0
  %3071 = vmatpush2.msra.mxu0 0.0
  %3072 = vmatprep.subr.mxu0 0.0
  %3073 = vmatpush2.msra.mxu0 0.0
  %3074 = vmatprep.subr.mxu0 0.0
  %3075 = vmatpush2.msra.mxu0 0.0
  %3076 = vmatprep.subr.mxu0 0.0
  %3077 = vmatpush2.msra.mxu0 0.0
  %3078 = vmatprep.subr.mxu0 0.0
  %3079 = vmatpush2.msra.mxu0 0.0
  %3080 = vmatprep.mubr.f32.mxu0 0.0
  %3081 = vmatmul.mubr.f32.gmra.mxu0 %v3014
  %v3082 = vpop.f32.mrf.mxu0
  %v3083 = vadd.f32 0.0, %v3082
  %v3084 = vpop.f32.mrf.mxu0
  %3085 = vdwg.mxu0
  %v3087 = vsel %vm761, %v2849, 0
  %3089 = vmatprep.subr.mxu0 0.0
  %3090 = vmatpush1.msra.mxu0 0.0
  %3091 = vmatprep.subr.mxu0 0.0
  %3092 = vmatpush1.msra.mxu0 0.0
  %3093 = vmatprep.subr.mxu0 0.0
  %3094 = vmatpush1.msra.mxu0 0.0
  %3095 = vmatprep.subr.mxu0 0.0
  %3096 = vmatpush1.msra.mxu0 0.0
  %3097 = vmatprep.subr.mxu0 0.0
  %3098 = vmatpush1.msra.mxu0 0.0
  %3099 = vmatprep.subr.mxu0 0.0
  %3100 = vmatpush1.msra.mxu0 0.0
  %3101 = vmatprep.subr.mxu0 0.0
  %3102 = vmatpush1.msra.mxu0 0.0
  %3103 = vmatprep.subr.mxu0 0.0
  %3104 = vmatpush1.msra.mxu0 0.0
  %3105 = vmatprep.subr.mxu0 0.0
  %3106 = vmatpush1.msra.mxu0 0.0
  %3107 = vmatprep.subr.mxu0 0.0
  %3108 = vmatpush1.msra.mxu0 0.0
  %3109 = vmatprep.subr.mxu0 0.0
  %3110 = vmatpush1.msra.mxu0 0.0
  %3111 = vmatprep.subr.mxu0 0.0
  %3112 = vmatpush1.msra.mxu0 0.0
  %3113 = vmatprep.subr.mxu0 0.0
  %3114 = vmatpush1.msra.mxu0 0.0
  %3115 = vmatprep.subr.mxu0 0.0
  %3116 = vmatpush1.msra.mxu0 0.0
  %3117 = vmatprep.subr.mxu0 0.0
  %3118 = vmatpush1.msra.mxu0 %v2231
  %3119 = vmatprep.subr.mxu0 0.0
  %3120 = vmatpush1.msra.mxu0 %v2230
  %3121 = vmatprep.subr.mxu0 0.0
  %3122 = vmatpush2.msra.mxu0 0.0
  %3123 = vmatprep.subr.mxu0 0.0
  %3124 = vmatpush2.msra.mxu0 0.0
  %3125 = vmatprep.subr.mxu0 0.0
  %3126 = vmatpush2.msra.mxu0 0.0
  %3127 = vmatprep.subr.mxu0 0.0
  %3128 = vmatpush2.msra.mxu0 0.0
  %3129 = vmatprep.subr.mxu0 0.0
  %3130 = vmatpush2.msra.mxu0 0.0
  %3131 = vmatprep.subr.mxu0 0.0
  %3132 = vmatpush2.msra.mxu0 0.0
  %3133 = vmatprep.subr.mxu0 0.0
  %3134 = vmatpush2.msra.mxu0 0.0
  %3135 = vmatprep.subr.mxu0 0.0
  %3136 = vmatpush2.msra.mxu0 0.0
  %3137 = vmatprep.subr.mxu0 0.0
  %3138 = vmatpush2.msra.mxu0 0.0
  %3139 = vmatprep.subr.mxu0 0.0
  %3140 = vmatpush2.msra.mxu0 0.0
  %3141 = vmatprep.subr.mxu0 0.0
  %3142 = vmatpush2.msra.mxu0 0.0
  %3143 = vmatprep.subr.mxu0 0.0
  %3144 = vmatpush2.msra.mxu0 0.0
  %3145 = vmatprep.subr.mxu0 0.0
  %3146 = vmatpush2.msra.mxu0 0.0
  %3147 = vmatprep.subr.mxu0 0.0
  %3148 = vmatpush2.msra.mxu0 0.0
  %3149 = vmatprep.subr.mxu0 0.0
  %3150 = vmatpush2.msra.mxu0 0.0
  %3151 = vmatprep.subr.mxu0 0.0
  %3152 = vmatpush2.msra.mxu0 0.0
  %3153 = vmatprep.mubr.f32.mxu0 0.0
  %3154 = vmatmul.mubr.f32.gmra.mxu0 %v3087
  %v3155 = vpop.f32.mrf.mxu0
  %v3156 = vadd.f32 %v3083, %v3155
  %v3157 = vpop.f32.mrf.mxu0
  %3158 = vdwg.mxu0
  %3159 = vst.msk [vmem:[#allocation3] sm:$0xff] %vm165, %v3156
  %v3161 = vsel %vm761, %v2312, 0
  %v3164 = vsel %vm761, %v2462, 0
  %3166 = vmatprep.subr.mxu0 0.0
  %3167 = vmatpush1.xpose.msra.mxu0 0.0
  %3168 = vmatprep.subr.mxu0 0.0
  %3169 = vmatpush1.xpose.msra.mxu0 0.0
  %3170 = vmatprep.subr.mxu0 0.0
  %3171 = vmatpush1.xpose.msra.mxu0 0.0
  %3172 = vmatprep.subr.mxu0 0.0
  %3173 = vmatpush1.xpose.msra.mxu0 0.0
  %3174 = vmatprep.subr.mxu0 0.0
  %3175 = vmatpush1.xpose.msra.mxu0 0.0
  %3176 = vmatprep.subr.mxu0 0.0
  %3177 = vmatpush1.xpose.msra.mxu0 0.0
  %3178 = vmatprep.subr.mxu0 0.0
  %3179 = vmatpush1.xpose.msra.mxu0 0.0
  %3180 = vmatprep.subr.mxu0 0.0
  %3181 = vmatpush1.xpose.msra.mxu0 0.0
  %3182 = vmatprep.subr.mxu0 0.0
  %3183 = vmatpush1.xpose.msra.mxu0 0.0
  %3184 = vmatprep.subr.mxu0 0.0
  %3185 = vmatpush1.xpose.msra.mxu0 0.0
  %3186 = vmatprep.subr.mxu0 0.0
  %3187 = vmatpush1.xpose.msra.mxu0 0.0
  %3188 = vmatprep.subr.mxu0 0.0
  %3189 = vmatpush1.xpose.msra.mxu0 0.0
  %3190 = vmatprep.subr.mxu0 0.0
  %3191 = vmatpush1.xpose.msra.mxu0 0.0
  %3192 = vmatprep.subr.mxu0 0.0
  %3193 = vmatpush1.xpose.msra.mxu0 0.0
  %3194 = vmatprep.subr.mxu0 0.0
  %3195 = vmatpush1.xpose.msra.mxu0 0.0
  %3196 = vmatprep.subr.mxu0 0.0
  %3197 = vmatpush1.xpose.msra.mxu0 %v3164
  %3198 = vmatprep.subr.mxu0 0.0
  %3199 = vmatpush2.xpose.msra.mxu0 0.0
  %3200 = vmatprep.subr.mxu0 0.0
  %3201 = vmatpush2.xpose.msra.mxu0 0.0
  %3202 = vmatprep.subr.mxu0 0.0
  %3203 = vmatpush2.xpose.msra.mxu0 0.0
  %3204 = vmatprep.subr.mxu0 0.0
  %3205 = vmatpush2.xpose.msra.mxu0 0.0
  %3206 = vmatprep.subr.mxu0 0.0
  %3207 = vmatpush2.xpose.msra.mxu0 0.0
  %3208 = vmatprep.subr.mxu0 0.0
  %3209 = vmatpush2.xpose.msra.mxu0 0.0
  %3210 = vmatprep.subr.mxu0 0.0
  %3211 = vmatpush2.xpose.msra.mxu0 0.0
  %3212 = vmatprep.subr.mxu0 0.0
  %3213 = vmatpush2.xpose.msra.mxu0 0.0
  %3214 = vmatprep.subr.mxu0 0.0
  %3215 = vmatpush2.xpose.msra.mxu0 0.0
  %3216 = vmatprep.subr.mxu0 0.0
  %3217 = vmatpush2.xpose.msra.mxu0 0.0
  %3218 = vmatprep.subr.mxu0 0.0
  %3219 = vmatpush2.xpose.msra.mxu0 0.0
  %3220 = vmatprep.subr.mxu0 0.0
  %3221 = vmatpush2.xpose.msra.mxu0 0.0
  %3222 = vmatprep.subr.mxu0 0.0
  %3223 = vmatpush2.xpose.msra.mxu0 0.0
  %3224 = vmatprep.subr.mxu0 0.0
  %3225 = vmatpush2.xpose.msra.mxu0 0.0
  %3226 = vmatprep.subr.mxu0 0.0
  %3227 = vmatpush2.xpose.msra.mxu0 0.0
  %3228 = vmatprep.subr.mxu0 0.0
  %3229 = vmatpush2.xpose.msra.mxu0 0.0
  %3230 = vmatprep.mubr.f32.mxu0 0.0
  %3231 = vmatmul.mubr.f32.gmra.mxu0 %v3161
  %v3232 = vpop.f32.mrf.mxu0
  %v3233 = vadd.f32 %v2178, %v3232
  %v3234 = vpop.f32.mrf.mxu0
  %3235 = vdwg.mxu0
  %v3236 = vadd.f32 %v3233, %v2175
  %v3237 = vsel %vm2767, %v3236, -inf
  %3238 = vmax.xlane.f32.xlu0 %v3237
  %v3239 = vpop.xlane.xlu0 %3238
  %v3240 = vsub.f32 %v3236, %v3239
  %v3241 = vmul.f32 %v3240, 1.442695
  %v3242 = vpow.pop %v3241
  %v3243 = vsel %vm2767, %v3242, 0.0
  %3244 = vadd.xlane.f32.xlu0 %v3243
  %v3245 = vpop.xlane.xlu0 %3244
  %v3246 = vrcp.pop %v3245
  %v3247 = vmul.f32 %v3242, %v3246
  %v3249 = vsel %vm2767, %v3247, 0
  %3251 = vmatprep.subr.mxu0 0.0
  %3252 = vmatpush1.msra.mxu0 0.0
  %3253 = vmatprep.subr.mxu0 0.0
  %3254 = vmatpush1.msra.mxu0 0.0
  %3255 = vmatprep.subr.mxu0 0.0
  %3256 = vmatpush1.msra.mxu0 0.0
  %3257 = vmatprep.subr.mxu0 0.0
  %3258 = vmatpush1.msra.mxu0 0.0
  %3259 = vmatprep.subr.mxu0 0.0
  %3260 = vmatpush1.msra.mxu0 0.0
  %3261 = vmatprep.subr.mxu0 0.0
  %3262 = vmatpush1.msra.mxu0 0.0
  %3263 = vmatprep.subr.mxu0 0.0
  %3264 = vmatpush1.msra.mxu0 0.0
  %3265 = vmatprep.subr.mxu0 0.0
  %3266 = vmatpush1.msra.mxu0 0.0
  %3267 = vmatprep.subr.mxu0 0.0
  %3268 = vmatpush1.msra.mxu0 0.0
  %3269 = vmatprep.subr.mxu0 0.0
  %3270 = vmatpush1.msra.mxu0 0.0
  %3271 = vmatprep.subr.mxu0 0.0
  %3272 = vmatpush1.msra.mxu0 0.0
  %3273 = vmatprep.subr.mxu0 0.0
  %3274 = vmatpush1.msra.mxu0 0.0
  %3275 = vmatprep.subr.mxu0 0.0
  %3276 = vmatpush1.msra.mxu0 0.0
  %3277 = vmatprep.subr.mxu0 0.0
  %3278 = vmatpush1.msra.mxu0 0.0
  %3279 = vmatprep.subr.mxu0 0.0
  %3280 = vmatpush1.msra.mxu0 0.0
  %3281 = vmatprep.subr.mxu0 0.0
  %3282 = vmatpush1.msra.mxu0 %v2612
  %3283 = vmatprep.subr.mxu0 0.0
  %3284 = vmatpush2.msra.mxu0 0.0
  %3285 = vmatprep.subr.mxu0 0.0
  %3286 = vmatpush2.msra.mxu0 0.0
  %3287 = vmatprep.subr.mxu0 0.0
  %3288 = vmatpush2.msra.mxu0 0.0
  %3289 = vmatprep.subr.mxu0 0.0
  %3290 = vmatpush2.msra.mxu0 0.0
  %3291 = vmatprep.subr.mxu0 0.0
  %3292 = vmatpush2.msra.mxu0 0.0
  %3293 = vmatprep.subr.mxu0 0.0
  %3294 = vmatpush2.msra.mxu0 0.0
  %3295 = vmatprep.subr.mxu0 0.0
  %3296 = vmatpush2.msra.mxu0 0.0
  %3297 = vmatprep.subr.mxu0 0.0
  %3298 = vmatpush2.msra.mxu0 0.0
  %3299 = vmatprep.subr.mxu0 0.0
  %3300 = vmatpush2.msra.mxu0 0.0
  %3301 = vmatprep.subr.mxu0 0.0
  %3302 = vmatpush2.msra.mxu0 0.0
  %3303 = vmatprep.subr.mxu0 0.0
  %3304 = vmatpush2.msra.mxu0 0.0
  %3305 = vmatprep.subr.mxu0 0.0
  %3306 = vmatpush2.msra.mxu0 0.0
  %3307 = vmatprep.subr.mxu0 0.0
  %3308 = vmatpush2.msra.mxu0 0.0
  %3309 = vmatprep.subr.mxu0 0.0
  %3310 = vmatpush2.msra.mxu0 0.0
  %3311 = vmatprep.subr.mxu0 0.0
  %3312 = vmatpush2.msra.mxu0 0.0
  %3313 = vmatprep.subr.mxu0 0.0
  %3314 = vmatpush2.msra.mxu0 0.0
  %3315 = vmatprep.mubr.f32.mxu0 0.0
  %3316 = vmatmul.mubr.f32.gmra.mxu0 %v3249
  %v3317 = vpop.f32.mrf.mxu0
  %v3318 = vadd.f32 0.0, %v3317
  %v3319 = vpop.f32.mrf.mxu0
  %3320 = vdwg.mxu0
  %v3322 = vsel %vm761, %v2387, 0
  %v3325 = vsel %vm761, %v2537, 0
  %3327 = vmatprep.subr.mxu0 0.0
  %3328 = vmatpush1.xpose.msra.mxu0 0.0
  %3329 = vmatprep.subr.mxu0 0.0
  %3330 = vmatpush1.xpose.msra.mxu0 0.0
  %3331 = vmatprep.subr.mxu0 0.0
  %3332 = vmatpush1.xpose.msra.mxu0 0.0
  %3333 = vmatprep.subr.mxu0 0.0
  %3334 = vmatpush1.xpose.msra.mxu0 0.0
  %3335 = vmatprep.subr.mxu0 0.0
  %3336 = vmatpush1.xpose.msra.mxu0 0.0
  %3337 = vmatprep.subr.mxu0 0.0
  %3338 = vmatpush1.xpose.msra.mxu0 0.0
  %3339 = vmatprep.subr.mxu0 0.0
  %3340 = vmatpush1.xpose.msra.mxu0 0.0
  %3341 = vmatprep.subr.mxu0 0.0
  %3342 = vmatpush1.xpose.msra.mxu0 0.0
  %3343 = vmatprep.subr.mxu0 0.0
  %3344 = vmatpush1.xpose.msra.mxu0 0.0
  %3345 = vmatprep.subr.mxu0 0.0
  %3346 = vmatpush1.xpose.msra.mxu0 0.0
  %3347 = vmatprep.subr.mxu0 0.0
  %3348 = vmatpush1.xpose.msra.mxu0 0.0
  %3349 = vmatprep.subr.mxu0 0.0
  %3350 = vmatpush1.xpose.msra.mxu0 0.0
  %3351 = vmatprep.subr.mxu0 0.0
  %3352 = vmatpush1.xpose.msra.mxu0 0.0
  %3353 = vmatprep.subr.mxu0 0.0
  %3354 = vmatpush1.xpose.msra.mxu0 0.0
  %3355 = vmatprep.subr.mxu0 0.0
  %3356 = vmatpush1.xpose.msra.mxu0 0.0
  %3357 = vmatprep.subr.mxu0 0.0
  %3358 = vmatpush1.xpose.msra.mxu0 %v3325
  %3359 = vmatprep.subr.mxu0 0.0
  %3360 = vmatpush2.xpose.msra.mxu0 0.0
  %3361 = vmatprep.subr.mxu0 0.0
  %3362 = vmatpush2.xpose.msra.mxu0 0.0
  %3363 = vmatprep.subr.mxu0 0.0
  %3364 = vmatpush2.xpose.msra.mxu0 0.0
  %3365 = vmatprep.subr.mxu0 0.0
  %3366 = vmatpush2.xpose.msra.mxu0 0.0
  %3367 = vmatprep.subr.mxu0 0.0
  %3368 = vmatpush2.xpose.msra.mxu0 0.0
  %3369 = vmatprep.subr.mxu0 0.0
  %3370 = vmatpush2.xpose.msra.mxu0 0.0
  %3371 = vmatprep.subr.mxu0 0.0
  %3372 = vmatpush2.xpose.msra.mxu0 0.0
  %3373 = vmatprep.subr.mxu0 0.0
  %3374 = vmatpush2.xpose.msra.mxu0 0.0
  %3375 = vmatprep.subr.mxu0 0.0
  %3376 = vmatpush2.xpose.msra.mxu0 0.0
  %3377 = vmatprep.subr.mxu0 0.0
  %3378 = vmatpush2.xpose.msra.mxu0 0.0
  %3379 = vmatprep.subr.mxu0 0.0
  %3380 = vmatpush2.xpose.msra.mxu0 0.0
  %3381 = vmatprep.subr.mxu0 0.0
  %3382 = vmatpush2.xpose.msra.mxu0 0.0
  %3383 = vmatprep.subr.mxu0 0.0
  %3384 = vmatpush2.xpose.msra.mxu0 0.0
  %3385 = vmatprep.subr.mxu0 0.0
  %3386 = vmatpush2.xpose.msra.mxu0 0.0
  %3387 = vmatprep.subr.mxu0 0.0
  %3388 = vmatpush2.xpose.msra.mxu0 0.0
  %3389 = vmatprep.subr.mxu0 0.0
  %3390 = vmatpush2.xpose.msra.mxu0 0.0
  %3391 = vmatprep.mubr.f32.mxu0 0.0
  %3392 = vmatmul.mubr.f32.gmra.mxu0 %v3322
  %v3393 = vpop.f32.mrf.mxu0
  %v3394 = vadd.f32 %v2178, %v3393
  %v3395 = vpop.f32.mrf.mxu0
  %3396 = vdwg.mxu0
  %v3397 = vadd.f32 %v3394, %v2176
  %v3398 = vsel %vm2767, %v3397, -inf
  %3399 = vmax.xlane.f32.xlu0 %v3398
  %v3400 = vpop.xlane.xlu0 %3399
  %v3401 = vsub.f32 %v3397, %v3400
  %v3402 = vmul.f32 %v3401, 1.442695
  %v3403 = vpow.pop %v3402
  %v3404 = vsel %vm2767, %v3403, 0.0
  %3405 = vadd.xlane.f32.xlu0 %v3404
  %v3406 = vpop.xlane.xlu0 %3405
  %v3407 = vrcp.pop %v3406
  %v3408 = vmul.f32 %v3403, %v3407
  %v3410 = vsel %vm2767, %v3408, 0
  %3412 = vmatprep.subr.mxu0 0.0
  %3413 = vmatpush1.msra.mxu0 0.0
  %3414 = vmatprep.subr.mxu0 0.0
  %3415 = vmatpush1.msra.mxu0 0.0
  %3416 = vmatprep.subr.mxu0 0.0
  %3417 = vmatpush1.msra.mxu0 0.0
  %3418 = vmatprep.subr.mxu0 0.0
  %3419 = vmatpush1.msra.mxu0 0.0
  %3420 = vmatprep.subr.mxu0 0.0
  %3421 = vmatpush1.msra.mxu0 0.0
  %3422 = vmatprep.subr.mxu0 0.0
  %3423 = vmatpush1.msra.mxu0 0.0
  %3424 = vmatprep.subr.mxu0 0.0
  %3425 = vmatpush1.msra.mxu0 0.0
  %3426 = vmatprep.subr.mxu0 0.0
  %3427 = vmatpush1.msra.mxu0 0.0
  %3428 = vmatprep.subr.mxu0 0.0
  %3429 = vmatpush1.msra.mxu0 0.0
  %3430 = vmatprep.subr.mxu0 0.0
  %3431 = vmatpush1.msra.mxu0 0.0
  %3432 = vmatprep.subr.mxu0 0.0
  %3433 = vmatpush1.msra.mxu0 0.0
  %3434 = vmatprep.subr.mxu0 0.0
  %3435 = vmatpush1.msra.mxu0 0.0
  %3436 = vmatprep.subr.mxu0 0.0
  %3437 = vmatpush1.msra.mxu0 0.0
  %3438 = vmatprep.subr.mxu0 0.0
  %3439 = vmatpush1.msra.mxu0 0.0
  %3440 = vmatprep.subr.mxu0 0.0
  %3441 = vmatpush1.msra.mxu0 0.0
  %3442 = vmatprep.subr.mxu0 0.0
  %3443 = vmatpush1.msra.mxu0 %v2687
  %3444 = vmatprep.subr.mxu0 0.0
  %3445 = vmatpush2.msra.mxu0 0.0
  %3446 = vmatprep.subr.mxu0 0.0
  %3447 = vmatpush2.msra.mxu0 0.0
  %3448 = vmatprep.subr.mxu0 0.0
  %3449 = vmatpush2.msra.mxu0 0.0
  %3450 = vmatprep.subr.mxu0 0.0
  %3451 = vmatpush2.msra.mxu0 0.0
  %3452 = vmatprep.subr.mxu0 0.0
  %3453 = vmatpush2.msra.mxu0 0.0
  %3454 = vmatprep.subr.mxu0 0.0
  %3455 = vmatpush2.msra.mxu0 0.0
  %3456 = vmatprep.subr.mxu0 0.0
  %3457 = vmatpush2.msra.mxu0 0.0
  %3458 = vmatprep.subr.mxu0 0.0
  %3459 = vmatpush2.msra.mxu0 0.0
  %3460 = vmatprep.subr.mxu0 0.0
  %3461 = vmatpush2.msra.mxu0 0.0
  %3462 = vmatprep.subr.mxu0 0.0
  %3463 = vmatpush2.msra.mxu0 0.0
  %3464 = vmatprep.subr.mxu0 0.0
  %3465 = vmatpush2.msra.mxu0 0.0
  %3466 = vmatprep.subr.mxu0 0.0
  %3467 = vmatpush2.msra.mxu0 0.0
  %3468 = vmatprep.subr.mxu0 0.0
  %3469 = vmatpush2.msra.mxu0 0.0
  %3470 = vmatprep.subr.mxu0 0.0
  %3471 = vmatpush2.msra.mxu0 0.0
  %3472 = vmatprep.subr.mxu0 0.0
  %3473 = vmatpush2.msra.mxu0 0.0
  %3474 = vmatprep.subr.mxu0 0.0
  %3475 = vmatpush2.msra.mxu0 0.0
  %3476 = vmatprep.mubr.f32.mxu0 0.0
  %3477 = vmatmul.mubr.f32.gmra.mxu0 %v3410
  %v3478 = vpop.f32.mrf.mxu0
  %v3479 = vadd.f32 0.0, %v3478
  %v3480 = vpop.f32.mrf.mxu0
  %3481 = vdwg.mxu0
  %v3483 = vsel %vm761, %v3479, 0
  %3485 = vmatprep.subr.mxu0 0.0
  %3486 = vmatpush1.msra.mxu0 0.0
  %3487 = vmatprep.subr.mxu0 0.0
  %3488 = vmatpush1.msra.mxu0 0.0
  %3489 = vmatprep.subr.mxu0 0.0
  %3490 = vmatpush1.msra.mxu0 0.0
  %3491 = vmatprep.subr.mxu0 0.0
  %3492 = vmatpush1.msra.mxu0 0.0
  %3493 = vmatprep.subr.mxu0 0.0
  %3494 = vmatpush1.msra.mxu0 0.0
  %3495 = vmatprep.subr.mxu0 0.0
  %3496 = vmatpush1.msra.mxu0 0.0
  %3497 = vmatprep.subr.mxu0 0.0
  %3498 = vmatpush1.msra.mxu0 0.0
  %3499 = vmatprep.subr.mxu0 0.0
  %3500 = vmatpush1.msra.mxu0 0.0
  %3501 = vmatprep.subr.mxu0 0.0
  %3502 = vmatpush1.msra.mxu0 0.0
  %3503 = vmatprep.subr.mxu0 0.0
  %3504 = vmatpush1.msra.mxu0 0.0
  %3505 = vmatprep.subr.mxu0 0.0
  %3506 = vmatpush1.msra.mxu0 0.0
  %3507 = vmatprep.subr.mxu0 0.0
  %3508 = vmatpush1.msra.mxu0 0.0
  %3509 = vmatprep.subr.mxu0 0.0
  %3510 = vmatpush1.msra.mxu0 0.0
  %3511 = vmatprep.subr.mxu0 0.0
  %3512 = vmatpush1.msra.mxu0 0.0
  %3513 = vmatprep.subr.mxu0 0.0
  %3514 = vmatpush1.msra.mxu0 %v2233
  %3515 = vmatprep.subr.mxu0 0.0
  %3516 = vmatpush1.msra.mxu0 %v2232
  %3517 = vmatprep.subr.mxu0 0.0
  %3518 = vmatpush2.msra.mxu0 0.0
  %3519 = vmatprep.subr.mxu0 0.0
  %3520 = vmatpush2.msra.mxu0 0.0
  %3521 = vmatprep.subr.mxu0 0.0
  %3522 = vmatpush2.msra.mxu0 0.0
  %3523 = vmatprep.subr.mxu0 0.0
  %3524 = vmatpush2.msra.mxu0 0.0
  %3525 = vmatprep.subr.mxu0 0.0
  %3526 = vmatpush2.msra.mxu0 0.0
  %3527 = vmatprep.subr.mxu0 0.0
  %3528 = vmatpush2.msra.mxu0 0.0
  %3529 = vmatprep.subr.mxu0 0.0
  %3530 = vmatpush2.msra.mxu0 0.0
  %3531 = vmatprep.subr.mxu0 0.0
  %3532 = vmatpush2.msra.mxu0 0.0
  %3533 = vmatprep.subr.mxu0 0.0
  %3534 = vmatpush2.msra.mxu0 0.0
  %3535 = vmatprep.subr.mxu0 0.0
  %3536 = vmatpush2.msra.mxu0 0.0
  %3537 = vmatprep.subr.mxu0 0.0
  %3538 = vmatpush2.msra.mxu0 0.0
  %3539 = vmatprep.subr.mxu0 0.0
  %3540 = vmatpush2.msra.mxu0 0.0
  %3541 = vmatprep.subr.mxu0 0.0
  %3542 = vmatpush2.msra.mxu0 0.0
  %3543 = vmatprep.subr.mxu0 0.0
  %3544 = vmatpush2.msra.mxu0 0.0
  %3545 = vmatprep.subr.mxu0 0.0
  %3546 = vmatpush2.msra.mxu0 0.0
  %3547 = vmatprep.subr.mxu0 0.0
  %3548 = vmatpush2.msra.mxu0 0.0
  %3549 = vmatprep.mubr.f32.mxu0 0.0
  %3550 = vmatmul.mubr.f32.gmra.mxu0 %v3483
  %v3551 = vpop.f32.mrf.mxu0
  %v3552 = vadd.f32 0.0, %v3551
  %v3553 = vpop.f32.mrf.mxu0
  %3554 = vdwg.mxu0
  %v3556 = vsel %vm761, %v3318, 0
  %3558 = vmatprep.subr.mxu0 0.0
  %3559 = vmatpush1.msra.mxu0 0.0
  %3560 = vmatprep.subr.mxu0 0.0
  %3561 = vmatpush1.msra.mxu0 0.0
  %3562 = vmatprep.subr.mxu0 0.0
  %3563 = vmatpush1.msra.mxu0 0.0
  %3564 = vmatprep.subr.mxu0 0.0
  %3565 = vmatpush1.msra.mxu0 0.0
  %3566 = vmatprep.subr.mxu0 0.0
  %3567 = vmatpush1.msra.mxu0 0.0
  %3568 = vmatprep.subr.mxu0 0.0
  %3569 = vmatpush1.msra.mxu0 0.0
  %3570 = vmatprep.subr.mxu0 0.0
  %3571 = vmatpush1.msra.mxu0 0.0
  %3572 = vmatprep.subr.mxu0 0.0
  %3573 = vmatpush1.msra.mxu0 0.0
  %3574 = vmatprep.subr.mxu0 0.0
  %3575 = vmatpush1.msra.mxu0 0.0
  %3576 = vmatprep.subr.mxu0 0.0
  %3577 = vmatpush1.msra.mxu0 0.0
  %3578 = vmatprep.subr.mxu0 0.0
  %3579 = vmatpush1.msra.mxu0 0.0
  %3580 = vmatprep.subr.mxu0 0.0
  %3581 = vmatpush1.msra.mxu0 0.0
  %3582 = vmatprep.subr.mxu0 0.0
  %3583 = vmatpush1.msra.mxu0 0.0
  %3584 = vmatprep.subr.mxu0 0.0
  %3585 = vmatpush1.msra.mxu0 0.0
  %3586 = vmatprep.subr.mxu0 0.0
  %3587 = vmatpush1.msra.mxu0 %v2231
  %3588 = vmatprep.subr.mxu0 0.0
  %3589 = vmatpush1.msra.mxu0 %v2230
  %3590 = vmatprep.subr.mxu0 0.0
  %3591 = vmatpush2.msra.mxu0 0.0
  %3592 = vmatprep.subr.mxu0 0.0
  %3593 = vmatpush2.msra.mxu0 0.0
  %3594 = vmatprep.subr.mxu0 0.0
  %3595 = vmatpush2.msra.mxu0 0.0
  %3596 = vmatprep.subr.mxu0 0.0
  %3597 = vmatpush2.msra.mxu0 0.0
  %3598 = vmatprep.subr.mxu0 0.0
  %3599 = vmatpush2.msra.mxu0 0.0
  %3600 = vmatprep.subr.mxu0 0.0
  %3601 = vmatpush2.msra.mxu0 0.0
  %3602 = vmatprep.subr.mxu0 0.0
  %3603 = vmatpush2.msra.mxu0 0.0
  %3604 = vmatprep.subr.mxu0 0.0
  %3605 = vmatpush2.msra.mxu0 0.0
  %3606 = vmatprep.subr.mxu0 0.0
  %3607 = vmatpush2.msra.mxu0 0.0
  %3608 = vmatprep.subr.mxu0 0.0
  %3609 = vmatpush2.msra.mxu0 0.0
  %3610 = vmatprep.subr.mxu0 0.0
  %3611 = vmatpush2.msra.mxu0 0.0
  %3612 = vmatprep.subr.mxu0 0.0
  %3613 = vmatpush2.msra.mxu0 0.0
  %3614 = vmatprep.subr.mxu0 0.0
  %3615 = vmatpush2.msra.mxu0 0.0
  %3616 = vmatprep.subr.mxu0 0.0
  %3617 = vmatpush2.msra.mxu0 0.0
  %3618 = vmatprep.subr.mxu0 0.0
  %3619 = vmatpush2.msra.mxu0 0.0
  %3620 = vmatprep.subr.mxu0 0.0
  %3621 = vmatpush2.msra.mxu0 0.0
  %3622 = vmatprep.mubr.f32.mxu0 0.0
  %3623 = vmatmul.mubr.f32.gmra.mxu0 %v3556
  %v3624 = vpop.f32.mrf.mxu0
  %v3625 = vadd.f32 %v3552, %v3624
  %v3626 = vpop.f32.mrf.mxu0
  %3627 = vdwg.mxu0
  %3628 = vst.msk [vmem:[#allocation3 + $0x8] sm:$0xff] %vm165, %v3625
  %v3629 = vld [vmem:[#allocation3] sm:$0xff]
  %v3630 = vld [vmem:[#allocation3 + $0x8] sm:$0xff]
  %v3631 = vadd.f32 %v2173, %v3629
  %v3632 = vadd.f32 %v2174, %v3630
  %v3633 = vld [vmem:[%s43] sm:$0x1]
  %v3634 = vmul.f32 %v3631, %v3631
  %v3635 = vmul.f32 %v3632, %v3632
  %v3636 = vsel %vm165, %v3634, 0.0
  %3637 = vadd.xlane.f32.xlu0 %v3636
  %v3638 = vpop.xlane.xlu0 %3637
  %v3639 = vsel %vm165, %v3635, 0.0
  %3640 = vadd.xlane.f32.xlu0 %v3639
  %v3641 = vpop.xlane.xlu0 %3640
  %v3642 = vmul.f32 %v3638, %v178
  %v3643 = vmul.f32 %v3641, %v178
  %v3644 = vadd.f32 %v3642, 1e-06
  %v3645 = vadd.f32 %v3643, 1e-06
  %v3646 = vrsqrt.pop %v3644
  %v3647 = vrsqrt.pop %v3645
  %v3648 = vmul.f32 %v3631, %v3646
  %v3649 = vmul.f32 %v3632, %v3647
  %v3651 = vlaneseq
  %v3652 = vshrl.u32 %v3651, 7
  %v3653 = vsub.s32 0, %v3652
  %v3654 = vrot.slane %v3633, %v3653
  %v3656 = vmul.f32 %v3648, %v3654
  %v3657 = vmul.f32 %v3649, %v3654
  %v3658 = vld [vmem:[%s45] sm:$0xff]
  %v3659 = vld [vmem:[%s45 + $0x8] sm:$0xff]
  %v3660 = vld [vmem:[%s45 + $0x10] sm:$0xff]
  %v3661 = vld [vmem:[%s45 + $0x18] sm:$0xff]
  %v3662 = vld [vmem:[%s45 + $0x20] sm:$0xff]
  %v3663 = vld [vmem:[%s45 + $0x28] sm:$0xff]
  %v3664 = vld [vmem:[%s45 + $0x30] sm:$0xff]
  %v3665 = vld [vmem:[%s45 + $0x38] sm:$0xff]
  %v3666 = vld [vmem:[%s47] sm:$0xff]
  %v3667 = vld [vmem:[%s47 + $0x8] sm:$0xff]
  %v3668 = vld [vmem:[%s47 + $0x10] sm:$0xff]
  %v3669 = vld [vmem:[%s47 + $0x18] sm:$0xff]
  %v3670 = vld [vmem:[%s47 + $0x20] sm:$0xff]
  %v3671 = vld [vmem:[%s47 + $0x28] sm:$0xff]
  %v3672 = vld [vmem:[%s47 + $0x30] sm:$0xff]
  %v3673 = vld [vmem:[%s47 + $0x38] sm:$0xff]
  %v3674 = vld [vmem:[%s49] sm:$0xff]
  %v3675 = vld [vmem:[%s49 + $0x8] sm:$0xff]
  %v3676 = vld [vmem:[%s49 + $0x10] sm:$0xff]
  %v3677 = vld [vmem:[%s49 + $0x18] sm:$0xff]
  %v3678 = vld [vmem:[%s49 + $0x20] sm:$0xff]
  %v3679 = vld [vmem:[%s49 + $0x28] sm:$0xff]
  %v3680 = vld [vmem:[%s49 + $0x30] sm:$0xff]
  %v3681 = vld [vmem:[%s49 + $0x38] sm:$0xff]
  %v3682 = vld [vmem:[%s51] sm:$0xff]
  %v3683 = vld [vmem:[%s51 + $0x8] sm:$0xff]
  %v3684 = vld [vmem:[%s51 + $0x10] sm:$0xff]
  %v3685 = vld [vmem:[%s51 + $0x18] sm:$0xff]
  %v3687 = vsel %vm165, %v3656, 0
  %v3690 = vsel %vm165, %v3657, 0
  %3692 = vmatprep.subr.mxu0 0.0
  %3693 = vmatpush1.msra.mxu0 0.0
  %3694 = vmatprep.subr.mxu0 0.0
  %3695 = vmatpush1.msra.mxu0 0.0
  %3696 = vmatprep.subr.mxu0 0.0
  %3697 = vmatpush1.msra.mxu0 0.0
  %3698 = vmatprep.subr.mxu0 0.0
  %3699 = vmatpush1.msra.mxu0 0.0
  %3700 = vmatprep.subr.mxu0 0.0
  %3701 = vmatpush1.msra.mxu0 0.0
  %3702 = vmatprep.subr.mxu0 0.0
  %3703 = vmatpush1.msra.mxu0 0.0
  %3704 = vmatprep.subr.mxu0 0.0
  %3705 = vmatpush1.msra.mxu0 0.0
  %3706 = vmatprep.subr.mxu0 0.0
  %3707 = vmatpush1.msra.mxu0 0.0
  %3708 = vmatprep.subr.mxu0 0.0
  %3709 = vmatpush1.msra.mxu0 0.0
  %3710 = vmatprep.subr.mxu0 0.0
  %3711 = vmatpush1.msra.mxu0 0.0
  %3712 = vmatprep.subr.mxu0 0.0
  %3713 = vmatpush1.msra.mxu0 0.0
  %3714 = vmatprep.subr.mxu0 0.0
  %3715 = vmatpush1.msra.mxu0 0.0
  %3716 = vmatprep.subr.mxu0 0.0
  %3717 = vmatpush1.msra.mxu0 %v3661
  %3718 = vmatprep.subr.mxu0 0.0
  %3719 = vmatpush1.msra.mxu0 %v3660
  %3720 = vmatprep.subr.mxu0 0.0
  %3721 = vmatpush1.msra.mxu0 %v3659
  %3722 = vmatprep.subr.mxu0 0.0
  %3723 = vmatpush1.msra.mxu0 %v3658
  %3724 = vmatprep.subr.mxu0 0.0
  %3725 = vmatpush2.msra.mxu0 0.0
  %3726 = vmatprep.subr.mxu0 0.0
  %3727 = vmatpush2.msra.mxu0 0.0
  %3728 = vmatprep.subr.mxu0 0.0
  %3729 = vmatpush2.msra.mxu0 0.0
  %3730 = vmatprep.subr.mxu0 0.0
  %3731 = vmatpush2.msra.mxu0 0.0
  %3732 = vmatprep.subr.mxu0 0.0
  %3733 = vmatpush2.msra.mxu0 0.0
  %3734 = vmatprep.subr.mxu0 0.0
  %3735 = vmatpush2.msra.mxu0 0.0
  %3736 = vmatprep.subr.mxu0 0.0
  %3737 = vmatpush2.msra.mxu0 0.0
  %3738 = vmatprep.subr.mxu0 0.0
  %3739 = vmatpush2.msra.mxu0 0.0
  %3740 = vmatprep.subr.mxu0 0.0
  %3741 = vmatpush2.msra.mxu0 0.0
  %3742 = vmatprep.subr.mxu0 0.0
  %3743 = vmatpush2.msra.mxu0 0.0
  %3744 = vmatprep.subr.mxu0 0.0
  %3745 = vmatpush2.msra.mxu0 0.0
  %3746 = vmatprep.subr.mxu0 0.0
  %3747 = vmatpush2.msra.mxu0 0.0
  %3748 = vmatprep.subr.mxu0 0.0
  %3749 = vmatpush2.msra.mxu0 0.0
  %3750 = vmatprep.subr.mxu0 0.0
  %3751 = vmatpush2.msra.mxu0 0.0
  %3752 = vmatprep.subr.mxu0 0.0
  %3753 = vmatpush2.msra.mxu0 0.0
  %3754 = vmatprep.subr.mxu0 0.0
  %3755 = vmatpush2.msra.mxu0 0.0
  %3756 = vmatprep.mubr.f32.mxu0 0.0
  %3757 = vmatmul.mubr.f32.gmra.mxu0 %v3687
  %v3758 = vpop.f32.mrf.mxu0
  %v3759 = vadd.f32 0.0, %v3758
  %v3760 = vpop.f32.mrf.mxu0
  %3761 = vmatprep.mubr.f32.mxu0 0.0
  %3762 = vmatmul.mubr.f32.gmra.mxu0 %v3690
  %v3763 = vpop.f32.mrf.mxu0
  %v3764 = vadd.f32 0.0, %v3763
  %v3765 = vpop.f32.mrf.mxu0
  %3766 = vdwg.mxu0
  %3767 = vmatprep.subr.mxu0 0.0
  %3768 = vmatpush1.msra.mxu0 0.0
  %3769 = vmatprep.subr.mxu0 0.0
  %3770 = vmatpush1.msra.mxu0 0.0
  %3771 = vmatprep.subr.mxu0 0.0
  %3772 = vmatpush1.msra.mxu0 0.0
  %3773 = vmatprep.subr.mxu0 0.0
  %3774 = vmatpush1.msra.mxu0 0.0
  %3775 = vmatprep.subr.mxu0 0.0
  %3776 = vmatpush1.msra.mxu0 0.0
  %3777 = vmatprep.subr.mxu0 0.0
  %3778 = vmatpush1.msra.mxu0 0.0
  %3779 = vmatprep.subr.mxu0 0.0
  %3780 = vmatpush1.msra.mxu0 0.0
  %3781 = vmatprep.subr.mxu0 0.0
  %3782 = vmatpush1.msra.mxu0 0.0
  %3783 = vmatprep.subr.mxu0 0.0
  %3784 = vmatpush1.msra.mxu0 0.0
  %3785 = vmatprep.subr.mxu0 0.0
  %3786 = vmatpush1.msra.mxu0 0.0
  %3787 = vmatprep.subr.mxu0 0.0
  %3788 = vmatpush1.msra.mxu0 0.0
  %3789 = vmatprep.subr.mxu0 0.0
  %3790 = vmatpush1.msra.mxu0 0.0
  %3791 = vmatprep.subr.mxu0 0.0
  %3792 = vmatpush1.msra.mxu0 %v3665
  %3793 = vmatprep.subr.mxu0 0.0
  %3794 = vmatpush1.msra.mxu0 %v3664
  %3795 = vmatprep.subr.mxu0 0.0
  %3796 = vmatpush1.msra.mxu0 %v3663
  %3797 = vmatprep.subr.mxu0 0.0
  %3798 = vmatpush1.msra.mxu0 %v3662
  %3799 = vmatprep.subr.mxu0 0.0
  %3800 = vmatpush2.msra.mxu0 0.0
  %3801 = vmatprep.subr.mxu0 0.0
  %3802 = vmatpush2.msra.mxu0 0.0
  %3803 = vmatprep.subr.mxu0 0.0
  %3804 = vmatpush2.msra.mxu0 0.0
  %3805 = vmatprep.subr.mxu0 0.0
  %3806 = vmatpush2.msra.mxu0 0.0
  %3807 = vmatprep.subr.mxu0 0.0
  %3808 = vmatpush2.msra.mxu0 0.0
  %3809 = vmatprep.subr.mxu0 0.0
  %3810 = vmatpush2.msra.mxu0 0.0
  %3811 = vmatprep.subr.mxu0 0.0
  %3812 = vmatpush2.msra.mxu0 0.0
  %3813 = vmatprep.subr.mxu0 0.0
  %3814 = vmatpush2.msra.mxu0 0.0
  %3815 = vmatprep.subr.mxu0 0.0
  %3816 = vmatpush2.msra.mxu0 0.0
  %3817 = vmatprep.subr.mxu0 0.0
  %3818 = vmatpush2.msra.mxu0 0.0
  %3819 = vmatprep.subr.mxu0 0.0
  %3820 = vmatpush2.msra.mxu0 0.0
  %3821 = vmatprep.subr.mxu0 0.0
  %3822 = vmatpush2.msra.mxu0 0.0
  %3823 = vmatprep.subr.mxu0 0.0
  %3824 = vmatpush2.msra.mxu0 0.0
  %3825 = vmatprep.subr.mxu0 0.0
  %3826 = vmatpush2.msra.mxu0 0.0
  %3827 = vmatprep.subr.mxu0 0.0
  %3828 = vmatpush2.msra.mxu0 0.0
  %3829 = vmatprep.subr.mxu0 0.0
  %3830 = vmatpush2.msra.mxu0 0.0
  %3831 = vmatprep.mubr.f32.mxu0 0.0
  %3832 = vmatmul.mubr.f32.gmra.mxu0 %v3687
  %v3833 = vpop.f32.mrf.mxu0
  %v3834 = vadd.f32 0.0, %v3833
  %v3835 = vpop.f32.mrf.mxu0
  %3836 = vmatprep.mubr.f32.mxu0 0.0
  %3837 = vmatmul.mubr.f32.gmra.mxu0 %v3690
  %v3838 = vpop.f32.mrf.mxu0
  %v3839 = vadd.f32 0.0, %v3838
  %v3840 = vpop.f32.mrf.mxu0
  %3841 = vdwg.mxu0
  %v3843 = vsel %vm165, %v2169, 0
  %v3846 = vsel %vm165, %v2170, 0
  %v3849 = vsel %vm165, %v2171, 0
  %v3852 = vsel %vm165, %v2172, 0
  %3854 = vmatprep.subr.mxu0 0.0
  %3855 = vmatpush1.msra.mxu0 0.0
  %3856 = vmatprep.subr.mxu0 0.0
  %3857 = vmatpush1.msra.mxu0 0.0
  %3858 = vmatprep.subr.mxu0 0.0
  %3859 = vmatpush1.msra.mxu0 0.0
  %3860 = vmatprep.subr.mxu0 0.0
  %3861 = vmatpush1.msra.mxu0 0.0
  %3862 = vmatprep.subr.mxu0 0.0
  %3863 = vmatpush1.msra.mxu0 0.0
  %3864 = vmatprep.subr.mxu0 0.0
  %3865 = vmatpush1.msra.mxu0 0.0
  %3866 = vmatprep.subr.mxu0 0.0
  %3867 = vmatpush1.msra.mxu0 0.0
  %3868 = vmatprep.subr.mxu0 0.0
  %3869 = vmatpush1.msra.mxu0 0.0
  %3870 = vmatprep.subr.mxu0 0.0
  %3871 = vmatpush1.msra.mxu0 0.0
  %3872 = vmatprep.subr.mxu0 0.0
  %3873 = vmatpush1.msra.mxu0 0.0
  %3874 = vmatprep.subr.mxu0 0.0
  %3875 = vmatpush1.msra.mxu0 0.0
  %3876 = vmatprep.subr.mxu0 0.0
  %3877 = vmatpush1.msra.mxu0 0.0
  %3878 = vmatprep.subr.mxu0 0.0
  %3879 = vmatpush1.msra.mxu0 %v3669
  %3880 = vmatprep.subr.mxu0 0.0
  %3881 = vmatpush1.msra.mxu0 %v3668
  %3882 = vmatprep.subr.mxu0 0.0
  %3883 = vmatpush1.msra.mxu0 %v3667
  %3884 = vmatprep.subr.mxu0 0.0
  %3885 = vmatpush1.msra.mxu0 %v3666
  %3886 = vmatprep.subr.mxu0 0.0
  %3887 = vmatpush2.msra.mxu0 0.0
  %3888 = vmatprep.subr.mxu0 0.0
  %3889 = vmatpush2.msra.mxu0 0.0
  %3890 = vmatprep.subr.mxu0 0.0
  %3891 = vmatpush2.msra.mxu0 0.0
  %3892 = vmatprep.subr.mxu0 0.0
  %3893 = vmatpush2.msra.mxu0 0.0
  %3894 = vmatprep.subr.mxu0 0.0
  %3895 = vmatpush2.msra.mxu0 0.0
  %3896 = vmatprep.subr.mxu0 0.0
  %3897 = vmatpush2.msra.mxu0 0.0
  %3898 = vmatprep.subr.mxu0 0.0
  %3899 = vmatpush2.msra.mxu0 0.0
  %3900 = vmatprep.subr.mxu0 0.0
  %3901 = vmatpush2.msra.mxu0 0.0
  %3902 = vmatprep.subr.mxu0 0.0
  %3903 = vmatpush2.msra.mxu0 0.0
  %3904 = vmatprep.subr.mxu0 0.0
  %3905 = vmatpush2.msra.mxu0 0.0
  %3906 = vmatprep.subr.mxu0 0.0
  %3907 = vmatpush2.msra.mxu0 0.0
  %3908 = vmatprep.subr.mxu0 0.0
  %3909 = vmatpush2.msra.mxu0 0.0
  %3910 = vmatprep.subr.mxu0 0.0
  %3911 = vmatpush2.msra.mxu0 0.0
  %3912 = vmatprep.subr.mxu0 0.0
  %3913 = vmatpush2.msra.mxu0 0.0
  %3914 = vmatprep.subr.mxu0 0.0
  %3915 = vmatpush2.msra.mxu0 0.0
  %3916 = vmatprep.subr.mxu0 0.0
  %3917 = vmatpush2.msra.mxu0 0.0
  %3918 = vmatprep.mubr.f32.mxu0 0.0
  %3919 = vmatmul.mubr.f32.gmra.mxu0 %v3843
  %v3920 = vpop.f32.mrf.mxu0
  %v3921 = vadd.f32 0.0, %v3920
  %v3922 = vpop.f32.mrf.mxu0
  %3923 = vmatprep.mubr.f32.mxu0 0.0
  %3924 = vmatmul.mubr.f32.gmra.mxu0 %v3846
  %v3925 = vpop.f32.mrf.mxu0
  %v3926 = vadd.f32 0.0, %v3925
  %v3927 = vpop.f32.mrf.mxu0
  %3928 = vmatprep.mubr.f32.mxu0 0.0
  %3929 = vmatmul.mubr.f32.gmra.mxu0 %v3849
  %v3930 = vpop.f32.mrf.mxu0
  %v3931 = vadd.f32 0.0, %v3930
  %v3932 = vpop.f32.mrf.mxu0
  %3933 = vmatprep.mubr.f32.mxu0 0.0
  %3934 = vmatmul.mubr.f32.gmra.mxu0 %v3852
  %v3935 = vpop.f32.mrf.mxu0
  %v3936 = vadd.f32 0.0, %v3935
  %v3937 = vpop.f32.mrf.mxu0
  %3938 = vdwg.mxu0
  %3939 = vmatprep.subr.mxu0 0.0
  %3940 = vmatpush1.msra.mxu0 0.0
  %3941 = vmatprep.subr.mxu0 0.0
  %3942 = vmatpush1.msra.mxu0 0.0
  %3943 = vmatprep.subr.mxu0 0.0
  %3944 = vmatpush1.msra.mxu0 0.0
  %3945 = vmatprep.subr.mxu0 0.0
  %3946 = vmatpush1.msra.mxu0 0.0
  %3947 = vmatprep.subr.mxu0 0.0
  %3948 = vmatpush1.msra.mxu0 0.0
  %3949 = vmatprep.subr.mxu0 0.0
  %3950 = vmatpush1.msra.mxu0 0.0
  %3951 = vmatprep.subr.mxu0 0.0
  %3952 = vmatpush1.msra.mxu0 0.0
  %3953 = vmatprep.subr.mxu0 0.0
  %3954 = vmatpush1.msra.mxu0 0.0
  %3955 = vmatprep.subr.mxu0 0.0
  %3956 = vmatpush1.msra.mxu0 0.0
  %3957 = vmatprep.subr.mxu0 0.0
  %3958 = vmatpush1.msra.mxu0 0.0
  %3959 = vmatprep.subr.mxu0 0.0
  %3960 = vmatpush1.msra.mxu0 0.0
  %3961 = vmatprep.subr.mxu0 0.0
  %3962 = vmatpush1.msra.mxu0 0.0
  %3963 = vmatprep.subr.mxu0 0.0
  %3964 = vmatpush1.msra.mxu0 %v3673
  %3965 = vmatprep.subr.mxu0 0.0
  %3966 = vmatpush1.msra.mxu0 %v3672
  %3967 = vmatprep.subr.mxu0 0.0
  %3968 = vmatpush1.msra.mxu0 %v3671
  %3969 = vmatprep.subr.mxu0 0.0
  %3970 = vmatpush1.msra.mxu0 %v3670
  %3971 = vmatprep.subr.mxu0 0.0
  %3972 = vmatpush2.msra.mxu0 0.0
  %3973 = vmatprep.subr.mxu0 0.0
  %3974 = vmatpush2.msra.mxu0 0.0
  %3975 = vmatprep.subr.mxu0 0.0
  %3976 = vmatpush2.msra.mxu0 0.0
  %3977 = vmatprep.subr.mxu0 0.0
  %3978 = vmatpush2.msra.mxu0 0.0
  %3979 = vmatprep.subr.mxu0 0.0
  %3980 = vmatpush2.msra.mxu0 0.0
  %3981 = vmatprep.subr.mxu0 0.0
  %3982 = vmatpush2.msra.mxu0 0.0
  %3983 = vmatprep.subr.mxu0 0.0
  %3984 = vmatpush2.msra.mxu0 0.0
  %3985 = vmatprep.subr.mxu0 0.0
  %3986 = vmatpush2.msra.mxu0 0.0
  %3987 = vmatprep.subr.mxu0 0.0
  %3988 = vmatpush2.msra.mxu0 0.0
  %3989 = vmatprep.subr.mxu0 0.0
  %3990 = vmatpush2.msra.mxu0 0.0
  %3991 = vmatprep.subr.mxu0 0.0
  %3992 = vmatpush2.msra.mxu0 0.0
  %3993 = vmatprep.subr.mxu0 0.0
  %3994 = vmatpush2.msra.mxu0 0.0
  %3995 = vmatprep.subr.mxu0 0.0
  %3996 = vmatpush2.msra.mxu0 0.0
  %3997 = vmatprep.subr.mxu0 0.0
  %3998 = vmatpush2.msra.mxu0 0.0
  %3999 = vmatprep.subr.mxu0 0.0
  %4000 = vmatpush2.msra.mxu0 0.0
  %4001 = vmatprep.subr.mxu0 0.0
  %4002 = vmatpush2.msra.mxu0 0.0
  %4003 = vmatprep.mubr.f32.mxu0 0.0
  %4004 = vmatmul.mubr.f32.gmra.mxu0 %v3843
  %v4005 = vpop.f32.mrf.mxu0
  %v4006 = vadd.f32 0.0, %v4005
  %v4007 = vpop.f32.mrf.mxu0
  %4008 = vmatprep.mubr.f32.mxu0 0.0
  %4009 = vmatmul.mubr.f32.gmra.mxu0 %v3846
  %v4010 = vpop.f32.mrf.mxu0
  %v4011 = vadd.f32 0.0, %v4010
  %v4012 = vpop.f32.mrf.mxu0
  %4013 = vmatprep.mubr.f32.mxu0 0.0
  %4014 = vmatmul.mubr.f32.gmra.mxu0 %v3849
  %v4015 = vpop.f32.mrf.mxu0
  %v4016 = vadd.f32 0.0, %v4015
  %v4017 = vpop.f32.mrf.mxu0
  %4018 = vmatprep.mubr.f32.mxu0 0.0
  %4019 = vmatmul.mubr.f32.gmra.mxu0 %v3852
  %v4020 = vpop.f32.mrf.mxu0
  %v4021 = vadd.f32 0.0, %v4020
  %v4022 = vpop.f32.mrf.mxu0
  %4023 = vdwg.mxu0
  %4024 = vmatprep.subr.mxu0 0.0
  %4025 = vmatpush1.msra.mxu0 0.0
  %4026 = vmatprep.subr.mxu0 0.0
  %4027 = vmatpush1.msra.mxu0 0.0
  %4028 = vmatprep.subr.mxu0 0.0
  %4029 = vmatpush1.msra.mxu0 0.0
  %4030 = vmatprep.subr.mxu0 0.0
  %4031 = vmatpush1.msra.mxu0 0.0
  %4032 = vmatprep.subr.mxu0 0.0
  %4033 = vmatpush1.msra.mxu0 0.0
  %4034 = vmatprep.subr.mxu0 0.0
  %4035 = vmatpush1.msra.mxu0 0.0
  %4036 = vmatprep.subr.mxu0 0.0
  %4037 = vmatpush1.msra.mxu0 0.0
  %4038 = vmatprep.subr.mxu0 0.0
  %4039 = vmatpush1.msra.mxu0 0.0
  %4040 = vmatprep.subr.mxu0 0.0
  %4041 = vmatpush1.msra.mxu0 0.0
  %4042 = vmatprep.subr.mxu0 0.0
  %4043 = vmatpush1.msra.mxu0 0.0
  %4044 = vmatprep.subr.mxu0 0.0
  %4045 = vmatpush1.msra.mxu0 0.0
  %4046 = vmatprep.subr.mxu0 0.0
  %4047 = vmatpush1.msra.mxu0 0.0
  %4048 = vmatprep.subr.mxu0 0.0
  %4049 = vmatpush1.msra.mxu0 %v3677
  %4050 = vmatprep.subr.mxu0 0.0
  %4051 = vmatpush1.msra.mxu0 %v3676
  %4052 = vmatprep.subr.mxu0 0.0
  %4053 = vmatpush1.msra.mxu0 %v3675
  %4054 = vmatprep.subr.mxu0 0.0
  %4055 = vmatpush1.msra.mxu0 %v3674
  %4056 = vmatprep.subr.mxu0 0.0
  %4057 = vmatpush2.msra.mxu0 0.0
  %4058 = vmatprep.subr.mxu0 0.0
  %4059 = vmatpush2.msra.mxu0 0.0
  %4060 = vmatprep.subr.mxu0 0.0
  %4061 = vmatpush2.msra.mxu0 0.0
  %4062 = vmatprep.subr.mxu0 0.0
  %4063 = vmatpush2.msra.mxu0 0.0
  %4064 = vmatprep.subr.mxu0 0.0
  %4065 = vmatpush2.msra.mxu0 0.0
  %4066 = vmatprep.subr.mxu0 0.0
  %4067 = vmatpush2.msra.mxu0 0.0
  %4068 = vmatprep.subr.mxu0 0.0
  %4069 = vmatpush2.msra.mxu0 0.0
  %4070 = vmatprep.subr.mxu0 0.0
  %4071 = vmatpush2.msra.mxu0 0.0
  %4072 = vmatprep.subr.mxu0 0.0
  %4073 = vmatpush2.msra.mxu0 0.0
  %4074 = vmatprep.subr.mxu0 0.0
  %4075 = vmatpush2.msra.mxu0 0.0
  %4076 = vmatprep.subr.mxu0 0.0
  %4077 = vmatpush2.msra.mxu0 0.0
  %4078 = vmatprep.subr.mxu0 0.0
  %4079 = vmatpush2.msra.mxu0 0.0
  %4080 = vmatprep.subr.mxu0 0.0
  %4081 = vmatpush2.msra.mxu0 0.0
  %4082 = vmatprep.subr.mxu0 0.0
  %4083 = vmatpush2.msra.mxu0 0.0
  %4084 = vmatprep.subr.mxu0 0.0
  %4085 = vmatpush2.msra.mxu0 0.0
  %4086 = vmatprep.subr.mxu0 0.0
  %4087 = vmatpush2.msra.mxu0 0.0
  %4088 = vmatprep.mubr.f32.mxu0 0.0
  %4089 = vmatmul.mubr.f32.gmra.mxu0 %v3843
  %v4090 = vpop.f32.mrf.mxu0
  %v4091 = vadd.f32 0.0, %v4090
  %v4092 = vpop.f32.mrf.mxu0
  %4093 = vmatprep.mubr.f32.mxu0 0.0
  %4094 = vmatmul.mubr.f32.gmra.mxu0 %v3846
  %v4095 = vpop.f32.mrf.mxu0
  %v4096 = vadd.f32 0.0, %v4095
  %v4097 = vpop.f32.mrf.mxu0
  %4098 = vmatprep.mubr.f32.mxu0 0.0
  %4099 = vmatmul.mubr.f32.gmra.mxu0 %v3849
  %v4100 = vpop.f32.mrf.mxu0
  %v4101 = vadd.f32 0.0, %v4100
  %v4102 = vpop.f32.mrf.mxu0
  %4103 = vmatprep.mubr.f32.mxu0 0.0
  %4104 = vmatmul.mubr.f32.gmra.mxu0 %v3852
  %v4105 = vpop.f32.mrf.mxu0
  %v4106 = vadd.f32 0.0, %v4105
  %v4107 = vpop.f32.mrf.mxu0
  %4108 = vdwg.mxu0
  %4109 = vmatprep.subr.mxu0 0.0
  %4110 = vmatpush1.msra.mxu0 0.0
  %4111 = vmatprep.subr.mxu0 0.0
  %4112 = vmatpush1.msra.mxu0 0.0
  %4113 = vmatprep.subr.mxu0 0.0
  %4114 = vmatpush1.msra.mxu0 0.0
  %4115 = vmatprep.subr.mxu0 0.0
  %4116 = vmatpush1.msra.mxu0 0.0
  %4117 = vmatprep.subr.mxu0 0.0
  %4118 = vmatpush1.msra.mxu0 0.0
  %4119 = vmatprep.subr.mxu0 0.0
  %4120 = vmatpush1.msra.mxu0 0.0
  %4121 = vmatprep.subr.mxu0 0.0
  %4122 = vmatpush1.msra.mxu0 0.0
  %4123 = vmatprep.subr.mxu0 0.0
  %4124 = vmatpush1.msra.mxu0 0.0
  %4125 = vmatprep.subr.mxu0 0.0
  %4126 = vmatpush1.msra.mxu0 0.0
  %4127 = vmatprep.subr.mxu0 0.0
  %4128 = vmatpush1.msra.mxu0 0.0
  %4129 = vmatprep.subr.mxu0 0.0
  %4130 = vmatpush1.msra.mxu0 0.0
  %4131 = vmatprep.subr.mxu0 0.0
  %4132 = vmatpush1.msra.mxu0 0.0
  %4133 = vmatprep.subr.mxu0 0.0
  %4134 = vmatpush1.msra.mxu0 %v3681
  %4135 = vmatprep.subr.mxu0 0.0
  %4136 = vmatpush1.msra.mxu0 %v3680
  %4137 = vmatprep.subr.mxu0 0.0
  %4138 = vmatpush1.msra.mxu0 %v3679
  %4139 = vmatprep.subr.mxu0 0.0
  %4140 = vmatpush1.msra.mxu0 %v3678
  %4141 = vmatprep.subr.mxu0 0.0
  %4142 = vmatpush2.msra.mxu0 0.0
  %4143 = vmatprep.subr.mxu0 0.0
  %4144 = vmatpush2.msra.mxu0 0.0
  %4145 = vmatprep.subr.mxu0 0.0
  %4146 = vmatpush2.msra.mxu0 0.0
  %4147 = vmatprep.subr.mxu0 0.0
  %4148 = vmatpush2.msra.mxu0 0.0
  %4149 = vmatprep.subr.mxu0 0.0
  %4150 = vmatpush2.msra.mxu0 0.0
  %4151 = vmatprep.subr.mxu0 0.0
  %4152 = vmatpush2.msra.mxu0 0.0
  %4153 = vmatprep.subr.mxu0 0.0
  %4154 = vmatpush2.msra.mxu0 0.0
  %4155 = vmatprep.subr.mxu0 0.0
  %4156 = vmatpush2.msra.mxu0 0.0
  %4157 = vmatprep.subr.mxu0 0.0
  %4158 = vmatpush2.msra.mxu0 0.0
  %4159 = vmatprep.subr.mxu0 0.0
  %4160 = vmatpush2.msra.mxu0 0.0
  %4161 = vmatprep.subr.mxu0 0.0
  %4162 = vmatpush2.msra.mxu0 0.0
  %4163 = vmatprep.subr.mxu0 0.0
  %4164 = vmatpush2.msra.mxu0 0.0
  %4165 = vmatprep.subr.mxu0 0.0
  %4166 = vmatpush2.msra.mxu0 0.0
  %4167 = vmatprep.subr.mxu0 0.0
  %4168 = vmatpush2.msra.mxu0 0.0
  %4169 = vmatprep.subr.mxu0 0.0
  %4170 = vmatpush2.msra.mxu0 0.0
  %4171 = vmatprep.subr.mxu0 0.0
  %4172 = vmatpush2.msra.mxu0 0.0
  %4173 = vmatprep.mubr.f32.mxu0 0.0
  %4174 = vmatmul.mubr.f32.gmra.mxu0 %v3843
  %v4175 = vpop.f32.mrf.mxu0
  %v4176 = vadd.f32 0.0, %v4175
  %v4177 = vpop.f32.mrf.mxu0
  %4178 = vmatprep.mubr.f32.mxu0 0.0
  %4179 = vmatmul.mubr.f32.gmra.mxu0 %v3846
  %v4180 = vpop.f32.mrf.mxu0
  %v4181 = vadd.f32 0.0, %v4180
  %v4182 = vpop.f32.mrf.mxu0
  %4183 = vmatprep.mubr.f32.mxu0 0.0
  %4184 = vmatmul.mubr.f32.gmra.mxu0 %v3849
  %v4185 = vpop.f32.mrf.mxu0
  %v4186 = vadd.f32 0.0, %v4185
  %v4187 = vpop.f32.mrf.mxu0
  %4188 = vmatprep.mubr.f32.mxu0 0.0
  %4189 = vmatmul.mubr.f32.gmra.mxu0 %v3852
  %v4190 = vpop.f32.mrf.mxu0
  %v4191 = vadd.f32 0.0, %v4190
  %v4192 = vpop.f32.mrf.mxu0
  %4193 = vdwg.mxu0
  %v4195 = vlaneseq
  %v4196 = vshrl.u32 %v4195, 7
  %v4197 = vsub.s32 0, %v4196
  %v4198 = vrot.slane %v2179, %v4197
  %v4201 = vsel %vm761, %v3759, 0
  %v4204 = vsel %vm761, %v3921, 0
  %v4207 = vsel %vm761, %v3926, 0
  %4209 = vmatprep.subr.mxu0 0.0
  %4210 = vmatpush1.xpose.msra.mxu0 0.0
  %4211 = vmatprep.subr.mxu0 0.0
  %4212 = vmatpush1.xpose.msra.mxu0 0.0
  %4213 = vmatprep.subr.mxu0 0.0
  %4214 = vmatpush1.xpose.msra.mxu0 0.0
  %4215 = vmatprep.subr.mxu0 0.0
  %4216 = vmatpush1.xpose.msra.mxu0 0.0
  %4217 = vmatprep.subr.mxu0 0.0
  %4218 = vmatpush1.xpose.msra.mxu0 0.0
  %4219 = vmatprep.subr.mxu0 0.0
  %4220 = vmatpush1.xpose.msra.mxu0 0.0
  %4221 = vmatprep.subr.mxu0 0.0
  %4222 = vmatpush1.xpose.msra.mxu0 0.0
  %4223 = vmatprep.subr.mxu0 0.0
  %4224 = vmatpush1.xpose.msra.mxu0 0.0
  %4225 = vmatprep.subr.mxu0 0.0
  %4226 = vmatpush1.xpose.msra.mxu0 0.0
  %4227 = vmatprep.subr.mxu0 0.0
  %4228 = vmatpush1.xpose.msra.mxu0 0.0
  %4229 = vmatprep.subr.mxu0 0.0
  %4230 = vmatpush1.xpose.msra.mxu0 0.0
  %4231 = vmatprep.subr.mxu0 0.0
  %4232 = vmatpush1.xpose.msra.mxu0 0.0
  %4233 = vmatprep.subr.mxu0 0.0
  %4234 = vmatpush1.xpose.msra.mxu0 0.0
  %4235 = vmatprep.subr.mxu0 0.0
  %4236 = vmatpush1.xpose.msra.mxu0 0.0
  %4237 = vmatprep.subr.mxu0 0.0
  %4238 = vmatpush1.xpose.msra.mxu0 %v4207
  %4239 = vmatprep.subr.mxu0 0.0
  %4240 = vmatpush1.xpose.msra.mxu0 %v4204
  %4241 = vmatprep.subr.mxu0 0.0
  %4242 = vmatpush2.xpose.msra.mxu0 0.0
  %4243 = vmatprep.subr.mxu0 0.0
  %4244 = vmatpush2.xpose.msra.mxu0 0.0
  %4245 = vmatprep.subr.mxu0 0.0
  %4246 = vmatpush2.xpose.msra.mxu0 0.0
  %4247 = vmatprep.subr.mxu0 0.0
  %4248 = vmatpush2.xpose.msra.mxu0 0.0
  %4249 = vmatprep.subr.mxu0 0.0
  %4250 = vmatpush2.xpose.msra.mxu0 0.0
  %4251 = vmatprep.subr.mxu0 0.0
  %4252 = vmatpush2.xpose.msra.mxu0 0.0
  %4253 = vmatprep.subr.mxu0 0.0
  %4254 = vmatpush2.xpose.msra.mxu0 0.0
  %4255 = vmatprep.subr.mxu0 0.0
  %4256 = vmatpush2.xpose.msra.mxu0 0.0
  %4257 = vmatprep.subr.mxu0 0.0
  %4258 = vmatpush2.xpose.msra.mxu0 0.0
  %4259 = vmatprep.subr.mxu0 0.0
  %4260 = vmatpush2.xpose.msra.mxu0 0.0
  %4261 = vmatprep.subr.mxu0 0.0
  %4262 = vmatpush2.xpose.msra.mxu0 0.0
  %4263 = vmatprep.subr.mxu0 0.0
  %4264 = vmatpush2.xpose.msra.mxu0 0.0
  %4265 = vmatprep.subr.mxu0 0.0
  %4266 = vmatpush2.xpose.msra.mxu0 0.0
  %4267 = vmatprep.subr.mxu0 0.0
  %4268 = vmatpush2.xpose.msra.mxu0 0.0
  %4269 = vmatprep.subr.mxu0 0.0
  %4270 = vmatpush2.xpose.msra.mxu0 0.0
  %4271 = vmatprep.subr.mxu0 0.0
  %4272 = vmatpush2.xpose.msra.mxu0 0.0
  %4273 = vmatprep.mubr.f32.mxu0 0.0
  %4274 = vmatmul.mubr.f32.gmra.mxu0 %v4201
  %v4275 = vpop.f32.mrf.mxu0
  %v4276 = vadd.f32 %v4198, %v4275
  %v4277 = vpop.f32.mrf.mxu0
  %4278 = vdwg.mxu0
  %v4279 = vsel %vm761, %v4276, -inf
  %4280 = vmax.xlane.f32.xlu0 %v4279
  %v4281 = vpop.xlane.xlu0 %4280
  %v4282 = vsub.f32 %v4276, %v4281
  %v4283 = vmul.f32 %v4282, 1.442695
  %v4284 = vpow.pop %v4283
  %v4285 = vsel %vm761, %v4284, 0.0
  %4286 = vadd.xlane.f32.xlu0 %v4285
  %v4287 = vpop.xlane.xlu0 %4286
  %v4288 = vrcp.pop %v4287
  %v4289 = vmul.f32 %v4284, %v4288
  %v4291 = vsel %vm761, %v4289, 0
  %4293 = vmatprep.subr.mxu0 0.0
  %4294 = vmatpush1.msra.mxu0 0.0
  %4295 = vmatprep.subr.mxu0 0.0
  %4296 = vmatpush1.msra.mxu0 0.0
  %4297 = vmatprep.subr.mxu0 0.0
  %4298 = vmatpush1.msra.mxu0 0.0
  %4299 = vmatprep.subr.mxu0 0.0
  %4300 = vmatpush1.msra.mxu0 0.0
  %4301 = vmatprep.subr.mxu0 0.0
  %4302 = vmatpush1.msra.mxu0 0.0
  %4303 = vmatprep.subr.mxu0 0.0
  %4304 = vmatpush1.msra.mxu0 0.0
  %4305 = vmatprep.subr.mxu0 0.0
  %4306 = vmatpush1.msra.mxu0 0.0
  %4307 = vmatprep.subr.mxu0 0.0
  %4308 = vmatpush1.msra.mxu0 0.0
  %4309 = vmatprep.subr.mxu0 0.0
  %4310 = vmatpush1.msra.mxu0 0.0
  %4311 = vmatprep.subr.mxu0 0.0
  %4312 = vmatpush1.msra.mxu0 0.0
  %4313 = vmatprep.subr.mxu0 0.0
  %4314 = vmatpush1.msra.mxu0 0.0
  %4315 = vmatprep.subr.mxu0 0.0
  %4316 = vmatpush1.msra.mxu0 0.0
  %4317 = vmatprep.subr.mxu0 0.0
  %4318 = vmatpush1.msra.mxu0 0.0
  %4319 = vmatprep.subr.mxu0 0.0
  %4320 = vmatpush1.msra.mxu0 0.0
  %4321 = vmatprep.subr.mxu0 0.0
  %4322 = vmatpush1.msra.mxu0 %v4096
  %4323 = vmatprep.subr.mxu0 0.0
  %4324 = vmatpush1.msra.mxu0 %v4091
  %4325 = vmatprep.subr.mxu0 0.0
  %4326 = vmatpush2.msra.mxu0 0.0
  %4327 = vmatprep.subr.mxu0 0.0
  %4328 = vmatpush2.msra.mxu0 0.0
  %4329 = vmatprep.subr.mxu0 0.0
  %4330 = vmatpush2.msra.mxu0 0.0
  %4331 = vmatprep.subr.mxu0 0.0
  %4332 = vmatpush2.msra.mxu0 0.0
  %4333 = vmatprep.subr.mxu0 0.0
  %4334 = vmatpush2.msra.mxu0 0.0
  %4335 = vmatprep.subr.mxu0 0.0
  %4336 = vmatpush2.msra.mxu0 0.0
  %4337 = vmatprep.subr.mxu0 0.0
  %4338 = vmatpush2.msra.mxu0 0.0
  %4339 = vmatprep.subr.mxu0 0.0
  %4340 = vmatpush2.msra.mxu0 0.0
  %4341 = vmatprep.subr.mxu0 0.0
  %4342 = vmatpush2.msra.mxu0 0.0
  %4343 = vmatprep.subr.mxu0 0.0
  %4344 = vmatpush2.msra.mxu0 0.0
  %4345 = vmatprep.subr.mxu0 0.0
  %4346 = vmatpush2.msra.mxu0 0.0
  %4347 = vmatprep.subr.mxu0 0.0
  %4348 = vmatpush2.msra.mxu0 0.0
  %4349 = vmatprep.subr.mxu0 0.0
  %4350 = vmatpush2.msra.mxu0 0.0
  %4351 = vmatprep.subr.mxu0 0.0
  %4352 = vmatpush2.msra.mxu0 0.0
  %4353 = vmatprep.subr.mxu0 0.0
  %4354 = vmatpush2.msra.mxu0 0.0
  %4355 = vmatprep.subr.mxu0 0.0
  %4356 = vmatpush2.msra.mxu0 0.0
  %4357 = vmatprep.mubr.f32.mxu0 0.0
  %4358 = vmatmul.mubr.f32.gmra.mxu0 %v4291
  %v4359 = vpop.f32.mrf.mxu0
  %v4360 = vadd.f32 0.0, %v4359
  %v4361 = vpop.f32.mrf.mxu0
  %4362 = vdwg.mxu0
  %v4364 = vsel %vm761, %v3834, 0
  %v4367 = vsel %vm761, %v4006, 0
  %v4370 = vsel %vm761, %v4011, 0
  %4372 = vmatprep.subr.mxu0 0.0
  %4373 = vmatpush1.xpose.msra.mxu0 0.0
  %4374 = vmatprep.subr.mxu0 0.0
  %4375 = vmatpush1.xpose.msra.mxu0 0.0
  %4376 = vmatprep.subr.mxu0 0.0
  %4377 = vmatpush1.xpose.msra.mxu0 0.0
  %4378 = vmatprep.subr.mxu0 0.0
  %4379 = vmatpush1.xpose.msra.mxu0 0.0
  %4380 = vmatprep.subr.mxu0 0.0
  %4381 = vmatpush1.xpose.msra.mxu0 0.0
  %4382 = vmatprep.subr.mxu0 0.0
  %4383 = vmatpush1.xpose.msra.mxu0 0.0
  %4384 = vmatprep.subr.mxu0 0.0
  %4385 = vmatpush1.xpose.msra.mxu0 0.0
  %4386 = vmatprep.subr.mxu0 0.0
  %4387 = vmatpush1.xpose.msra.mxu0 0.0
  %4388 = vmatprep.subr.mxu0 0.0
  %4389 = vmatpush1.xpose.msra.mxu0 0.0
  %4390 = vmatprep.subr.mxu0 0.0
  %4391 = vmatpush1.xpose.msra.mxu0 0.0
  %4392 = vmatprep.subr.mxu0 0.0
  %4393 = vmatpush1.xpose.msra.mxu0 0.0
  %4394 = vmatprep.subr.mxu0 0.0
  %4395 = vmatpush1.xpose.msra.mxu0 0.0
  %4396 = vmatprep.subr.mxu0 0.0
  %4397 = vmatpush1.xpose.msra.mxu0 0.0
  %4398 = vmatprep.subr.mxu0 0.0
  %4399 = vmatpush1.xpose.msra.mxu0 0.0
  %4400 = vmatprep.subr.mxu0 0.0
  %4401 = vmatpush1.xpose.msra.mxu0 %v4370
  %4402 = vmatprep.subr.mxu0 0.0
  %4403 = vmatpush1.xpose.msra.mxu0 %v4367
  %4404 = vmatprep.subr.mxu0 0.0
  %4405 = vmatpush2.xpose.msra.mxu0 0.0
  %4406 = vmatprep.subr.mxu0 0.0
  %4407 = vmatpush2.xpose.msra.mxu0 0.0
  %4408 = vmatprep.subr.mxu0 0.0
  %4409 = vmatpush2.xpose.msra.mxu0 0.0
  %4410 = vmatprep.subr.mxu0 0.0
  %4411 = vmatpush2.xpose.msra.mxu0 0.0
  %4412 = vmatprep.subr.mxu0 0.0
  %4413 = vmatpush2.xpose.msra.mxu0 0.0
  %4414 = vmatprep.subr.mxu0 0.0
  %4415 = vmatpush2.xpose.msra.mxu0 0.0
  %4416 = vmatprep.subr.mxu0 0.0
  %4417 = vmatpush2.xpose.msra.mxu0 0.0
  %4418 = vmatprep.subr.mxu0 0.0
  %4419 = vmatpush2.xpose.msra.mxu0 0.0
  %4420 = vmatprep.subr.mxu0 0.0
  %4421 = vmatpush2.xpose.msra.mxu0 0.0
  %4422 = vmatprep.subr.mxu0 0.0
  %4423 = vmatpush2.xpose.msra.mxu0 0.0
  %4424 = vmatprep.subr.mxu0 0.0
  %4425 = vmatpush2.xpose.msra.mxu0 0.0
  %4426 = vmatprep.subr.mxu0 0.0
  %4427 = vmatpush2.xpose.msra.mxu0 0.0
  %4428 = vmatprep.subr.mxu0 0.0
  %4429 = vmatpush2.xpose.msra.mxu0 0.0
  %4430 = vmatprep.subr.mxu0 0.0
  %4431 = vmatpush2.xpose.msra.mxu0 0.0
  %4432 = vmatprep.subr.mxu0 0.0
  %4433 = vmatpush2.xpose.msra.mxu0 0.0
  %4434 = vmatprep.subr.mxu0 0.0
  %4435 = vmatpush2.xpose.msra.mxu0 0.0
  %4436 = vmatprep.mubr.f32.mxu0 0.0
  %4437 = vmatmul.mubr.f32.gmra.mxu0 %v4364
  %v4438 = vpop.f32.mrf.mxu0
  %v4439 = vadd.f32 %v4198, %v4438
  %v4440 = vpop.f32.mrf.mxu0
  %4441 = vdwg.mxu0
  %v4442 = vsel %vm761, %v4439, -inf
  %4443 = vmax.xlane.f32.xlu0 %v4442
  %v4444 = vpop.xlane.xlu0 %4443
  %v4445 = vsub.f32 %v4439, %v4444
  %v4446 = vmul.f32 %v4445, 1.442695
  %v4447 = vpow.pop %v4446
  %v4448 = vsel %vm761, %v4447, 0.0
  %4449 = vadd.xlane.f32.xlu0 %v4448
  %v4450 = vpop.xlane.xlu0 %4449
  %v4451 = vrcp.pop %v4450
  %v4452 = vmul.f32 %v4447, %v4451
  %v4454 = vsel %vm761, %v4452, 0
  %4456 = vmatprep.subr.mxu0 0.0
  %4457 = vmatpush1.msra.mxu0 0.0
  %4458 = vmatprep.subr.mxu0 0.0
  %4459 = vmatpush1.msra.mxu0 0.0
  %4460 = vmatprep.subr.mxu0 0.0
  %4461 = vmatpush1.msra.mxu0 0.0
  %4462 = vmatprep.subr.mxu0 0.0
  %4463 = vmatpush1.msra.mxu0 0.0
  %4464 = vmatprep.subr.mxu0 0.0
  %4465 = vmatpush1.msra.mxu0 0.0
  %4466 = vmatprep.subr.mxu0 0.0
  %4467 = vmatpush1.msra.mxu0 0.0
  %4468 = vmatprep.subr.mxu0 0.0
  %4469 = vmatpush1.msra.mxu0 0.0
  %4470 = vmatprep.subr.mxu0 0.0
  %4471 = vmatpush1.msra.mxu0 0.0
  %4472 = vmatprep.subr.mxu0 0.0
  %4473 = vmatpush1.msra.mxu0 0.0
  %4474 = vmatprep.subr.mxu0 0.0
  %4475 = vmatpush1.msra.mxu0 0.0
  %4476 = vmatprep.subr.mxu0 0.0
  %4477 = vmatpush1.msra.mxu0 0.0
  %4478 = vmatprep.subr.mxu0 0.0
  %4479 = vmatpush1.msra.mxu0 0.0
  %4480 = vmatprep.subr.mxu0 0.0
  %4481 = vmatpush1.msra.mxu0 0.0
  %4482 = vmatprep.subr.mxu0 0.0
  %4483 = vmatpush1.msra.mxu0 0.0
  %4484 = vmatprep.subr.mxu0 0.0
  %4485 = vmatpush1.msra.mxu0 %v4181
  %4486 = vmatprep.subr.mxu0 0.0
  %4487 = vmatpush1.msra.mxu0 %v4176
  %4488 = vmatprep.subr.mxu0 0.0
  %4489 = vmatpush2.msra.mxu0 0.0
  %4490 = vmatprep.subr.mxu0 0.0
  %4491 = vmatpush2.msra.mxu0 0.0
  %4492 = vmatprep.subr.mxu0 0.0
  %4493 = vmatpush2.msra.mxu0 0.0
  %4494 = vmatprep.subr.mxu0 0.0
  %4495 = vmatpush2.msra.mxu0 0.0
  %4496 = vmatprep.subr.mxu0 0.0
  %4497 = vmatpush2.msra.mxu0 0.0
  %4498 = vmatprep.subr.mxu0 0.0
  %4499 = vmatpush2.msra.mxu0 0.0
  %4500 = vmatprep.subr.mxu0 0.0
  %4501 = vmatpush2.msra.mxu0 0.0
  %4502 = vmatprep.subr.mxu0 0.0
  %4503 = vmatpush2.msra.mxu0 0.0
  %4504 = vmatprep.subr.mxu0 0.0
  %4505 = vmatpush2.msra.mxu0 0.0
  %4506 = vmatprep.subr.mxu0 0.0
  %4507 = vmatpush2.msra.mxu0 0.0
  %4508 = vmatprep.subr.mxu0 0.0
  %4509 = vmatpush2.msra.mxu0 0.0
  %4510 = vmatprep.subr.mxu0 0.0
  %4511 = vmatpush2.msra.mxu0 0.0
  %4512 = vmatprep.subr.mxu0 0.0
  %4513 = vmatpush2.msra.mxu0 0.0
  %4514 = vmatprep.subr.mxu0 0.0
  %4515 = vmatpush2.msra.mxu0 0.0
  %4516 = vmatprep.subr.mxu0 0.0
  %4517 = vmatpush2.msra.mxu0 0.0
  %4518 = vmatprep.subr.mxu0 0.0
  %4519 = vmatpush2.msra.mxu0 0.0
  %4520 = vmatprep.mubr.f32.mxu0 0.0
  %4521 = vmatmul.mubr.f32.gmra.mxu0 %v4454
  %v4522 = vpop.f32.mrf.mxu0
  %v4523 = vadd.f32 0.0, %v4522
  %v4524 = vpop.f32.mrf.mxu0
  %4525 = vdwg.mxu0
  %v4527 = vsel %vm761, %v4523, 0
  %4529 = vmatprep.subr.mxu0 0.0
  %4530 = vmatpush1.msra.mxu0 0.0
  %4531 = vmatprep.subr.mxu0 0.0
  %4532 = vmatpush1.msra.mxu0 0.0
  %4533 = vmatprep.subr.mxu0 0.0
  %4534 = vmatpush1.msra.mxu0 0.0
  %4535 = vmatprep.subr.mxu0 0.0
  %4536 = vmatpush1.msra.mxu0 0.0
  %4537 = vmatprep.subr.mxu0 0.0
  %4538 = vmatpush1.msra.mxu0 0.0
  %4539 = vmatprep.subr.mxu0 0.0
  %4540 = vmatpush1.msra.mxu0 0.0
  %4541 = vmatprep.subr.mxu0 0.0
  %4542 = vmatpush1.msra.mxu0 0.0
  %4543 = vmatprep.subr.mxu0 0.0
  %4544 = vmatpush1.msra.mxu0 0.0
  %4545 = vmatprep.subr.mxu0 0.0
  %4546 = vmatpush1.msra.mxu0 0.0
  %4547 = vmatprep.subr.mxu0 0.0
  %4548 = vmatpush1.msra.mxu0 0.0
  %4549 = vmatprep.subr.mxu0 0.0
  %4550 = vmatpush1.msra.mxu0 0.0
  %4551 = vmatprep.subr.mxu0 0.0
  %4552 = vmatpush1.msra.mxu0 0.0
  %4553 = vmatprep.subr.mxu0 0.0
  %4554 = vmatpush1.msra.mxu0 0.0
  %4555 = vmatprep.subr.mxu0 0.0
  %4556 = vmatpush1.msra.mxu0 0.0
  %4557 = vmatprep.subr.mxu0 0.0
  %4558 = vmatpush1.msra.mxu0 %v3685
  %4559 = vmatprep.subr.mxu0 0.0
  %4560 = vmatpush1.msra.mxu0 %v3684
  %4561 = vmatprep.subr.mxu0 0.0
  %4562 = vmatpush2.msra.mxu0 0.0
  %4563 = vmatprep.subr.mxu0 0.0
  %4564 = vmatpush2.msra.mxu0 0.0
  %4565 = vmatprep.subr.mxu0 0.0
  %4566 = vmatpush2.msra.mxu0 0.0
  %4567 = vmatprep.subr.mxu0 0.0
  %4568 = vmatpush2.msra.mxu0 0.0
  %4569 = vmatprep.subr.mxu0 0.0
  %4570 = vmatpush2.msra.mxu0 0.0
  %4571 = vmatprep.subr.mxu0 0.0
  %4572 = vmatpush2.msra.mxu0 0.0
  %4573 = vmatprep.subr.mxu0 0.0
  %4574 = vmatpush2.msra.mxu0 0.0
  %4575 = vmatprep.subr.mxu0 0.0
  %4576 = vmatpush2.msra.mxu0 0.0
  %4577 = vmatprep.subr.mxu0 0.0
  %4578 = vmatpush2.msra.mxu0 0.0
  %4579 = vmatprep.subr.mxu0 0.0
  %4580 = vmatpush2.msra.mxu0 0.0
  %4581 = vmatprep.subr.mxu0 0.0
  %4582 = vmatpush2.msra.mxu0 0.0
  %4583 = vmatprep.subr.mxu0 0.0
  %4584 = vmatpush2.msra.mxu0 0.0
  %4585 = vmatprep.subr.mxu0 0.0
  %4586 = vmatpush2.msra.mxu0 0.0
  %4587 = vmatprep.subr.mxu0 0.0
  %4588 = vmatpush2.msra.mxu0 0.0
  %4589 = vmatprep.subr.mxu0 0.0
  %4590 = vmatpush2.msra.mxu0 0.0
  %4591 = vmatprep.subr.mxu0 0.0
  %4592 = vmatpush2.msra.mxu0 0.0
  %4593 = vmatprep.mubr.f32.mxu0 0.0
  %4594 = vmatmul.mubr.f32.gmra.mxu0 %v4527
  %v4595 = vpop.f32.mrf.mxu0
  %v4596 = vadd.f32 0.0, %v4595
  %v4597 = vpop.f32.mrf.mxu0
  %4598 = vdwg.mxu0
  %v4600 = vsel %vm761, %v4360, 0
  %4602 = vmatprep.subr.mxu0 0.0
  %4603 = vmatpush1.msra.mxu0 0.0
  %4604 = vmatprep.subr.mxu0 0.0
  %4605 = vmatpush1.msra.mxu0 0.0
  %4606 = vmatprep.subr.mxu0 0.0
  %4607 = vmatpush1.msra.mxu0 0.0
  %4608 = vmatprep.subr.mxu0 0.0
  %4609 = vmatpush1.msra.mxu0 0.0
  %4610 = vmatprep.subr.mxu0 0.0
  %4611 = vmatpush1.msra.mxu0 0.0
  %4612 = vmatprep.subr.mxu0 0.0
  %4613 = vmatpush1.msra.mxu0 0.0
  %4614 = vmatprep.subr.mxu0 0.0
  %4615 = vmatpush1.msra.mxu0 0.0
  %4616 = vmatprep.subr.mxu0 0.0
  %4617 = vmatpush1.msra.mxu0 0.0
  %4618 = vmatprep.subr.mxu0 0.0
  %4619 = vmatpush1.msra.mxu0 0.0
  %4620 = vmatprep.subr.mxu0 0.0
  %4621 = vmatpush1.msra.mxu0 0.0
  %4622 = vmatprep.subr.mxu0 0.0
  %4623 = vmatpush1.msra.mxu0 0.0
  %4624 = vmatprep.subr.mxu0 0.0
  %4625 = vmatpush1.msra.mxu0 0.0
  %4626 = vmatprep.subr.mxu0 0.0
  %4627 = vmatpush1.msra.mxu0 0.0
  %4628 = vmatprep.subr.mxu0 0.0
  %4629 = vmatpush1.msra.mxu0 0.0
  %4630 = vmatprep.subr.mxu0 0.0
  %4631 = vmatpush1.msra.mxu0 %v3683
  %4632 = vmatprep.subr.mxu0 0.0
  %4633 = vmatpush1.msra.mxu0 %v3682
  %4634 = vmatprep.subr.mxu0 0.0
  %4635 = vmatpush2.msra.mxu0 0.0
  %4636 = vmatprep.subr.mxu0 0.0
  %4637 = vmatpush2.msra.mxu0 0.0
  %4638 = vmatprep.subr.mxu0 0.0
  %4639 = vmatpush2.msra.mxu0 0.0
  %4640 = vmatprep.subr.mxu0 0.0
  %4641 = vmatpush2.msra.mxu0 0.0
  %4642 = vmatprep.subr.mxu0 0.0
  %4643 = vmatpush2.msra.mxu0 0.0
  %4644 = vmatprep.subr.mxu0 0.0
  %4645 = vmatpush2.msra.mxu0 0.0
  %4646 = vmatprep.subr.mxu0 0.0
  %4647 = vmatpush2.msra.mxu0 0.0
  %4648 = vmatprep.subr.mxu0 0.0
  %4649 = vmatpush2.msra.mxu0 0.0
  %4650 = vmatprep.subr.mxu0 0.0
  %4651 = vmatpush2.msra.mxu0 0.0
  %4652 = vmatprep.subr.mxu0 0.0
  %4653 = vmatpush2.msra.mxu0 0.0
  %4654 = vmatprep.subr.mxu0 0.0
  %4655 = vmatpush2.msra.mxu0 0.0
  %4656 = vmatprep.subr.mxu0 0.0
  %4657 = vmatpush2.msra.mxu0 0.0
  %4658 = vmatprep.subr.mxu0 0.0
  %4659 = vmatpush2.msra.mxu0 0.0
  %4660 = vmatprep.subr.mxu0 0.0
  %4661 = vmatpush2.msra.mxu0 0.0
  %4662 = vmatprep.subr.mxu0 0.0
  %4663 = vmatpush2.msra.mxu0 0.0
  %4664 = vmatprep.subr.mxu0 0.0
  %4665 = vmatpush2.msra.mxu0 0.0
  %4666 = vmatprep.mubr.f32.mxu0 0.0
  %4667 = vmatmul.mubr.f32.gmra.mxu0 %v4600
  %v4668 = vpop.f32.mrf.mxu0
  %v4669 = vadd.f32 %v4596, %v4668
  %v4670 = vpop.f32.mrf.mxu0
  %4671 = vdwg.mxu0
  %4672 = vst.msk [vmem:[#allocation3] sm:$0xff] %vm165, %v4669
  %v4674 = vlaneseq
  %v4675 = vshrl.u32 %v4674, 7
  %v4676 = vsub.s32 0, %v4675
  %v4677 = vrot.slane %v2180, %v4676
  %v4680 = vsel %vm761, %v3764, 0
  %v4683 = vsel %vm761, %v3931, 0
  %v4686 = vsel %vm761, %v3936, 0
  %4688 = vmatprep.subr.mxu0 0.0
  %4689 = vmatpush1.xpose.msra.mxu0 0.0
  %4690 = vmatprep.subr.mxu0 0.0
  %4691 = vmatpush1.xpose.msra.mxu0 0.0
  %4692 = vmatprep.subr.mxu0 0.0
  %4693 = vmatpush1.xpose.msra.mxu0 0.0
  %4694 = vmatprep.subr.mxu0 0.0
  %4695 = vmatpush1.xpose.msra.mxu0 0.0
  %4696 = vmatprep.subr.mxu0 0.0
  %4697 = vmatpush1.xpose.msra.mxu0 0.0
  %4698 = vmatprep.subr.mxu0 0.0
  %4699 = vmatpush1.xpose.msra.mxu0 0.0
  %4700 = vmatprep.subr.mxu0 0.0
  %4701 = vmatpush1.xpose.msra.mxu0 0.0
  %4702 = vmatprep.subr.mxu0 0.0
  %4703 = vmatpush1.xpose.msra.mxu0 0.0
  %4704 = vmatprep.subr.mxu0 0.0
  %4705 = vmatpush1.xpose.msra.mxu0 0.0
  %4706 = vmatprep.subr.mxu0 0.0
  %4707 = vmatpush1.xpose.msra.mxu0 0.0
  %4708 = vmatprep.subr.mxu0 0.0
  %4709 = vmatpush1.xpose.msra.mxu0 0.0
  %4710 = vmatprep.subr.mxu0 0.0
  %4711 = vmatpush1.xpose.msra.mxu0 0.0
  %4712 = vmatprep.subr.mxu0 0.0
  %4713 = vmatpush1.xpose.msra.mxu0 0.0
  %4714 = vmatprep.subr.mxu0 0.0
  %4715 = vmatpush1.xpose.msra.mxu0 0.0
  %4716 = vmatprep.subr.mxu0 0.0
  %4717 = vmatpush1.xpose.msra.mxu0 %v4686
  %4718 = vmatprep.subr.mxu0 0.0
  %4719 = vmatpush1.xpose.msra.mxu0 %v4683
  %4720 = vmatprep.subr.mxu0 0.0
  %4721 = vmatpush2.xpose.msra.mxu0 0.0
  %4722 = vmatprep.subr.mxu0 0.0
  %4723 = vmatpush2.xpose.msra.mxu0 0.0
  %4724 = vmatprep.subr.mxu0 0.0
  %4725 = vmatpush2.xpose.msra.mxu0 0.0
  %4726 = vmatprep.subr.mxu0 0.0
  %4727 = vmatpush2.xpose.msra.mxu0 0.0
  %4728 = vmatprep.subr.mxu0 0.0
  %4729 = vmatpush2.xpose.msra.mxu0 0.0
  %4730 = vmatprep.subr.mxu0 0.0
  %4731 = vmatpush2.xpose.msra.mxu0 0.0
  %4732 = vmatprep.subr.mxu0 0.0
  %4733 = vmatpush2.xpose.msra.mxu0 0.0
  %4734 = vmatprep.subr.mxu0 0.0
  %4735 = vmatpush2.xpose.msra.mxu0 0.0
  %4736 = vmatprep.subr.mxu0 0.0
  %4737 = vmatpush2.xpose.msra.mxu0 0.0
  %4738 = vmatprep.subr.mxu0 0.0
  %4739 = vmatpush2.xpose.msra.mxu0 0.0
  %4740 = vmatprep.subr.mxu0 0.0
  %4741 = vmatpush2.xpose.msra.mxu0 0.0
  %4742 = vmatprep.subr.mxu0 0.0
  %4743 = vmatpush2.xpose.msra.mxu0 0.0
  %4744 = vmatprep.subr.mxu0 0.0
  %4745 = vmatpush2.xpose.msra.mxu0 0.0
  %4746 = vmatprep.subr.mxu0 0.0
  %4747 = vmatpush2.xpose.msra.mxu0 0.0
  %4748 = vmatprep.subr.mxu0 0.0
  %4749 = vmatpush2.xpose.msra.mxu0 0.0
  %4750 = vmatprep.subr.mxu0 0.0
  %4751 = vmatpush2.xpose.msra.mxu0 0.0
  %4752 = vmatprep.mubr.f32.mxu0 0.0
  %4753 = vmatmul.mubr.f32.gmra.mxu0 %v4680
  %v4754 = vpop.f32.mrf.mxu0
  %v4755 = vadd.f32 %v4677, %v4754
  %v4756 = vpop.f32.mrf.mxu0
  %4757 = vdwg.mxu0
  %v4758 = vsel %vm761, %v4755, -inf
  %4759 = vmax.xlane.f32.xlu0 %v4758
  %v4760 = vpop.xlane.xlu0 %4759
  %v4761 = vsub.f32 %v4755, %v4760
  %v4762 = vmul.f32 %v4761, 1.442695
  %v4763 = vpow.pop %v4762
  %v4764 = vsel %vm761, %v4763, 0.0
  %4765 = vadd.xlane.f32.xlu0 %v4764
  %v4766 = vpop.xlane.xlu0 %4765
  %v4767 = vrcp.pop %v4766
  %v4768 = vmul.f32 %v4763, %v4767
  %v4770 = vsel %vm761, %v4768, 0
  %4772 = vmatprep.subr.mxu0 0.0
  %4773 = vmatpush1.msra.mxu0 0.0
  %4774 = vmatprep.subr.mxu0 0.0
  %4775 = vmatpush1.msra.mxu0 0.0
  %4776 = vmatprep.subr.mxu0 0.0
  %4777 = vmatpush1.msra.mxu0 0.0
  %4778 = vmatprep.subr.mxu0 0.0
  %4779 = vmatpush1.msra.mxu0 0.0
  %4780 = vmatprep.subr.mxu0 0.0
  %4781 = vmatpush1.msra.mxu0 0.0
  %4782 = vmatprep.subr.mxu0 0.0
  %4783 = vmatpush1.msra.mxu0 0.0
  %4784 = vmatprep.subr.mxu0 0.0
  %4785 = vmatpush1.msra.mxu0 0.0
  %4786 = vmatprep.subr.mxu0 0.0
  %4787 = vmatpush1.msra.mxu0 0.0
  %4788 = vmatprep.subr.mxu0 0.0
  %4789 = vmatpush1.msra.mxu0 0.0
  %4790 = vmatprep.subr.mxu0 0.0
  %4791 = vmatpush1.msra.mxu0 0.0
  %4792 = vmatprep.subr.mxu0 0.0
  %4793 = vmatpush1.msra.mxu0 0.0
  %4794 = vmatprep.subr.mxu0 0.0
  %4795 = vmatpush1.msra.mxu0 0.0
  %4796 = vmatprep.subr.mxu0 0.0
  %4797 = vmatpush1.msra.mxu0 0.0
  %4798 = vmatprep.subr.mxu0 0.0
  %4799 = vmatpush1.msra.mxu0 0.0
  %4800 = vmatprep.subr.mxu0 0.0
  %4801 = vmatpush1.msra.mxu0 %v4106
  %4802 = vmatprep.subr.mxu0 0.0
  %4803 = vmatpush1.msra.mxu0 %v4101
  %4804 = vmatprep.subr.mxu0 0.0
  %4805 = vmatpush2.msra.mxu0 0.0
  %4806 = vmatprep.subr.mxu0 0.0
  %4807 = vmatpush2.msra.mxu0 0.0
  %4808 = vmatprep.subr.mxu0 0.0
  %4809 = vmatpush2.msra.mxu0 0.0
  %4810 = vmatprep.subr.mxu0 0.0
  %4811 = vmatpush2.msra.mxu0 0.0
  %4812 = vmatprep.subr.mxu0 0.0
  %4813 = vmatpush2.msra.mxu0 0.0
  %4814 = vmatprep.subr.mxu0 0.0
  %4815 = vmatpush2.msra.mxu0 0.0
  %4816 = vmatprep.subr.mxu0 0.0
  %4817 = vmatpush2.msra.mxu0 0.0
  %4818 = vmatprep.subr.mxu0 0.0
  %4819 = vmatpush2.msra.mxu0 0.0
  %4820 = vmatprep.subr.mxu0 0.0
  %4821 = vmatpush2.msra.mxu0 0.0
  %4822 = vmatprep.subr.mxu0 0.0
  %4823 = vmatpush2.msra.mxu0 0.0
  %4824 = vmatprep.subr.mxu0 0.0
  %4825 = vmatpush2.msra.mxu0 0.0
  %4826 = vmatprep.subr.mxu0 0.0
  %4827 = vmatpush2.msra.mxu0 0.0
  %4828 = vmatprep.subr.mxu0 0.0
  %4829 = vmatpush2.msra.mxu0 0.0
  %4830 = vmatprep.subr.mxu0 0.0
  %4831 = vmatpush2.msra.mxu0 0.0
  %4832 = vmatprep.subr.mxu0 0.0
  %4833 = vmatpush2.msra.mxu0 0.0
  %4834 = vmatprep.subr.mxu0 0.0
  %4835 = vmatpush2.msra.mxu0 0.0
  %4836 = vmatprep.mubr.f32.mxu0 0.0
  %4837 = vmatmul.mubr.f32.gmra.mxu0 %v4770
  %v4838 = vpop.f32.mrf.mxu0
  %v4839 = vadd.f32 0.0, %v4838
  %v4840 = vpop.f32.mrf.mxu0
  %4841 = vdwg.mxu0
  %v4843 = vsel %vm761, %v3839, 0
  %v4846 = vsel %vm761, %v4016, 0
  %v4849 = vsel %vm761, %v4021, 0
  %4851 = vmatprep.subr.mxu0 0.0
  %4852 = vmatpush1.xpose.msra.mxu0 0.0
  %4853 = vmatprep.subr.mxu0 0.0
  %4854 = vmatpush1.xpose.msra.mxu0 0.0
  %4855 = vmatprep.subr.mxu0 0.0
  %4856 = vmatpush1.xpose.msra.mxu0 0.0
  %4857 = vmatprep.subr.mxu0 0.0
  %4858 = vmatpush1.xpose.msra.mxu0 0.0
  %4859 = vmatprep.subr.mxu0 0.0
  %4860 = vmatpush1.xpose.msra.mxu0 0.0
  %4861 = vmatprep.subr.mxu0 0.0
  %4862 = vmatpush1.xpose.msra.mxu0 0.0
  %4863 = vmatprep.subr.mxu0 0.0
  %4864 = vmatpush1.xpose.msra.mxu0 0.0
  %4865 = vmatprep.subr.mxu0 0.0
  %4866 = vmatpush1.xpose.msra.mxu0 0.0
  %4867 = vmatprep.subr.mxu0 0.0
  %4868 = vmatpush1.xpose.msra.mxu0 0.0
  %4869 = vmatprep.subr.mxu0 0.0
  %4870 = vmatpush1.xpose.msra.mxu0 0.0
  %4871 = vmatprep.subr.mxu0 0.0
  %4872 = vmatpush1.xpose.msra.mxu0 0.0
  %4873 = vmatprep.subr.mxu0 0.0
  %4874 = vmatpush1.xpose.msra.mxu0 0.0
  %4875 = vmatprep.subr.mxu0 0.0
  %4876 = vmatpush1.xpose.msra.mxu0 0.0
  %4877 = vmatprep.subr.mxu0 0.0
  %4878 = vmatpush1.xpose.msra.mxu0 0.0
  %4879 = vmatprep.subr.mxu0 0.0
  %4880 = vmatpush1.xpose.msra.mxu0 %v4849
  %4881 = vmatprep.subr.mxu0 0.0
  %4882 = vmatpush1.xpose.msra.mxu0 %v4846
  %4883 = vmatprep.subr.mxu0 0.0
  %4884 = vmatpush2.xpose.msra.mxu0 0.0
  %4885 = vmatprep.subr.mxu0 0.0
  %4886 = vmatpush2.xpose.msra.mxu0 0.0
  %4887 = vmatprep.subr.mxu0 0.0
  %4888 = vmatpush2.xpose.msra.mxu0 0.0
  %4889 = vmatprep.subr.mxu0 0.0
  %4890 = vmatpush2.xpose.msra.mxu0 0.0
  %4891 = vmatprep.subr.mxu0 0.0
  %4892 = vmatpush2.xpose.msra.mxu0 0.0
  %4893 = vmatprep.subr.mxu0 0.0
  %4894 = vmatpush2.xpose.msra.mxu0 0.0
  %4895 = vmatprep.subr.mxu0 0.0
  %4896 = vmatpush2.xpose.msra.mxu0 0.0
  %4897 = vmatprep.subr.mxu0 0.0
  %4898 = vmatpush2.xpose.msra.mxu0 0.0
  %4899 = vmatprep.subr.mxu0 0.0
  %4900 = vmatpush2.xpose.msra.mxu0 0.0
  %4901 = vmatprep.subr.mxu0 0.0
  %4902 = vmatpush2.xpose.msra.mxu0 0.0
  %4903 = vmatprep.subr.mxu0 0.0
  %4904 = vmatpush2.xpose.msra.mxu0 0.0
  %4905 = vmatprep.subr.mxu0 0.0
  %4906 = vmatpush2.xpose.msra.mxu0 0.0
  %4907 = vmatprep.subr.mxu0 0.0
  %4908 = vmatpush2.xpose.msra.mxu0 0.0
  %4909 = vmatprep.subr.mxu0 0.0
  %4910 = vmatpush2.xpose.msra.mxu0 0.0
  %4911 = vmatprep.subr.mxu0 0.0
  %4912 = vmatpush2.xpose.msra.mxu0 0.0
  %4913 = vmatprep.subr.mxu0 0.0
  %4914 = vmatpush2.xpose.msra.mxu0 0.0
  %4915 = vmatprep.mubr.f32.mxu0 0.0
  %4916 = vmatmul.mubr.f32.gmra.mxu0 %v4843
  %v4917 = vpop.f32.mrf.mxu0
  %v4918 = vadd.f32 %v4677, %v4917
  %v4919 = vpop.f32.mrf.mxu0
  %4920 = vdwg.mxu0
  %v4921 = vsel %vm761, %v4918, -inf
  %4922 = vmax.xlane.f32.xlu0 %v4921
  %v4923 = vpop.xlane.xlu0 %4922
  %v4924 = vsub.f32 %v4918, %v4923
  %v4925 = vmul.f32 %v4924, 1.442695
  %v4926 = vpow.pop %v4925
  %v4927 = vsel %vm761, %v4926, 0.0
  %4928 = vadd.xlane.f32.xlu0 %v4927
  %v4929 = vpop.xlane.xlu0 %4928
  %v4930 = vrcp.pop %v4929
  %v4931 = vmul.f32 %v4926, %v4930
  %v4933 = vsel %vm761, %v4931, 0
  %4935 = vmatprep.subr.mxu0 0.0
  %4936 = vmatpush1.msra.mxu0 0.0
  %4937 = vmatprep.subr.mxu0 0.0
  %4938 = vmatpush1.msra.mxu0 0.0
  %4939 = vmatprep.subr.mxu0 0.0
  %4940 = vmatpush1.msra.mxu0 0.0
  %4941 = vmatprep.subr.mxu0 0.0
  %4942 = vmatpush1.msra.mxu0 0.0
  %4943 = vmatprep.subr.mxu0 0.0
  %4944 = vmatpush1.msra.mxu0 0.0
  %4945 = vmatprep.subr.mxu0 0.0
  %4946 = vmatpush1.msra.mxu0 0.0
  %4947 = vmatprep.subr.mxu0 0.0
  %4948 = vmatpush1.msra.mxu0 0.0
  %4949 = vmatprep.subr.mxu0 0.0
  %4950 = vmatpush1.msra.mxu0 0.0
  %4951 = vmatprep.subr.mxu0 0.0
  %4952 = vmatpush1.msra.mxu0 0.0
  %4953 = vmatprep.subr.mxu0 0.0
  %4954 = vmatpush1.msra.mxu0 0.0
  %4955 = vmatprep.subr.mxu0 0.0
  %4956 = vmatpush1.msra.mxu0 0.0
  %4957 = vmatprep.subr.mxu0 0.0
  %4958 = vmatpush1.msra.mxu0 0.0
  %4959 = vmatprep.subr.mxu0 0.0
  %4960 = vmatpush1.msra.mxu0 0.0
  %4961 = vmatprep.subr.mxu0 0.0
  %4962 = vmatpush1.msra.mxu0 0.0
  %4963 = vmatprep.subr.mxu0 0.0
  %4964 = vmatpush1.msra.mxu0 %v4191
  %4965 = vmatprep.subr.mxu0 0.0
  %4966 = vmatpush1.msra.mxu0 %v4186
  %4967 = vmatprep.subr.mxu0 0.0
  %4968 = vmatpush2.msra.mxu0 0.0
  %4969 = vmatprep.subr.mxu0 0.0
  %4970 = vmatpush2.msra.mxu0 0.0
  %4971 = vmatprep.subr.mxu0 0.0
  %4972 = vmatpush2.msra.mxu0 0.0
  %4973 = vmatprep.subr.mxu0 0.0
  %4974 = vmatpush2.msra.mxu0 0.0
  %4975 = vmatprep.subr.mxu0 0.0
  %4976 = vmatpush2.msra.mxu0 0.0
  %4977 = vmatprep.subr.mxu0 0.0
  %4978 = vmatpush2.msra.mxu0 0.0
  %4979 = vmatprep.subr.mxu0 0.0
  %4980 = vmatpush2.msra.mxu0 0.0
  %4981 = vmatprep.subr.mxu0 0.0
  %4982 = vmatpush2.msra.mxu0 0.0
  %4983 = vmatprep.subr.mxu0 0.0
  %4984 = vmatpush2.msra.mxu0 0.0
  %4985 = vmatprep.subr.mxu0 0.0
  %4986 = vmatpush2.msra.mxu0 0.0
  %4987 = vmatprep.subr.mxu0 0.0
  %4988 = vmatpush2.msra.mxu0 0.0
  %4989 = vmatprep.subr.mxu0 0.0
  %4990 = vmatpush2.msra.mxu0 0.0
  %4991 = vmatprep.subr.mxu0 0.0
  %4992 = vmatpush2.msra.mxu0 0.0
  %4993 = vmatprep.subr.mxu0 0.0
  %4994 = vmatpush2.msra.mxu0 0.0
  %4995 = vmatprep.subr.mxu0 0.0
  %4996 = vmatpush2.msra.mxu0 0.0
  %4997 = vmatprep.subr.mxu0 0.0
  %4998 = vmatpush2.msra.mxu0 0.0
  %4999 = vmatprep.mubr.f32.mxu0 0.0
  %5000 = vmatmul.mubr.f32.gmra.mxu0 %v4933
  %v5001 = vpop.f32.mrf.mxu0
  %v5002 = vadd.f32 0.0, %v5001
  %v5003 = vpop.f32.mrf.mxu0
  %5004 = vdwg.mxu0
  %v5006 = vsel %vm761, %v5002, 0
  %5008 = vmatprep.subr.mxu0 0.0
  %5009 = vmatpush1.msra.mxu0 0.0
  %5010 = vmatprep.subr.mxu0 0.0
  %5011 = vmatpush1.msra.mxu0 0.0
  %5012 = vmatprep.subr.mxu0 0.0
  %5013 = vmatpush1.msra.mxu0 0.0
  %5014 = vmatprep.subr.mxu0 0.0
  %5015 = vmatpush1.msra.mxu0 0.0
  %5016 = vmatprep.subr.mxu0 0.0
  %5017 = vmatpush1.msra.mxu0 0.0
  %5018 = vmatprep.subr.mxu0 0.0
  %5019 = vmatpush1.msra.mxu0 0.0
  %5020 = vmatprep.subr.mxu0 0.0
  %5021 = vmatpush1.msra.mxu0 0.0
  %5022 = vmatprep.subr.mxu0 0.0
  %5023 = vmatpush1.msra.mxu0 0.0
  %5024 = vmatprep.subr.mxu0 0.0
  %5025 = vmatpush1.msra.mxu0 0.0
  %5026 = vmatprep.subr.mxu0 0.0
  %5027 = vmatpush1.msra.mxu0 0.0
  %5028 = vmatprep.subr.mxu0 0.0
  %5029 = vmatpush1.msra.mxu0 0.0
  %5030 = vmatprep.subr.mxu0 0.0
  %5031 = vmatpush1.msra.mxu0 0.0
  %5032 = vmatprep.subr.mxu0 0.0
  %5033 = vmatpush1.msra.mxu0 0.0
  %5034 = vmatprep.subr.mxu0 0.0
  %5035 = vmatpush1.msra.mxu0 0.0
  %5036 = vmatprep.subr.mxu0 0.0
  %5037 = vmatpush1.msra.mxu0 %v3685
  %5038 = vmatprep.subr.mxu0 0.0
  %5039 = vmatpush1.msra.mxu0 %v3684
  %5040 = vmatprep.subr.mxu0 0.0
  %5041 = vmatpush2.msra.mxu0 0.0
  %5042 = vmatprep.subr.mxu0 0.0
  %5043 = vmatpush2.msra.mxu0 0.0
  %5044 = vmatprep.subr.mxu0 0.0
  %5045 = vmatpush2.msra.mxu0 0.0
  %5046 = vmatprep.subr.mxu0 0.0
  %5047 = vmatpush2.msra.mxu0 0.0
  %5048 = vmatprep.subr.mxu0 0.0
  %5049 = vmatpush2.msra.mxu0 0.0
  %5050 = vmatprep.subr.mxu0 0.0
  %5051 = vmatpush2.msra.mxu0 0.0
  %5052 = vmatprep.subr.mxu0 0.0
  %5053 = vmatpush2.msra.mxu0 0.0
  %5054 = vmatprep.subr.mxu0 0.0
  %5055 = vmatpush2.msra.mxu0 0.0
  %5056 = vmatprep.subr.mxu0 0.0
  %5057 = vmatpush2.msra.mxu0 0.0
  %5058 = vmatprep.subr.mxu0 0.0
  %5059 = vmatpush2.msra.mxu0 0.0
  %5060 = vmatprep.subr.mxu0 0.0
  %5061 = vmatpush2.msra.mxu0 0.0
  %5062 = vmatprep.subr.mxu0 0.0
  %5063 = vmatpush2.msra.mxu0 0.0
  %5064 = vmatprep.subr.mxu0 0.0
  %5065 = vmatpush2.msra.mxu0 0.0
  %5066 = vmatprep.subr.mxu0 0.0
  %5067 = vmatpush2.msra.mxu0 0.0
  %5068 = vmatprep.subr.mxu0 0.0
  %5069 = vmatpush2.msra.mxu0 0.0
  %5070 = vmatprep.subr.mxu0 0.0
  %5071 = vmatpush2.msra.mxu0 0.0
  %5072 = vmatprep.mubr.f32.mxu0 0.0
  %5073 = vmatmul.mubr.f32.gmra.mxu0 %v5006
  %v5074 = vpop.f32.mrf.mxu0
  %v5075 = vadd.f32 0.0, %v5074
  %v5076 = vpop.f32.mrf.mxu0
  %5077 = vdwg.mxu0
  %v5079 = vsel %vm761, %v4839, 0
  %5081 = vmatprep.subr.mxu0 0.0
  %5082 = vmatpush1.msra.mxu0 0.0
  %5083 = vmatprep.subr.mxu0 0.0
  %5084 = vmatpush1.msra.mxu0 0.0
  %5085 = vmatprep.subr.mxu0 0.0
  %5086 = vmatpush1.msra.mxu0 0.0
  %5087 = vmatprep.subr.mxu0 0.0
  %5088 = vmatpush1.msra.mxu0 0.0
  %5089 = vmatprep.subr.mxu0 0.0
  %5090 = vmatpush1.msra.mxu0 0.0
  %5091 = vmatprep.subr.mxu0 0.0
  %5092 = vmatpush1.msra.mxu0 0.0
  %5093 = vmatprep.subr.mxu0 0.0
  %5094 = vmatpush1.msra.mxu0 0.0
  %5095 = vmatprep.subr.mxu0 0.0
  %5096 = vmatpush1.msra.mxu0 0.0
  %5097 = vmatprep.subr.mxu0 0.0
  %5098 = vmatpush1.msra.mxu0 0.0
  %5099 = vmatprep.subr.mxu0 0.0
  %5100 = vmatpush1.msra.mxu0 0.0
  %5101 = vmatprep.subr.mxu0 0.0
  %5102 = vmatpush1.msra.mxu0 0.0
  %5103 = vmatprep.subr.mxu0 0.0
  %5104 = vmatpush1.msra.mxu0 0.0
  %5105 = vmatprep.subr.mxu0 0.0
  %5106 = vmatpush1.msra.mxu0 0.0
  %5107 = vmatprep.subr.mxu0 0.0
  %5108 = vmatpush1.msra.mxu0 0.0
  %5109 = vmatprep.subr.mxu0 0.0
  %5110 = vmatpush1.msra.mxu0 %v3683
  %5111 = vmatprep.subr.mxu0 0.0
  %5112 = vmatpush1.msra.mxu0 %v3682
  %5113 = vmatprep.subr.mxu0 0.0
  %5114 = vmatpush2.msra.mxu0 0.0
  %5115 = vmatprep.subr.mxu0 0.0
  %5116 = vmatpush2.msra.mxu0 0.0
  %5117 = vmatprep.subr.mxu0 0.0
  %5118 = vmatpush2.msra.mxu0 0.0
  %5119 = vmatprep.subr.mxu0 0.0
  %5120 = vmatpush2.msra.mxu0 0.0
  %5121 = vmatprep.subr.mxu0 0.0
  %5122 = vmatpush2.msra.mxu0 0.0
  %5123 = vmatprep.subr.mxu0 0.0
  %5124 = vmatpush2.msra.mxu0 0.0
  %5125 = vmatprep.subr.mxu0 0.0
  %5126 = vmatpush2.msra.mxu0 0.0
  %5127 = vmatprep.subr.mxu0 0.0
  %5128 = vmatpush2.msra.mxu0 0.0
  %5129 = vmatprep.subr.mxu0 0.0
  %5130 = vmatpush2.msra.mxu0 0.0
  %5131 = vmatprep.subr.mxu0 0.0
  %5132 = vmatpush2.msra.mxu0 0.0
  %5133 = vmatprep.subr.mxu0 0.0
  %5134 = vmatpush2.msra.mxu0 0.0
  %5135 = vmatprep.subr.mxu0 0.0
  %5136 = vmatpush2.msra.mxu0 0.0
  %5137 = vmatprep.subr.mxu0 0.0
  %5138 = vmatpush2.msra.mxu0 0.0
  %5139 = vmatprep.subr.mxu0 0.0
  %5140 = vmatpush2.msra.mxu0 0.0
  %5141 = vmatprep.subr.mxu0 0.0
  %5142 = vmatpush2.msra.mxu0 0.0
  %5143 = vmatprep.subr.mxu0 0.0
  %5144 = vmatpush2.msra.mxu0 0.0
  %5145 = vmatprep.mubr.f32.mxu0 0.0
  %5146 = vmatmul.mubr.f32.gmra.mxu0 %v5079
  %v5147 = vpop.f32.mrf.mxu0
  %v5148 = vadd.f32 %v5075, %v5147
  %v5149 = vpop.f32.mrf.mxu0
  %5150 = vdwg.mxu0
  %5151 = vst.msk [vmem:[#allocation3 + $0x8] sm:$0xff] %vm165, %v5148
  %v5152 = vld [vmem:[#allocation3] sm:$0xff]
  %v5153 = vld [vmem:[#allocation3 + $0x8] sm:$0xff]
  %v5154 = vadd.f32 %v3631, %v5152
  %v5155 = vadd.f32 %v3632, %v5153
  %v5156 = vld [vmem:[%s53] sm:$0x1]
  %v5157 = vmul.f32 %v5154, %v5154
  %v5158 = vmul.f32 %v5155, %v5155
  %v5159 = vsel %vm165, %v5157, 0.0
  %5160 = vadd.xlane.f32.xlu0 %v5159
  %v5161 = vpop.xlane.xlu0 %5160
  %v5162 = vsel %vm165, %v5158, 0.0
  %5163 = vadd.xlane.f32.xlu0 %v5162
  %v5164 = vpop.xlane.xlu0 %5163
  %v5165 = vmul.f32 %v5161, %v178
  %v5166 = vmul.f32 %v5164, %v178
  %v5167 = vadd.f32 %v5165, 1e-06
  %v5168 = vadd.f32 %v5166, 1e-06
  %v5169 = vrsqrt.pop %v5167
  %v5170 = vrsqrt.pop %v5168
  %v5171 = vmul.f32 %v5154, %v5169
  %v5172 = vmul.f32 %v5155, %v5170
  %v5174 = vlaneseq
  %v5175 = vshrl.u32 %v5174, 7
  %v5176 = vsub.s32 0, %v5175
  %v5177 = vrot.slane %v5156, %v5176
  %v5179 = vmul.f32 %v5171, %v5177
  %v5180 = vmul.f32 %v5172, %v5177
  %v5181 = vld [vmem:[%s55] sm:$0xff]
  %v5182 = vld [vmem:[%s55 + $0x8] sm:$0xff]
  %v5183 = vld [vmem:[%s55 + $0x10] sm:$0xff]
  %v5184 = vld [vmem:[%s55 + $0x18] sm:$0xff]
  %v5186 = vsel %vm165, %v5179, 0
  %v5189 = vsel %vm165, %v5180, 0
  %5191 = vmatprep.subr.mxu0 0.0
  %5192 = vmatpush1.msra.mxu0 0.0
  %5193 = vmatprep.subr.mxu0 0.0
  %5194 = vmatpush1.msra.mxu0 0.0
  %5195 = vmatprep.subr.mxu0 0.0
  %5196 = vmatpush1.msra.mxu0 0.0
  %5197 = vmatprep.subr.mxu0 0.0
  %5198 = vmatpush1.msra.mxu0 0.0
  %5199 = vmatprep.subr.mxu0 0.0
  %5200 = vmatpush1.msra.mxu0 0.0
  %5201 = vmatprep.subr.mxu0 0.0
  %5202 = vmatpush1.msra.mxu0 0.0
  %5203 = vmatprep.subr.mxu0 0.0
  %5204 = vmatpush1.msra.mxu0 0.0
  %5205 = vmatprep.subr.mxu0 0.0
  %5206 = vmatpush1.msra.mxu0 0.0
  %5207 = vmatprep.subr.mxu0 0.0
  %5208 = vmatpush1.msra.mxu0 0.0
  %5209 = vmatprep.subr.mxu0 0.0
  %5210 = vmatpush1.msra.mxu0 0.0
  %5211 = vmatprep.subr.mxu0 0.0
  %5212 = vmatpush1.msra.mxu0 0.0
  %5213 = vmatprep.subr.mxu0 0.0
  %5214 = vmatpush1.msra.mxu0 0.0
  %5215 = vmatprep.subr.mxu0 0.0
  %5216 = vmatpush1.msra.mxu0 %v5184
  %5217 = vmatprep.subr.mxu0 0.0
  %5218 = vmatpush1.msra.mxu0 %v5183
  %5219 = vmatprep.subr.mxu0 0.0
  %5220 = vmatpush1.msra.mxu0 %v5182
  %5221 = vmatprep.subr.mxu0 0.0
  %5222 = vmatpush1.msra.mxu0 %v5181
  %5223 = vmatprep.subr.mxu0 0.0
  %5224 = vmatpush2.msra.mxu0 0.0
  %5225 = vmatprep.subr.mxu0 0.0
  %5226 = vmatpush2.msra.mxu0 0.0
  %5227 = vmatprep.subr.mxu0 0.0
  %5228 = vmatpush2.msra.mxu0 0.0
  %5229 = vmatprep.subr.mxu0 0.0
  %5230 = vmatpush2.msra.mxu0 0.0
  %5231 = vmatprep.subr.mxu0 0.0
  %5232 = vmatpush2.msra.mxu0 0.0
  %5233 = vmatprep.subr.mxu0 0.0
  %5234 = vmatpush2.msra.mxu0 0.0
  %5235 = vmatprep.subr.mxu0 0.0
  %5236 = vmatpush2.msra.mxu0 0.0
  %5237 = vmatprep.subr.mxu0 0.0
  %5238 = vmatpush2.msra.mxu0 0.0
  %5239 = vmatprep.subr.mxu0 0.0
  %5240 = vmatpush2.msra.mxu0 0.0
  %5241 = vmatprep.subr.mxu0 0.0
  %5242 = vmatpush2.msra.mxu0 0.0
  %5243 = vmatprep.subr.mxu0 0.0
  %5244 = vmatpush2.msra.mxu0 0.0
  %5245 = vmatprep.subr.mxu0 0.0
  %5246 = vmatpush2.msra.mxu0 0.0
  %5247 = vmatprep.subr.mxu0 0.0
  %5248 = vmatpush2.msra.mxu0 0.0
  %5249 = vmatprep.subr.mxu0 0.0
  %5250 = vmatpush2.msra.mxu0 0.0
  %5251 = vmatprep.subr.mxu0 0.0
  %5252 = vmatpush2.msra.mxu0 0.0
  %5253 = vmatprep.subr.mxu0 0.0
  %5254 = vmatpush2.msra.mxu0 0.0
  %5255 = vmatprep.mubr.f32.mxu0 0.0
  %5256 = vmatmul.mubr.f32.gmra.mxu0 %v5186
  %v5257 = vpop.f32.mrf.mxu0
  %v5258 = vadd.f32 0.0, %v5257
  %v5259 = vpop.f32.mrf.mxu0
  %5260 = vmatprep.mubr.f32.mxu0 0.0
  %5261 = vmatmul.mubr.f32.gmra.mxu0 %v5189
  %v5262 = vpop.f32.mrf.mxu0
  %v5263 = vadd.f32 0.0, %v5262
  %v5264 = vpop.f32.mrf.mxu0
  %5265 = vdwg.mxu0
  %v5266 = vmax.f32 %v5258, 0.0
  %v5267 = vmax.f32 %v5263, 0.0
  %v5268 = vld [vmem:[%s57] sm:$0xff]
  %v5269 = vld [vmem:[%s57 + $0x8] sm:$0xff]
  %v5270 = vld [vmem:[%s57 + $0x10] sm:$0xff]
  %v5271 = vld [vmem:[%s57 + $0x18] sm:$0xff]
  %v5272 = vld [vmem:[%s57 + $0x20] sm:$0xff]
  %v5273 = vld [vmem:[%s57 + $0x28] sm:$0xff]
  %v5274 = vld [vmem:[%s57 + $0x30] sm:$0xff]
  %v5275 = vld [vmem:[%s57 + $0x38] sm:$0xff]
  %v5277 = vsel %vm2028, %v5266, 0
  %v5280 = vsel %vm2028, %v5267, 0
  %5282 = vmatprep.subr.mxu0 0.0
  %5283 = vmatpush1.msra.mxu0 0.0
  %5284 = vmatprep.subr.mxu0 0.0
  %5285 = vmatpush1.msra.mxu0 0.0
  %5286 = vmatprep.subr.mxu0 0.0
  %5287 = vmatpush1.msra.mxu0 0.0
  %5288 = vmatprep.subr.mxu0 0.0
  %5289 = vmatpush1.msra.mxu0 0.0
  %5290 = vmatprep.subr.mxu0 0.0
  %5291 = vmatpush1.msra.mxu0 0.0
  %5292 = vmatprep.subr.mxu0 0.0
  %5293 = vmatpush1.msra.mxu0 0.0
  %5294 = vmatprep.subr.mxu0 0.0
  %5295 = vmatpush1.msra.mxu0 0.0
  %5296 = vmatprep.subr.mxu0 0.0
  %5297 = vmatpush1.msra.mxu0 0.0
  %5298 = vmatprep.subr.mxu0 0.0
  %5299 = vmatpush1.msra.mxu0 %v5275
  %5300 = vmatprep.subr.mxu0 0.0
  %5301 = vmatpush1.msra.mxu0 %v5274
  %5302 = vmatprep.subr.mxu0 0.0
  %5303 = vmatpush1.msra.mxu0 %v5273
  %5304 = vmatprep.subr.mxu0 0.0
  %5305 = vmatpush1.msra.mxu0 %v5272
  %5306 = vmatprep.subr.mxu0 0.0
  %5307 = vmatpush1.msra.mxu0 %v5271
  %5308 = vmatprep.subr.mxu0 0.0
  %5309 = vmatpush1.msra.mxu0 %v5270
  %5310 = vmatprep.subr.mxu0 0.0
  %5311 = vmatpush1.msra.mxu0 %v5269
  %5312 = vmatprep.subr.mxu0 0.0
  %5313 = vmatpush1.msra.mxu0 %v5268
  %5314 = vmatprep.subr.mxu0 0.0
  %5315 = vmatpush2.msra.mxu0 0.0
  %5316 = vmatprep.subr.mxu0 0.0
  %5317 = vmatpush2.msra.mxu0 0.0
  %5318 = vmatprep.subr.mxu0 0.0
  %5319 = vmatpush2.msra.mxu0 0.0
  %5320 = vmatprep.subr.mxu0 0.0
  %5321 = vmatpush2.msra.mxu0 0.0
  %5322 = vmatprep.subr.mxu0 0.0
  %5323 = vmatpush2.msra.mxu0 0.0
  %5324 = vmatprep.subr.mxu0 0.0
  %5325 = vmatpush2.msra.mxu0 0.0
  %5326 = vmatprep.subr.mxu0 0.0
  %5327 = vmatpush2.msra.mxu0 0.0
  %5328 = vmatprep.subr.mxu0 0.0
  %5329 = vmatpush2.msra.mxu0 0.0
  %5330 = vmatprep.subr.mxu0 0.0
  %5331 = vmatpush2.msra.mxu0 0.0
  %5332 = vmatprep.subr.mxu0 0.0
  %5333 = vmatpush2.msra.mxu0 0.0
  %5334 = vmatprep.subr.mxu0 0.0
  %5335 = vmatpush2.msra.mxu0 0.0
  %5336 = vmatprep.subr.mxu0 0.0
  %5337 = vmatpush2.msra.mxu0 0.0
  %5338 = vmatprep.subr.mxu0 0.0
  %5339 = vmatpush2.msra.mxu0 0.0
  %5340 = vmatprep.subr.mxu0 0.0
  %5341 = vmatpush2.msra.mxu0 0.0
  %5342 = vmatprep.subr.mxu0 0.0
  %5343 = vmatpush2.msra.mxu0 0.0
  %5344 = vmatprep.subr.mxu0 0.0
  %5345 = vmatpush2.msra.mxu0 0.0
  %5346 = vmatprep.mubr.f32.mxu0 0.0
  %5347 = vmatmul.mubr.f32.gmra.mxu0 %v5277
  %v5348 = vpop.f32.mrf.mxu0
  %v5349 = vadd.f32 0.0, %v5348
  %v5350 = vpop.f32.mrf.mxu0
  %5351 = vmatprep.mubr.f32.mxu0 0.0
  %5352 = vmatmul.mubr.f32.gmra.mxu0 %v5280
  %v5353 = vpop.f32.mrf.mxu0
  %v5354 = vadd.f32 0.0, %v5353
  %v5355 = vpop.f32.mrf.mxu0
  %5356 = vdwg.mxu0
  %v5357 = vadd.f32 %v5154, %v5349
  %v5358 = vadd.f32 %v5155, %v5354
  %v5359 = vld [vmem:[%s59] sm:$0x1]
  %v5360 = vmul.f32 %v5357, %v5357
  %v5361 = vmul.f32 %v5358, %v5358
  %v5362 = vsel %vm165, %v5360, 0.0
  %5363 = vadd.xlane.f32.xlu0 %v5362
  %v5364 = vpop.xlane.xlu0 %5363
  %v5365 = vsel %vm165, %v5361, 0.0
  %5366 = vadd.xlane.f32.xlu0 %v5365
  %v5367 = vpop.xlane.xlu0 %5366
  %v5368 = vmul.f32 %v5364, %v178
  %v5369 = vmul.f32 %v5367, %v178
  %v5370 = vadd.f32 %v5368, 1e-06
  %v5371 = vadd.f32 %v5369, 1e-06
  %v5372 = vrsqrt.pop %v5370
  %v5373 = vrsqrt.pop %v5371
  %v5374 = vmul.f32 %v5357, %v5372
  %v5375 = vmul.f32 %v5358, %v5373
  %v5377 = vlaneseq
  %v5378 = vshrl.u32 %v5377, 7
  %v5379 = vsub.s32 0, %v5378
  %v5380 = vrot.slane %v5359, %v5379
  %v5382 = vmul.f32 %v5374, %v5380
  %v5383 = vmul.f32 %v5375, %v5380
  %v5384 = vmul.f32 %v5382, 0.17677669
  %v5385 = vmul.f32 %v5383, 0.17677669
  %v5386 = vld [vmem:[%s61] sm:$0xff]
  %v5387 = vld [vmem:[%s61 + $0x8] sm:$0xff]
  %v5388 = vld [vmem:[%s63] sm:$0xff]
  %v5389 = vld [vmem:[%s63 + $0x8] sm:$0xff]
  %v5390 = vld [vmem:[%s63 + $0x10] sm:$0xff]
  %v5391 = vld [vmem:[%s63 + $0x18] sm:$0xff]
  %v5392 = vld [vmem:[%s65] sm:$0xff]
  %v5393 = vld [vmem:[%s65 + $0x8] sm:$0xff]
  %v5394 = vld [vmem:[%s65 + $0x10] sm:$0xff]
  %v5395 = vld [vmem:[%s65 + $0x18] sm:$0xff]
  %v5397 = vsel %vm165, %v5386, 0
  %v5400 = vsel %vm165, %v5387, 0
  %5402 = vmatprep.subr.mxu0 0.0
  %5403 = vmatpush1.msra.mxu0 0.0
  %5404 = vmatprep.subr.mxu0 0.0
  %5405 = vmatpush1.msra.mxu0 0.0
  %5406 = vmatprep.subr.mxu0 0.0
  %5407 = vmatpush1.msra.mxu0 0.0
  %5408 = vmatprep.subr.mxu0 0.0
  %5409 = vmatpush1.msra.mxu0 0.0
  %5410 = vmatprep.subr.mxu0 0.0
  %5411 = vmatpush1.msra.mxu0 0.0
  %5412 = vmatprep.subr.mxu0 0.0
  %5413 = vmatpush1.msra.mxu0 0.0
  %5414 = vmatprep.subr.mxu0 0.0
  %5415 = vmatpush1.msra.mxu0 0.0
  %5416 = vmatprep.subr.mxu0 0.0
  %5417 = vmatpush1.msra.mxu0 0.0
  %5418 = vmatprep.subr.mxu0 0.0
  %5419 = vmatpush1.msra.mxu0 0.0
  %5420 = vmatprep.subr.mxu0 0.0
  %5421 = vmatpush1.msra.mxu0 0.0
  %5422 = vmatprep.subr.mxu0 0.0
  %5423 = vmatpush1.msra.mxu0 0.0
  %5424 = vmatprep.subr.mxu0 0.0
  %5425 = vmatpush1.msra.mxu0 0.0
  %5426 = vmatprep.subr.mxu0 0.0
  %5427 = vmatpush1.msra.mxu0 %v5395
  %5428 = vmatprep.subr.mxu0 0.0
  %5429 = vmatpush1.msra.mxu0 %v5394
  %5430 = vmatprep.subr.mxu0 0.0
  %5431 = vmatpush1.msra.mxu0 %v5393
  %5432 = vmatprep.subr.mxu0 0.0
  %5433 = vmatpush1.msra.mxu0 %v5392
  %5434 = vmatprep.subr.mxu0 0.0
  %5435 = vmatpush2.msra.mxu0 0.0
  %5436 = vmatprep.subr.mxu0 0.0
  %5437 = vmatpush2.msra.mxu0 0.0
  %5438 = vmatprep.subr.mxu0 0.0
  %5439 = vmatpush2.msra.mxu0 0.0
  %5440 = vmatprep.subr.mxu0 0.0
  %5441 = vmatpush2.msra.mxu0 0.0
  %5442 = vmatprep.subr.mxu0 0.0
  %5443 = vmatpush2.msra.mxu0 0.0
  %5444 = vmatprep.subr.mxu0 0.0
  %5445 = vmatpush2.msra.mxu0 0.0
  %5446 = vmatprep.subr.mxu0 0.0
  %5447 = vmatpush2.msra.mxu0 0.0
  %5448 = vmatprep.subr.mxu0 0.0
  %5449 = vmatpush2.msra.mxu0 0.0
  %5450 = vmatprep.subr.mxu0 0.0
  %5451 = vmatpush2.msra.mxu0 0.0
  %5452 = vmatprep.subr.mxu0 0.0
  %5453 = vmatpush2.msra.mxu0 0.0
  %5454 = vmatprep.subr.mxu0 0.0
  %5455 = vmatpush2.msra.mxu0 0.0
  %5456 = vmatprep.subr.mxu0 0.0
  %5457 = vmatpush2.msra.mxu0 0.0
  %5458 = vmatprep.subr.mxu0 0.0
  %5459 = vmatpush2.msra.mxu0 0.0
  %5460 = vmatprep.subr.mxu0 0.0
  %5461 = vmatpush2.msra.mxu0 0.0
  %5462 = vmatprep.subr.mxu0 0.0
  %5463 = vmatpush2.msra.mxu0 0.0
  %5464 = vmatprep.subr.mxu0 0.0
  %5465 = vmatpush2.msra.mxu0 0.0
  %5466 = vmatprep.mubr.f32.mxu0 0.0
  %5467 = vmatmul.mubr.f32.gmra.mxu0 %v5397
  %v5468 = vpop.f32.mrf.mxu0
  %v5469 = vadd.f32 0.0, %v5468
  %v5470 = vpop.f32.mrf.mxu0
  %5471 = vmatprep.mubr.f32.mxu0 0.0
  %5472 = vmatmul.mubr.f32.gmra.mxu0 %v5400
  %v5473 = vpop.f32.mrf.mxu0
  %v5474 = vadd.f32 0.0, %v5473
  %v5475 = vpop.f32.mrf.mxu0
  %5476 = vdwg.mxu0
  %v5478 = vsel %vm165, %v5384, 0
  %v5481 = vsel %vm165, %v5385, 0
  %5483 = vmatprep.subr.mxu0 0.0
  %5484 = vmatpush1.msra.mxu0 0.0
  %5485 = vmatprep.subr.mxu0 0.0
  %5486 = vmatpush1.msra.mxu0 0.0
  %5487 = vmatprep.subr.mxu0 0.0
  %5488 = vmatpush1.msra.mxu0 0.0
  %5489 = vmatprep.subr.mxu0 0.0
  %5490 = vmatpush1.msra.mxu0 0.0
  %5491 = vmatprep.subr.mxu0 0.0
  %5492 = vmatpush1.msra.mxu0 0.0
  %5493 = vmatprep.subr.mxu0 0.0
  %5494 = vmatpush1.msra.mxu0 0.0
  %5495 = vmatprep.subr.mxu0 0.0
  %5496 = vmatpush1.msra.mxu0 0.0
  %5497 = vmatprep.subr.mxu0 0.0
  %5498 = vmatpush1.msra.mxu0 0.0
  %5499 = vmatprep.subr.mxu0 0.0
  %5500 = vmatpush1.msra.mxu0 0.0
  %5501 = vmatprep.subr.mxu0 0.0
  %5502 = vmatpush1.msra.mxu0 0.0
  %5503 = vmatprep.subr.mxu0 0.0
  %5504 = vmatpush1.msra.mxu0 0.0
  %5505 = vmatprep.subr.mxu0 0.0
  %5506 = vmatpush1.msra.mxu0 0.0
  %5507 = vmatprep.subr.mxu0 0.0
  %5508 = vmatpush1.msra.mxu0 %v5391
  %5509 = vmatprep.subr.mxu0 0.0
  %5510 = vmatpush1.msra.mxu0 %v5390
  %5511 = vmatprep.subr.mxu0 0.0
  %5512 = vmatpush1.msra.mxu0 %v5389
  %5513 = vmatprep.subr.mxu0 0.0
  %5514 = vmatpush1.msra.mxu0 %v5388
  %5515 = vmatprep.subr.mxu0 0.0
  %5516 = vmatpush2.msra.mxu0 0.0
  %5517 = vmatprep.subr.mxu0 0.0
  %5518 = vmatpush2.msra.mxu0 0.0
  %5519 = vmatprep.subr.mxu0 0.0
  %5520 = vmatpush2.msra.mxu0 0.0
  %5521 = vmatprep.subr.mxu0 0.0
  %5522 = vmatpush2.msra.mxu0 0.0
  %5523 = vmatprep.subr.mxu0 0.0
  %5524 = vmatpush2.msra.mxu0 0.0
  %5525 = vmatprep.subr.mxu0 0.0
  %5526 = vmatpush2.msra.mxu0 0.0
  %5527 = vmatprep.subr.mxu0 0.0
  %5528 = vmatpush2.msra.mxu0 0.0
  %5529 = vmatprep.subr.mxu0 0.0
  %5530 = vmatpush2.msra.mxu0 0.0
  %5531 = vmatprep.subr.mxu0 0.0
  %5532 = vmatpush2.msra.mxu0 0.0
  %5533 = vmatprep.subr.mxu0 0.0
  %5534 = vmatpush2.msra.mxu0 0.0
  %5535 = vmatprep.subr.mxu0 0.0
  %5536 = vmatpush2.msra.mxu0 0.0
  %5537 = vmatprep.subr.mxu0 0.0
  %5538 = vmatpush2.msra.mxu0 0.0
  %5539 = vmatprep.subr.mxu0 0.0
  %5540 = vmatpush2.msra.mxu0 0.0
  %5541 = vmatprep.subr.mxu0 0.0
  %5542 = vmatpush2.msra.mxu0 0.0
  %5543 = vmatprep.subr.mxu0 0.0
  %5544 = vmatpush2.msra.mxu0 0.0
  %5545 = vmatprep.subr.mxu0 0.0
  %5546 = vmatpush2.msra.mxu0 0.0
  %5547 = vmatprep.mubr.f32.mxu0 0.0
  %5548 = vmatmul.mubr.f32.gmra.mxu0 %v5478
  %v5549 = vpop.f32.mrf.mxu0
  %v5550 = vadd.f32 %v5469, %v5549
  %v5551 = vpop.f32.mrf.mxu0
  %5552 = vmatprep.mubr.f32.mxu0 0.0
  %5553 = vmatmul.mubr.f32.gmra.mxu0 %v5481
  %v5554 = vpop.f32.mrf.mxu0
  %v5555 = vadd.f32 %v5474, %v5554
  %v5556 = vpop.f32.mrf.mxu0
  %5557 = vdwg.mxu0
  %v5558 = vld [vmem:[%s67] sm:$0x1]
  %v5560 = vlaneseq
  %v5561 = vshrl.u32 %v5560, 7
  %v5562 = vsub.s32 0, %v5561
  %v5563 = vrot.slane %v5558, %v5562
  %v5565 = vadd.f32 %v5550, %v5563
  %v5566 = vadd.f32 %v5555, %v5563
  %v5567 = vmax.f32 %v5565, 0.0
  %v5568 = vmax.f32 %v5566, 0.0
  %v5569 = vld [vmem:[%s69] sm:$0xff]
  %v5570 = vld [vmem:[%s69 + $0x8] sm:$0xff]
  %v5571 = vld [vmem:[%s69 + $0x10] sm:$0xff]
  %v5572 = vld [vmem:[%s69 + $0x18] sm:$0xff]
  %v5573 = vld [vmem:[%s69 + $0x20] sm:$0xff]
  %v5574 = vld [vmem:[%s69 + $0x28] sm:$0xff]
  %v5575 = vld [vmem:[%s69 + $0x30] sm:$0xff]
  %v5576 = vld [vmem:[%s69 + $0x38] sm:$0xff]
  %v5578 = vsel %vm165, %v5569, 0
  %v5581 = vsel %vm165, %v5570, 0
  %v5584 = vsel %vm165, %v5571, 0
  %v5587 = vsel %vm165, %v5572, 0
  %v5590 = vsel %vm165, %v5573, 0
  %v5593 = vsel %vm165, %v5574, 0
  %v5596 = vsel %vm165, %v5575, 0
  %v5599 = vsel %vm165, %v5576, 0
  %5601 = vmatprep.subr.mxu0 0.0
  %5602 = vmatpush1.xpose.msra.mxu0 0.0
  %5603 = vmatprep.subr.mxu0 0.0
  %5604 = vmatpush1.xpose.msra.mxu0 0.0
  %5605 = vmatprep.subr.mxu0 0.0
  %5606 = vmatpush1.xpose.msra.mxu0 0.0
  %5607 = vmatprep.subr.mxu0 0.0
  %5608 = vmatpush1.xpose.msra.mxu0 0.0
  %5609 = vmatprep.subr.mxu0 0.0
  %5610 = vmatpush1.xpose.msra.mxu0 0.0
  %5611 = vmatprep.subr.mxu0 0.0
  %5612 = vmatpush1.xpose.msra.mxu0 0.0
  %5613 = vmatprep.subr.mxu0 0.0
  %5614 = vmatpush1.xpose.msra.mxu0 0.0
  %5615 = vmatprep.subr.mxu0 0.0
  %5616 = vmatpush1.xpose.msra.mxu0 0.0
  %5617 = vmatprep.subr.mxu0 0.0
  %5618 = vmatpush1.xpose.msra.mxu0 %v5599
  %5619 = vmatprep.subr.mxu0 0.0
  %5620 = vmatpush1.xpose.msra.mxu0 %v5596
  %5621 = vmatprep.subr.mxu0 0.0
  %5622 = vmatpush1.xpose.msra.mxu0 %v5593
  %5623 = vmatprep.subr.mxu0 0.0
  %5624 = vmatpush1.xpose.msra.mxu0 %v5590
  %5625 = vmatprep.subr.mxu0 0.0
  %5626 = vmatpush1.xpose.msra.mxu0 %v5587
  %5627 = vmatprep.subr.mxu0 0.0
  %5628 = vmatpush1.xpose.msra.mxu0 %v5584
  %5629 = vmatprep.subr.mxu0 0.0
  %5630 = vmatpush1.xpose.msra.mxu0 %v5581
  %5631 = vmatprep.subr.mxu0 0.0
  %5632 = vmatpush1.xpose.msra.mxu0 %v5578
  %5633 = vmatprep.subr.mxu0 0.0
  %5634 = vmatpush2.xpose.msra.mxu0 0.0
  %5635 = vmatprep.subr.mxu0 0.0
  %5636 = vmatpush2.xpose.msra.mxu0 0.0
  %5637 = vmatprep.subr.mxu0 0.0
  %5638 = vmatpush2.xpose.msra.mxu0 0.0
  %5639 = vmatprep.subr.mxu0 0.0
  %5640 = vmatpush2.xpose.msra.mxu0 0.0
  %5641 = vmatprep.subr.mxu0 0.0
  %5642 = vmatpush2.xpose.msra.mxu0 0.0
  %5643 = vmatprep.subr.mxu0 0.0
  %5644 = vmatpush2.xpose.msra.mxu0 0.0
  %5645 = vmatprep.subr.mxu0 0.0
  %5646 = vmatpush2.xpose.msra.mxu0 0.0
  %5647 = vmatprep.subr.mxu0 0.0
  %5648 = vmatpush2.xpose.msra.mxu0 0.0
  %5649 = vmatprep.subr.mxu0 0.0
  %5650 = vmatpush2.xpose.msra.mxu0 0.0
  %5651 = vmatprep.subr.mxu0 0.0
  %5652 = vmatpush2.xpose.msra.mxu0 0.0
  %5653 = vmatprep.subr.mxu0 0.0
  %5654 = vmatpush2.xpose.msra.mxu0 0.0
  %5655 = vmatprep.subr.mxu0 0.0
  %5656 = vmatpush2.xpose.msra.mxu0 0.0
  %5657 = vmatprep.subr.mxu0 0.0
  %5658 = vmatpush2.xpose.msra.mxu0 0.0
  %5659 = vmatprep.subr.mxu0 0.0
  %5660 = vmatpush2.xpose.msra.mxu0 0.0
  %5661 = vmatprep.subr.mxu0 0.0
  %5662 = vmatpush2.xpose.msra.mxu0 0.0
  %5663 = vmatprep.subr.mxu0 0.0
  %5664 = vmatpush2.xpose.msra.mxu0 0.0
  %5665 = vmatprep.mubr.f32.mxu0 0.0
  %5666 = vmatmul.mubr.f32.gmra.mxu0 %v5478
  %v5667 = vpop.f32.mrf.mxu0
  %v5668 = vadd.f32 0.0, %v5667
  %v5669 = vpop.f32.mrf.mxu0
  %5670 = vmatprep.mubr.f32.mxu0 0.0
  %5671 = vmatmul.mubr.f32.gmra.mxu0 %v5481
  %v5672 = vpop.f32.mrf.mxu0
  %v5673 = vadd.f32 0.0, %v5672
  %v5674 = vpop.f32.mrf.mxu0
  %5675 = vdwg.mxu0
  %v5677 = vsel %vm165, %v5567, 0
  %v5680 = vsel %vm165, %v5568, 0
  %5682 = vmatprep.subr.mxu0 0.0
  %5683 = vmatpush1.xpose.msra.mxu0 0.0
  %5684 = vmatprep.subr.mxu0 0.0
  %5685 = vmatpush1.xpose.msra.mxu0 0.0
  %5686 = vmatprep.subr.mxu0 0.0
  %5687 = vmatpush1.xpose.msra.mxu0 0.0
  %5688 = vmatprep.subr.mxu0 0.0
  %5689 = vmatpush1.xpose.msra.mxu0 0.0
  %5690 = vmatprep.subr.mxu0 0.0
  %5691 = vmatpush1.xpose.msra.mxu0 0.0
  %5692 = vmatprep.subr.mxu0 0.0
  %5693 = vmatpush1.xpose.msra.mxu0 0.0
  %5694 = vmatprep.subr.mxu0 0.0
  %5695 = vmatpush1.xpose.msra.mxu0 0.0
  %5696 = vmatprep.subr.mxu0 0.0
  %5697 = vmatpush1.xpose.msra.mxu0 0.0
  %5698 = vmatprep.subr.mxu0 0.0
  %5699 = vmatpush1.xpose.msra.mxu0 %v5599
  %5700 = vmatprep.subr.mxu0 0.0
  %5701 = vmatpush1.xpose.msra.mxu0 %v5596
  %5702 = vmatprep.subr.mxu0 0.0
  %5703 = vmatpush1.xpose.msra.mxu0 %v5593
  %5704 = vmatprep.subr.mxu0 0.0
  %5705 = vmatpush1.xpose.msra.mxu0 %v5590
  %5706 = vmatprep.subr.mxu0 0.0
  %5707 = vmatpush1.xpose.msra.mxu0 %v5587
  %5708 = vmatprep.subr.mxu0 0.0
  %5709 = vmatpush1.xpose.msra.mxu0 %v5584
  %5710 = vmatprep.subr.mxu0 0.0
  %5711 = vmatpush1.xpose.msra.mxu0 %v5581
  %5712 = vmatprep.subr.mxu0 0.0
  %5713 = vmatpush1.xpose.msra.mxu0 %v5578
  %5714 = vmatprep.subr.mxu0 0.0
  %5715 = vmatpush2.xpose.msra.mxu0 0.0
  %5716 = vmatprep.subr.mxu0 0.0
  %5717 = vmatpush2.xpose.msra.mxu0 0.0
  %5718 = vmatprep.subr.mxu0 0.0
  %5719 = vmatpush2.xpose.msra.mxu0 0.0
  %5720 = vmatprep.subr.mxu0 0.0
  %5721 = vmatpush2.xpose.msra.mxu0 0.0
  %5722 = vmatprep.subr.mxu0 0.0
  %5723 = vmatpush2.xpose.msra.mxu0 0.0
  %5724 = vmatprep.subr.mxu0 0.0
  %5725 = vmatpush2.xpose.msra.mxu0 0.0
  %5726 = vmatprep.subr.mxu0 0.0
  %5727 = vmatpush2.xpose.msra.mxu0 0.0
  %5728 = vmatprep.subr.mxu0 0.0
  %5729 = vmatpush2.xpose.msra.mxu0 0.0
  %5730 = vmatprep.subr.mxu0 0.0
  %5731 = vmatpush2.xpose.msra.mxu0 0.0
  %5732 = vmatprep.subr.mxu0 0.0
  %5733 = vmatpush2.xpose.msra.mxu0 0.0
  %5734 = vmatprep.subr.mxu0 0.0
  %5735 = vmatpush2.xpose.msra.mxu0 0.0
  %5736 = vmatprep.subr.mxu0 0.0
  %5737 = vmatpush2.xpose.msra.mxu0 0.0
  %5738 = vmatprep.subr.mxu0 0.0
  %5739 = vmatpush2.xpose.msra.mxu0 0.0
  %5740 = vmatprep.subr.mxu0 0.0
  %5741 = vmatpush2.xpose.msra.mxu0 0.0
  %5742 = vmatprep.subr.mxu0 0.0
  %5743 = vmatpush2.xpose.msra.mxu0 0.0
  %5744 = vmatprep.subr.mxu0 0.0
  %5745 = vmatpush2.xpose.msra.mxu0 0.0
  %5746 = vmatprep.mubr.f32.mxu0 0.0
  %5747 = vmatmul.mubr.f32.gmra.mxu0 %v5677
  %v5748 = vpop.f32.mrf.mxu0
  %v5749 = vadd.f32 0.0, %v5748
  %v5750 = vpop.f32.mrf.mxu0
  %5751 = vmatprep.mubr.f32.mxu0 0.0
  %5752 = vmatmul.mubr.f32.gmra.mxu0 %v5680
  %v5753 = vpop.f32.mrf.mxu0
  %v5754 = vadd.f32 0.0, %v5753
  %v5755 = vpop.f32.mrf.mxu0
  %5756 = vdwg.mxu0
  %v5757 = vld [vmem:[%s71] sm:$0xff]
  %v5758 = vld [vmem:[%s71 + $0x8] sm:$0xff]
  %vm5759 = vcmp.ne.s32.totalorder %v5757, 0
  %vm5760 = vcmp.ne.s32.totalorder %v5758, 0
  %v5761 = vsel %vm5759, 1, 0
  %v5762 = vsel %vm5760, 1, 0
  %v5763 = vcvt.s32.f32 %v5761
  %v5764 = vcvt.s32.f32 %v5762
  %v5765 = vlaneseq
  %v5766 = vand.u32 %v5765, 127
  %5767 = vset.pattern.permute.xlu0 0
  %5768 = vperm.xlu0 %5767, %v5757
  %v5769 = vpop.permute.xlu0 %5768
  %5770 = vset.pattern.permute.xlu0 0
  %5771 = vperm.xlu0 %5770, %v5758
  %v5772 = vpop.permute.xlu0 %5771
  %vm5773 = vcmp.eq.s32.totalorder %v5766, %v5769
  %vm5774 = vcmp.eq.s32.totalorder %v5766, %v5772
  %v5775 = vsel %vm5773, 1, 0
  %v5776 = vsel %vm5774, 1, 0
  %v5777 = vcvt.s32.f32 %v5775
  %v5778 = vcvt.s32.f32 %v5776
  %vm5779 = vcmask 7168
  %v5780 = vsel %vm5779, %v5763, 0.0
  %v5781 = vsel %vm5779, %v5764, 0.0
  %v5782 = vadd.f32 %v5780, %v5781
  %v5783 = vrot.slane %v5782, 4
  %v5784 = vadd.f32 %v5782, %v5783
  %v5785 = vrot.slane %v5784, 2
  %v5786 = vadd.f32 %v5784, %v5785
  %v5787 = vrot.slane %v5786, 1
  %v5788 = vadd.f32 %v5786, %v5787
  %v5789 = vmax.f32 %v5788, 1.0
  %v5790 = vrcp.pop %v5789
  %v5791 = vmul.f32 1.0, %v5790
  %v5792 = vsel %vm2028, %v5668, -inf
  %5793 = vmax.xlane.f32.xlu0 %v5792
  %v5794 = vpop.xlane.xlu0 %5793
  %v5795 = vsel %vm2028, %v5673, -inf
  %5796 = vmax.xlane.f32.xlu0 %v5795
  %v5797 = vpop.xlane.xlu0 %5796
  %v5798 = vsub.f32 %v5668, %v5794
  %v5799 = vsub.f32 %v5673, %v5797
  %v5800 = vmul.f32 %v5798, 1.442695
  %v5801 = vpow.pop %v5800
  %v5802 = vmul.f32 %v5799, 1.442695
  %v5803 = vpow.pop %v5802
  %v5804 = vsel %vm2028, %v5801, 0.0
  %5805 = vadd.xlane.f32.xlu0 %v5804
  %v5806 = vpop.xlane.xlu0 %5805
  %v5807 = vsel %vm2028, %v5803, 0.0
  %5808 = vadd.xlane.f32.xlu0 %v5807
  %v5809 = vpop.xlane.xlu0 %5808
  %v5810 = vlog2.pop %v5806
  %v5811 = vmul.f32 %v5810, 0.6931472
  %v5812 = vlog2.pop %v5809
  %v5813 = vmul.f32 %v5812, 0.6931472
  %v5814 = vadd.f32 %v5811, %v5794
  %v5815 = vadd.f32 %v5813, %v5797
  %v5816 = vmul.f32 %v5668, %v5777
  %v5817 = vmul.f32 %v5673, %v5778
  %v5818 = vsel %vm2028, %v5816, 0.0
  %5819 = vadd.xlane.f32.xlu0 %v5818
  %v5820 = vpop.xlane.xlu0 %5819
  %v5821 = vsel %vm2028, %v5817, 0.0
  %5822 = vadd.xlane.f32.xlu0 %v5821
  %v5823 = vpop.xlane.xlu0 %5822
  %v5824 = vsub.f32 %v5814, %v5820
  %v5825 = vsub.f32 %v5815, %v5823
  %v5826 = vmul.f32 %v5763, %v5824
  %v5827 = vmul.f32 %v5764, %v5825
  %v5828 = vsel %vm5779, %v5826, 0.0
  %v5829 = vsel %vm5779, %v5827, 0.0
  %v5830 = vadd.f32 %v5828, %v5829
  %v5831 = vrot.slane %v5830, 4
  %v5832 = vadd.f32 %v5830, %v5831
  %v5833 = vrot.slane %v5832, 2
  %v5834 = vadd.f32 %v5832, %v5833
  %v5835 = vrot.slane %v5834, 1
  %v5836 = vadd.f32 %v5834, %v5835
  %v5837 = vmul.f32 %v5836, %v5791
  %v5838 = vsel %vm2028, %v5749, -inf
  %5839 = vmax.xlane.f32.xlu0 %v5838
  %v5840 = vpop.xlane.xlu0 %5839
  %v5841 = vsel %vm2028, %v5754, -inf
  %5842 = vmax.xlane.f32.xlu0 %v5841
  %v5843 = vpop.xlane.xlu0 %5842
  %v5844 = vsub.f32 %v5749, %v5840
  %v5845 = vsub.f32 %v5754, %v5843
  %v5846 = vmul.f32 %v5844, 1.442695
  %v5847 = vpow.pop %v5846
  %v5848 = vmul.f32 %v5845, 1.442695
  %v5849 = vpow.pop %v5848
  %v5850 = vsel %vm2028, %v5847, 0.0
  %5851 = vadd.xlane.f32.xlu0 %v5850
  %v5852 = vpop.xlane.xlu0 %5851
  %v5853 = vsel %vm2028, %v5849, 0.0
  %5854 = vadd.xlane.f32.xlu0 %v5853
  %v5855 = vpop.xlane.xlu0 %5854
  %v5856 = vlog2.pop %v5852
  %v5857 = vmul.f32 %v5856, 0.6931472
  %v5858 = vlog2.pop %v5855
  %v5859 = vmul.f32 %v5858, 0.6931472
  %v5860 = vadd.f32 %v5857, %v5840
  %v5861 = vadd.f32 %v5859, %v5843
  %v5862 = vmul.f32 %v5749, %v5777
  %v5863 = vmul.f32 %v5754, %v5778
  %v5864 = vsel %vm2028, %v5862, 0.0
  %5865 = vadd.xlane.f32.xlu0 %v5864
  %v5866 = vpop.xlane.xlu0 %5865
  %v5867 = vsel %vm2028, %v5863, 0.0
  %5868 = vadd.xlane.f32.xlu0 %v5867
  %v5869 = vpop.xlane.xlu0 %5868
  %v5870 = vsub.f32 %v5860, %v5866
  %v5871 = vsub.f32 %v5861, %v5869
  %v5872 = vmul.f32 %v5763, %v5870
  %v5873 = vmul.f32 %v5764, %v5871
  %v5874 = vsel %vm5779, %v5872, 0.0
  %v5875 = vsel %vm5779, %v5873, 0.0
  %v5876 = vadd.f32 %v5874, %v5875
  %v5877 = vrot.slane %v5876, 4
  %v5878 = vadd.f32 %v5876, %v5877
  %v5879 = vrot.slane %v5878, 2
  %v5880 = vadd.f32 %v5878, %v5879
  %v5881 = vrot.slane %v5880, 1
  %v5882 = vadd.f32 %v5880, %v5881
  %v5883 = vmul.f32 %v5882, %v5791
  %5885 = vrot.lane.b32.xlu0 %v5883, 1
  %v5886 = vpop.permute.xlu0 %5885
  %v5888 = vsel %vm5779, %v5837, %v5886
  %vm5889 = vcmask 8192
  %5890 = vst.msk [vmem:[%s73] sm:$0x1] %vm5889, %v5888
  // Predicated region
  $region146: #{forward.1} parent=0 // pred_check
    _
  $region147: #{forward.1} parent=0 // pred_check_branch
    %5892 = sbr.rel (0) target = $region149
  $region148: #{forward.1} parent=0 // pred_region
    _
  $region149: #{forward.1} parent=0 // pred_fallthru
    _
  // Predicated region
  $region150: #{forward.1} parent=0 // pred_check
    _
  $region151: #{forward.1} parent=0 // pred_check_branch
    %5894 = sbr.rel (0) target = $region153
  $region152: #{forward.1} parent=0 // pred_region
    _
  $region153: #{forward.1} parent=0 // pred_fallthru
    _

</llo_original>
